<compile_context>
chip_gen: v5e
topology: v5e:2x2
jax: 0.10.0
libtpu: 0.0.40
codegen_flags: <defaults>
</compile_context>

<pallas_src>
import functools

import jax
import jax.numpy as jnp
import numpy as np
from jax.experimental import pallas as pl
from jax.experimental.pallas import tpu as pltpu


_A_CHUNK = 512  # in-kernel A tiling width (bounds the live f32 att1/h chunk)


def _round_up(x, m):
    return ((x + m - 1) // m) * m


def _tpu_generation():
    try:
        kind = jax.devices()[0].device_kind.lower()
    except Exception:
        return None
    for tag, gen in (("v7", 7), ("7x", 7), ("v6", 6), ("v5", 5)):
        if tag in kind:
            return gen
    return None


def attention_kernel(enc_ref, att2_ref, weT_ref, wf_ref, awe_ref, alpha_ref,
                     *, num_pixels):
    # enc_ref:   (Bt, P_pad, E)   compute dtype (bf16 or f32)
    # att2_ref:  (Bt, A_pad)      f32  (= dec @ Wd^T + be + bd, A-padded)
    # weT_ref:   (E, A_pad)       compute dtype
    # wf_ref:    (1, A_pad)       f32
    # awe_ref:   (Bt, E)  f32     alpha_ref: (Bt, P_pad)  f32
    bt, p_pad, e_dim = enc_ref.shape
    a_pad = weT_ref.shape[1]

    enc = enc_ref[...]                                  # (Bt, P_pad, E)
    # Fold batch into the M dimension: one (Bt*P_pad, E) x (E, A_chunk) MXU
    # matmul per A-chunk (leading-dim merge is free: P_pad % 8 == 0).
    enc2 = enc.reshape(bt * p_pad, e_dim)
    att2 = att2_ref[...]                                # (Bt, A_pad) f32
    wf = wf_ref[...]                                    # (1, A_pad)  f32

    # Chunk the A axis so the live f32 att1/h intermediate stays bounded even
    # for large attention_dim (vreg / VMEM pressure).
    score = jnp.zeros((bt, p_pad), jnp.float32)
    for c0 in range(0, a_pad, _A_CHUNK):
        cs = min(_A_CHUNK, a_pad - c0)
        att1_c = jnp.dot(enc2, weT_ref[:, c0:c0 + cs],
                         preferred_element_type=jnp.float32)      # (Bt*P_pad, cs)
        h_c = jnp.maximum(att1_c.reshape(bt, p_pad, cs)
                          + att2[:, None, c0:c0 + cs], 0.0)       # (Bt, P_pad, cs)
        # full_att projection as a lane reduction: scores stay (Bt, P_pad),
        # lane-dense over P (no N=1 matmul, no lane reshuffle).
        score = score + jnp.sum(h_c * wf[:, None, c0:c0 + cs], axis=-1)

    # NOTE: full_att.bias is a per-logit constant; it cancels in the softmax
    # and neither output depends on it, so it is intentionally dropped.

    # Mask the logits of zero-padded pixels before the softmax.
    if p_pad != num_pixels:
        lane = jax.lax.broadcasted_iota(jnp.int32, (bt, p_pad), 1)
        score = jnp.where(lane < num_pixels, score, -1e30)

    # Max-stabilized softmax over the pixel (lane) axis; EUP reciprocal plus
    # one Newton step so rows sum to 1 at ~f32 precision.
    m = jnp.max(score, axis=-1, keepdims=True)
    e = jnp.exp(score - m)
    denom = jnp.sum(e, axis=-1, keepdims=True)
    inv = pl.reciprocal(denom, approx=True)
    inv = inv * (2.0 - denom * inv)
    alpha = e * inv                                     # (Bt, P_pad) f32
    alpha_ref[...] = alpha

    # Attention-weighted encoding: VPU multiply + sublane reduction over the
    # pixel axis (E stays lane-dense; no M=1 MXU matmuls).  alpha stays f32.
    awe = jnp.sum(enc.astype(jnp.float32) * alpha[:, :, None], axis=1)  # (Bt, E)
    awe_ref[...] = awe


def _choose_block_batch(B, P_pad, E, A_pad, enc_itemsize, gen, block_b=None):
    """Pick the batch block size and a matching scoped-VMEM limit."""
    # Generation-aware scoped VMEM: v7x has 64 MiB / TC (default scoped 32),
    # v5e/v6e have 128 MiB physical (default scoped 16 / 32 MiB).
    if gen == 7:
        vmem_limit = 48 * 1024 * 1024
    elif gen in (5, 6):
        vmem_limit = 64 * 1024 * 1024
    else:
        vmem_limit = 40 * 1024 * 1024
    budget = int(vmem_limit * 0.72)     # headroom for compiler scratch

    a_chunk = min(A_pad, _A_CHUNK)
    # Resident weight blocks (constant index maps, auto double-buffered).
    fixed = 2 * (E * A_pad * enc_itemsize + A_pad * 4)
    # Per-batch-element bytes: double-buffered enc/att2 inputs, double-buffered
    # f32 outputs, plus f32 intermediates (att1 + h chunk, scores, exp, alpha,
    # f32 enc copy for awe, awe).
    per_elem = (2 * P_pad * E * enc_itemsize
                + 2 * A_pad * 4
                + 2 * (E + P_pad) * 4
                + 2 * P_pad * a_chunk * 4
                + P_pad * E * 4
                + 4 * P_pad * 4 + 2 * E * 4)

    b8 = _round_up(B, 8)
    if block_b is not None:
        return max(8, _round_up(block_b, 8)), vmem_limit

    bt = max(1, (budget - fixed) // per_elem)
    bt = min(bt, b8)
    if gen == 7 and b8 >= 16:
        bt = min(bt, b8 // 2)           # >= 2 grid steps: both TCs get work
    bt = max(8, (bt // 8) * 8)          # (8,128) second-minor rule on outputs
    return bt, vmem_limit


def attention_forward(encoder_out, decoder_hidden, params,
                      *, compute_dtype=jnp.bfloat16, block_b=None):
    """encoder_out: (B, P, E), decoder_hidden: (B, D). Returns (awe, alpha)."""
    B, P, E = encoder_out.shape
    we, be, wd, bd, wf, bf = params
    A = we.shape[0]
    del bf  # cancels in the softmax; neither output depends on it.

    gen = _tpu_generation()
    a_mult = 128 if gen == 5 else 256   # MXU N is 128-wide on v5e, 256 on v6e/v7x
    A_pad = _round_up(A, a_mult)
    P_pad = _round_up(P, 128)

    # Decoder projection hoisted to XLA (M = B is too small to fill the MXU
    # inside the kernel); fused encoder+decoder bias; zero-padded A columns.
    att2 = (decoder_hidden.astype(jnp.float32) @ wd.T.astype(jnp.float32)
            + (be + bd).astype(jnp.float32))                       # (B, A)
    att2 = jnp.pad(att2, ((0, 0), (0, A_pad - A)))

    # One-time weight prep: pre-transposed, A-padded (zero columns contribute
    # nothing: relu(0) * 0 == 0).
    weT = jnp.pad(we.T.astype(compute_dtype), ((0, 0), (0, A_pad - A)))   # (E, A_pad)
    wf_row = jnp.pad(wf.reshape(1, A).astype(jnp.float32),
                     ((0, 0), (0, A_pad - A)))                            # (1, A_pad)

    enc = encoder_out.astype(compute_dtype)
    if P_pad != P:
        enc = jnp.pad(enc, ((0, 0), (0, P_pad - P), (0, 0)))

    itemsize = jnp.dtype(compute_dtype).itemsize
    bt, vmem_limit = _choose_block_batch(B, P_pad, E, A_pad, itemsize, gen, block_b)
    b_pad = _round_up(B, bt)
    if b_pad != B:
        enc = jnp.pad(enc, ((0, b_pad - B), (0, 0), (0, 0)))
        att2 = jnp.pad(att2, ((0, b_pad - B), (0, 0)))

    grid = (b_pad // bt,)
    kernel = functools.partial(attention_kernel, num_pixels=P)

    # Further opt (not applied): pipeline_mode=pl.Buffered(1) on the constant
    # weight blocks would reclaim one dead pipeline buffer of VMEM each.
    awe, alpha = pl.pallas_call(
        kernel,
        out_shape=(
            jax.ShapeDtypeStruct((b_pad, E), jnp.float32),
            jax.ShapeDtypeStruct((b_pad, P_pad), jnp.float32),
        ),
        grid_spec=pltpu.PrefetchScalarGridSpec(
            num_scalar_prefetch=0,
            grid=grid,
            in_specs=[
                pl.BlockSpec((bt, P_pad, E), lambda b: (b, 0, 0)),   # encoder tile
                pl.BlockSpec((bt, A_pad), lambda b: (b, 0)),         # att2 block
                pl.BlockSpec((E, A_pad), lambda b: (0, 0)),          # We^T (resident)
                pl.BlockSpec((1, A_pad), lambda b: (0, 0)),          # Wf   (resident)
            ],
            out_specs=[
                pl.BlockSpec((bt, E), lambda b: (b, 0)),             # weighted encoding
                pl.BlockSpec((bt, P_pad), lambda b: (b, 0)),         # alpha
            ],
        ),
        compiler_params=pltpu.CompilerParams(
            dimension_semantics=("parallel",),
            vmem_limit_bytes=vmem_limit),
    )(enc, att2, weT, wf_row)

    return awe[:B], alpha[:B, :P]


def attention_reference(encoder_out, decoder_hidden, params):
    we, be, wd, bd, wf, bf = params
    att1 = encoder_out @ we.T + be                              # (B, P, A)
    att2 = decoder_hidden @ wd.T + bd                           # (B, A)
    h = jnp.maximum(att1 + att2[:, None, :], 0.0)               # (B, P, A)
    att = (h @ wf.T + bf)[..., 0]                               # (B, P)
    alpha = jax.nn.softmax(att, axis=1)                         # (B, P)
    awe = jnp.sum(encoder_out * alpha[..., None], axis=1)       # (B, E)
    return awe, alpha


if __name__ == "__main__":
    # Small, deterministic configuration.  P and A are intentionally NOT
    # multiples of 128/256 so the padding/masking paths are exercised.
    B, P = 16, 16                # batch, num_pixels
    E, D, A = 32, 24, 48         # encoder_dim, decoder_dim, attention_dim

    key = jax.random.PRNGKey(0)
    k_enc, k_dec, k_we, k_be, k_wd, k_bd, k_wf, k_bf = jax.random.split(key, 8)

    encoder_out = jax.random.normal(k_enc, (B, P, E), dtype=jnp.float32)
    decoder_hidden = jax.random.normal(k_dec, (B, D), dtype=jnp.float32)

    # Deterministic parameter init (PyTorch Linear layout: weight (out, in)).
    params = (
        jax.random.normal(k_we, (A, E), dtype=jnp.float32) * 0.1,   # encoder_att.weight
        jax.random.normal(k_be, (A,), dtype=jnp.float32) * 0.1,     # encoder_att.bias
        jax.random.normal(k_wd, (A, D), dtype=jnp.float32) * 0.1,   # decoder_att.weight
        jax.random.normal(k_bd, (A,), dtype=jnp.float32) * 0.1,     # decoder_att.bias
        jax.random.normal(k_wf, (1, A), dtype=jnp.float32) * 0.1,   # full_att.weight
        jax.random.normal(k_bf, (1,), dtype=jnp.float32) * 0.1,     # full_att.bias
    )

    awe_ref, alpha_ref = attention_reference(encoder_out, decoder_hidden, params)

    # f32 compute path: tight check.
    awe, alpha = jax.block_until_ready(
        attention_forward(encoder_out, decoder_hidden, params,
                          compute_dtype=jnp.float32))
    assert awe.shape == (B, E) and alpha.shape == (B, P)
    np.testing.assert_allclose(np.asarray(alpha), np.asarray(alpha_ref),
                               rtol=1e-3, atol=1e-5)
    np.testing.assert_allclose(np.asarray(awe), np.asarray(awe_ref),
                               rtol=1e-3, atol=1e-5)

    # Default bf16 encoder/weight path: looser check (bf16 rounding on enc/We).
    awe_bf, alpha_bf = jax.block_until_ready(
        attention_forward(encoder_out, decoder_hidden, params))
    assert awe_bf.shape == (B, E) and alpha_bf.shape == (B, P)
    np.testing.assert_allclose(np.asarray(alpha_bf).sum(axis=1),
                               np.ones(B, np.float32), rtol=0, atol=1e-3)
    np.testing.assert_allclose(np.asarray(alpha_bf), np.asarray(alpha_ref),
                               rtol=0, atol=1.5e-2)
    np.testing.assert_allclose(np.asarray(awe_bf), np.asarray(awe_ref),
                               rtol=0, atol=2e-2)

    print("KERNEL_OK")
</pallas_src>

<mosaic_0001>
module attributes {stable_mosaic.version = 11 : i64} {
  func.func @attention_kernel(%arg0: i32, %arg1: memref<16x128x32xf32, #tpu.memory_space<vmem>>, %arg2: memref<16x256xf32, #tpu.memory_space<vmem>>, %arg3: memref<32x256xf32, #tpu.memory_space<vmem>>, %arg4: memref<1x256xf32, #tpu.memory_space<vmem>>, %arg5: memref<16x32xf32, #tpu.memory_space<vmem>>, %arg6: memref<16x128xf32, #tpu.memory_space<vmem>>) attributes {dimension_semantics = [#tpu.dimension_semantics<parallel>], iteration_bounds = array<i64: 1>, scalar_prefetch = 0 : i64, scratch_operands = 0 : i64, tpu.core_type = #tpu.core_type<tc>, window_params = [{transform_indices = @transform_0, window_bounds = array<i64: 16, 128, 32>}, {transform_indices = @transform_1, window_bounds = array<i64: 16, 256>}, {pipeline_mode = #tpu.pipeline_mode<synchronous>, transform_indices = @transform_2, window_bounds = array<i64: 32, 256>}, {pipeline_mode = #tpu.pipeline_mode<synchronous>, transform_indices = @transform_3, window_bounds = array<i64: 1, 256>}, {transform_indices = @transform_4, window_bounds = array<i64: 16, 32>}, {transform_indices = @transform_5, window_bounds = array<i64: 16, 128>}]} {
    %c0 = arith.constant 0 : index
    %c0_0 = arith.constant 0 : index
    %c0_1 = arith.constant 0 : index
    %0 = vector.load %arg1[%c0, %c0_0, %c0_1] : memref<16x128x32xf32, #tpu.memory_space<vmem>>, vector<16x128x32xf32>
    %1 = vector.shape_cast %0 : vector<16x128x32xf32> to vector<2048x32xf32>
    %c0_2 = arith.constant 0 : index
    %c0_3 = arith.constant 0 : index
    %2 = vector.load %arg2[%c0_2, %c0_3] : memref<16x256xf32, #tpu.memory_space<vmem>>, vector<16x256xf32>
    %c0_4 = arith.constant 0 : index
    %c0_5 = arith.constant 0 : index
    %3 = vector.load %arg4[%c0_4, %c0_5] : memref<1x256xf32, #tpu.memory_space<vmem>>, vector<1x256xf32>
    %cst = arith.constant 0.000000e+00 : f32
    %4 = vector.broadcast %cst : f32 to vector<16x128xf32>
    %c0_6 = arith.constant 0 : index
    %c0_7 = arith.constant 0 : index
    %5 = vector.load %arg3[%c0_6, %c0_7] : memref<32x256xf32, #tpu.memory_space<vmem>>, vector<32x256xf32>
    %cst_8 = arith.constant dense<0.000000e+00> : vector<2048x256xf32>
    %6 = tpu.matmul %1, %5, %cst_8 {dimension_numbers = #tpu.dot_dimension_numbers<[1], [0], [0], [1], [0, 0, 1, 1], [], []>} : vector<2048x32xf32>, vector<32x256xf32>, vector<2048x256xf32> -> vector<2048x256xf32>
    %7 = vector.shape_cast %6 : vector<2048x256xf32> to vector<16x128x256xf32>
    %8 = vector.shape_cast %2 : vector<16x256xf32> to vector<16x1x256xf32>
    %9 = vector.broadcast %8 : vector<16x1x256xf32> to vector<16x128x256xf32>
    %10 = arith.addf %7, %9 : vector<16x128x256xf32>
    %cst_9 = arith.constant 0.000000e+00 : f32
    %11 = vector.broadcast %cst_9 : f32 to vector<16x128x256xf32>
    %12 = arith.maximumf %10, %11 : vector<16x128x256xf32>
    %13 = vector.shape_cast %3 : vector<1x256xf32> to vector<1x1x256xf32>
    %14 = vector.broadcast %13 : vector<1x1x256xf32> to vector<16x128x256xf32>
    %15 = arith.mulf %12, %14 : vector<16x128x256xf32>
    %cst_10 = arith.constant dense<0.000000e+00> : vector<16x128xf32>
    %16 = vector.multi_reduction <add>, %15, %cst_10 [2] : vector<16x128x256xf32> to vector<16x128xf32>
    %17 = arith.addf %4, %16 : vector<16x128xf32>
    %18 = tpu.iota {dimensions = array<i32: 1>} : vector<16x128xi32>
    %c16_i32 = arith.constant 16 : i32
    %19 = vector.broadcast %c16_i32 : i32 to vector<16x128xi32>
    %20 = arith.cmpi slt, %18, %19 : vector<16x128xi32>
    %cst_11 = arith.constant -1.000000e+30 : f32
    %21 = vector.broadcast %cst_11 : f32 to vector<16x128xf32>
    %22 = arith.select %20, %17, %21 : vector<16x128xi1>, vector<16x128xf32>
    %cst_12 = arith.constant dense<0xFF800000> : vector<16xf32>
    %23 = vector.multi_reduction <maximumf>, %22, %cst_12 [1] : vector<16x128xf32> to vector<16xf32>
    %24 = vector.shape_cast %23 : vector<16xf32> to vector<16x1xf32>
    %25 = vector.broadcast %24 : vector<16x1xf32> to vector<16x128xf32>
    %26 = arith.subf %22, %25 : vector<16x128xf32>
    %27 = math.exp %26 : vector<16x128xf32>
    %cst_13 = arith.constant dense<0.000000e+00> : vector<16xf32>
    %28 = vector.multi_reduction <add>, %27, %cst_13 [1] : vector<16x128xf32> to vector<16xf32>
    %29 = vector.shape_cast %28 : vector<16xf32> to vector<16x1xf32>
    %30 = tpu.reciprocal %29 {approx = true} : vector<16x1xf32> -> vector<16x1xf32>
    %31 = arith.mulf %29, %30 : vector<16x1xf32>
    %cst_14 = arith.constant 2.000000e+00 : f32
    %32 = vector.broadcast %cst_14 : f32 to vector<16x1xf32>
    %33 = arith.subf %32, %31 : vector<16x1xf32>
    %34 = arith.mulf %30, %33 : vector<16x1xf32>
    %35 = vector.broadcast %34 : vector<16x1xf32> to vector<16x128xf32>
    %36 = arith.mulf %27, %35 : vector<16x128xf32>
    %c0_15 = arith.constant 0 : index
    %c0_16 = arith.constant 0 : index
    %37 = vector.load %arg6[%c0_15, %c0_16] : memref<16x128xf32, #tpu.memory_space<vmem>>, vector<16x128xf32>
    tpu.vector_store %arg6[%c0_15, %c0_16], %36 {strides = array<i32>} : memref<16x128xf32, #tpu.memory_space<vmem>>, vector<16x128xf32>,
    %38 = vector.shape_cast %36 : vector<16x128xf32> to vector<16x128x1xf32>
    %39 = vector.broadcast %38 : vector<16x128x1xf32> to vector<16x128x32xf32>
    %40 = arith.mulf %0, %39 : vector<16x128x32xf32>
    %cst_17 = arith.constant dense<0.000000e+00> : vector<16x32xf32>
    %41 = vector.multi_reduction <add>, %40, %cst_17 [1] : vector<16x128x32xf32> to vector<16x32xf32>
    %c0_18 = arith.constant 0 : index
    %c0_19 = arith.constant 0 : index
    %42 = vector.load %arg5[%c0_18, %c0_19] : memref<16x32xf32, #tpu.memory_space<vmem>>, vector<16x32xf32>
    tpu.vector_store %arg5[%c0_18, %c0_19], %41 {strides = array<i32>} : memref<16x32xf32, #tpu.memory_space<vmem>>, vector<16x32xf32>,
    return
  }
  func.func @transform_0(%arg0: i32) -> (i32, i32, i32) {
    %c0_i32 = arith.constant 0 : i32
    %c0_i32_0 = arith.constant 0 : i32
    %c0_i32_1 = arith.constant 0 : i32
    return %arg0, %c0_i32, %c0_i32_0 : i32, i32, i32
  }
  func.func @transform_1(%arg0: i32) -> (i32, i32) {
    %c0_i32 = arith.constant 0 : i32
    %c0_i32_0 = arith.constant 0 : i32
    return %arg0, %c0_i32 : i32, i32
  }
  func.func @transform_2(%arg0: i32) -> (i32, i32) {
    %c0_i32 = arith.constant 0 : i32
    %c0_i32_0 = arith.constant 0 : i32
    %c0_i32_1 = arith.constant 0 : i32
    return %c0_i32, %c0_i32_0 : i32, i32
  }
  func.func @transform_3(%arg0: i32) -> (i32, i32) {
    %c0_i32 = arith.constant 0 : i32
    %c0_i32_0 = arith.constant 0 : i32
    %c0_i32_1 = arith.constant 0 : i32
    return %c0_i32, %c0_i32_0 : i32, i32
  }
  func.func @transform_4(%arg0: i32) -> (i32, i32) {
    %c0_i32 = arith.constant 0 : i32
    %c0_i32_0 = arith.constant 0 : i32
    return %arg0, %c0_i32 : i32, i32
  }
  func.func @transform_5(%arg0: i32) -> (i32, i32) {
    %c0_i32 = arith.constant 0 : i32
    %c0_i32_0 = arith.constant 0 : i32
    return %arg0, %c0_i32 : i32, i32
  }
}

</mosaic_0001>

<llo_original>
// kernel: tpu_custom_call.1
$region0: #{tpu_custom_call.1}
  #allocation0 [shape = 'u32[]', space=smem, size = 0x4, offset = 0x4, fixed_abs, tag = 'smem constant byte address 0x4 - core index']
  #allocation1 [shape = 'u32[72,128]{1,0:T(1,128)}', space=vmem, size = 0x9000, scoped, tag = 'internal scratch']
  %s0 = inlined_call_operand.vmem [shape: f32[16,128,32], index: 0, kind: input, shape index: {}]
  %s1 = inlined_call_operand.vmem [shape: f32[16,256], index: 1, kind: input, shape index: {}]
  %s2 = inlined_call_operand.vmem [shape: f32[32,256], index: 2, kind: input, shape index: {}]
  %s3 = inlined_call_operand.vmem [shape: f32[1,256], index: 3, kind: input, shape index: {}]
  %s4 = inlined_call_operand.hbm [shape: f32[16,32], index: 4, kind: output, shape index: {0}]
  %s5 = inlined_call_operand.hbm [shape: f32[16,128], index: 5, kind: output, shape index: {1}]
  %6 = xla_tuple %s4, %s5
  %s7 = sld [smem:[#allocation0]]
  $region34: #{tpu_custom_call.1} parent=0
    _
  %s9 = ssub.s32 1, %s7
  %s10 = scalar_select 0, %s9, %s7
  $region1: #{tpu_custom_call.1} parent=0
    #allocation2 [shape = 'u8[8192]{0}', space=vmem, size = 0x2000, scoped, tag = 'output window, operand 0, single buffered']
    #allocation3 [shape = 's32[1]{0}', space=sflag, size = 0x4, scoped, tag = 'scoped memory for tpu_custom_call.1']
    #allocation4 [shape = 'u8[8192]{0}', space=vmem, size = 0x2000, scoped, tag = 'output window, operand 1, single buffered']
    #allocation5 [shape = 's32[1]{0}', space=sflag, size = 0x4, scoped, tag = 'scoped memory for tpu_custom_call.1']
    %11 = vsyncpa [#allocation3], 0
    %12 = vsyncpa [#allocation5], 0
    // Predicated region
    $region2: #{tpu_custom_call.1} parent=1 // pred_check
      _
    $region3: #{tpu_custom_call.1} parent=1 // pred_check_branch
      %14 = sbr.rel (0) target = $region5
    $region4: #{tpu_custom_call.1} parent=1 // pred_region
      _
    $region5: #{tpu_custom_call.1} parent=1 // pred_fallthru
      _
    // Predicated region
    $region6: #{tpu_custom_call.1} parent=1 // pred_check
      _
    $region7: #{tpu_custom_call.1} parent=1 // pred_check_branch
      %16 = sbr.rel (0) target = $region9
    $region8: #{tpu_custom_call.1} parent=1 // pred_region
      _
    $region9: #{tpu_custom_call.1} parent=1 // pred_fallthru
      _
    // Predicated region
    $region10: #{tpu_custom_call.1} parent=1 // pred_check
      _
    $region11: #{tpu_custom_call.1} parent=1 // pred_check_branch
      %18 = sbr.rel (0) target = $region13
    $region12: #{tpu_custom_call.1} parent=1 // pred_region
      _
    $region13: #{tpu_custom_call.1} parent=1 // pred_fallthru
      _
    // Predicated region
    $region14: #{tpu_custom_call.1} parent=1 // pred_check
      _
    $region15: #{tpu_custom_call.1} parent=1 // pred_check_branch
      %20 = sbr.rel (0) target = $region17
    $region16: #{tpu_custom_call.1} parent=1 // pred_region
      _
    $region17: #{tpu_custom_call.1} parent=1 // pred_fallthru
      _
    %v21 = vld [vmem:[%s0] sm:$0xff]
    %v22 = vld [vmem:[%s0 + $0x8] sm:$0xff]
    %v23 = vld [vmem:[%s0 + $0x10] sm:$0xff]
    %v24 = vld [vmem:[%s0 + $0x18] sm:$0xff]
    %v25 = vld [vmem:[%s0 + $0x20] sm:$0xff]
    %v26 = vld [vmem:[%s0 + $0x28] sm:$0xff]
    %v27 = vld [vmem:[%s0 + $0x30] sm:$0xff]
    %v28 = vld [vmem:[%s0 + $0x38] sm:$0xff]
    %v29 = vld [vmem:[%s0 + $0x40] sm:$0xff]
    %v30 = vld [vmem:[%s0 + $0x48] sm:$0xff]
    %v31 = vld [vmem:[%s0 + $0x50] sm:$0xff]
    %v32 = vld [vmem:[%s0 + $0x58] sm:$0xff]
    %v33 = vld [vmem:[%s0 + $0x60] sm:$0xff]
    %v34 = vld [vmem:[%s0 + $0x68] sm:$0xff]
    %v35 = vld [vmem:[%s0 + $0x70] sm:$0xff]
    %v36 = vld [vmem:[%s0 + $0x78] sm:$0xff]
    %v37 = vld [vmem:[%s0 + $0x80] sm:$0xff]
    %v38 = vld [vmem:[%s0 + $0x88] sm:$0xff]
    %v39 = vld [vmem:[%s0 + $0x90] sm:$0xff]
    %v40 = vld [vmem:[%s0 + $0x98] sm:$0xff]
    %v41 = vld [vmem:[%s0 + $0xa0] sm:$0xff]
    %v42 = vld [vmem:[%s0 + $0xa8] sm:$0xff]
    %v43 = vld [vmem:[%s0 + $0xb0] sm:$0xff]
    %v44 = vld [vmem:[%s0 + $0xb8] sm:$0xff]
    %v45 = vld [vmem:[%s0 + $0xc0] sm:$0xff]
    %v46 = vld [vmem:[%s0 + $0xc8] sm:$0xff]
    %v47 = vld [vmem:[%s0 + $0xd0] sm:$0xff]
    %v48 = vld [vmem:[%s0 + $0xd8] sm:$0xff]
    %v49 = vld [vmem:[%s0 + $0xe0] sm:$0xff]
    %v50 = vld [vmem:[%s0 + $0xe8] sm:$0xff]
    %v51 = vld [vmem:[%s0 + $0xf0] sm:$0xff]
    %v52 = vld [vmem:[%s0 + $0xf8] sm:$0xff]
    %v53 = vld [vmem:[%s0 + $0x100] sm:$0xff]
    %v54 = vld [vmem:[%s0 + $0x108] sm:$0xff]
    %v55 = vld [vmem:[%s0 + $0x110] sm:$0xff]
    %v56 = vld [vmem:[%s0 + $0x118] sm:$0xff]
    %v57 = vld [vmem:[%s0 + $0x120] sm:$0xff]
    %v58 = vld [vmem:[%s0 + $0x128] sm:$0xff]
    %v59 = vld [vmem:[%s0 + $0x130] sm:$0xff]
    %v60 = vld [vmem:[%s0 + $0x138] sm:$0xff]
    %v61 = vld [vmem:[%s0 + $0x140] sm:$0xff]
    %v62 = vld [vmem:[%s0 + $0x148] sm:$0xff]
    %v63 = vld [vmem:[%s0 + $0x150] sm:$0xff]
    %v64 = vld [vmem:[%s0 + $0x158] sm:$0xff]
    %v65 = vld [vmem:[%s0 + $0x160] sm:$0xff]
    %v66 = vld [vmem:[%s0 + $0x168] sm:$0xff]
    %v67 = vld [vmem:[%s0 + $0x170] sm:$0xff]
    %v68 = vld [vmem:[%s0 + $0x178] sm:$0xff]
    %v69 = vld [vmem:[%s0 + $0x180] sm:$0xff]
    %v70 = vld [vmem:[%s0 + $0x188] sm:$0xff]
    %v71 = vld [vmem:[%s0 + $0x190] sm:$0xff]
    %v72 = vld [vmem:[%s0 + $0x198] sm:$0xff]
    %v73 = vld [vmem:[%s0 + $0x1a0] sm:$0xff]
    %v74 = vld [vmem:[%s0 + $0x1a8] sm:$0xff]
    %v75 = vld [vmem:[%s0 + $0x1b0] sm:$0xff]
    %v76 = vld [vmem:[%s0 + $0x1b8] sm:$0xff]
    %v77 = vld [vmem:[%s0 + $0x1c0] sm:$0xff]
    %v78 = vld [vmem:[%s0 + $0x1c8] sm:$0xff]
    %v79 = vld [vmem:[%s0 + $0x1d0] sm:$0xff]
    %v80 = vld [vmem:[%s0 + $0x1d8] sm:$0xff]
    %v81 = vld [vmem:[%s0 + $0x1e0] sm:$0xff]
    %v82 = vld [vmem:[%s0 + $0x1e8] sm:$0xff]
    %v83 = vld [vmem:[%s0 + $0x1f0] sm:$0xff]
    %v84 = vld [vmem:[%s0 + $0x1f8] sm:$0xff]
    %v85 = vld [vmem:[%s0 + $0x200] sm:$0xff]
    %v86 = vld [vmem:[%s0 + $0x208] sm:$0xff]
    %v87 = vld [vmem:[%s0 + $0x210] sm:$0xff]
    %v88 = vld [vmem:[%s0 + $0x218] sm:$0xff]
    %v89 = vld [vmem:[%s0 + $0x220] sm:$0xff]
    %v90 = vld [vmem:[%s0 + $0x228] sm:$0xff]
    %v91 = vld [vmem:[%s0 + $0x230] sm:$0xff]
    %v92 = vld [vmem:[%s0 + $0x238] sm:$0xff]
    %v93 = vld [vmem:[%s0 + $0x240] sm:$0xff]
    %v94 = vld [vmem:[%s0 + $0x248] sm:$0xff]
    %v95 = vld [vmem:[%s0 + $0x250] sm:$0xff]
    %v96 = vld [vmem:[%s0 + $0x258] sm:$0xff]
    %v97 = vld [vmem:[%s0 + $0x260] sm:$0xff]
    %v98 = vld [vmem:[%s0 + $0x268] sm:$0xff]
    %v99 = vld [vmem:[%s0 + $0x270] sm:$0xff]
    %v100 = vld [vmem:[%s0 + $0x278] sm:$0xff]
    %v101 = vld [vmem:[%s0 + $0x280] sm:$0xff]
    %v102 = vld [vmem:[%s0 + $0x288] sm:$0xff]
    %v103 = vld [vmem:[%s0 + $0x290] sm:$0xff]
    %v104 = vld [vmem:[%s0 + $0x298] sm:$0xff]
    %v105 = vld [vmem:[%s0 + $0x2a0] sm:$0xff]
    %v106 = vld [vmem:[%s0 + $0x2a8] sm:$0xff]
    %v107 = vld [vmem:[%s0 + $0x2b0] sm:$0xff]
    %v108 = vld [vmem:[%s0 + $0x2b8] sm:$0xff]
    %v109 = vld [vmem:[%s0 + $0x2c0] sm:$0xff]
    %v110 = vld [vmem:[%s0 + $0x2c8] sm:$0xff]
    %v111 = vld [vmem:[%s0 + $0x2d0] sm:$0xff]
    %v112 = vld [vmem:[%s0 + $0x2d8] sm:$0xff]
    %v113 = vld [vmem:[%s0 + $0x2e0] sm:$0xff]
    %v114 = vld [vmem:[%s0 + $0x2e8] sm:$0xff]
    %v115 = vld [vmem:[%s0 + $0x2f0] sm:$0xff]
    %v116 = vld [vmem:[%s0 + $0x2f8] sm:$0xff]
    %v117 = vld [vmem:[%s0 + $0x300] sm:$0xff]
    %v118 = vld [vmem:[%s0 + $0x308] sm:$0xff]
    %v119 = vld [vmem:[%s0 + $0x310] sm:$0xff]
    %v120 = vld [vmem:[%s0 + $0x318] sm:$0xff]
    %v121 = vld [vmem:[%s0 + $0x320] sm:$0xff]
    %v122 = vld [vmem:[%s0 + $0x328] sm:$0xff]
    %v123 = vld [vmem:[%s0 + $0x330] sm:$0xff]
    %v124 = vld [vmem:[%s0 + $0x338] sm:$0xff]
    %v125 = vld [vmem:[%s0 + $0x340] sm:$0xff]
    %v126 = vld [vmem:[%s0 + $0x348] sm:$0xff]
    %v127 = vld [vmem:[%s0 + $0x350] sm:$0xff]
    %v128 = vld [vmem:[%s0 + $0x358] sm:$0xff]
    %v129 = vld [vmem:[%s0 + $0x360] sm:$0xff]
    %v130 = vld [vmem:[%s0 + $0x368] sm:$0xff]
    %v131 = vld [vmem:[%s0 + $0x370] sm:$0xff]
    %v132 = vld [vmem:[%s0 + $0x378] sm:$0xff]
    %v133 = vld [vmem:[%s0 + $0x380] sm:$0xff]
    %v134 = vld [vmem:[%s0 + $0x388] sm:$0xff]
    %v135 = vld [vmem:[%s0 + $0x390] sm:$0xff]
    %v136 = vld [vmem:[%s0 + $0x398] sm:$0xff]
    %v137 = vld [vmem:[%s0 + $0x3a0] sm:$0xff]
    %v138 = vld [vmem:[%s0 + $0x3a8] sm:$0xff]
    %v139 = vld [vmem:[%s0 + $0x3b0] sm:$0xff]
    %v140 = vld [vmem:[%s0 + $0x3b8] sm:$0xff]
    %v141 = vld [vmem:[%s0 + $0x3c0] sm:$0xff]
    %v142 = vld [vmem:[%s0 + $0x3c8] sm:$0xff]
    %v143 = vld [vmem:[%s0 + $0x3d0] sm:$0xff]
    %v144 = vld [vmem:[%s0 + $0x3d8] sm:$0xff]
    %v145 = vld [vmem:[%s0 + $0x3e0] sm:$0xff]
    %v146 = vld [vmem:[%s0 + $0x3e8] sm:$0xff]
    %v147 = vld [vmem:[%s0 + $0x3f0] sm:$0xff]
    %v148 = vld [vmem:[%s0 + $0x3f8] sm:$0xff]
    %v149 = vld [vmem:[%s0 + $0x400] sm:$0xff]
    %v150 = vld [vmem:[%s0 + $0x408] sm:$0xff]
    %v151 = vld [vmem:[%s0 + $0x410] sm:$0xff]
    %v152 = vld [vmem:[%s0 + $0x418] sm:$0xff]
    %v153 = vld [vmem:[%s0 + $0x420] sm:$0xff]
    %v154 = vld [vmem:[%s0 + $0x428] sm:$0xff]
    %v155 = vld [vmem:[%s0 + $0x430] sm:$0xff]
    %v156 = vld [vmem:[%s0 + $0x438] sm:$0xff]
    %v157 = vld [vmem:[%s0 + $0x440] sm:$0xff]
    %v158 = vld [vmem:[%s0 + $0x448] sm:$0xff]
    %v159 = vld [vmem:[%s0 + $0x450] sm:$0xff]
    %v160 = vld [vmem:[%s0 + $0x458] sm:$0xff]
    %v161 = vld [vmem:[%s0 + $0x460] sm:$0xff]
    %v162 = vld [vmem:[%s0 + $0x468] sm:$0xff]
    %v163 = vld [vmem:[%s0 + $0x470] sm:$0xff]
    %v164 = vld [vmem:[%s0 + $0x478] sm:$0xff]
    %v165 = vld [vmem:[%s0 + $0x480] sm:$0xff]
    %v166 = vld [vmem:[%s0 + $0x488] sm:$0xff]
    %v167 = vld [vmem:[%s0 + $0x490] sm:$0xff]
    %v168 = vld [vmem:[%s0 + $0x498] sm:$0xff]
    %v169 = vld [vmem:[%s0 + $0x4a0] sm:$0xff]
    %v170 = vld [vmem:[%s0 + $0x4a8] sm:$0xff]
    %v171 = vld [vmem:[%s0 + $0x4b0] sm:$0xff]
    %v172 = vld [vmem:[%s0 + $0x4b8] sm:$0xff]
    %v173 = vld [vmem:[%s0 + $0x4c0] sm:$0xff]
    %v174 = vld [vmem:[%s0 + $0x4c8] sm:$0xff]
    %v175 = vld [vmem:[%s0 + $0x4d0] sm:$0xff]
    %v176 = vld [vmem:[%s0 + $0x4d8] sm:$0xff]
    %v177 = vld [vmem:[%s0 + $0x4e0] sm:$0xff]
    %v178 = vld [vmem:[%s0 + $0x4e8] sm:$0xff]
    %v179 = vld [vmem:[%s0 + $0x4f0] sm:$0xff]
    %v180 = vld [vmem:[%s0 + $0x4f8] sm:$0xff]
    %v181 = vld [vmem:[%s0 + $0x500] sm:$0xff]
    %v182 = vld [vmem:[%s0 + $0x508] sm:$0xff]
    %v183 = vld [vmem:[%s0 + $0x510] sm:$0xff]
    %v184 = vld [vmem:[%s0 + $0x518] sm:$0xff]
    %v185 = vld [vmem:[%s0 + $0x520] sm:$0xff]
    %v186 = vld [vmem:[%s0 + $0x528] sm:$0xff]
    %v187 = vld [vmem:[%s0 + $0x530] sm:$0xff]
    %v188 = vld [vmem:[%s0 + $0x538] sm:$0xff]
    %v189 = vld [vmem:[%s0 + $0x540] sm:$0xff]
    %v190 = vld [vmem:[%s0 + $0x548] sm:$0xff]
    %v191 = vld [vmem:[%s0 + $0x550] sm:$0xff]
    %v192 = vld [vmem:[%s0 + $0x558] sm:$0xff]
    %v193 = vld [vmem:[%s0 + $0x560] sm:$0xff]
    %v194 = vld [vmem:[%s0 + $0x568] sm:$0xff]
    %v195 = vld [vmem:[%s0 + $0x570] sm:$0xff]
    %v196 = vld [vmem:[%s0 + $0x578] sm:$0xff]
    %v197 = vld [vmem:[%s0 + $0x580] sm:$0xff]
    %v198 = vld [vmem:[%s0 + $0x588] sm:$0xff]
    %v199 = vld [vmem:[%s0 + $0x590] sm:$0xff]
    %v200 = vld [vmem:[%s0 + $0x598] sm:$0xff]
    %v201 = vld [vmem:[%s0 + $0x5a0] sm:$0xff]
    %v202 = vld [vmem:[%s0 + $0x5a8] sm:$0xff]
    %v203 = vld [vmem:[%s0 + $0x5b0] sm:$0xff]
    %v204 = vld [vmem:[%s0 + $0x5b8] sm:$0xff]
    %v205 = vld [vmem:[%s0 + $0x5c0] sm:$0xff]
    %v206 = vld [vmem:[%s0 + $0x5c8] sm:$0xff]
    %v207 = vld [vmem:[%s0 + $0x5d0] sm:$0xff]
    %v208 = vld [vmem:[%s0 + $0x5d8] sm:$0xff]
    %v209 = vld [vmem:[%s0 + $0x5e0] sm:$0xff]
    %v210 = vld [vmem:[%s0 + $0x5e8] sm:$0xff]
    %v211 = vld [vmem:[%s0 + $0x5f0] sm:$0xff]
    %v212 = vld [vmem:[%s0 + $0x5f8] sm:$0xff]
    %v213 = vld [vmem:[%s0 + $0x600] sm:$0xff]
    %v214 = vld [vmem:[%s0 + $0x608] sm:$0xff]
    %v215 = vld [vmem:[%s0 + $0x610] sm:$0xff]
    %v216 = vld [vmem:[%s0 + $0x618] sm:$0xff]
    %v217 = vld [vmem:[%s0 + $0x620] sm:$0xff]
    %v218 = vld [vmem:[%s0 + $0x628] sm:$0xff]
    %v219 = vld [vmem:[%s0 + $0x630] sm:$0xff]
    %v220 = vld [vmem:[%s0 + $0x638] sm:$0xff]
    %v221 = vld [vmem:[%s0 + $0x640] sm:$0xff]
    %v222 = vld [vmem:[%s0 + $0x648] sm:$0xff]
    %v223 = vld [vmem:[%s0 + $0x650] sm:$0xff]
    %v224 = vld [vmem:[%s0 + $0x658] sm:$0xff]
    %v225 = vld [vmem:[%s0 + $0x660] sm:$0xff]
    %v226 = vld [vmem:[%s0 + $0x668] sm:$0xff]
    %v227 = vld [vmem:[%s0 + $0x670] sm:$0xff]
    %v228 = vld [vmem:[%s0 + $0x678] sm:$0xff]
    %v229 = vld [vmem:[%s0 + $0x680] sm:$0xff]
    %v230 = vld [vmem:[%s0 + $0x688] sm:$0xff]
    %v231 = vld [vmem:[%s0 + $0x690] sm:$0xff]
    %v232 = vld [vmem:[%s0 + $0x698] sm:$0xff]
    %v233 = vld [vmem:[%s0 + $0x6a0] sm:$0xff]
    %v234 = vld [vmem:[%s0 + $0x6a8] sm:$0xff]
    %v235 = vld [vmem:[%s0 + $0x6b0] sm:$0xff]
    %v236 = vld [vmem:[%s0 + $0x6b8] sm:$0xff]
    %v237 = vld [vmem:[%s0 + $0x6c0] sm:$0xff]
    %v238 = vld [vmem:[%s0 + $0x6c8] sm:$0xff]
    %v239 = vld [vmem:[%s0 + $0x6d0] sm:$0xff]
    %v240 = vld [vmem:[%s0 + $0x6d8] sm:$0xff]
    %v241 = vld [vmem:[%s0 + $0x6e0] sm:$0xff]
    %v242 = vld [vmem:[%s0 + $0x6e8] sm:$0xff]
    %v243 = vld [vmem:[%s0 + $0x6f0] sm:$0xff]
    %v244 = vld [vmem:[%s0 + $0x6f8] sm:$0xff]
    %v245 = vld [vmem:[%s0 + $0x700] sm:$0xff]
    %v246 = vld [vmem:[%s0 + $0x708] sm:$0xff]
    %v247 = vld [vmem:[%s0 + $0x710] sm:$0xff]
    %v248 = vld [vmem:[%s0 + $0x718] sm:$0xff]
    %v249 = vld [vmem:[%s0 + $0x720] sm:$0xff]
    %v250 = vld [vmem:[%s0 + $0x728] sm:$0xff]
    %v251 = vld [vmem:[%s0 + $0x730] sm:$0xff]
    %v252 = vld [vmem:[%s0 + $0x738] sm:$0xff]
    %v253 = vld [vmem:[%s0 + $0x740] sm:$0xff]
    %v254 = vld [vmem:[%s0 + $0x748] sm:$0xff]
    %v255 = vld [vmem:[%s0 + $0x750] sm:$0xff]
    %v256 = vld [vmem:[%s0 + $0x758] sm:$0xff]
    %v257 = vld [vmem:[%s0 + $0x760] sm:$0xff]
    %v258 = vld [vmem:[%s0 + $0x768] sm:$0xff]
    %v259 = vld [vmem:[%s0 + $0x770] sm:$0xff]
    %v260 = vld [vmem:[%s0 + $0x778] sm:$0xff]
    %v261 = vld [vmem:[%s0 + $0x780] sm:$0xff]
    %v262 = vld [vmem:[%s0 + $0x788] sm:$0xff]
    %v263 = vld [vmem:[%s0 + $0x790] sm:$0xff]
    %v264 = vld [vmem:[%s0 + $0x798] sm:$0xff]
    %v265 = vld [vmem:[%s0 + $0x7a0] sm:$0xff]
    %v266 = vld [vmem:[%s0 + $0x7a8] sm:$0xff]
    %v267 = vld [vmem:[%s0 + $0x7b0] sm:$0xff]
    %v268 = vld [vmem:[%s0 + $0x7b8] sm:$0xff]
    %v269 = vld [vmem:[%s0 + $0x7c0] sm:$0xff]
    %v270 = vld [vmem:[%s0 + $0x7c8] sm:$0xff]
    %v271 = vld [vmem:[%s0 + $0x7d0] sm:$0xff]
    %v272 = vld [vmem:[%s0 + $0x7d8] sm:$0xff]
    %v273 = vld [vmem:[%s0 + $0x7e0] sm:$0xff]
    %v274 = vld [vmem:[%s0 + $0x7e8] sm:$0xff]
    %v275 = vld [vmem:[%s0 + $0x7f0] sm:$0xff]
    %v276 = vld [vmem:[%s0 + $0x7f8] sm:$0xff]
    %v277 = vld [vmem:[%s1] sm:$0xff]
    %v278 = vld [vmem:[%s1 + $0x8] sm:$0xff]
    %v279 = vld [vmem:[%s1 + $0x10] sm:$0xff]
    %v280 = vld [vmem:[%s1 + $0x18] sm:$0xff]
    %v281 = vld [vmem:[%s3] sm:$0x3]
    %v282 = vld [vmem:[%s2] sm:$0xff]
    %v283 = vld [vmem:[%s2 + $0x8] sm:$0xff]
    %v284 = vld [vmem:[%s2 + $0x10] sm:$0xff]
    %v285 = vld [vmem:[%s2 + $0x18] sm:$0xff]
    %v286 = vld [vmem:[%s2 + $0x20] sm:$0xff]
    %v287 = vld [vmem:[%s2 + $0x28] sm:$0xff]
    %v288 = vld [vmem:[%s2 + $0x30] sm:$0xff]
    %v289 = vld [vmem:[%s2 + $0x38] sm:$0xff]
    %vm290 = vcmask 261120
    %v292 = vsel %vm290, %v21, 0
    %v295 = vsel %vm290, %v22, 0
    %v298 = vsel %vm290, %v23, 0
    %v301 = vsel %vm290, %v24, 0
    %v304 = vsel %vm290, %v25, 0
    %v307 = vsel %vm290, %v26, 0
    %v310 = vsel %vm290, %v27, 0
    %v313 = vsel %vm290, %v28, 0
    %v316 = vsel %vm290, %v29, 0
    %v319 = vsel %vm290, %v30, 0
    %v322 = vsel %vm290, %v31, 0
    %v325 = vsel %vm290, %v32, 0
    %v328 = vsel %vm290, %v33, 0
    %v331 = vsel %vm290, %v34, 0
    %v334 = vsel %vm290, %v35, 0
    %v337 = vsel %vm290, %v36, 0
    %v340 = vsel %vm290, %v37, 0
    %v343 = vsel %vm290, %v38, 0
    %v346 = vsel %vm290, %v39, 0
    %v349 = vsel %vm290, %v40, 0
    %v352 = vsel %vm290, %v41, 0
    %v355 = vsel %vm290, %v42, 0
    %v358 = vsel %vm290, %v43, 0
    %v361 = vsel %vm290, %v44, 0
    %v364 = vsel %vm290, %v45, 0
    %v367 = vsel %vm290, %v46, 0
    %v370 = vsel %vm290, %v47, 0
    %v373 = vsel %vm290, %v48, 0
    %v376 = vsel %vm290, %v49, 0
    %v379 = vsel %vm290, %v50, 0
    %v382 = vsel %vm290, %v51, 0
    %v385 = vsel %vm290, %v52, 0
    %v388 = vsel %vm290, %v53, 0
    %v391 = vsel %vm290, %v54, 0
    %v394 = vsel %vm290, %v55, 0
    %v397 = vsel %vm290, %v56, 0
    %v400 = vsel %vm290, %v57, 0
    %v403 = vsel %vm290, %v58, 0
    %v406 = vsel %vm290, %v59, 0
    %v409 = vsel %vm290, %v60, 0
    %v412 = vsel %vm290, %v61, 0
    %v415 = vsel %vm290, %v62, 0
    %v418 = vsel %vm290, %v63, 0
    %v421 = vsel %vm290, %v64, 0
    %v424 = vsel %vm290, %v65, 0
    %v427 = vsel %vm290, %v66, 0
    %v430 = vsel %vm290, %v67, 0
    %v433 = vsel %vm290, %v68, 0
    %v436 = vsel %vm290, %v69, 0
    %v439 = vsel %vm290, %v70, 0
    %v442 = vsel %vm290, %v71, 0
    %v445 = vsel %vm290, %v72, 0
    %v448 = vsel %vm290, %v73, 0
    %v451 = vsel %vm290, %v74, 0
    %v454 = vsel %vm290, %v75, 0
    %v457 = vsel %vm290, %v76, 0
    %v460 = vsel %vm290, %v77, 0
    %v463 = vsel %vm290, %v78, 0
    %v466 = vsel %vm290, %v79, 0
    %v469 = vsel %vm290, %v80, 0
    %v472 = vsel %vm290, %v81, 0
    %v475 = vsel %vm290, %v82, 0
    %v478 = vsel %vm290, %v83, 0
    %v481 = vsel %vm290, %v84, 0
    %v484 = vsel %vm290, %v85, 0
    %v487 = vsel %vm290, %v86, 0
    %v490 = vsel %vm290, %v87, 0
    %v493 = vsel %vm290, %v88, 0
    %v496 = vsel %vm290, %v89, 0
    %v499 = vsel %vm290, %v90, 0
    %v502 = vsel %vm290, %v91, 0
    %v505 = vsel %vm290, %v92, 0
    %v508 = vsel %vm290, %v93, 0
    %v511 = vsel %vm290, %v94, 0
    %v514 = vsel %vm290, %v95, 0
    %v517 = vsel %vm290, %v96, 0
    %v520 = vsel %vm290, %v97, 0
    %v523 = vsel %vm290, %v98, 0
    %v526 = vsel %vm290, %v99, 0
    %v529 = vsel %vm290, %v100, 0
    %v532 = vsel %vm290, %v101, 0
    %v535 = vsel %vm290, %v102, 0
    %v538 = vsel %vm290, %v103, 0
    %v541 = vsel %vm290, %v104, 0
    %v544 = vsel %vm290, %v105, 0
    %v547 = vsel %vm290, %v106, 0
    %v550 = vsel %vm290, %v107, 0
    %v553 = vsel %vm290, %v108, 0
    %v556 = vsel %vm290, %v109, 0
    %v559 = vsel %vm290, %v110, 0
    %v562 = vsel %vm290, %v111, 0
    %v565 = vsel %vm290, %v112, 0
    %v568 = vsel %vm290, %v113, 0
    %v571 = vsel %vm290, %v114, 0
    %v574 = vsel %vm290, %v115, 0
    %v577 = vsel %vm290, %v116, 0
    %v580 = vsel %vm290, %v117, 0
    %v583 = vsel %vm290, %v118, 0
    %v586 = vsel %vm290, %v119, 0
    %v589 = vsel %vm290, %v120, 0
    %v592 = vsel %vm290, %v121, 0
    %v595 = vsel %vm290, %v122, 0
    %v598 = vsel %vm290, %v123, 0
    %v601 = vsel %vm290, %v124, 0
    %v604 = vsel %vm290, %v125, 0
    %v607 = vsel %vm290, %v126, 0
    %v610 = vsel %vm290, %v127, 0
    %v613 = vsel %vm290, %v128, 0
    %v616 = vsel %vm290, %v129, 0
    %v619 = vsel %vm290, %v130, 0
    %v622 = vsel %vm290, %v131, 0
    %v625 = vsel %vm290, %v132, 0
    %v628 = vsel %vm290, %v133, 0
    %v631 = vsel %vm290, %v134, 0
    %v634 = vsel %vm290, %v135, 0
    %v637 = vsel %vm290, %v136, 0
    %v640 = vsel %vm290, %v137, 0
    %v643 = vsel %vm290, %v138, 0
    %v646 = vsel %vm290, %v139, 0
    %v649 = vsel %vm290, %v140, 0
    %v652 = vsel %vm290, %v141, 0
    %v655 = vsel %vm290, %v142, 0
    %v658 = vsel %vm290, %v143, 0
    %v661 = vsel %vm290, %v144, 0
    %v664 = vsel %vm290, %v145, 0
    %v667 = vsel %vm290, %v146, 0
    %v670 = vsel %vm290, %v147, 0
    %v673 = vsel %vm290, %v148, 0
    %v676 = vsel %vm290, %v149, 0
    %v679 = vsel %vm290, %v150, 0
    %v682 = vsel %vm290, %v151, 0
    %v685 = vsel %vm290, %v152, 0
    %v688 = vsel %vm290, %v153, 0
    %v691 = vsel %vm290, %v154, 0
    %v694 = vsel %vm290, %v155, 0
    %v697 = vsel %vm290, %v156, 0
    %v700 = vsel %vm290, %v157, 0
    %v703 = vsel %vm290, %v158, 0
    %v706 = vsel %vm290, %v159, 0
    %v709 = vsel %vm290, %v160, 0
    %v712 = vsel %vm290, %v161, 0
    %v715 = vsel %vm290, %v162, 0
    %v718 = vsel %vm290, %v163, 0
    %v721 = vsel %vm290, %v164, 0
    %v724 = vsel %vm290, %v165, 0
    %v727 = vsel %vm290, %v166, 0
    %v730 = vsel %vm290, %v167, 0
    %v733 = vsel %vm290, %v168, 0
    %v736 = vsel %vm290, %v169, 0
    %v739 = vsel %vm290, %v170, 0
    %v742 = vsel %vm290, %v171, 0
    %v745 = vsel %vm290, %v172, 0
    %v748 = vsel %vm290, %v173, 0
    %v751 = vsel %vm290, %v174, 0
    %v754 = vsel %vm290, %v175, 0
    %v757 = vsel %vm290, %v176, 0
    %v760 = vsel %vm290, %v177, 0
    %v763 = vsel %vm290, %v178, 0
    %v766 = vsel %vm290, %v179, 0
    %v769 = vsel %vm290, %v180, 0
    %v772 = vsel %vm290, %v181, 0
    %v775 = vsel %vm290, %v182, 0
    %v778 = vsel %vm290, %v183, 0
    %v781 = vsel %vm290, %v184, 0
    %v784 = vsel %vm290, %v185, 0
    %v787 = vsel %vm290, %v186, 0
    %v790 = vsel %vm290, %v187, 0
    %v793 = vsel %vm290, %v188, 0
    %v796 = vsel %vm290, %v189, 0
    %v799 = vsel %vm290, %v190, 0
    %v802 = vsel %vm290, %v191, 0
    %v805 = vsel %vm290, %v192, 0
    %v808 = vsel %vm290, %v193, 0
    %v811 = vsel %vm290, %v194, 0
    %v814 = vsel %vm290, %v195, 0
    %v817 = vsel %vm290, %v196, 0
    %v820 = vsel %vm290, %v197, 0
    %v823 = vsel %vm290, %v198, 0
    %v826 = vsel %vm290, %v199, 0
    %v829 = vsel %vm290, %v200, 0
    %v832 = vsel %vm290, %v201, 0
    %v835 = vsel %vm290, %v202, 0
    %v838 = vsel %vm290, %v203, 0
    %v841 = vsel %vm290, %v204, 0
    %v844 = vsel %vm290, %v205, 0
    %v847 = vsel %vm290, %v206, 0
    %v850 = vsel %vm290, %v207, 0
    %v853 = vsel %vm290, %v208, 0
    %v856 = vsel %vm290, %v209, 0
    %v859 = vsel %vm290, %v210, 0
    %v862 = vsel %vm290, %v211, 0
    %v865 = vsel %vm290, %v212, 0
    %v868 = vsel %vm290, %v213, 0
    %v871 = vsel %vm290, %v214, 0
    %v874 = vsel %vm290, %v215, 0
    %v877 = vsel %vm290, %v216, 0
    %v880 = vsel %vm290, %v217, 0
    %v883 = vsel %vm290, %v218, 0
    %v886 = vsel %vm290, %v219, 0
    %v889 = vsel %vm290, %v220, 0
    %v892 = vsel %vm290, %v221, 0
    %v895 = vsel %vm290, %v222, 0
    %v898 = vsel %vm290, %v223, 0
    %v901 = vsel %vm290, %v224, 0
    %v904 = vsel %vm290, %v225, 0
    %v907 = vsel %vm290, %v226, 0
    %v910 = vsel %vm290, %v227, 0
    %v913 = vsel %vm290, %v228, 0
    %v916 = vsel %vm290, %v229, 0
    %v919 = vsel %vm290, %v230, 0
    %v922 = vsel %vm290, %v231, 0
    %v925 = vsel %vm290, %v232, 0
    %v928 = vsel %vm290, %v233, 0
    %v931 = vsel %vm290, %v234, 0
    %v934 = vsel %vm290, %v235, 0
    %v937 = vsel %vm290, %v236, 0
    %v940 = vsel %vm290, %v237, 0
    %v943 = vsel %vm290, %v238, 0
    %v946 = vsel %vm290, %v239, 0
    %v949 = vsel %vm290, %v240, 0
    %v952 = vsel %vm290, %v241, 0
    %v955 = vsel %vm290, %v242, 0
    %v958 = vsel %vm290, %v243, 0
    %v961 = vsel %vm290, %v244, 0
    %v964 = vsel %vm290, %v245, 0
    %v967 = vsel %vm290, %v246, 0
    %v970 = vsel %vm290, %v247, 0
    %v973 = vsel %vm290, %v248, 0
    %v976 = vsel %vm290, %v249, 0
    %v979 = vsel %vm290, %v250, 0
    %v982 = vsel %vm290, %v251, 0
    %v985 = vsel %vm290, %v252, 0
    %v988 = vsel %vm290, %v253, 0
    %v991 = vsel %vm290, %v254, 0
    %v994 = vsel %vm290, %v255, 0
    %v997 = vsel %vm290, %v256, 0
    %v1000 = vsel %vm290, %v257, 0
    %v1003 = vsel %vm290, %v258, 0
    %v1006 = vsel %vm290, %v259, 0
    %v1009 = vsel %vm290, %v260, 0
    %v1012 = vsel %vm290, %v261, 0
    %v1015 = vsel %vm290, %v262, 0
    %v1018 = vsel %vm290, %v263, 0
    %v1021 = vsel %vm290, %v264, 0
    %v1024 = vsel %vm290, %v265, 0
    %v1027 = vsel %vm290, %v266, 0
    %v1030 = vsel %vm290, %v267, 0
    %v1033 = vsel %vm290, %v268, 0
    %v1036 = vsel %vm290, %v269, 0
    %v1039 = vsel %vm290, %v270, 0
    %v1042 = vsel %vm290, %v271, 0
    %v1045 = vsel %vm290, %v272, 0
    %v1048 = vsel %vm290, %v273, 0
    %v1051 = vsel %vm290, %v274, 0
    %v1054 = vsel %vm290, %v275, 0
    %v1057 = vsel %vm290, %v276, 0
    %1059 = vmatpush.msra.mxu0 0.0
    %1060 = vmatpush.msra.mxu0 0.0
    %1061 = vmatpush.msra.mxu0 0.0
    %1062 = vmatpush.msra.mxu0 0.0
    %1063 = vmatpush.msra.mxu0 0.0
    %1064 = vmatpush.msra.mxu0 0.0
    %1065 = vmatpush.msra.mxu0 0.0
    %1066 = vmatpush.msra.mxu0 0.0
    %1067 = vmatpush.msra.mxu0 0.0
    %1068 = vmatpush.msra.mxu0 0.0
    %1069 = vmatpush.msra.mxu0 0.0
    %1070 = vmatpush.msra.mxu0 0.0
    %1071 = vmatpush.msra.mxu0 %v288
    %1072 = vmatpush.msra.mxu0 %v286
    %1073 = vmatpush.msra.mxu0 %v284
    %1074 = vmatpush.msra.mxu0 %v282
    %1075 = vmatmul.f32.gmra.mxu0 %v292
    %v1076 = vpop.f32.mrf.mxu0
    %v1077 = vadd.f32 0.0, %v1076
    %1078 = vmatmul.f32.gmra.mxu0 %v295
    %v1079 = vpop.f32.mrf.mxu0
    %v1080 = vadd.f32 0.0, %v1079
    %1081 = vmatmul.f32.gmra.mxu0 %v298
    %v1082 = vpop.f32.mrf.mxu0
    %v1083 = vadd.f32 0.0, %v1082
    %1084 = vmatmul.f32.gmra.mxu0 %v301
    %v1085 = vpop.f32.mrf.mxu0
    %v1086 = vadd.f32 0.0, %v1085
    %1087 = vmatmul.f32.gmra.mxu0 %v304
    %v1088 = vpop.f32.mrf.mxu0
    %v1089 = vadd.f32 0.0, %v1088
    %1090 = vmatmul.f32.gmra.mxu0 %v307
    %v1091 = vpop.f32.mrf.mxu0
    %v1092 = vadd.f32 0.0, %v1091
    %1093 = vmatmul.f32.gmra.mxu0 %v310
    %v1094 = vpop.f32.mrf.mxu0
    %v1095 = vadd.f32 0.0, %v1094
    %1096 = vmatmul.f32.gmra.mxu0 %v313
    %v1097 = vpop.f32.mrf.mxu0
    %v1098 = vadd.f32 0.0, %v1097
    %1099 = vmatmul.f32.gmra.mxu0 %v316
    %v1100 = vpop.f32.mrf.mxu0
    %v1101 = vadd.f32 0.0, %v1100
    %1102 = vmatmul.f32.gmra.mxu0 %v319
    %v1103 = vpop.f32.mrf.mxu0
    %v1104 = vadd.f32 0.0, %v1103
    %1105 = vmatmul.f32.gmra.mxu0 %v322
    %v1106 = vpop.f32.mrf.mxu0
    %v1107 = vadd.f32 0.0, %v1106
    %1108 = vmatmul.f32.gmra.mxu0 %v325
    %v1109 = vpop.f32.mrf.mxu0
    %v1110 = vadd.f32 0.0, %v1109
    %1111 = vmatmul.f32.gmra.mxu0 %v328
    %v1112 = vpop.f32.mrf.mxu0
    %v1113 = vadd.f32 0.0, %v1112
    %1114 = vmatmul.f32.gmra.mxu0 %v331
    %v1115 = vpop.f32.mrf.mxu0
    %v1116 = vadd.f32 0.0, %v1115
    %1117 = vmatmul.f32.gmra.mxu0 %v334
    %v1118 = vpop.f32.mrf.mxu0
    %v1119 = vadd.f32 0.0, %v1118
    %1120 = vmatmul.f32.gmra.mxu0 %v337
    %v1121 = vpop.f32.mrf.mxu0
    %v1122 = vadd.f32 0.0, %v1121
    %1123 = vmatmul.f32.gmra.mxu0 %v340
    %v1124 = vpop.f32.mrf.mxu0
    %v1125 = vadd.f32 0.0, %v1124
    %1126 = vmatmul.f32.gmra.mxu0 %v343
    %v1127 = vpop.f32.mrf.mxu0
    %v1128 = vadd.f32 0.0, %v1127
    %1129 = vmatmul.f32.gmra.mxu0 %v346
    %v1130 = vpop.f32.mrf.mxu0
    %v1131 = vadd.f32 0.0, %v1130
    %1132 = vmatmul.f32.gmra.mxu0 %v349
    %v1133 = vpop.f32.mrf.mxu0
    %v1134 = vadd.f32 0.0, %v1133
    %1135 = vmatmul.f32.gmra.mxu0 %v352
    %v1136 = vpop.f32.mrf.mxu0
    %v1137 = vadd.f32 0.0, %v1136
    %1138 = vmatmul.f32.gmra.mxu0 %v355
    %v1139 = vpop.f32.mrf.mxu0
    %v1140 = vadd.f32 0.0, %v1139
    %1141 = vmatmul.f32.gmra.mxu0 %v358
    %v1142 = vpop.f32.mrf.mxu0
    %v1143 = vadd.f32 0.0, %v1142
    %1144 = vmatmul.f32.gmra.mxu0 %v361
    %v1145 = vpop.f32.mrf.mxu0
    %v1146 = vadd.f32 0.0, %v1145
    %1147 = vmatmul.f32.gmra.mxu0 %v364
    %v1148 = vpop.f32.mrf.mxu0
    %v1149 = vadd.f32 0.0, %v1148
    %1150 = vmatmul.f32.gmra.mxu0 %v367
    %v1151 = vpop.f32.mrf.mxu0
    %v1152 = vadd.f32 0.0, %v1151
    %1153 = vmatmul.f32.gmra.mxu0 %v370
    %v1154 = vpop.f32.mrf.mxu0
    %v1155 = vadd.f32 0.0, %v1154
    %1156 = vmatmul.f32.gmra.mxu0 %v373
    %v1157 = vpop.f32.mrf.mxu0
    %v1158 = vadd.f32 0.0, %v1157
    %1159 = vmatmul.f32.gmra.mxu0 %v376
    %v1160 = vpop.f32.mrf.mxu0
    %v1161 = vadd.f32 0.0, %v1160
    %1162 = vmatmul.f32.gmra.mxu0 %v379
    %v1163 = vpop.f32.mrf.mxu0
    %v1164 = vadd.f32 0.0, %v1163
    %1165 = vmatmul.f32.gmra.mxu0 %v382
    %v1166 = vpop.f32.mrf.mxu0
    %v1167 = vadd.f32 0.0, %v1166
    %1168 = vmatmul.f32.gmra.mxu0 %v385
    %v1169 = vpop.f32.mrf.mxu0
    %v1170 = vadd.f32 0.0, %v1169
    %1171 = vmatmul.f32.gmra.mxu0 %v388
    %v1172 = vpop.f32.mrf.mxu0
    %v1173 = vadd.f32 0.0, %v1172
    %1174 = vmatmul.f32.gmra.mxu0 %v391
    %v1175 = vpop.f32.mrf.mxu0
    %v1176 = vadd.f32 0.0, %v1175
    %1177 = vmatmul.f32.gmra.mxu0 %v394
    %v1178 = vpop.f32.mrf.mxu0
    %v1179 = vadd.f32 0.0, %v1178
    %1180 = vmatmul.f32.gmra.mxu0 %v397
    %v1181 = vpop.f32.mrf.mxu0
    %v1182 = vadd.f32 0.0, %v1181
    %1183 = vmatmul.f32.gmra.mxu0 %v400
    %v1184 = vpop.f32.mrf.mxu0
    %v1185 = vadd.f32 0.0, %v1184
    %1186 = vmatmul.f32.gmra.mxu0 %v403
    %v1187 = vpop.f32.mrf.mxu0
    %v1188 = vadd.f32 0.0, %v1187
    %1189 = vmatmul.f32.gmra.mxu0 %v406
    %v1190 = vpop.f32.mrf.mxu0
    %v1191 = vadd.f32 0.0, %v1190
    %1192 = vmatmul.f32.gmra.mxu0 %v409
    %v1193 = vpop.f32.mrf.mxu0
    %v1194 = vadd.f32 0.0, %v1193
    %1195 = vmatmul.f32.gmra.mxu0 %v412
    %v1196 = vpop.f32.mrf.mxu0
    %v1197 = vadd.f32 0.0, %v1196
    %1198 = vmatmul.f32.gmra.mxu0 %v415
    %v1199 = vpop.f32.mrf.mxu0
    %v1200 = vadd.f32 0.0, %v1199
    %1201 = vmatmul.f32.gmra.mxu0 %v418
    %v1202 = vpop.f32.mrf.mxu0
    %v1203 = vadd.f32 0.0, %v1202
    %1204 = vmatmul.f32.gmra.mxu0 %v421
    %v1205 = vpop.f32.mrf.mxu0
    %v1206 = vadd.f32 0.0, %v1205
    %1207 = vmatmul.f32.gmra.mxu0 %v424
    %v1208 = vpop.f32.mrf.mxu0
    %v1209 = vadd.f32 0.0, %v1208
    %1210 = vmatmul.f32.gmra.mxu0 %v427
    %v1211 = vpop.f32.mrf.mxu0
    %v1212 = vadd.f32 0.0, %v1211
    %1213 = vmatmul.f32.gmra.mxu0 %v430
    %v1214 = vpop.f32.mrf.mxu0
    %v1215 = vadd.f32 0.0, %v1214
    %1216 = vmatmul.f32.gmra.mxu0 %v433
    %v1217 = vpop.f32.mrf.mxu0
    %v1218 = vadd.f32 0.0, %v1217
    %1219 = vmatmul.f32.gmra.mxu0 %v436
    %v1220 = vpop.f32.mrf.mxu0
    %v1221 = vadd.f32 0.0, %v1220
    %1222 = vmatmul.f32.gmra.mxu0 %v439
    %v1223 = vpop.f32.mrf.mxu0
    %v1224 = vadd.f32 0.0, %v1223
    %1225 = vmatmul.f32.gmra.mxu0 %v442
    %v1226 = vpop.f32.mrf.mxu0
    %v1227 = vadd.f32 0.0, %v1226
    %1228 = vmatmul.f32.gmra.mxu0 %v445
    %v1229 = vpop.f32.mrf.mxu0
    %v1230 = vadd.f32 0.0, %v1229
    %1231 = vmatmul.f32.gmra.mxu0 %v448
    %v1232 = vpop.f32.mrf.mxu0
    %v1233 = vadd.f32 0.0, %v1232
    %1234 = vmatmul.f32.gmra.mxu0 %v451
    %v1235 = vpop.f32.mrf.mxu0
    %v1236 = vadd.f32 0.0, %v1235
    %1237 = vmatmul.f32.gmra.mxu0 %v454
    %v1238 = vpop.f32.mrf.mxu0
    %v1239 = vadd.f32 0.0, %v1238
    %1240 = vmatmul.f32.gmra.mxu0 %v457
    %v1241 = vpop.f32.mrf.mxu0
    %v1242 = vadd.f32 0.0, %v1241
    %1243 = vmatmul.f32.gmra.mxu0 %v460
    %v1244 = vpop.f32.mrf.mxu0
    %v1245 = vadd.f32 0.0, %v1244
    %1246 = vmatmul.f32.gmra.mxu0 %v463
    %v1247 = vpop.f32.mrf.mxu0
    %v1248 = vadd.f32 0.0, %v1247
    %1249 = vmatmul.f32.gmra.mxu0 %v466
    %v1250 = vpop.f32.mrf.mxu0
    %v1251 = vadd.f32 0.0, %v1250
    %1252 = vmatmul.f32.gmra.mxu0 %v469
    %v1253 = vpop.f32.mrf.mxu0
    %v1254 = vadd.f32 0.0, %v1253
    %1255 = vmatmul.f32.gmra.mxu0 %v472
    %v1256 = vpop.f32.mrf.mxu0
    %v1257 = vadd.f32 0.0, %v1256
    %1258 = vmatmul.f32.gmra.mxu0 %v475
    %v1259 = vpop.f32.mrf.mxu0
    %v1260 = vadd.f32 0.0, %v1259
    %1261 = vmatmul.f32.gmra.mxu0 %v478
    %v1262 = vpop.f32.mrf.mxu0
    %v1263 = vadd.f32 0.0, %v1262
    %1264 = vmatmul.f32.gmra.mxu0 %v481
    %v1265 = vpop.f32.mrf.mxu0
    %v1266 = vadd.f32 0.0, %v1265
    %1267 = vmatmul.f32.gmra.mxu0 %v484
    %v1268 = vpop.f32.mrf.mxu0
    %v1269 = vadd.f32 0.0, %v1268
    %1270 = vmatmul.f32.gmra.mxu0 %v487
    %v1271 = vpop.f32.mrf.mxu0
    %v1272 = vadd.f32 0.0, %v1271
    %1273 = vmatmul.f32.gmra.mxu0 %v490
    %v1274 = vpop.f32.mrf.mxu0
    %v1275 = vadd.f32 0.0, %v1274
    %1276 = vmatmul.f32.gmra.mxu0 %v493
    %v1277 = vpop.f32.mrf.mxu0
    %v1278 = vadd.f32 0.0, %v1277
    %1279 = vmatmul.f32.gmra.mxu0 %v496
    %v1280 = vpop.f32.mrf.mxu0
    %v1281 = vadd.f32 0.0, %v1280
    %1282 = vmatmul.f32.gmra.mxu0 %v499
    %v1283 = vpop.f32.mrf.mxu0
    %v1284 = vadd.f32 0.0, %v1283
    %1285 = vmatmul.f32.gmra.mxu0 %v502
    %v1286 = vpop.f32.mrf.mxu0
    %v1287 = vadd.f32 0.0, %v1286
    %1288 = vmatmul.f32.gmra.mxu0 %v505
    %v1289 = vpop.f32.mrf.mxu0
    %v1290 = vadd.f32 0.0, %v1289
    %1291 = vmatmul.f32.gmra.mxu0 %v508
    %v1292 = vpop.f32.mrf.mxu0
    %v1293 = vadd.f32 0.0, %v1292
    %1294 = vmatmul.f32.gmra.mxu0 %v511
    %v1295 = vpop.f32.mrf.mxu0
    %v1296 = vadd.f32 0.0, %v1295
    %1297 = vmatmul.f32.gmra.mxu0 %v514
    %v1298 = vpop.f32.mrf.mxu0
    %v1299 = vadd.f32 0.0, %v1298
    %1300 = vmatmul.f32.gmra.mxu0 %v517
    %v1301 = vpop.f32.mrf.mxu0
    %v1302 = vadd.f32 0.0, %v1301
    %1303 = vmatmul.f32.gmra.mxu0 %v520
    %v1304 = vpop.f32.mrf.mxu0
    %v1305 = vadd.f32 0.0, %v1304
    %1306 = vmatmul.f32.gmra.mxu0 %v523
    %v1307 = vpop.f32.mrf.mxu0
    %v1308 = vadd.f32 0.0, %v1307
    %1309 = vmatmul.f32.gmra.mxu0 %v526
    %v1310 = vpop.f32.mrf.mxu0
    %v1311 = vadd.f32 0.0, %v1310
    %1312 = vmatmul.f32.gmra.mxu0 %v529
    %v1313 = vpop.f32.mrf.mxu0
    %v1314 = vadd.f32 0.0, %v1313
    %1315 = vmatmul.f32.gmra.mxu0 %v532
    %v1316 = vpop.f32.mrf.mxu0
    %v1317 = vadd.f32 0.0, %v1316
    %1318 = vmatmul.f32.gmra.mxu0 %v535
    %v1319 = vpop.f32.mrf.mxu0
    %v1320 = vadd.f32 0.0, %v1319
    %1321 = vmatmul.f32.gmra.mxu0 %v538
    %v1322 = vpop.f32.mrf.mxu0
    %v1323 = vadd.f32 0.0, %v1322
    %1324 = vmatmul.f32.gmra.mxu0 %v541
    %v1325 = vpop.f32.mrf.mxu0
    %v1326 = vadd.f32 0.0, %v1325
    %1327 = vmatmul.f32.gmra.mxu0 %v544
    %v1328 = vpop.f32.mrf.mxu0
    %v1329 = vadd.f32 0.0, %v1328
    %1330 = vmatmul.f32.gmra.mxu0 %v547
    %v1331 = vpop.f32.mrf.mxu0
    %v1332 = vadd.f32 0.0, %v1331
    %1333 = vmatmul.f32.gmra.mxu0 %v550
    %v1334 = vpop.f32.mrf.mxu0
    %v1335 = vadd.f32 0.0, %v1334
    %1336 = vmatmul.f32.gmra.mxu0 %v553
    %v1337 = vpop.f32.mrf.mxu0
    %v1338 = vadd.f32 0.0, %v1337
    %1339 = vmatmul.f32.gmra.mxu0 %v556
    %v1340 = vpop.f32.mrf.mxu0
    %v1341 = vadd.f32 0.0, %v1340
    %1342 = vmatmul.f32.gmra.mxu0 %v559
    %v1343 = vpop.f32.mrf.mxu0
    %v1344 = vadd.f32 0.0, %v1343
    %1345 = vmatmul.f32.gmra.mxu0 %v562
    %v1346 = vpop.f32.mrf.mxu0
    %v1347 = vadd.f32 0.0, %v1346
    %1348 = vmatmul.f32.gmra.mxu0 %v565
    %v1349 = vpop.f32.mrf.mxu0
    %v1350 = vadd.f32 0.0, %v1349
    %1351 = vmatmul.f32.gmra.mxu0 %v568
    %v1352 = vpop.f32.mrf.mxu0
    %v1353 = vadd.f32 0.0, %v1352
    %1354 = vmatmul.f32.gmra.mxu0 %v571
    %v1355 = vpop.f32.mrf.mxu0
    %v1356 = vadd.f32 0.0, %v1355
    %1357 = vmatmul.f32.gmra.mxu0 %v574
    %v1358 = vpop.f32.mrf.mxu0
    %v1359 = vadd.f32 0.0, %v1358
    %1360 = vmatmul.f32.gmra.mxu0 %v577
    %v1361 = vpop.f32.mrf.mxu0
    %v1362 = vadd.f32 0.0, %v1361
    %1363 = vmatmul.f32.gmra.mxu0 %v580
    %v1364 = vpop.f32.mrf.mxu0
    %v1365 = vadd.f32 0.0, %v1364
    %1366 = vmatmul.f32.gmra.mxu0 %v583
    %v1367 = vpop.f32.mrf.mxu0
    %v1368 = vadd.f32 0.0, %v1367
    %1369 = vmatmul.f32.gmra.mxu0 %v586
    %v1370 = vpop.f32.mrf.mxu0
    %v1371 = vadd.f32 0.0, %v1370
    %1372 = vmatmul.f32.gmra.mxu0 %v589
    %v1373 = vpop.f32.mrf.mxu0
    %v1374 = vadd.f32 0.0, %v1373
    %1375 = vmatmul.f32.gmra.mxu0 %v592
    %v1376 = vpop.f32.mrf.mxu0
    %v1377 = vadd.f32 0.0, %v1376
    %1378 = vmatmul.f32.gmra.mxu0 %v595
    %v1379 = vpop.f32.mrf.mxu0
    %v1380 = vadd.f32 0.0, %v1379
    %1381 = vmatmul.f32.gmra.mxu0 %v598
    %v1382 = vpop.f32.mrf.mxu0
    %v1383 = vadd.f32 0.0, %v1382
    %1384 = vmatmul.f32.gmra.mxu0 %v601
    %v1385 = vpop.f32.mrf.mxu0
    %v1386 = vadd.f32 0.0, %v1385
    %1387 = vmatmul.f32.gmra.mxu0 %v604
    %v1388 = vpop.f32.mrf.mxu0
    %v1389 = vadd.f32 0.0, %v1388
    %1390 = vmatmul.f32.gmra.mxu0 %v607
    %v1391 = vpop.f32.mrf.mxu0
    %v1392 = vadd.f32 0.0, %v1391
    %1393 = vmatmul.f32.gmra.mxu0 %v610
    %v1394 = vpop.f32.mrf.mxu0
    %v1395 = vadd.f32 0.0, %v1394
    %1396 = vmatmul.f32.gmra.mxu0 %v613
    %v1397 = vpop.f32.mrf.mxu0
    %v1398 = vadd.f32 0.0, %v1397
    %1399 = vmatmul.f32.gmra.mxu0 %v616
    %v1400 = vpop.f32.mrf.mxu0
    %v1401 = vadd.f32 0.0, %v1400
    %1402 = vmatmul.f32.gmra.mxu0 %v619
    %v1403 = vpop.f32.mrf.mxu0
    %v1404 = vadd.f32 0.0, %v1403
    %1405 = vmatmul.f32.gmra.mxu0 %v622
    %v1406 = vpop.f32.mrf.mxu0
    %v1407 = vadd.f32 0.0, %v1406
    %1408 = vmatmul.f32.gmra.mxu0 %v625
    %v1409 = vpop.f32.mrf.mxu0
    %v1410 = vadd.f32 0.0, %v1409
    %1411 = vmatmul.f32.gmra.mxu0 %v628
    %v1412 = vpop.f32.mrf.mxu0
    %v1413 = vadd.f32 0.0, %v1412
    %1414 = vmatmul.f32.gmra.mxu0 %v631
    %v1415 = vpop.f32.mrf.mxu0
    %v1416 = vadd.f32 0.0, %v1415
    %1417 = vmatmul.f32.gmra.mxu0 %v634
    %v1418 = vpop.f32.mrf.mxu0
    %v1419 = vadd.f32 0.0, %v1418
    %1420 = vmatmul.f32.gmra.mxu0 %v637
    %v1421 = vpop.f32.mrf.mxu0
    %v1422 = vadd.f32 0.0, %v1421
    %1423 = vmatmul.f32.gmra.mxu0 %v640
    %v1424 = vpop.f32.mrf.mxu0
    %v1425 = vadd.f32 0.0, %v1424
    %1426 = vmatmul.f32.gmra.mxu0 %v643
    %v1427 = vpop.f32.mrf.mxu0
    %v1428 = vadd.f32 0.0, %v1427
    %1429 = vmatmul.f32.gmra.mxu0 %v646
    %v1430 = vpop.f32.mrf.mxu0
    %v1431 = vadd.f32 0.0, %v1430
    %1432 = vmatmul.f32.gmra.mxu0 %v649
    %v1433 = vpop.f32.mrf.mxu0
    %v1434 = vadd.f32 0.0, %v1433
    %1435 = vmatmul.f32.gmra.mxu0 %v652
    %v1436 = vpop.f32.mrf.mxu0
    %v1437 = vadd.f32 0.0, %v1436
    %1438 = vmatmul.f32.gmra.mxu0 %v655
    %v1439 = vpop.f32.mrf.mxu0
    %v1440 = vadd.f32 0.0, %v1439
    %1441 = vmatmul.f32.gmra.mxu0 %v658
    %v1442 = vpop.f32.mrf.mxu0
    %v1443 = vadd.f32 0.0, %v1442
    %1444 = vmatmul.f32.gmra.mxu0 %v661
    %v1445 = vpop.f32.mrf.mxu0
    %v1446 = vadd.f32 0.0, %v1445
    %1447 = vmatmul.f32.gmra.mxu0 %v664
    %v1448 = vpop.f32.mrf.mxu0
    %v1449 = vadd.f32 0.0, %v1448
    %1450 = vmatmul.f32.gmra.mxu0 %v667
    %v1451 = vpop.f32.mrf.mxu0
    %v1452 = vadd.f32 0.0, %v1451
    %1453 = vmatmul.f32.gmra.mxu0 %v670
    %v1454 = vpop.f32.mrf.mxu0
    %v1455 = vadd.f32 0.0, %v1454
    %1456 = vmatmul.f32.gmra.mxu0 %v673
    %v1457 = vpop.f32.mrf.mxu0
    %v1458 = vadd.f32 0.0, %v1457
    %1459 = vmatmul.f32.gmra.mxu0 %v676
    %v1460 = vpop.f32.mrf.mxu0
    %v1461 = vadd.f32 0.0, %v1460
    %1462 = vmatmul.f32.gmra.mxu0 %v679
    %v1463 = vpop.f32.mrf.mxu0
    %v1464 = vadd.f32 0.0, %v1463
    %1465 = vmatmul.f32.gmra.mxu0 %v682
    %v1466 = vpop.f32.mrf.mxu0
    %v1467 = vadd.f32 0.0, %v1466
    %1468 = vmatmul.f32.gmra.mxu0 %v685
    %v1469 = vpop.f32.mrf.mxu0
    %v1470 = vadd.f32 0.0, %v1469
    %1471 = vmatmul.f32.gmra.mxu0 %v688
    %v1472 = vpop.f32.mrf.mxu0
    %v1473 = vadd.f32 0.0, %v1472
    %1474 = vmatmul.f32.gmra.mxu0 %v691
    %v1475 = vpop.f32.mrf.mxu0
    %v1476 = vadd.f32 0.0, %v1475
    %1477 = vmatmul.f32.gmra.mxu0 %v694
    %v1478 = vpop.f32.mrf.mxu0
    %v1479 = vadd.f32 0.0, %v1478
    %1480 = vmatmul.f32.gmra.mxu0 %v697
    %v1481 = vpop.f32.mrf.mxu0
    %v1482 = vadd.f32 0.0, %v1481
    %1483 = vmatmul.f32.gmra.mxu0 %v700
    %v1484 = vpop.f32.mrf.mxu0
    %v1485 = vadd.f32 0.0, %v1484
    %1486 = vmatmul.f32.gmra.mxu0 %v703
    %v1487 = vpop.f32.mrf.mxu0
    %v1488 = vadd.f32 0.0, %v1487
    %1489 = vmatmul.f32.gmra.mxu0 %v706
    %v1490 = vpop.f32.mrf.mxu0
    %v1491 = vadd.f32 0.0, %v1490
    %1492 = vmatmul.f32.gmra.mxu0 %v709
    %v1493 = vpop.f32.mrf.mxu0
    %v1494 = vadd.f32 0.0, %v1493
    %1495 = vmatmul.f32.gmra.mxu0 %v712
    %v1496 = vpop.f32.mrf.mxu0
    %v1497 = vadd.f32 0.0, %v1496
    %1498 = vmatmul.f32.gmra.mxu0 %v715
    %v1499 = vpop.f32.mrf.mxu0
    %v1500 = vadd.f32 0.0, %v1499
    %1501 = vmatmul.f32.gmra.mxu0 %v718
    %v1502 = vpop.f32.mrf.mxu0
    %v1503 = vadd.f32 0.0, %v1502
    %1504 = vmatmul.f32.gmra.mxu0 %v721
    %v1505 = vpop.f32.mrf.mxu0
    %v1506 = vadd.f32 0.0, %v1505
    %1507 = vmatmul.f32.gmra.mxu0 %v724
    %v1508 = vpop.f32.mrf.mxu0
    %v1509 = vadd.f32 0.0, %v1508
    %1510 = vmatmul.f32.gmra.mxu0 %v727
    %v1511 = vpop.f32.mrf.mxu0
    %v1512 = vadd.f32 0.0, %v1511
    %1513 = vmatmul.f32.gmra.mxu0 %v730
    %v1514 = vpop.f32.mrf.mxu0
    %v1515 = vadd.f32 0.0, %v1514
    %1516 = vmatmul.f32.gmra.mxu0 %v733
    %v1517 = vpop.f32.mrf.mxu0
    %v1518 = vadd.f32 0.0, %v1517
    %1519 = vmatmul.f32.gmra.mxu0 %v736
    %v1520 = vpop.f32.mrf.mxu0
    %v1521 = vadd.f32 0.0, %v1520
    %1522 = vmatmul.f32.gmra.mxu0 %v739
    %v1523 = vpop.f32.mrf.mxu0
    %v1524 = vadd.f32 0.0, %v1523
    %1525 = vmatmul.f32.gmra.mxu0 %v742
    %v1526 = vpop.f32.mrf.mxu0
    %v1527 = vadd.f32 0.0, %v1526
    %1528 = vmatmul.f32.gmra.mxu0 %v745
    %v1529 = vpop.f32.mrf.mxu0
    %v1530 = vadd.f32 0.0, %v1529
    %1531 = vmatmul.f32.gmra.mxu0 %v748
    %v1532 = vpop.f32.mrf.mxu0
    %v1533 = vadd.f32 0.0, %v1532
    %1534 = vmatmul.f32.gmra.mxu0 %v751
    %v1535 = vpop.f32.mrf.mxu0
    %v1536 = vadd.f32 0.0, %v1535
    %1537 = vmatmul.f32.gmra.mxu0 %v754
    %v1538 = vpop.f32.mrf.mxu0
    %v1539 = vadd.f32 0.0, %v1538
    %1540 = vmatmul.f32.gmra.mxu0 %v757
    %v1541 = vpop.f32.mrf.mxu0
    %v1542 = vadd.f32 0.0, %v1541
    %1543 = vmatmul.f32.gmra.mxu0 %v760
    %v1544 = vpop.f32.mrf.mxu0
    %v1545 = vadd.f32 0.0, %v1544
    %1546 = vmatmul.f32.gmra.mxu0 %v763
    %v1547 = vpop.f32.mrf.mxu0
    %v1548 = vadd.f32 0.0, %v1547
    %1549 = vmatmul.f32.gmra.mxu0 %v766
    %v1550 = vpop.f32.mrf.mxu0
    %v1551 = vadd.f32 0.0, %v1550
    %1552 = vmatmul.f32.gmra.mxu0 %v769
    %v1553 = vpop.f32.mrf.mxu0
    %v1554 = vadd.f32 0.0, %v1553
    %1555 = vmatmul.f32.gmra.mxu0 %v772
    %v1556 = vpop.f32.mrf.mxu0
    %v1557 = vadd.f32 0.0, %v1556
    %1558 = vmatmul.f32.gmra.mxu0 %v775
    %v1559 = vpop.f32.mrf.mxu0
    %v1560 = vadd.f32 0.0, %v1559
    %1561 = vmatmul.f32.gmra.mxu0 %v778
    %v1562 = vpop.f32.mrf.mxu0
    %v1563 = vadd.f32 0.0, %v1562
    %1564 = vmatmul.f32.gmra.mxu0 %v781
    %v1565 = vpop.f32.mrf.mxu0
    %v1566 = vadd.f32 0.0, %v1565
    %1567 = vmatmul.f32.gmra.mxu0 %v784
    %v1568 = vpop.f32.mrf.mxu0
    %v1569 = vadd.f32 0.0, %v1568
    %1570 = vmatmul.f32.gmra.mxu0 %v787
    %v1571 = vpop.f32.mrf.mxu0
    %v1572 = vadd.f32 0.0, %v1571
    %1573 = vmatmul.f32.gmra.mxu0 %v790
    %v1574 = vpop.f32.mrf.mxu0
    %v1575 = vadd.f32 0.0, %v1574
    %1576 = vmatmul.f32.gmra.mxu0 %v793
    %v1577 = vpop.f32.mrf.mxu0
    %v1578 = vadd.f32 0.0, %v1577
    %1579 = vmatmul.f32.gmra.mxu0 %v796
    %v1580 = vpop.f32.mrf.mxu0
    %v1581 = vadd.f32 0.0, %v1580
    %1582 = vmatmul.f32.gmra.mxu0 %v799
    %v1583 = vpop.f32.mrf.mxu0
    %v1584 = vadd.f32 0.0, %v1583
    %1585 = vmatmul.f32.gmra.mxu0 %v802
    %v1586 = vpop.f32.mrf.mxu0
    %v1587 = vadd.f32 0.0, %v1586
    %1588 = vmatmul.f32.gmra.mxu0 %v805
    %v1589 = vpop.f32.mrf.mxu0
    %v1590 = vadd.f32 0.0, %v1589
    %1591 = vmatmul.f32.gmra.mxu0 %v808
    %v1592 = vpop.f32.mrf.mxu0
    %v1593 = vadd.f32 0.0, %v1592
    %1594 = vmatmul.f32.gmra.mxu0 %v811
    %v1595 = vpop.f32.mrf.mxu0
    %v1596 = vadd.f32 0.0, %v1595
    %1597 = vmatmul.f32.gmra.mxu0 %v814
    %v1598 = vpop.f32.mrf.mxu0
    %v1599 = vadd.f32 0.0, %v1598
    %1600 = vmatmul.f32.gmra.mxu0 %v817
    %v1601 = vpop.f32.mrf.mxu0
    %v1602 = vadd.f32 0.0, %v1601
    %1603 = vmatmul.f32.gmra.mxu0 %v820
    %v1604 = vpop.f32.mrf.mxu0
    %v1605 = vadd.f32 0.0, %v1604
    %1606 = vmatmul.f32.gmra.mxu0 %v823
    %v1607 = vpop.f32.mrf.mxu0
    %v1608 = vadd.f32 0.0, %v1607
    %1609 = vmatmul.f32.gmra.mxu0 %v826
    %v1610 = vpop.f32.mrf.mxu0
    %v1611 = vadd.f32 0.0, %v1610
    %1612 = vmatmul.f32.gmra.mxu0 %v829
    %v1613 = vpop.f32.mrf.mxu0
    %v1614 = vadd.f32 0.0, %v1613
    %1615 = vmatmul.f32.gmra.mxu0 %v832
    %v1616 = vpop.f32.mrf.mxu0
    %v1617 = vadd.f32 0.0, %v1616
    %1618 = vmatmul.f32.gmra.mxu0 %v835
    %v1619 = vpop.f32.mrf.mxu0
    %v1620 = vadd.f32 0.0, %v1619
    %1621 = vmatmul.f32.gmra.mxu0 %v838
    %v1622 = vpop.f32.mrf.mxu0
    %v1623 = vadd.f32 0.0, %v1622
    %1624 = vmatmul.f32.gmra.mxu0 %v841
    %v1625 = vpop.f32.mrf.mxu0
    %v1626 = vadd.f32 0.0, %v1625
    %1627 = vmatmul.f32.gmra.mxu0 %v844
    %v1628 = vpop.f32.mrf.mxu0
    %v1629 = vadd.f32 0.0, %v1628
    %1630 = vmatmul.f32.gmra.mxu0 %v847
    %v1631 = vpop.f32.mrf.mxu0
    %v1632 = vadd.f32 0.0, %v1631
    %1633 = vmatmul.f32.gmra.mxu0 %v850
    %v1634 = vpop.f32.mrf.mxu0
    %v1635 = vadd.f32 0.0, %v1634
    %1636 = vmatmul.f32.gmra.mxu0 %v853
    %v1637 = vpop.f32.mrf.mxu0
    %v1638 = vadd.f32 0.0, %v1637
    %1639 = vmatmul.f32.gmra.mxu0 %v856
    %v1640 = vpop.f32.mrf.mxu0
    %v1641 = vadd.f32 0.0, %v1640
    %1642 = vmatmul.f32.gmra.mxu0 %v859
    %v1643 = vpop.f32.mrf.mxu0
    %v1644 = vadd.f32 0.0, %v1643
    %1645 = vmatmul.f32.gmra.mxu0 %v862
    %v1646 = vpop.f32.mrf.mxu0
    %v1647 = vadd.f32 0.0, %v1646
    %1648 = vmatmul.f32.gmra.mxu0 %v865
    %v1649 = vpop.f32.mrf.mxu0
    %v1650 = vadd.f32 0.0, %v1649
    %1651 = vmatmul.f32.gmra.mxu0 %v868
    %v1652 = vpop.f32.mrf.mxu0
    %v1653 = vadd.f32 0.0, %v1652
    %1654 = vmatmul.f32.gmra.mxu0 %v871
    %v1655 = vpop.f32.mrf.mxu0
    %v1656 = vadd.f32 0.0, %v1655
    %1657 = vmatmul.f32.gmra.mxu0 %v874
    %v1658 = vpop.f32.mrf.mxu0
    %v1659 = vadd.f32 0.0, %v1658
    %1660 = vmatmul.f32.gmra.mxu0 %v877
    %v1661 = vpop.f32.mrf.mxu0
    %v1662 = vadd.f32 0.0, %v1661
    %1663 = vmatmul.f32.gmra.mxu0 %v880
    %v1664 = vpop.f32.mrf.mxu0
    %v1665 = vadd.f32 0.0, %v1664
    %1666 = vmatmul.f32.gmra.mxu0 %v883
    %v1667 = vpop.f32.mrf.mxu0
    %v1668 = vadd.f32 0.0, %v1667
    %1669 = vmatmul.f32.gmra.mxu0 %v886
    %v1670 = vpop.f32.mrf.mxu0
    %v1671 = vadd.f32 0.0, %v1670
    %1672 = vmatmul.f32.gmra.mxu0 %v889
    %v1673 = vpop.f32.mrf.mxu0
    %v1674 = vadd.f32 0.0, %v1673
    %1675 = vmatmul.f32.gmra.mxu0 %v892
    %v1676 = vpop.f32.mrf.mxu0
    %v1677 = vadd.f32 0.0, %v1676
    %1678 = vmatmul.f32.gmra.mxu0 %v895
    %v1679 = vpop.f32.mrf.mxu0
    %v1680 = vadd.f32 0.0, %v1679
    %1681 = vmatmul.f32.gmra.mxu0 %v898
    %v1682 = vpop.f32.mrf.mxu0
    %v1683 = vadd.f32 0.0, %v1682
    %1684 = vmatmul.f32.gmra.mxu0 %v901
    %v1685 = vpop.f32.mrf.mxu0
    %v1686 = vadd.f32 0.0, %v1685
    %1687 = vmatmul.f32.gmra.mxu0 %v904
    %v1688 = vpop.f32.mrf.mxu0
    %v1689 = vadd.f32 0.0, %v1688
    %1690 = vmatmul.f32.gmra.mxu0 %v907
    %v1691 = vpop.f32.mrf.mxu0
    %v1692 = vadd.f32 0.0, %v1691
    %1693 = vmatmul.f32.gmra.mxu0 %v910
    %v1694 = vpop.f32.mrf.mxu0
    %v1695 = vadd.f32 0.0, %v1694
    %1696 = vmatmul.f32.gmra.mxu0 %v913
    %v1697 = vpop.f32.mrf.mxu0
    %v1698 = vadd.f32 0.0, %v1697
    %1699 = vmatmul.f32.gmra.mxu0 %v916
    %v1700 = vpop.f32.mrf.mxu0
    %v1701 = vadd.f32 0.0, %v1700
    %1702 = vmatmul.f32.gmra.mxu0 %v919
    %v1703 = vpop.f32.mrf.mxu0
    %v1704 = vadd.f32 0.0, %v1703
    %1705 = vmatmul.f32.gmra.mxu0 %v922
    %v1706 = vpop.f32.mrf.mxu0
    %v1707 = vadd.f32 0.0, %v1706
    %1708 = vmatmul.f32.gmra.mxu0 %v925
    %v1709 = vpop.f32.mrf.mxu0
    %v1710 = vadd.f32 0.0, %v1709
    %1711 = vmatmul.f32.gmra.mxu0 %v928
    %v1712 = vpop.f32.mrf.mxu0
    %v1713 = vadd.f32 0.0, %v1712
    %1714 = vmatmul.f32.gmra.mxu0 %v931
    %v1715 = vpop.f32.mrf.mxu0
    %v1716 = vadd.f32 0.0, %v1715
    %1717 = vmatmul.f32.gmra.mxu0 %v934
    %v1718 = vpop.f32.mrf.mxu0
    %v1719 = vadd.f32 0.0, %v1718
    %1720 = vmatmul.f32.gmra.mxu0 %v937
    %v1721 = vpop.f32.mrf.mxu0
    %v1722 = vadd.f32 0.0, %v1721
    %1723 = vmatmul.f32.gmra.mxu0 %v940
    %v1724 = vpop.f32.mrf.mxu0
    %v1725 = vadd.f32 0.0, %v1724
    %1726 = vmatmul.f32.gmra.mxu0 %v943
    %v1727 = vpop.f32.mrf.mxu0
    %v1728 = vadd.f32 0.0, %v1727
    %1729 = vmatmul.f32.gmra.mxu0 %v946
    %v1730 = vpop.f32.mrf.mxu0
    %v1731 = vadd.f32 0.0, %v1730
    %1732 = vmatmul.f32.gmra.mxu0 %v949
    %v1733 = vpop.f32.mrf.mxu0
    %v1734 = vadd.f32 0.0, %v1733
    %1735 = vmatmul.f32.gmra.mxu0 %v952
    %v1736 = vpop.f32.mrf.mxu0
    %v1737 = vadd.f32 0.0, %v1736
    %1738 = vmatmul.f32.gmra.mxu0 %v955
    %v1739 = vpop.f32.mrf.mxu0
    %v1740 = vadd.f32 0.0, %v1739
    %1741 = vmatmul.f32.gmra.mxu0 %v958
    %v1742 = vpop.f32.mrf.mxu0
    %v1743 = vadd.f32 0.0, %v1742
    %1744 = vmatmul.f32.gmra.mxu0 %v961
    %v1745 = vpop.f32.mrf.mxu0
    %v1746 = vadd.f32 0.0, %v1745
    %1747 = vmatmul.f32.gmra.mxu0 %v964
    %v1748 = vpop.f32.mrf.mxu0
    %v1749 = vadd.f32 0.0, %v1748
    %1750 = vmatmul.f32.gmra.mxu0 %v967
    %v1751 = vpop.f32.mrf.mxu0
    %v1752 = vadd.f32 0.0, %v1751
    %1753 = vmatmul.f32.gmra.mxu0 %v970
    %v1754 = vpop.f32.mrf.mxu0
    %v1755 = vadd.f32 0.0, %v1754
    %1756 = vmatmul.f32.gmra.mxu0 %v973
    %v1757 = vpop.f32.mrf.mxu0
    %v1758 = vadd.f32 0.0, %v1757
    %1759 = vmatmul.f32.gmra.mxu0 %v976
    %v1760 = vpop.f32.mrf.mxu0
    %v1761 = vadd.f32 0.0, %v1760
    %1762 = vmatmul.f32.gmra.mxu0 %v979
    %v1763 = vpop.f32.mrf.mxu0
    %v1764 = vadd.f32 0.0, %v1763
    %1765 = vmatmul.f32.gmra.mxu0 %v982
    %v1766 = vpop.f32.mrf.mxu0
    %v1767 = vadd.f32 0.0, %v1766
    %1768 = vmatmul.f32.gmra.mxu0 %v985
    %v1769 = vpop.f32.mrf.mxu0
    %v1770 = vadd.f32 0.0, %v1769
    %1771 = vmatmul.f32.gmra.mxu0 %v988
    %v1772 = vpop.f32.mrf.mxu0
    %v1773 = vadd.f32 0.0, %v1772
    %1774 = vmatmul.f32.gmra.mxu0 %v991
    %v1775 = vpop.f32.mrf.mxu0
    %v1776 = vadd.f32 0.0, %v1775
    %1777 = vmatmul.f32.gmra.mxu0 %v994
    %v1778 = vpop.f32.mrf.mxu0
    %v1779 = vadd.f32 0.0, %v1778
    %1780 = vmatmul.f32.gmra.mxu0 %v997
    %v1781 = vpop.f32.mrf.mxu0
    %v1782 = vadd.f32 0.0, %v1781
    %1783 = vmatmul.f32.gmra.mxu0 %v1000
    %v1784 = vpop.f32.mrf.mxu0
    %v1785 = vadd.f32 0.0, %v1784
    %1786 = vmatmul.f32.gmra.mxu0 %v1003
    %v1787 = vpop.f32.mrf.mxu0
    %v1788 = vadd.f32 0.0, %v1787
    %1789 = vmatmul.f32.gmra.mxu0 %v1006
    %v1790 = vpop.f32.mrf.mxu0
    %v1791 = vadd.f32 0.0, %v1790
    %1792 = vmatmul.f32.gmra.mxu0 %v1009
    %v1793 = vpop.f32.mrf.mxu0
    %v1794 = vadd.f32 0.0, %v1793
    %1795 = vmatmul.f32.gmra.mxu0 %v1012
    %v1796 = vpop.f32.mrf.mxu0
    %v1797 = vadd.f32 0.0, %v1796
    %1798 = vmatmul.f32.gmra.mxu0 %v1015
    %v1799 = vpop.f32.mrf.mxu0
    %v1800 = vadd.f32 0.0, %v1799
    %1801 = vmatmul.f32.gmra.mxu0 %v1018
    %v1802 = vpop.f32.mrf.mxu0
    %v1803 = vadd.f32 0.0, %v1802
    %1804 = vmatmul.f32.gmra.mxu0 %v1021
    %v1805 = vpop.f32.mrf.mxu0
    %v1806 = vadd.f32 0.0, %v1805
    %1807 = vmatmul.f32.gmra.mxu0 %v1024
    %v1808 = vpop.f32.mrf.mxu0
    %v1809 = vadd.f32 0.0, %v1808
    %1810 = vmatmul.f32.gmra.mxu0 %v1027
    %v1811 = vpop.f32.mrf.mxu0
    %v1812 = vadd.f32 0.0, %v1811
    %1813 = vmatmul.f32.gmra.mxu0 %v1030
    %v1814 = vpop.f32.mrf.mxu0
    %v1815 = vadd.f32 0.0, %v1814
    %1816 = vmatmul.f32.gmra.mxu0 %v1033
    %v1817 = vpop.f32.mrf.mxu0
    %v1818 = vadd.f32 0.0, %v1817
    %1819 = vmatmul.f32.gmra.mxu0 %v1036
    %v1820 = vpop.f32.mrf.mxu0
    %v1821 = vadd.f32 0.0, %v1820
    %1822 = vmatmul.f32.gmra.mxu0 %v1039
    %v1823 = vpop.f32.mrf.mxu0
    %v1824 = vadd.f32 0.0, %v1823
    %1825 = vmatmul.f32.gmra.mxu0 %v1042
    %v1826 = vpop.f32.mrf.mxu0
    %v1827 = vadd.f32 0.0, %v1826
    %1828 = vmatmul.f32.gmra.mxu0 %v1045
    %v1829 = vpop.f32.mrf.mxu0
    %v1830 = vadd.f32 0.0, %v1829
    %1831 = vmatmul.f32.gmra.mxu0 %v1048
    %v1832 = vpop.f32.mrf.mxu0
    %v1833 = vadd.f32 0.0, %v1832
    %1834 = vmatmul.f32.gmra.mxu0 %v1051
    %v1835 = vpop.f32.mrf.mxu0
    %v1836 = vadd.f32 0.0, %v1835
    %1837 = vmatmul.f32.gmra.mxu0 %v1054
    %v1838 = vpop.f32.mrf.mxu0
    %v1839 = vadd.f32 0.0, %v1838
    %1840 = vmatmul.f32.gmra.mxu0 %v1057
    %v1841 = vpop.f32.mrf.mxu0
    %v1842 = vadd.f32 0.0, %v1841
    %1843 = vdwg.mxu0
    %1844 = vmatpush.msra.mxu0 0.0
    %1845 = vmatpush.msra.mxu0 0.0
    %1846 = vmatpush.msra.mxu0 0.0
    %1847 = vmatpush.msra.mxu0 0.0
    %1848 = vmatpush.msra.mxu0 0.0
    %1849 = vmatpush.msra.mxu0 0.0
    %1850 = vmatpush.msra.mxu0 0.0
    %1851 = vmatpush.msra.mxu0 0.0
    %1852 = vmatpush.msra.mxu0 0.0
    %1853 = vmatpush.msra.mxu0 0.0
    %1854 = vmatpush.msra.mxu0 0.0
    %1855 = vmatpush.msra.mxu0 0.0
    %1856 = vmatpush.msra.mxu0 %v289
    %1857 = vmatpush.msra.mxu0 %v287
    %1858 = vmatpush.msra.mxu0 %v285
    %1859 = vmatpush.msra.mxu0 %v283
    %1860 = vmatmul.f32.gmra.mxu0 %v292
    %v1861 = vpop.f32.mrf.mxu0
    %v1862 = vadd.f32 0.0, %v1861
    %1863 = vmatmul.f32.gmra.mxu0 %v295
    %v1864 = vpop.f32.mrf.mxu0
    %v1865 = vadd.f32 0.0, %v1864
    %1866 = vmatmul.f32.gmra.mxu0 %v298
    %v1867 = vpop.f32.mrf.mxu0
    %v1868 = vadd.f32 0.0, %v1867
    %1869 = vmatmul.f32.gmra.mxu0 %v301
    %v1870 = vpop.f32.mrf.mxu0
    %v1871 = vadd.f32 0.0, %v1870
    %1872 = vmatmul.f32.gmra.mxu0 %v304
    %v1873 = vpop.f32.mrf.mxu0
    %v1874 = vadd.f32 0.0, %v1873
    %1875 = vmatmul.f32.gmra.mxu0 %v307
    %v1876 = vpop.f32.mrf.mxu0
    %v1877 = vadd.f32 0.0, %v1876
    %1878 = vmatmul.f32.gmra.mxu0 %v310
    %v1879 = vpop.f32.mrf.mxu0
    %v1880 = vadd.f32 0.0, %v1879
    %1881 = vmatmul.f32.gmra.mxu0 %v313
    %v1882 = vpop.f32.mrf.mxu0
    %v1883 = vadd.f32 0.0, %v1882
    %1884 = vmatmul.f32.gmra.mxu0 %v316
    %v1885 = vpop.f32.mrf.mxu0
    %v1886 = vadd.f32 0.0, %v1885
    %1887 = vmatmul.f32.gmra.mxu0 %v319
    %v1888 = vpop.f32.mrf.mxu0
    %v1889 = vadd.f32 0.0, %v1888
    %1890 = vmatmul.f32.gmra.mxu0 %v322
    %v1891 = vpop.f32.mrf.mxu0
    %v1892 = vadd.f32 0.0, %v1891
    %1893 = vmatmul.f32.gmra.mxu0 %v325
    %v1894 = vpop.f32.mrf.mxu0
    %v1895 = vadd.f32 0.0, %v1894
    %1896 = vmatmul.f32.gmra.mxu0 %v328
    %v1897 = vpop.f32.mrf.mxu0
    %v1898 = vadd.f32 0.0, %v1897
    %1899 = vmatmul.f32.gmra.mxu0 %v331
    %v1900 = vpop.f32.mrf.mxu0
    %v1901 = vadd.f32 0.0, %v1900
    %1902 = vmatmul.f32.gmra.mxu0 %v334
    %v1903 = vpop.f32.mrf.mxu0
    %v1904 = vadd.f32 0.0, %v1903
    %1905 = vmatmul.f32.gmra.mxu0 %v337
    %v1906 = vpop.f32.mrf.mxu0
    %v1907 = vadd.f32 0.0, %v1906
    %1908 = vmatmul.f32.gmra.mxu0 %v340
    %v1909 = vpop.f32.mrf.mxu0
    %v1910 = vadd.f32 0.0, %v1909
    %1911 = vmatmul.f32.gmra.mxu0 %v343
    %v1912 = vpop.f32.mrf.mxu0
    %v1913 = vadd.f32 0.0, %v1912
    %1914 = vmatmul.f32.gmra.mxu0 %v346
    %v1915 = vpop.f32.mrf.mxu0
    %v1916 = vadd.f32 0.0, %v1915
    %1917 = vmatmul.f32.gmra.mxu0 %v349
    %v1918 = vpop.f32.mrf.mxu0
    %v1919 = vadd.f32 0.0, %v1918
    %1920 = vmatmul.f32.gmra.mxu0 %v352
    %v1921 = vpop.f32.mrf.mxu0
    %v1922 = vadd.f32 0.0, %v1921
    %1923 = vmatmul.f32.gmra.mxu0 %v355
    %v1924 = vpop.f32.mrf.mxu0
    %v1925 = vadd.f32 0.0, %v1924
    %1926 = vmatmul.f32.gmra.mxu0 %v358
    %v1927 = vpop.f32.mrf.mxu0
    %v1928 = vadd.f32 0.0, %v1927
    %1929 = vmatmul.f32.gmra.mxu0 %v361
    %v1930 = vpop.f32.mrf.mxu0
    %v1931 = vadd.f32 0.0, %v1930
    %1932 = vmatmul.f32.gmra.mxu0 %v364
    %v1933 = vpop.f32.mrf.mxu0
    %v1934 = vadd.f32 0.0, %v1933
    %1935 = vmatmul.f32.gmra.mxu0 %v367
    %v1936 = vpop.f32.mrf.mxu0
    %v1937 = vadd.f32 0.0, %v1936
    %1938 = vmatmul.f32.gmra.mxu0 %v370
    %v1939 = vpop.f32.mrf.mxu0
    %v1940 = vadd.f32 0.0, %v1939
    %1941 = vmatmul.f32.gmra.mxu0 %v373
    %v1942 = vpop.f32.mrf.mxu0
    %v1943 = vadd.f32 0.0, %v1942
    %1944 = vmatmul.f32.gmra.mxu0 %v376
    %v1945 = vpop.f32.mrf.mxu0
    %v1946 = vadd.f32 0.0, %v1945
    %1947 = vmatmul.f32.gmra.mxu0 %v379
    %v1948 = vpop.f32.mrf.mxu0
    %v1949 = vadd.f32 0.0, %v1948
    %1950 = vmatmul.f32.gmra.mxu0 %v382
    %v1951 = vpop.f32.mrf.mxu0
    %v1952 = vadd.f32 0.0, %v1951
    %1953 = vmatmul.f32.gmra.mxu0 %v385
    %v1954 = vpop.f32.mrf.mxu0
    %v1955 = vadd.f32 0.0, %v1954
    %1956 = vmatmul.f32.gmra.mxu0 %v388
    %v1957 = vpop.f32.mrf.mxu0
    %v1958 = vadd.f32 0.0, %v1957
    %1959 = vmatmul.f32.gmra.mxu0 %v391
    %v1960 = vpop.f32.mrf.mxu0
    %v1961 = vadd.f32 0.0, %v1960
    %1962 = vmatmul.f32.gmra.mxu0 %v394
    %v1963 = vpop.f32.mrf.mxu0
    %v1964 = vadd.f32 0.0, %v1963
    %1965 = vmatmul.f32.gmra.mxu0 %v397
    %v1966 = vpop.f32.mrf.mxu0
    %v1967 = vadd.f32 0.0, %v1966
    %1968 = vmatmul.f32.gmra.mxu0 %v400
    %v1969 = vpop.f32.mrf.mxu0
    %v1970 = vadd.f32 0.0, %v1969
    %1971 = vmatmul.f32.gmra.mxu0 %v403
    %v1972 = vpop.f32.mrf.mxu0
    %v1973 = vadd.f32 0.0, %v1972
    %1974 = vmatmul.f32.gmra.mxu0 %v406
    %v1975 = vpop.f32.mrf.mxu0
    %v1976 = vadd.f32 0.0, %v1975
    %1977 = vmatmul.f32.gmra.mxu0 %v409
    %v1978 = vpop.f32.mrf.mxu0
    %v1979 = vadd.f32 0.0, %v1978
    %1980 = vmatmul.f32.gmra.mxu0 %v412
    %v1981 = vpop.f32.mrf.mxu0
    %v1982 = vadd.f32 0.0, %v1981
    %1983 = vmatmul.f32.gmra.mxu0 %v415
    %v1984 = vpop.f32.mrf.mxu0
    %v1985 = vadd.f32 0.0, %v1984
    %1986 = vmatmul.f32.gmra.mxu0 %v418
    %v1987 = vpop.f32.mrf.mxu0
    %v1988 = vadd.f32 0.0, %v1987
    %1989 = vmatmul.f32.gmra.mxu0 %v421
    %v1990 = vpop.f32.mrf.mxu0
    %v1991 = vadd.f32 0.0, %v1990
    %1992 = vmatmul.f32.gmra.mxu0 %v424
    %v1993 = vpop.f32.mrf.mxu0
    %v1994 = vadd.f32 0.0, %v1993
    %1995 = vmatmul.f32.gmra.mxu0 %v427
    %v1996 = vpop.f32.mrf.mxu0
    %v1997 = vadd.f32 0.0, %v1996
    %1998 = vmatmul.f32.gmra.mxu0 %v430
    %v1999 = vpop.f32.mrf.mxu0
    %v2000 = vadd.f32 0.0, %v1999
    %2001 = vmatmul.f32.gmra.mxu0 %v433
    %v2002 = vpop.f32.mrf.mxu0
    %v2003 = vadd.f32 0.0, %v2002
    %2004 = vmatmul.f32.gmra.mxu0 %v436
    %v2005 = vpop.f32.mrf.mxu0
    %v2006 = vadd.f32 0.0, %v2005
    %2007 = vmatmul.f32.gmra.mxu0 %v439
    %v2008 = vpop.f32.mrf.mxu0
    %v2009 = vadd.f32 0.0, %v2008
    %2010 = vmatmul.f32.gmra.mxu0 %v442
    %v2011 = vpop.f32.mrf.mxu0
    %v2012 = vadd.f32 0.0, %v2011
    %2013 = vmatmul.f32.gmra.mxu0 %v445
    %v2014 = vpop.f32.mrf.mxu0
    %v2015 = vadd.f32 0.0, %v2014
    %2016 = vmatmul.f32.gmra.mxu0 %v448
    %v2017 = vpop.f32.mrf.mxu0
    %v2018 = vadd.f32 0.0, %v2017
    %2019 = vmatmul.f32.gmra.mxu0 %v451
    %v2020 = vpop.f32.mrf.mxu0
    %v2021 = vadd.f32 0.0, %v2020
    %2022 = vmatmul.f32.gmra.mxu0 %v454
    %v2023 = vpop.f32.mrf.mxu0
    %v2024 = vadd.f32 0.0, %v2023
    %2025 = vmatmul.f32.gmra.mxu0 %v457
    %v2026 = vpop.f32.mrf.mxu0
    %v2027 = vadd.f32 0.0, %v2026
    %2028 = vmatmul.f32.gmra.mxu0 %v460
    %v2029 = vpop.f32.mrf.mxu0
    %v2030 = vadd.f32 0.0, %v2029
    %2031 = vmatmul.f32.gmra.mxu0 %v463
    %v2032 = vpop.f32.mrf.mxu0
    %v2033 = vadd.f32 0.0, %v2032
    %2034 = vmatmul.f32.gmra.mxu0 %v466
    %v2035 = vpop.f32.mrf.mxu0
    %v2036 = vadd.f32 0.0, %v2035
    %2037 = vmatmul.f32.gmra.mxu0 %v469
    %v2038 = vpop.f32.mrf.mxu0
    %v2039 = vadd.f32 0.0, %v2038
    %2040 = vmatmul.f32.gmra.mxu0 %v472
    %v2041 = vpop.f32.mrf.mxu0
    %v2042 = vadd.f32 0.0, %v2041
    %2043 = vmatmul.f32.gmra.mxu0 %v475
    %v2044 = vpop.f32.mrf.mxu0
    %v2045 = vadd.f32 0.0, %v2044
    %2046 = vmatmul.f32.gmra.mxu0 %v478
    %v2047 = vpop.f32.mrf.mxu0
    %v2048 = vadd.f32 0.0, %v2047
    %2049 = vmatmul.f32.gmra.mxu0 %v481
    %v2050 = vpop.f32.mrf.mxu0
    %v2051 = vadd.f32 0.0, %v2050
    %2052 = vmatmul.f32.gmra.mxu0 %v484
    %v2053 = vpop.f32.mrf.mxu0
    %v2054 = vadd.f32 0.0, %v2053
    %2055 = vmatmul.f32.gmra.mxu0 %v487
    %v2056 = vpop.f32.mrf.mxu0
    %v2057 = vadd.f32 0.0, %v2056
    %2058 = vmatmul.f32.gmra.mxu0 %v490
    %v2059 = vpop.f32.mrf.mxu0
    %v2060 = vadd.f32 0.0, %v2059
    %2061 = vmatmul.f32.gmra.mxu0 %v493
    %v2062 = vpop.f32.mrf.mxu0
    %v2063 = vadd.f32 0.0, %v2062
    %2064 = vmatmul.f32.gmra.mxu0 %v496
    %v2065 = vpop.f32.mrf.mxu0
    %v2066 = vadd.f32 0.0, %v2065
    %2067 = vmatmul.f32.gmra.mxu0 %v499
    %v2068 = vpop.f32.mrf.mxu0
    %v2069 = vadd.f32 0.0, %v2068
    %2070 = vmatmul.f32.gmra.mxu0 %v502
    %v2071 = vpop.f32.mrf.mxu0
    %v2072 = vadd.f32 0.0, %v2071
    %2073 = vmatmul.f32.gmra.mxu0 %v505
    %v2074 = vpop.f32.mrf.mxu0
    %v2075 = vadd.f32 0.0, %v2074
    %2076 = vmatmul.f32.gmra.mxu0 %v508
    %v2077 = vpop.f32.mrf.mxu0
    %v2078 = vadd.f32 0.0, %v2077
    %2079 = vmatmul.f32.gmra.mxu0 %v511
    %v2080 = vpop.f32.mrf.mxu0
    %v2081 = vadd.f32 0.0, %v2080
    %2082 = vmatmul.f32.gmra.mxu0 %v514
    %v2083 = vpop.f32.mrf.mxu0
    %v2084 = vadd.f32 0.0, %v2083
    %2085 = vmatmul.f32.gmra.mxu0 %v517
    %v2086 = vpop.f32.mrf.mxu0
    %v2087 = vadd.f32 0.0, %v2086
    %2088 = vmatmul.f32.gmra.mxu0 %v520
    %v2089 = vpop.f32.mrf.mxu0
    %v2090 = vadd.f32 0.0, %v2089
    %2091 = vmatmul.f32.gmra.mxu0 %v523
    %v2092 = vpop.f32.mrf.mxu0
    %v2093 = vadd.f32 0.0, %v2092
    %2094 = vmatmul.f32.gmra.mxu0 %v526
    %v2095 = vpop.f32.mrf.mxu0
    %v2096 = vadd.f32 0.0, %v2095
    %2097 = vmatmul.f32.gmra.mxu0 %v529
    %v2098 = vpop.f32.mrf.mxu0
    %v2099 = vadd.f32 0.0, %v2098
    %2100 = vmatmul.f32.gmra.mxu0 %v532
    %v2101 = vpop.f32.mrf.mxu0
    %v2102 = vadd.f32 0.0, %v2101
    %2103 = vmatmul.f32.gmra.mxu0 %v535
    %v2104 = vpop.f32.mrf.mxu0
    %v2105 = vadd.f32 0.0, %v2104
    %2106 = vmatmul.f32.gmra.mxu0 %v538
    %v2107 = vpop.f32.mrf.mxu0
    %v2108 = vadd.f32 0.0, %v2107
    %2109 = vmatmul.f32.gmra.mxu0 %v541
    %v2110 = vpop.f32.mrf.mxu0
    %v2111 = vadd.f32 0.0, %v2110
    %2112 = vmatmul.f32.gmra.mxu0 %v544
    %v2113 = vpop.f32.mrf.mxu0
    %v2114 = vadd.f32 0.0, %v2113
    %2115 = vmatmul.f32.gmra.mxu0 %v547
    %v2116 = vpop.f32.mrf.mxu0
    %v2117 = vadd.f32 0.0, %v2116
    %2118 = vmatmul.f32.gmra.mxu0 %v550
    %v2119 = vpop.f32.mrf.mxu0
    %v2120 = vadd.f32 0.0, %v2119
    %2121 = vmatmul.f32.gmra.mxu0 %v553
    %v2122 = vpop.f32.mrf.mxu0
    %v2123 = vadd.f32 0.0, %v2122
    %2124 = vmatmul.f32.gmra.mxu0 %v556
    %v2125 = vpop.f32.mrf.mxu0
    %v2126 = vadd.f32 0.0, %v2125
    %2127 = vmatmul.f32.gmra.mxu0 %v559
    %v2128 = vpop.f32.mrf.mxu0
    %v2129 = vadd.f32 0.0, %v2128
    %2130 = vmatmul.f32.gmra.mxu0 %v562
    %v2131 = vpop.f32.mrf.mxu0
    %v2132 = vadd.f32 0.0, %v2131
    %2133 = vmatmul.f32.gmra.mxu0 %v565
    %v2134 = vpop.f32.mrf.mxu0
    %v2135 = vadd.f32 0.0, %v2134
    %2136 = vmatmul.f32.gmra.mxu0 %v568
    %v2137 = vpop.f32.mrf.mxu0
    %v2138 = vadd.f32 0.0, %v2137
    %2139 = vmatmul.f32.gmra.mxu0 %v571
    %v2140 = vpop.f32.mrf.mxu0
    %v2141 = vadd.f32 0.0, %v2140
    %2142 = vmatmul.f32.gmra.mxu0 %v574
    %v2143 = vpop.f32.mrf.mxu0
    %v2144 = vadd.f32 0.0, %v2143
    %2145 = vmatmul.f32.gmra.mxu0 %v577
    %v2146 = vpop.f32.mrf.mxu0
    %v2147 = vadd.f32 0.0, %v2146
    %2148 = vmatmul.f32.gmra.mxu0 %v580
    %v2149 = vpop.f32.mrf.mxu0
    %v2150 = vadd.f32 0.0, %v2149
    %2151 = vmatmul.f32.gmra.mxu0 %v583
    %v2152 = vpop.f32.mrf.mxu0
    %v2153 = vadd.f32 0.0, %v2152
    %2154 = vmatmul.f32.gmra.mxu0 %v586
    %v2155 = vpop.f32.mrf.mxu0
    %v2156 = vadd.f32 0.0, %v2155
    %2157 = vmatmul.f32.gmra.mxu0 %v589
    %v2158 = vpop.f32.mrf.mxu0
    %v2159 = vadd.f32 0.0, %v2158
    %2160 = vmatmul.f32.gmra.mxu0 %v592
    %v2161 = vpop.f32.mrf.mxu0
    %v2162 = vadd.f32 0.0, %v2161
    %2163 = vmatmul.f32.gmra.mxu0 %v595
    %v2164 = vpop.f32.mrf.mxu0
    %v2165 = vadd.f32 0.0, %v2164
    %2166 = vmatmul.f32.gmra.mxu0 %v598
    %v2167 = vpop.f32.mrf.mxu0
    %v2168 = vadd.f32 0.0, %v2167
    %2169 = vmatmul.f32.gmra.mxu0 %v601
    %v2170 = vpop.f32.mrf.mxu0
    %v2171 = vadd.f32 0.0, %v2170
    %2172 = vmatmul.f32.gmra.mxu0 %v604
    %v2173 = vpop.f32.mrf.mxu0
    %v2174 = vadd.f32 0.0, %v2173
    %2175 = vmatmul.f32.gmra.mxu0 %v607
    %v2176 = vpop.f32.mrf.mxu0
    %v2177 = vadd.f32 0.0, %v2176
    %2178 = vmatmul.f32.gmra.mxu0 %v610
    %v2179 = vpop.f32.mrf.mxu0
    %v2180 = vadd.f32 0.0, %v2179
    %2181 = vmatmul.f32.gmra.mxu0 %v613
    %v2182 = vpop.f32.mrf.mxu0
    %v2183 = vadd.f32 0.0, %v2182
    %2184 = vmatmul.f32.gmra.mxu0 %v616
    %v2185 = vpop.f32.mrf.mxu0
    %v2186 = vadd.f32 0.0, %v2185
    %2187 = vmatmul.f32.gmra.mxu0 %v619
    %v2188 = vpop.f32.mrf.mxu0
    %v2189 = vadd.f32 0.0, %v2188
    %2190 = vmatmul.f32.gmra.mxu0 %v622
    %v2191 = vpop.f32.mrf.mxu0
    %v2192 = vadd.f32 0.0, %v2191
    %2193 = vmatmul.f32.gmra.mxu0 %v625
    %v2194 = vpop.f32.mrf.mxu0
    %v2195 = vadd.f32 0.0, %v2194
    %2196 = vmatmul.f32.gmra.mxu0 %v628
    %v2197 = vpop.f32.mrf.mxu0
    %v2198 = vadd.f32 0.0, %v2197
    %2199 = vmatmul.f32.gmra.mxu0 %v631
    %v2200 = vpop.f32.mrf.mxu0
    %v2201 = vadd.f32 0.0, %v2200
    %2202 = vmatmul.f32.gmra.mxu0 %v634
    %v2203 = vpop.f32.mrf.mxu0
    %v2204 = vadd.f32 0.0, %v2203
    %2205 = vmatmul.f32.gmra.mxu0 %v637
    %v2206 = vpop.f32.mrf.mxu0
    %v2207 = vadd.f32 0.0, %v2206
    %2208 = vmatmul.f32.gmra.mxu0 %v640
    %v2209 = vpop.f32.mrf.mxu0
    %v2210 = vadd.f32 0.0, %v2209
    %2211 = vmatmul.f32.gmra.mxu0 %v643
    %v2212 = vpop.f32.mrf.mxu0
    %v2213 = vadd.f32 0.0, %v2212
    %2214 = vmatmul.f32.gmra.mxu0 %v646
    %v2215 = vpop.f32.mrf.mxu0
    %v2216 = vadd.f32 0.0, %v2215
    %2217 = vmatmul.f32.gmra.mxu0 %v649
    %v2218 = vpop.f32.mrf.mxu0
    %v2219 = vadd.f32 0.0, %v2218
    %2220 = vmatmul.f32.gmra.mxu0 %v652
    %v2221 = vpop.f32.mrf.mxu0
    %v2222 = vadd.f32 0.0, %v2221
    %2223 = vmatmul.f32.gmra.mxu0 %v655
    %v2224 = vpop.f32.mrf.mxu0
    %v2225 = vadd.f32 0.0, %v2224
    %2226 = vmatmul.f32.gmra.mxu0 %v658
    %v2227 = vpop.f32.mrf.mxu0
    %v2228 = vadd.f32 0.0, %v2227
    %2229 = vmatmul.f32.gmra.mxu0 %v661
    %v2230 = vpop.f32.mrf.mxu0
    %v2231 = vadd.f32 0.0, %v2230
    %2232 = vmatmul.f32.gmra.mxu0 %v664
    %v2233 = vpop.f32.mrf.mxu0
    %v2234 = vadd.f32 0.0, %v2233
    %2235 = vmatmul.f32.gmra.mxu0 %v667
    %v2236 = vpop.f32.mrf.mxu0
    %v2237 = vadd.f32 0.0, %v2236
    %2238 = vmatmul.f32.gmra.mxu0 %v670
    %v2239 = vpop.f32.mrf.mxu0
    %v2240 = vadd.f32 0.0, %v2239
    %2241 = vmatmul.f32.gmra.mxu0 %v673
    %v2242 = vpop.f32.mrf.mxu0
    %v2243 = vadd.f32 0.0, %v2242
    %2244 = vmatmul.f32.gmra.mxu0 %v676
    %v2245 = vpop.f32.mrf.mxu0
    %v2246 = vadd.f32 0.0, %v2245
    %2247 = vmatmul.f32.gmra.mxu0 %v679
    %v2248 = vpop.f32.mrf.mxu0
    %v2249 = vadd.f32 0.0, %v2248
    %2250 = vmatmul.f32.gmra.mxu0 %v682
    %v2251 = vpop.f32.mrf.mxu0
    %v2252 = vadd.f32 0.0, %v2251
    %2253 = vmatmul.f32.gmra.mxu0 %v685
    %v2254 = vpop.f32.mrf.mxu0
    %v2255 = vadd.f32 0.0, %v2254
    %2256 = vmatmul.f32.gmra.mxu0 %v688
    %v2257 = vpop.f32.mrf.mxu0
    %v2258 = vadd.f32 0.0, %v2257
    %2259 = vmatmul.f32.gmra.mxu0 %v691
    %v2260 = vpop.f32.mrf.mxu0
    %v2261 = vadd.f32 0.0, %v2260
    %2262 = vmatmul.f32.gmra.mxu0 %v694
    %v2263 = vpop.f32.mrf.mxu0
    %v2264 = vadd.f32 0.0, %v2263
    %2265 = vmatmul.f32.gmra.mxu0 %v697
    %v2266 = vpop.f32.mrf.mxu0
    %v2267 = vadd.f32 0.0, %v2266
    %2268 = vmatmul.f32.gmra.mxu0 %v700
    %v2269 = vpop.f32.mrf.mxu0
    %v2270 = vadd.f32 0.0, %v2269
    %2271 = vmatmul.f32.gmra.mxu0 %v703
    %v2272 = vpop.f32.mrf.mxu0
    %v2273 = vadd.f32 0.0, %v2272
    %2274 = vmatmul.f32.gmra.mxu0 %v706
    %v2275 = vpop.f32.mrf.mxu0
    %v2276 = vadd.f32 0.0, %v2275
    %2277 = vmatmul.f32.gmra.mxu0 %v709
    %v2278 = vpop.f32.mrf.mxu0
    %v2279 = vadd.f32 0.0, %v2278
    %2280 = vmatmul.f32.gmra.mxu0 %v712
    %v2281 = vpop.f32.mrf.mxu0
    %v2282 = vadd.f32 0.0, %v2281
    %2283 = vmatmul.f32.gmra.mxu0 %v715
    %v2284 = vpop.f32.mrf.mxu0
    %v2285 = vadd.f32 0.0, %v2284
    %2286 = vmatmul.f32.gmra.mxu0 %v718
    %v2287 = vpop.f32.mrf.mxu0
    %v2288 = vadd.f32 0.0, %v2287
    %2289 = vmatmul.f32.gmra.mxu0 %v721
    %v2290 = vpop.f32.mrf.mxu0
    %v2291 = vadd.f32 0.0, %v2290
    %2292 = vmatmul.f32.gmra.mxu0 %v724
    %v2293 = vpop.f32.mrf.mxu0
    %v2294 = vadd.f32 0.0, %v2293
    %2295 = vmatmul.f32.gmra.mxu0 %v727
    %v2296 = vpop.f32.mrf.mxu0
    %v2297 = vadd.f32 0.0, %v2296
    %2298 = vmatmul.f32.gmra.mxu0 %v730
    %v2299 = vpop.f32.mrf.mxu0
    %v2300 = vadd.f32 0.0, %v2299
    %2301 = vmatmul.f32.gmra.mxu0 %v733
    %v2302 = vpop.f32.mrf.mxu0
    %v2303 = vadd.f32 0.0, %v2302
    %2304 = vmatmul.f32.gmra.mxu0 %v736
    %v2305 = vpop.f32.mrf.mxu0
    %v2306 = vadd.f32 0.0, %v2305
    %2307 = vmatmul.f32.gmra.mxu0 %v739
    %v2308 = vpop.f32.mrf.mxu0
    %v2309 = vadd.f32 0.0, %v2308
    %2310 = vmatmul.f32.gmra.mxu0 %v742
    %v2311 = vpop.f32.mrf.mxu0
    %v2312 = vadd.f32 0.0, %v2311
    %2313 = vmatmul.f32.gmra.mxu0 %v745
    %v2314 = vpop.f32.mrf.mxu0
    %v2315 = vadd.f32 0.0, %v2314
    %2316 = vmatmul.f32.gmra.mxu0 %v748
    %v2317 = vpop.f32.mrf.mxu0
    %v2318 = vadd.f32 0.0, %v2317
    %2319 = vmatmul.f32.gmra.mxu0 %v751
    %v2320 = vpop.f32.mrf.mxu0
    %v2321 = vadd.f32 0.0, %v2320
    %2322 = vmatmul.f32.gmra.mxu0 %v754
    %v2323 = vpop.f32.mrf.mxu0
    %v2324 = vadd.f32 0.0, %v2323
    %2325 = vmatmul.f32.gmra.mxu0 %v757
    %v2326 = vpop.f32.mrf.mxu0
    %v2327 = vadd.f32 0.0, %v2326
    %2328 = vmatmul.f32.gmra.mxu0 %v760
    %v2329 = vpop.f32.mrf.mxu0
    %v2330 = vadd.f32 0.0, %v2329
    %2331 = vmatmul.f32.gmra.mxu0 %v763
    %v2332 = vpop.f32.mrf.mxu0
    %v2333 = vadd.f32 0.0, %v2332
    %2334 = vmatmul.f32.gmra.mxu0 %v766
    %v2335 = vpop.f32.mrf.mxu0
    %v2336 = vadd.f32 0.0, %v2335
    %2337 = vmatmul.f32.gmra.mxu0 %v769
    %v2338 = vpop.f32.mrf.mxu0
    %v2339 = vadd.f32 0.0, %v2338
    %2340 = vmatmul.f32.gmra.mxu0 %v772
    %v2341 = vpop.f32.mrf.mxu0
    %v2342 = vadd.f32 0.0, %v2341
    %2343 = vmatmul.f32.gmra.mxu0 %v775
    %v2344 = vpop.f32.mrf.mxu0
    %v2345 = vadd.f32 0.0, %v2344
    %2346 = vmatmul.f32.gmra.mxu0 %v778
    %v2347 = vpop.f32.mrf.mxu0
    %v2348 = vadd.f32 0.0, %v2347
    %2349 = vmatmul.f32.gmra.mxu0 %v781
    %v2350 = vpop.f32.mrf.mxu0
    %v2351 = vadd.f32 0.0, %v2350
    %2352 = vmatmul.f32.gmra.mxu0 %v784
    %v2353 = vpop.f32.mrf.mxu0
    %v2354 = vadd.f32 0.0, %v2353
    %2355 = vmatmul.f32.gmra.mxu0 %v787
    %v2356 = vpop.f32.mrf.mxu0
    %v2357 = vadd.f32 0.0, %v2356
    %2358 = vmatmul.f32.gmra.mxu0 %v790
    %v2359 = vpop.f32.mrf.mxu0
    %v2360 = vadd.f32 0.0, %v2359
    %2361 = vmatmul.f32.gmra.mxu0 %v793
    %v2362 = vpop.f32.mrf.mxu0
    %v2363 = vadd.f32 0.0, %v2362
    %2364 = vmatmul.f32.gmra.mxu0 %v796
    %v2365 = vpop.f32.mrf.mxu0
    %v2366 = vadd.f32 0.0, %v2365
    %2367 = vmatmul.f32.gmra.mxu0 %v799
    %v2368 = vpop.f32.mrf.mxu0
    %v2369 = vadd.f32 0.0, %v2368
    %2370 = vmatmul.f32.gmra.mxu0 %v802
    %v2371 = vpop.f32.mrf.mxu0
    %v2372 = vadd.f32 0.0, %v2371
    %2373 = vmatmul.f32.gmra.mxu0 %v805
    %v2374 = vpop.f32.mrf.mxu0
    %v2375 = vadd.f32 0.0, %v2374
    %2376 = vmatmul.f32.gmra.mxu0 %v808
    %v2377 = vpop.f32.mrf.mxu0
    %v2378 = vadd.f32 0.0, %v2377
    %2379 = vmatmul.f32.gmra.mxu0 %v811
    %v2380 = vpop.f32.mrf.mxu0
    %v2381 = vadd.f32 0.0, %v2380
    %2382 = vmatmul.f32.gmra.mxu0 %v814
    %v2383 = vpop.f32.mrf.mxu0
    %v2384 = vadd.f32 0.0, %v2383
    %2385 = vmatmul.f32.gmra.mxu0 %v817
    %v2386 = vpop.f32.mrf.mxu0
    %v2387 = vadd.f32 0.0, %v2386
    %2388 = vmatmul.f32.gmra.mxu0 %v820
    %v2389 = vpop.f32.mrf.mxu0
    %v2390 = vadd.f32 0.0, %v2389
    %2391 = vmatmul.f32.gmra.mxu0 %v823
    %v2392 = vpop.f32.mrf.mxu0
    %v2393 = vadd.f32 0.0, %v2392
    %2394 = vmatmul.f32.gmra.mxu0 %v826
    %v2395 = vpop.f32.mrf.mxu0
    %v2396 = vadd.f32 0.0, %v2395
    %2397 = vmatmul.f32.gmra.mxu0 %v829
    %v2398 = vpop.f32.mrf.mxu0
    %v2399 = vadd.f32 0.0, %v2398
    %2400 = vmatmul.f32.gmra.mxu0 %v832
    %v2401 = vpop.f32.mrf.mxu0
    %v2402 = vadd.f32 0.0, %v2401
    %2403 = vmatmul.f32.gmra.mxu0 %v835
    %v2404 = vpop.f32.mrf.mxu0
    %v2405 = vadd.f32 0.0, %v2404
    %2406 = vmatmul.f32.gmra.mxu0 %v838
    %v2407 = vpop.f32.mrf.mxu0
    %v2408 = vadd.f32 0.0, %v2407
    %2409 = vmatmul.f32.gmra.mxu0 %v841
    %v2410 = vpop.f32.mrf.mxu0
    %v2411 = vadd.f32 0.0, %v2410
    %2412 = vmatmul.f32.gmra.mxu0 %v844
    %v2413 = vpop.f32.mrf.mxu0
    %v2414 = vadd.f32 0.0, %v2413
    %2415 = vmatmul.f32.gmra.mxu0 %v847
    %v2416 = vpop.f32.mrf.mxu0
    %v2417 = vadd.f32 0.0, %v2416
    %2418 = vmatmul.f32.gmra.mxu0 %v850
    %v2419 = vpop.f32.mrf.mxu0
    %v2420 = vadd.f32 0.0, %v2419
    %2421 = vmatmul.f32.gmra.mxu0 %v853
    %v2422 = vpop.f32.mrf.mxu0
    %v2423 = vadd.f32 0.0, %v2422
    %2424 = vmatmul.f32.gmra.mxu0 %v856
    %v2425 = vpop.f32.mrf.mxu0
    %v2426 = vadd.f32 0.0, %v2425
    %2427 = vmatmul.f32.gmra.mxu0 %v859
    %v2428 = vpop.f32.mrf.mxu0
    %v2429 = vadd.f32 0.0, %v2428
    %2430 = vmatmul.f32.gmra.mxu0 %v862
    %v2431 = vpop.f32.mrf.mxu0
    %v2432 = vadd.f32 0.0, %v2431
    %2433 = vmatmul.f32.gmra.mxu0 %v865
    %v2434 = vpop.f32.mrf.mxu0
    %v2435 = vadd.f32 0.0, %v2434
    %2436 = vmatmul.f32.gmra.mxu0 %v868
    %v2437 = vpop.f32.mrf.mxu0
    %v2438 = vadd.f32 0.0, %v2437
    %2439 = vmatmul.f32.gmra.mxu0 %v871
    %v2440 = vpop.f32.mrf.mxu0
    %v2441 = vadd.f32 0.0, %v2440
    %2442 = vmatmul.f32.gmra.mxu0 %v874
    %v2443 = vpop.f32.mrf.mxu0
    %v2444 = vadd.f32 0.0, %v2443
    %2445 = vmatmul.f32.gmra.mxu0 %v877
    %v2446 = vpop.f32.mrf.mxu0
    %v2447 = vadd.f32 0.0, %v2446
    %2448 = vmatmul.f32.gmra.mxu0 %v880
    %v2449 = vpop.f32.mrf.mxu0
    %v2450 = vadd.f32 0.0, %v2449
    %2451 = vmatmul.f32.gmra.mxu0 %v883
    %v2452 = vpop.f32.mrf.mxu0
    %v2453 = vadd.f32 0.0, %v2452
    %2454 = vmatmul.f32.gmra.mxu0 %v886
    %v2455 = vpop.f32.mrf.mxu0
    %v2456 = vadd.f32 0.0, %v2455
    %2457 = vmatmul.f32.gmra.mxu0 %v889
    %v2458 = vpop.f32.mrf.mxu0
    %v2459 = vadd.f32 0.0, %v2458
    %2460 = vmatmul.f32.gmra.mxu0 %v892
    %v2461 = vpop.f32.mrf.mxu0
    %v2462 = vadd.f32 0.0, %v2461
    %2463 = vmatmul.f32.gmra.mxu0 %v895
    %v2464 = vpop.f32.mrf.mxu0
    %v2465 = vadd.f32 0.0, %v2464
    %2466 = vmatmul.f32.gmra.mxu0 %v898
    %v2467 = vpop.f32.mrf.mxu0
    %v2468 = vadd.f32 0.0, %v2467
    %2469 = vmatmul.f32.gmra.mxu0 %v901
    %v2470 = vpop.f32.mrf.mxu0
    %v2471 = vadd.f32 0.0, %v2470
    %2472 = vmatmul.f32.gmra.mxu0 %v904
    %v2473 = vpop.f32.mrf.mxu0
    %v2474 = vadd.f32 0.0, %v2473
    %2475 = vmatmul.f32.gmra.mxu0 %v907
    %v2476 = vpop.f32.mrf.mxu0
    %v2477 = vadd.f32 0.0, %v2476
    %2478 = vmatmul.f32.gmra.mxu0 %v910
    %v2479 = vpop.f32.mrf.mxu0
    %v2480 = vadd.f32 0.0, %v2479
    %2481 = vmatmul.f32.gmra.mxu0 %v913
    %v2482 = vpop.f32.mrf.mxu0
    %v2483 = vadd.f32 0.0, %v2482
    %2484 = vmatmul.f32.gmra.mxu0 %v916
    %v2485 = vpop.f32.mrf.mxu0
    %v2486 = vadd.f32 0.0, %v2485
    %2487 = vmatmul.f32.gmra.mxu0 %v919
    %v2488 = vpop.f32.mrf.mxu0
    %v2489 = vadd.f32 0.0, %v2488
    %2490 = vmatmul.f32.gmra.mxu0 %v922
    %v2491 = vpop.f32.mrf.mxu0
    %v2492 = vadd.f32 0.0, %v2491
    %2493 = vmatmul.f32.gmra.mxu0 %v925
    %v2494 = vpop.f32.mrf.mxu0
    %v2495 = vadd.f32 0.0, %v2494
    %2496 = vmatmul.f32.gmra.mxu0 %v928
    %v2497 = vpop.f32.mrf.mxu0
    %v2498 = vadd.f32 0.0, %v2497
    %2499 = vmatmul.f32.gmra.mxu0 %v931
    %v2500 = vpop.f32.mrf.mxu0
    %v2501 = vadd.f32 0.0, %v2500
    %2502 = vmatmul.f32.gmra.mxu0 %v934
    %v2503 = vpop.f32.mrf.mxu0
    %v2504 = vadd.f32 0.0, %v2503
    %2505 = vmatmul.f32.gmra.mxu0 %v937
    %v2506 = vpop.f32.mrf.mxu0
    %v2507 = vadd.f32 0.0, %v2506
    %2508 = vmatmul.f32.gmra.mxu0 %v940
    %v2509 = vpop.f32.mrf.mxu0
    %v2510 = vadd.f32 0.0, %v2509
    %2511 = vmatmul.f32.gmra.mxu0 %v943
    %v2512 = vpop.f32.mrf.mxu0
    %v2513 = vadd.f32 0.0, %v2512
    %2514 = vmatmul.f32.gmra.mxu0 %v946
    %v2515 = vpop.f32.mrf.mxu0
    %v2516 = vadd.f32 0.0, %v2515
    %2517 = vmatmul.f32.gmra.mxu0 %v949
    %v2518 = vpop.f32.mrf.mxu0
    %v2519 = vadd.f32 0.0, %v2518
    %2520 = vmatmul.f32.gmra.mxu0 %v952
    %v2521 = vpop.f32.mrf.mxu0
    %v2522 = vadd.f32 0.0, %v2521
    %2523 = vmatmul.f32.gmra.mxu0 %v955
    %v2524 = vpop.f32.mrf.mxu0
    %v2525 = vadd.f32 0.0, %v2524
    %2526 = vmatmul.f32.gmra.mxu0 %v958
    %v2527 = vpop.f32.mrf.mxu0
    %v2528 = vadd.f32 0.0, %v2527
    %2529 = vmatmul.f32.gmra.mxu0 %v961
    %v2530 = vpop.f32.mrf.mxu0
    %v2531 = vadd.f32 0.0, %v2530
    %2532 = vmatmul.f32.gmra.mxu0 %v964
    %v2533 = vpop.f32.mrf.mxu0
    %v2534 = vadd.f32 0.0, %v2533
    %2535 = vmatmul.f32.gmra.mxu0 %v967
    %v2536 = vpop.f32.mrf.mxu0
    %v2537 = vadd.f32 0.0, %v2536
    %2538 = vmatmul.f32.gmra.mxu0 %v970
    %v2539 = vpop.f32.mrf.mxu0
    %v2540 = vadd.f32 0.0, %v2539
    %2541 = vmatmul.f32.gmra.mxu0 %v973
    %v2542 = vpop.f32.mrf.mxu0
    %v2543 = vadd.f32 0.0, %v2542
    %2544 = vmatmul.f32.gmra.mxu0 %v976
    %v2545 = vpop.f32.mrf.mxu0
    %v2546 = vadd.f32 0.0, %v2545
    %2547 = vmatmul.f32.gmra.mxu0 %v979
    %v2548 = vpop.f32.mrf.mxu0
    %v2549 = vadd.f32 0.0, %v2548
    %2550 = vmatmul.f32.gmra.mxu0 %v982
    %v2551 = vpop.f32.mrf.mxu0
    %v2552 = vadd.f32 0.0, %v2551
    %2553 = vmatmul.f32.gmra.mxu0 %v985
    %v2554 = vpop.f32.mrf.mxu0
    %v2555 = vadd.f32 0.0, %v2554
    %2556 = vmatmul.f32.gmra.mxu0 %v988
    %v2557 = vpop.f32.mrf.mxu0
    %v2558 = vadd.f32 0.0, %v2557
    %2559 = vmatmul.f32.gmra.mxu0 %v991
    %v2560 = vpop.f32.mrf.mxu0
    %v2561 = vadd.f32 0.0, %v2560
    %2562 = vmatmul.f32.gmra.mxu0 %v994
    %v2563 = vpop.f32.mrf.mxu0
    %v2564 = vadd.f32 0.0, %v2563
    %2565 = vmatmul.f32.gmra.mxu0 %v997
    %v2566 = vpop.f32.mrf.mxu0
    %v2567 = vadd.f32 0.0, %v2566
    %2568 = vmatmul.f32.gmra.mxu0 %v1000
    %v2569 = vpop.f32.mrf.mxu0
    %v2570 = vadd.f32 0.0, %v2569
    %2571 = vmatmul.f32.gmra.mxu0 %v1003
    %v2572 = vpop.f32.mrf.mxu0
    %v2573 = vadd.f32 0.0, %v2572
    %2574 = vmatmul.f32.gmra.mxu0 %v1006
    %v2575 = vpop.f32.mrf.mxu0
    %v2576 = vadd.f32 0.0, %v2575
    %2577 = vmatmul.f32.gmra.mxu0 %v1009
    %v2578 = vpop.f32.mrf.mxu0
    %v2579 = vadd.f32 0.0, %v2578
    %2580 = vmatmul.f32.gmra.mxu0 %v1012
    %v2581 = vpop.f32.mrf.mxu0
    %v2582 = vadd.f32 0.0, %v2581
    %2583 = vmatmul.f32.gmra.mxu0 %v1015
    %v2584 = vpop.f32.mrf.mxu0
    %v2585 = vadd.f32 0.0, %v2584
    %2586 = vmatmul.f32.gmra.mxu0 %v1018
    %v2587 = vpop.f32.mrf.mxu0
    %v2588 = vadd.f32 0.0, %v2587
    %2589 = vmatmul.f32.gmra.mxu0 %v1021
    %v2590 = vpop.f32.mrf.mxu0
    %v2591 = vadd.f32 0.0, %v2590
    %2592 = vmatmul.f32.gmra.mxu0 %v1024
    %v2593 = vpop.f32.mrf.mxu0
    %v2594 = vadd.f32 0.0, %v2593
    %2595 = vmatmul.f32.gmra.mxu0 %v1027
    %v2596 = vpop.f32.mrf.mxu0
    %v2597 = vadd.f32 0.0, %v2596
    %2598 = vmatmul.f32.gmra.mxu0 %v1030
    %v2599 = vpop.f32.mrf.mxu0
    %v2600 = vadd.f32 0.0, %v2599
    %2601 = vmatmul.f32.gmra.mxu0 %v1033
    %v2602 = vpop.f32.mrf.mxu0
    %v2603 = vadd.f32 0.0, %v2602
    %2604 = vmatmul.f32.gmra.mxu0 %v1036
    %v2605 = vpop.f32.mrf.mxu0
    %v2606 = vadd.f32 0.0, %v2605
    %2607 = vmatmul.f32.gmra.mxu0 %v1039
    %v2608 = vpop.f32.mrf.mxu0
    %v2609 = vadd.f32 0.0, %v2608
    %2610 = vmatmul.f32.gmra.mxu0 %v1042
    %v2611 = vpop.f32.mrf.mxu0
    %v2612 = vadd.f32 0.0, %v2611
    %2613 = vmatmul.f32.gmra.mxu0 %v1045
    %v2614 = vpop.f32.mrf.mxu0
    %v2615 = vadd.f32 0.0, %v2614
    %2616 = vmatmul.f32.gmra.mxu0 %v1048
    %v2617 = vpop.f32.mrf.mxu0
    %v2618 = vadd.f32 0.0, %v2617
    %2619 = vmatmul.f32.gmra.mxu0 %v1051
    %v2620 = vpop.f32.mrf.mxu0
    %v2621 = vadd.f32 0.0, %v2620
    %2622 = vmatmul.f32.gmra.mxu0 %v1054
    %v2623 = vpop.f32.mrf.mxu0
    %v2624 = vadd.f32 0.0, %v2623
    %2625 = vmatmul.f32.gmra.mxu0 %v1057
    %v2626 = vpop.f32.mrf.mxu0
    %v2627 = vadd.f32 0.0, %v2626
    %2628 = vdwg.mxu0
    %v2633 = vrot.slane %v278, 7
    %v2634 = vrot.slane %v280, 7
    %vm2635 = vcmask 1040384
    %v2636 = vsel %vm2635, %v277, %v2633
    %vm2637 = vcmask 1041409
    %v2638 = vsel %vm2637, %v277, %v2633
    %v2639 = vrot.slane %v2638, 1
    %vm2640 = vcmask 1042434
    %v2641 = vsel %vm2640, %v277, %v2633
    %v2642 = vrot.slane %v2641, 2
    %vm2643 = vcmask 1043459
    %v2644 = vsel %vm2643, %v277, %v2633
    %v2645 = vrot.slane %v2644, 3
    %vm2646 = vcmask 1044484
    %v2647 = vsel %vm2646, %v277, %v2633
    %v2648 = vrot.slane %v2647, 4
    %vm2649 = vcmask 1045509
    %v2650 = vsel %vm2649, %v277, %v2633
    %v2651 = vrot.slane %v2650, 5
    %vm2652 = vcmask 1046534
    %v2653 = vsel %vm2652, %v277, %v2633
    %v2654 = vrot.slane %v2653, 6
    %vm2655 = vcmask 1046528
    %v2656 = vsel %vm2655, %v2633, %v277
    %v2657 = vrot.slane %v2656, 7
    %v2658 = vsel %vm2635, %v279, %v2634
    %v2659 = vsel %vm2637, %v279, %v2634
    %v2660 = vrot.slane %v2659, 1
    %v2661 = vsel %vm2640, %v279, %v2634
    %v2662 = vrot.slane %v2661, 2
    %v2663 = vsel %vm2643, %v279, %v2634
    %v2664 = vrot.slane %v2663, 3
    %v2665 = vsel %vm2646, %v279, %v2634
    %v2666 = vrot.slane %v2665, 4
    %v2667 = vsel %vm2649, %v279, %v2634
    %v2668 = vrot.slane %v2667, 5
    %v2669 = vsel %vm2652, %v279, %v2634
    %v2670 = vrot.slane %v2669, 6
    %v2671 = vsel %vm2655, %v2634, %v279
    %v2672 = vrot.slane %v2671, 7
    %v2673 = vperm.slane %v2636, 0
    %v2674 = vperm.slane %v2636, 1
    %v2675 = vperm.slane %v2639, 0
    %v2676 = vperm.slane %v2639, 1
    %v2677 = vperm.slane %v2642, 0
    %v2678 = vperm.slane %v2642, 1
    %v2679 = vperm.slane %v2645, 0
    %v2680 = vperm.slane %v2645, 1
    %v2681 = vperm.slane %v2648, 0
    %v2682 = vperm.slane %v2648, 1
    %v2683 = vperm.slane %v2651, 0
    %v2684 = vperm.slane %v2651, 1
    %v2685 = vperm.slane %v2654, 0
    %v2686 = vperm.slane %v2654, 1
    %v2687 = vperm.slane %v2657, 0
    %v2688 = vperm.slane %v2657, 1
    %v2689 = vperm.slane %v2658, 0
    %v2690 = vperm.slane %v2658, 1
    %v2691 = vperm.slane %v2660, 0
    %v2692 = vperm.slane %v2660, 1
    %v2693 = vperm.slane %v2662, 0
    %v2694 = vperm.slane %v2662, 1
    %v2695 = vperm.slane %v2664, 0
    %v2696 = vperm.slane %v2664, 1
    %v2697 = vperm.slane %v2666, 0
    %v2698 = vperm.slane %v2666, 1
    %v2699 = vperm.slane %v2668, 0
    %v2700 = vperm.slane %v2668, 1
    %v2701 = vperm.slane %v2670, 0
    %v2702 = vperm.slane %v2670, 1
    %v2703 = vperm.slane %v2672, 0
    %v2704 = vperm.slane %v2672, 1
    %v2737 = vadd.f32 %v1077, %v2673
    %v2738 = vadd.f32 %v1862, %v2674
    %v2739 = vadd.f32 %v1080, %v2673
    %v2740 = vadd.f32 %v1865, %v2674
    %v2741 = vadd.f32 %v1083, %v2673
    %v2742 = vadd.f32 %v1868, %v2674
    %v2743 = vadd.f32 %v1086, %v2673
    %v2744 = vadd.f32 %v1871, %v2674
    %v2745 = vadd.f32 %v1089, %v2673
    %v2746 = vadd.f32 %v1874, %v2674
    %v2747 = vadd.f32 %v1092, %v2673
    %v2748 = vadd.f32 %v1877, %v2674
    %v2749 = vadd.f32 %v1095, %v2673
    %v2750 = vadd.f32 %v1880, %v2674
    %v2751 = vadd.f32 %v1098, %v2673
    %v2752 = vadd.f32 %v1883, %v2674
    %v2753 = vadd.f32 %v1101, %v2673
    %v2754 = vadd.f32 %v1886, %v2674
    %v2755 = vadd.f32 %v1104, %v2673
    %v2756 = vadd.f32 %v1889, %v2674
    %v2757 = vadd.f32 %v1107, %v2673
    %v2758 = vadd.f32 %v1892, %v2674
    %v2759 = vadd.f32 %v1110, %v2673
    %v2760 = vadd.f32 %v1895, %v2674
    %v2761 = vadd.f32 %v1113, %v2673
    %v2762 = vadd.f32 %v1898, %v2674
    %v2763 = vadd.f32 %v1116, %v2673
    %v2764 = vadd.f32 %v1901, %v2674
    %v2765 = vadd.f32 %v1119, %v2673
    %v2766 = vadd.f32 %v1904, %v2674
    %v2767 = vadd.f32 %v1122, %v2673
    %v2768 = vadd.f32 %v1907, %v2674
    %v2769 = vadd.f32 %v1125, %v2675
    %v2770 = vadd.f32 %v1910, %v2676
    %v2771 = vadd.f32 %v1128, %v2675
    %v2772 = vadd.f32 %v1913, %v2676
    %v2773 = vadd.f32 %v1131, %v2675
    %v2774 = vadd.f32 %v1916, %v2676
    %v2775 = vadd.f32 %v1134, %v2675
    %v2776 = vadd.f32 %v1919, %v2676
    %v2777 = vadd.f32 %v1137, %v2675
    %v2778 = vadd.f32 %v1922, %v2676
    %v2779 = vadd.f32 %v1140, %v2675
    %v2780 = vadd.f32 %v1925, %v2676
    %v2781 = vadd.f32 %v1143, %v2675
    %v2782 = vadd.f32 %v1928, %v2676
    %v2783 = vadd.f32 %v1146, %v2675
    %v2784 = vadd.f32 %v1931, %v2676
    %v2785 = vadd.f32 %v1149, %v2675
    %v2786 = vadd.f32 %v1934, %v2676
    %v2787 = vadd.f32 %v1152, %v2675
    %v2788 = vadd.f32 %v1937, %v2676
    %v2789 = vadd.f32 %v1155, %v2675
    %v2790 = vadd.f32 %v1940, %v2676
    %v2791 = vadd.f32 %v1158, %v2675
    %v2792 = vadd.f32 %v1943, %v2676
    %v2793 = vadd.f32 %v1161, %v2675
    %v2794 = vadd.f32 %v1946, %v2676
    %v2795 = vadd.f32 %v1164, %v2675
    %v2796 = vadd.f32 %v1949, %v2676
    %v2797 = vadd.f32 %v1167, %v2675
    %v2798 = vadd.f32 %v1952, %v2676
    %v2799 = vadd.f32 %v1170, %v2675
    %v2800 = vadd.f32 %v1955, %v2676
    %v2801 = vadd.f32 %v1173, %v2677
    %v2802 = vadd.f32 %v1958, %v2678
    %v2803 = vadd.f32 %v1176, %v2677
    %v2804 = vadd.f32 %v1961, %v2678
    %v2805 = vadd.f32 %v1179, %v2677
    %v2806 = vadd.f32 %v1964, %v2678
    %v2807 = vadd.f32 %v1182, %v2677
    %v2808 = vadd.f32 %v1967, %v2678
    %v2809 = vadd.f32 %v1185, %v2677
    %v2810 = vadd.f32 %v1970, %v2678
    %v2811 = vadd.f32 %v1188, %v2677
    %v2812 = vadd.f32 %v1973, %v2678
    %v2813 = vadd.f32 %v1191, %v2677
    %v2814 = vadd.f32 %v1976, %v2678
    %v2815 = vadd.f32 %v1194, %v2677
    %v2816 = vadd.f32 %v1979, %v2678
    %v2817 = vadd.f32 %v1197, %v2677
    %v2818 = vadd.f32 %v1982, %v2678
    %v2819 = vadd.f32 %v1200, %v2677
    %v2820 = vadd.f32 %v1985, %v2678
    %v2821 = vadd.f32 %v1203, %v2677
    %v2822 = vadd.f32 %v1988, %v2678
    %v2823 = vadd.f32 %v1206, %v2677
    %v2824 = vadd.f32 %v1991, %v2678
    %v2825 = vadd.f32 %v1209, %v2677
    %v2826 = vadd.f32 %v1994, %v2678
    %v2827 = vadd.f32 %v1212, %v2677
    %v2828 = vadd.f32 %v1997, %v2678
    %v2829 = vadd.f32 %v1215, %v2677
    %v2830 = vadd.f32 %v2000, %v2678
    %v2831 = vadd.f32 %v1218, %v2677
    %v2832 = vadd.f32 %v2003, %v2678
    %v2833 = vadd.f32 %v1221, %v2679
    %v2834 = vadd.f32 %v2006, %v2680
    %v2835 = vadd.f32 %v1224, %v2679
    %v2836 = vadd.f32 %v2009, %v2680
    %v2837 = vadd.f32 %v1227, %v2679
    %v2838 = vadd.f32 %v2012, %v2680
    %v2839 = vadd.f32 %v1230, %v2679
    %v2840 = vadd.f32 %v2015, %v2680
    %v2841 = vadd.f32 %v1233, %v2679
    %v2842 = vadd.f32 %v2018, %v2680
    %v2843 = vadd.f32 %v1236, %v2679
    %v2844 = vadd.f32 %v2021, %v2680
    %v2845 = vadd.f32 %v1239, %v2679
    %v2846 = vadd.f32 %v2024, %v2680
    %v2847 = vadd.f32 %v1242, %v2679
    %v2848 = vadd.f32 %v2027, %v2680
    %v2849 = vadd.f32 %v1245, %v2679
    %v2850 = vadd.f32 %v2030, %v2680
    %v2851 = vadd.f32 %v1248, %v2679
    %v2852 = vadd.f32 %v2033, %v2680
    %v2853 = vadd.f32 %v1251, %v2679
    %v2854 = vadd.f32 %v2036, %v2680
    %v2855 = vadd.f32 %v1254, %v2679
    %v2856 = vadd.f32 %v2039, %v2680
    %v2857 = vadd.f32 %v1257, %v2679
    %v2858 = vadd.f32 %v2042, %v2680
    %v2859 = vadd.f32 %v1260, %v2679
    %v2860 = vadd.f32 %v2045, %v2680
    %v2861 = vadd.f32 %v1263, %v2679
    %v2862 = vadd.f32 %v2048, %v2680
    %v2863 = vadd.f32 %v1266, %v2679
    %v2864 = vadd.f32 %v2051, %v2680
    %v2865 = vadd.f32 %v1269, %v2681
    %v2866 = vadd.f32 %v2054, %v2682
    %v2867 = vadd.f32 %v1272, %v2681
    %v2868 = vadd.f32 %v2057, %v2682
    %v2869 = vadd.f32 %v1275, %v2681
    %v2870 = vadd.f32 %v2060, %v2682
    %v2871 = vadd.f32 %v1278, %v2681
    %v2872 = vadd.f32 %v2063, %v2682
    %v2873 = vadd.f32 %v1281, %v2681
    %v2874 = vadd.f32 %v2066, %v2682
    %v2875 = vadd.f32 %v1284, %v2681
    %v2876 = vadd.f32 %v2069, %v2682
    %v2877 = vadd.f32 %v1287, %v2681
    %v2878 = vadd.f32 %v2072, %v2682
    %v2879 = vadd.f32 %v1290, %v2681
    %v2880 = vadd.f32 %v2075, %v2682
    %v2881 = vadd.f32 %v1293, %v2681
    %v2882 = vadd.f32 %v2078, %v2682
    %v2883 = vadd.f32 %v1296, %v2681
    %v2884 = vadd.f32 %v2081, %v2682
    %v2885 = vadd.f32 %v1299, %v2681
    %v2886 = vadd.f32 %v2084, %v2682
    %v2887 = vadd.f32 %v1302, %v2681
    %v2888 = vadd.f32 %v2087, %v2682
    %v2889 = vadd.f32 %v1305, %v2681
    %v2890 = vadd.f32 %v2090, %v2682
    %v2891 = vadd.f32 %v1308, %v2681
    %v2892 = vadd.f32 %v2093, %v2682
    %v2893 = vadd.f32 %v1311, %v2681
    %v2894 = vadd.f32 %v2096, %v2682
    %v2895 = vadd.f32 %v1314, %v2681
    %v2896 = vadd.f32 %v2099, %v2682
    %v2897 = vadd.f32 %v1317, %v2683
    %v2898 = vadd.f32 %v2102, %v2684
    %v2899 = vadd.f32 %v1320, %v2683
    %v2900 = vadd.f32 %v2105, %v2684
    %v2901 = vadd.f32 %v1323, %v2683
    %v2902 = vadd.f32 %v2108, %v2684
    %v2903 = vadd.f32 %v1326, %v2683
    %v2904 = vadd.f32 %v2111, %v2684
    %v2905 = vadd.f32 %v1329, %v2683
    %v2906 = vadd.f32 %v2114, %v2684
    %v2907 = vadd.f32 %v1332, %v2683
    %v2908 = vadd.f32 %v2117, %v2684
    %v2909 = vadd.f32 %v1335, %v2683
    %v2910 = vadd.f32 %v2120, %v2684
    %v2911 = vadd.f32 %v1338, %v2683
    %v2912 = vadd.f32 %v2123, %v2684
    %v2913 = vadd.f32 %v1341, %v2683
    %v2914 = vadd.f32 %v2126, %v2684
    %v2915 = vadd.f32 %v1344, %v2683
    %v2916 = vadd.f32 %v2129, %v2684
    %v2917 = vadd.f32 %v1347, %v2683
    %v2918 = vadd.f32 %v2132, %v2684
    %v2919 = vadd.f32 %v1350, %v2683
    %v2920 = vadd.f32 %v2135, %v2684
    %v2921 = vadd.f32 %v1353, %v2683
    %v2922 = vadd.f32 %v2138, %v2684
    %v2923 = vadd.f32 %v1356, %v2683
    %v2924 = vadd.f32 %v2141, %v2684
    %v2925 = vadd.f32 %v1359, %v2683
    %v2926 = vadd.f32 %v2144, %v2684
    %v2927 = vadd.f32 %v1362, %v2683
    %v2928 = vadd.f32 %v2147, %v2684
    %v2929 = vadd.f32 %v1365, %v2685
    %v2930 = vadd.f32 %v2150, %v2686
    %v2931 = vadd.f32 %v1368, %v2685
    %v2932 = vadd.f32 %v2153, %v2686
    %v2933 = vadd.f32 %v1371, %v2685
    %v2934 = vadd.f32 %v2156, %v2686
    %v2935 = vadd.f32 %v1374, %v2685
    %v2936 = vadd.f32 %v2159, %v2686
    %v2937 = vadd.f32 %v1377, %v2685
    %v2938 = vadd.f32 %v2162, %v2686
    %v2939 = vadd.f32 %v1380, %v2685
    %v2940 = vadd.f32 %v2165, %v2686
    %v2941 = vadd.f32 %v1383, %v2685
    %v2942 = vadd.f32 %v2168, %v2686
    %v2943 = vadd.f32 %v1386, %v2685
    %v2944 = vadd.f32 %v2171, %v2686
    %v2945 = vadd.f32 %v1389, %v2685
    %v2946 = vadd.f32 %v2174, %v2686
    %v2947 = vadd.f32 %v1392, %v2685
    %v2948 = vadd.f32 %v2177, %v2686
    %v2949 = vadd.f32 %v1395, %v2685
    %v2950 = vadd.f32 %v2180, %v2686
    %v2951 = vadd.f32 %v1398, %v2685
    %v2952 = vadd.f32 %v2183, %v2686
    %v2953 = vadd.f32 %v1401, %v2685
    %v2954 = vadd.f32 %v2186, %v2686
    %v2955 = vadd.f32 %v1404, %v2685
    %v2956 = vadd.f32 %v2189, %v2686
    %v2957 = vadd.f32 %v1407, %v2685
    %v2958 = vadd.f32 %v2192, %v2686
    %v2959 = vadd.f32 %v1410, %v2685
    %v2960 = vadd.f32 %v2195, %v2686
    %v2961 = vadd.f32 %v1413, %v2687
    %v2962 = vadd.f32 %v2198, %v2688
    %v2963 = vadd.f32 %v1416, %v2687
    %v2964 = vadd.f32 %v2201, %v2688
    %v2965 = vadd.f32 %v1419, %v2687
    %v2966 = vadd.f32 %v2204, %v2688
    %v2967 = vadd.f32 %v1422, %v2687
    %v2968 = vadd.f32 %v2207, %v2688
    %v2969 = vadd.f32 %v1425, %v2687
    %v2970 = vadd.f32 %v2210, %v2688
    %v2971 = vadd.f32 %v1428, %v2687
    %v2972 = vadd.f32 %v2213, %v2688
    %v2973 = vadd.f32 %v1431, %v2687
    %v2974 = vadd.f32 %v2216, %v2688
    %v2975 = vadd.f32 %v1434, %v2687
    %v2976 = vadd.f32 %v2219, %v2688
    %v2977 = vadd.f32 %v1437, %v2687
    %v2978 = vadd.f32 %v2222, %v2688
    %v2979 = vadd.f32 %v1440, %v2687
    %v2980 = vadd.f32 %v2225, %v2688
    %v2981 = vadd.f32 %v1443, %v2687
    %v2982 = vadd.f32 %v2228, %v2688
    %v2983 = vadd.f32 %v1446, %v2687
    %v2984 = vadd.f32 %v2231, %v2688
    %v2985 = vadd.f32 %v1449, %v2687
    %v2986 = vadd.f32 %v2234, %v2688
    %v2987 = vadd.f32 %v1452, %v2687
    %v2988 = vadd.f32 %v2237, %v2688
    %v2989 = vadd.f32 %v1455, %v2687
    %v2990 = vadd.f32 %v2240, %v2688
    %v2991 = vadd.f32 %v1458, %v2687
    %v2992 = vadd.f32 %v2243, %v2688
    %v2993 = vadd.f32 %v1461, %v2689
    %v2994 = vadd.f32 %v2246, %v2690
    %v2995 = vadd.f32 %v1464, %v2689
    %v2996 = vadd.f32 %v2249, %v2690
    %v2997 = vadd.f32 %v1467, %v2689
    %v2998 = vadd.f32 %v2252, %v2690
    %v2999 = vadd.f32 %v1470, %v2689
    %v3000 = vadd.f32 %v2255, %v2690
    %v3001 = vadd.f32 %v1473, %v2689
    %v3002 = vadd.f32 %v2258, %v2690
    %v3003 = vadd.f32 %v1476, %v2689
    %v3004 = vadd.f32 %v2261, %v2690
    %v3005 = vadd.f32 %v1479, %v2689
    %v3006 = vadd.f32 %v2264, %v2690
    %v3007 = vadd.f32 %v1482, %v2689
    %v3008 = vadd.f32 %v2267, %v2690
    %v3009 = vadd.f32 %v1485, %v2689
    %v3010 = vadd.f32 %v2270, %v2690
    %v3011 = vadd.f32 %v1488, %v2689
    %v3012 = vadd.f32 %v2273, %v2690
    %v3013 = vadd.f32 %v1491, %v2689
    %v3014 = vadd.f32 %v2276, %v2690
    %v3015 = vadd.f32 %v1494, %v2689
    %v3016 = vadd.f32 %v2279, %v2690
    %v3017 = vadd.f32 %v1497, %v2689
    %v3018 = vadd.f32 %v2282, %v2690
    %v3019 = vadd.f32 %v1500, %v2689
    %v3020 = vadd.f32 %v2285, %v2690
    %v3021 = vadd.f32 %v1503, %v2689
    %v3022 = vadd.f32 %v2288, %v2690
    %v3023 = vadd.f32 %v1506, %v2689
    %v3024 = vadd.f32 %v2291, %v2690
    %v3025 = vadd.f32 %v1509, %v2691
    %v3026 = vadd.f32 %v2294, %v2692
    %v3027 = vadd.f32 %v1512, %v2691
    %v3028 = vadd.f32 %v2297, %v2692
    %v3029 = vadd.f32 %v1515, %v2691
    %v3030 = vadd.f32 %v2300, %v2692
    %v3031 = vadd.f32 %v1518, %v2691
    %v3032 = vadd.f32 %v2303, %v2692
    %v3033 = vadd.f32 %v1521, %v2691
    %v3034 = vadd.f32 %v2306, %v2692
    %v3035 = vadd.f32 %v1524, %v2691
    %v3036 = vadd.f32 %v2309, %v2692
    %v3037 = vadd.f32 %v1527, %v2691
    %v3038 = vadd.f32 %v2312, %v2692
    %v3039 = vadd.f32 %v1530, %v2691
    %v3040 = vadd.f32 %v2315, %v2692
    %v3041 = vadd.f32 %v1533, %v2691
    %v3042 = vadd.f32 %v2318, %v2692
    %v3043 = vadd.f32 %v1536, %v2691
    %v3044 = vadd.f32 %v2321, %v2692
    %v3045 = vadd.f32 %v1539, %v2691
    %v3046 = vadd.f32 %v2324, %v2692
    %v3047 = vadd.f32 %v1542, %v2691
    %v3048 = vadd.f32 %v2327, %v2692
    %v3049 = vadd.f32 %v1545, %v2691
    %v3050 = vadd.f32 %v2330, %v2692
    %v3051 = vadd.f32 %v1548, %v2691
    %v3052 = vadd.f32 %v2333, %v2692
    %v3053 = vadd.f32 %v1551, %v2691
    %v3054 = vadd.f32 %v2336, %v2692
    %v3055 = vadd.f32 %v1554, %v2691
    %v3056 = vadd.f32 %v2339, %v2692
    %v3057 = vadd.f32 %v1557, %v2693
    %v3058 = vadd.f32 %v2342, %v2694
    %v3059 = vadd.f32 %v1560, %v2693
    %v3060 = vadd.f32 %v2345, %v2694
    %v3061 = vadd.f32 %v1563, %v2693
    %v3062 = vadd.f32 %v2348, %v2694
    %v3063 = vadd.f32 %v1566, %v2693
    %v3064 = vadd.f32 %v2351, %v2694
    %v3065 = vadd.f32 %v1569, %v2693
    %v3066 = vadd.f32 %v2354, %v2694
    %v3067 = vadd.f32 %v1572, %v2693
    %v3068 = vadd.f32 %v2357, %v2694
    %v3069 = vadd.f32 %v1575, %v2693
    %v3070 = vadd.f32 %v2360, %v2694
    %v3071 = vadd.f32 %v1578, %v2693
    %v3072 = vadd.f32 %v2363, %v2694
    %v3073 = vadd.f32 %v1581, %v2693
    %v3074 = vadd.f32 %v2366, %v2694
    %v3075 = vadd.f32 %v1584, %v2693
    %v3076 = vadd.f32 %v2369, %v2694
    %v3077 = vadd.f32 %v1587, %v2693
    %v3078 = vadd.f32 %v2372, %v2694
    %v3079 = vadd.f32 %v1590, %v2693
    %v3080 = vadd.f32 %v2375, %v2694
    %v3081 = vadd.f32 %v1593, %v2693
    %v3082 = vadd.f32 %v2378, %v2694
    %v3083 = vadd.f32 %v1596, %v2693
    %v3084 = vadd.f32 %v2381, %v2694
    %v3085 = vadd.f32 %v1599, %v2693
    %v3086 = vadd.f32 %v2384, %v2694
    %v3087 = vadd.f32 %v1602, %v2693
    %v3088 = vadd.f32 %v2387, %v2694
    %v3089 = vadd.f32 %v1605, %v2695
    %v3090 = vadd.f32 %v2390, %v2696
    %v3091 = vadd.f32 %v1608, %v2695
    %v3092 = vadd.f32 %v2393, %v2696
    %v3093 = vadd.f32 %v1611, %v2695
    %v3094 = vadd.f32 %v2396, %v2696
    %v3095 = vadd.f32 %v1614, %v2695
    %v3096 = vadd.f32 %v2399, %v2696
    %v3097 = vadd.f32 %v1617, %v2695
    %v3098 = vadd.f32 %v2402, %v2696
    %v3099 = vadd.f32 %v1620, %v2695
    %v3100 = vadd.f32 %v2405, %v2696
    %v3101 = vadd.f32 %v1623, %v2695
    %v3102 = vadd.f32 %v2408, %v2696
    %v3103 = vadd.f32 %v1626, %v2695
    %v3104 = vadd.f32 %v2411, %v2696
    %v3105 = vadd.f32 %v1629, %v2695
    %v3106 = vadd.f32 %v2414, %v2696
    %v3107 = vadd.f32 %v1632, %v2695
    %v3108 = vadd.f32 %v2417, %v2696
    %v3109 = vadd.f32 %v1635, %v2695
    %v3110 = vadd.f32 %v2420, %v2696
    %v3111 = vadd.f32 %v1638, %v2695
    %v3112 = vadd.f32 %v2423, %v2696
    %v3113 = vadd.f32 %v1641, %v2695
    %v3114 = vadd.f32 %v2426, %v2696
    %v3115 = vadd.f32 %v1644, %v2695
    %v3116 = vadd.f32 %v2429, %v2696
    %v3117 = vadd.f32 %v1647, %v2695
    %v3118 = vadd.f32 %v2432, %v2696
    %v3119 = vadd.f32 %v1650, %v2695
    %v3120 = vadd.f32 %v2435, %v2696
    %v3121 = vadd.f32 %v1653, %v2697
    %v3122 = vadd.f32 %v2438, %v2698
    %v3123 = vadd.f32 %v1656, %v2697
    %v3124 = vadd.f32 %v2441, %v2698
    %v3125 = vadd.f32 %v1659, %v2697
    %v3126 = vadd.f32 %v2444, %v2698
    %v3127 = vadd.f32 %v1662, %v2697
    %v3128 = vadd.f32 %v2447, %v2698
    %v3129 = vadd.f32 %v1665, %v2697
    %v3130 = vadd.f32 %v2450, %v2698
    %v3131 = vadd.f32 %v1668, %v2697
    %v3132 = vadd.f32 %v2453, %v2698
    %v3133 = vadd.f32 %v1671, %v2697
    %v3134 = vadd.f32 %v2456, %v2698
    %v3135 = vadd.f32 %v1674, %v2697
    %v3136 = vadd.f32 %v2459, %v2698
    %v3137 = vadd.f32 %v1677, %v2697
    %v3138 = vadd.f32 %v2462, %v2698
    %v3139 = vadd.f32 %v1680, %v2697
    %v3140 = vadd.f32 %v2465, %v2698
    %v3141 = vadd.f32 %v1683, %v2697
    %v3142 = vadd.f32 %v2468, %v2698
    %v3143 = vadd.f32 %v1686, %v2697
    %v3144 = vadd.f32 %v2471, %v2698
    %v3145 = vadd.f32 %v1689, %v2697
    %v3146 = vadd.f32 %v2474, %v2698
    %v3147 = vadd.f32 %v1692, %v2697
    %v3148 = vadd.f32 %v2477, %v2698
    %v3149 = vadd.f32 %v1695, %v2697
    %v3150 = vadd.f32 %v2480, %v2698
    %v3151 = vadd.f32 %v1698, %v2697
    %v3152 = vadd.f32 %v2483, %v2698
    %v3153 = vadd.f32 %v1701, %v2699
    %v3154 = vadd.f32 %v2486, %v2700
    %v3155 = vadd.f32 %v1704, %v2699
    %v3156 = vadd.f32 %v2489, %v2700
    %v3157 = vadd.f32 %v1707, %v2699
    %v3158 = vadd.f32 %v2492, %v2700
    %v3159 = vadd.f32 %v1710, %v2699
    %v3160 = vadd.f32 %v2495, %v2700
    %v3161 = vadd.f32 %v1713, %v2699
    %v3162 = vadd.f32 %v2498, %v2700
    %v3163 = vadd.f32 %v1716, %v2699
    %v3164 = vadd.f32 %v2501, %v2700
    %v3165 = vadd.f32 %v1719, %v2699
    %v3166 = vadd.f32 %v2504, %v2700
    %v3167 = vadd.f32 %v1722, %v2699
    %v3168 = vadd.f32 %v2507, %v2700
    %v3169 = vadd.f32 %v1725, %v2699
    %v3170 = vadd.f32 %v2510, %v2700
    %v3171 = vadd.f32 %v1728, %v2699
    %v3172 = vadd.f32 %v2513, %v2700
    %v3173 = vadd.f32 %v1731, %v2699
    %v3174 = vadd.f32 %v2516, %v2700
    %v3175 = vadd.f32 %v1734, %v2699
    %v3176 = vadd.f32 %v2519, %v2700
    %v3177 = vadd.f32 %v1737, %v2699
    %v3178 = vadd.f32 %v2522, %v2700
    %v3179 = vadd.f32 %v1740, %v2699
    %v3180 = vadd.f32 %v2525, %v2700
    %v3181 = vadd.f32 %v1743, %v2699
    %v3182 = vadd.f32 %v2528, %v2700
    %v3183 = vadd.f32 %v1746, %v2699
    %v3184 = vadd.f32 %v2531, %v2700
    %v3185 = vadd.f32 %v1749, %v2701
    %v3186 = vadd.f32 %v2534, %v2702
    %v3187 = vadd.f32 %v1752, %v2701
    %v3188 = vadd.f32 %v2537, %v2702
    %v3189 = vadd.f32 %v1755, %v2701
    %v3190 = vadd.f32 %v2540, %v2702
    %v3191 = vadd.f32 %v1758, %v2701
    %v3192 = vadd.f32 %v2543, %v2702
    %v3193 = vadd.f32 %v1761, %v2701
    %v3194 = vadd.f32 %v2546, %v2702
    %v3195 = vadd.f32 %v1764, %v2701
    %v3196 = vadd.f32 %v2549, %v2702
    %v3197 = vadd.f32 %v1767, %v2701
    %v3198 = vadd.f32 %v2552, %v2702
    %v3199 = vadd.f32 %v1770, %v2701
    %v3200 = vadd.f32 %v2555, %v2702
    %v3201 = vadd.f32 %v1773, %v2701
    %v3202 = vadd.f32 %v2558, %v2702
    %v3203 = vadd.f32 %v1776, %v2701
    %v3204 = vadd.f32 %v2561, %v2702
    %v3205 = vadd.f32 %v1779, %v2701
    %v3206 = vadd.f32 %v2564, %v2702
    %v3207 = vadd.f32 %v1782, %v2701
    %v3208 = vadd.f32 %v2567, %v2702
    %v3209 = vadd.f32 %v1785, %v2701
    %v3210 = vadd.f32 %v2570, %v2702
    %v3211 = vadd.f32 %v1788, %v2701
    %v3212 = vadd.f32 %v2573, %v2702
    %v3213 = vadd.f32 %v1791, %v2701
    %v3214 = vadd.f32 %v2576, %v2702
    %v3215 = vadd.f32 %v1794, %v2701
    %v3216 = vadd.f32 %v2579, %v2702
    %v3217 = vadd.f32 %v1797, %v2703
    %v3218 = vadd.f32 %v2582, %v2704
    %v3219 = vadd.f32 %v1800, %v2703
    %v3220 = vadd.f32 %v2585, %v2704
    %v3221 = vadd.f32 %v1803, %v2703
    %v3222 = vadd.f32 %v2588, %v2704
    %v3223 = vadd.f32 %v1806, %v2703
    %v3224 = vadd.f32 %v2591, %v2704
    %v3225 = vadd.f32 %v1809, %v2703
    %v3226 = vadd.f32 %v2594, %v2704
    %v3227 = vadd.f32 %v1812, %v2703
    %v3228 = vadd.f32 %v2597, %v2704
    %v3229 = vadd.f32 %v1815, %v2703
    %v3230 = vadd.f32 %v2600, %v2704
    %v3231 = vadd.f32 %v1818, %v2703
    %v3232 = vadd.f32 %v2603, %v2704
    %v3233 = vadd.f32 %v1821, %v2703
    %v3234 = vadd.f32 %v2606, %v2704
    %v3235 = vadd.f32 %v1824, %v2703
    %v3236 = vadd.f32 %v2609, %v2704
    %v3237 = vadd.f32 %v1827, %v2703
    %v3238 = vadd.f32 %v2612, %v2704
    %v3239 = vadd.f32 %v1830, %v2703
    %v3240 = vadd.f32 %v2615, %v2704
    %v3241 = vadd.f32 %v1833, %v2703
    %v3242 = vadd.f32 %v2618, %v2704
    %v3243 = vadd.f32 %v1836, %v2703
    %v3244 = vadd.f32 %v2621, %v2704
    %v3245 = vadd.f32 %v1839, %v2703
    %v3246 = vadd.f32 %v2624, %v2704
    %v3247 = vadd.f32 %v1842, %v2703
    %v3248 = vadd.f32 %v2627, %v2704
    %v3249 = vmax.f32 %v2737, 0.0
    %v3250 = vmax.f32 %v2738, 0.0
    %v3251 = vmax.f32 %v2739, 0.0
    %v3252 = vmax.f32 %v2740, 0.0
    %v3253 = vmax.f32 %v2741, 0.0
    %v3254 = vmax.f32 %v2742, 0.0
    %v3255 = vmax.f32 %v2743, 0.0
    %v3256 = vmax.f32 %v2744, 0.0
    %v3257 = vmax.f32 %v2745, 0.0
    %v3258 = vmax.f32 %v2746, 0.0
    %v3259 = vmax.f32 %v2747, 0.0
    %v3260 = vmax.f32 %v2748, 0.0
    %v3261 = vmax.f32 %v2749, 0.0
    %v3262 = vmax.f32 %v2750, 0.0
    %v3263 = vmax.f32 %v2751, 0.0
    %v3264 = vmax.f32 %v2752, 0.0
    %v3265 = vmax.f32 %v2753, 0.0
    %v3266 = vmax.f32 %v2754, 0.0
    %v3267 = vmax.f32 %v2755, 0.0
    %v3268 = vmax.f32 %v2756, 0.0
    %v3269 = vmax.f32 %v2757, 0.0
    %v3270 = vmax.f32 %v2758, 0.0
    %v3271 = vmax.f32 %v2759, 0.0
    %v3272 = vmax.f32 %v2760, 0.0
    %v3273 = vmax.f32 %v2761, 0.0
    %v3274 = vmax.f32 %v2762, 0.0
    %v3275 = vmax.f32 %v2763, 0.0
    %v3276 = vmax.f32 %v2764, 0.0
    %v3277 = vmax.f32 %v2765, 0.0
    %v3278 = vmax.f32 %v2766, 0.0
    %v3279 = vmax.f32 %v2767, 0.0
    %v3280 = vmax.f32 %v2768, 0.0
    %v3281 = vmax.f32 %v2769, 0.0
    %v3282 = vmax.f32 %v2770, 0.0
    %v3283 = vmax.f32 %v2771, 0.0
    %v3284 = vmax.f32 %v2772, 0.0
    %v3285 = vmax.f32 %v2773, 0.0
    %v3286 = vmax.f32 %v2774, 0.0
    %v3287 = vmax.f32 %v2775, 0.0
    %v3288 = vmax.f32 %v2776, 0.0
    %v3289 = vmax.f32 %v2777, 0.0
    %v3290 = vmax.f32 %v2778, 0.0
    %v3291 = vmax.f32 %v2779, 0.0
    %v3292 = vmax.f32 %v2780, 0.0
    %v3293 = vmax.f32 %v2781, 0.0
    %v3294 = vmax.f32 %v2782, 0.0
    %v3295 = vmax.f32 %v2783, 0.0
    %v3296 = vmax.f32 %v2784, 0.0
    %v3297 = vmax.f32 %v2785, 0.0
    %v3298 = vmax.f32 %v2786, 0.0
    %v3299 = vmax.f32 %v2787, 0.0
    %v3300 = vmax.f32 %v2788, 0.0
    %v3301 = vmax.f32 %v2789, 0.0
    %v3302 = vmax.f32 %v2790, 0.0
    %v3303 = vmax.f32 %v2791, 0.0
    %v3304 = vmax.f32 %v2792, 0.0
    %v3305 = vmax.f32 %v2793, 0.0
    %v3306 = vmax.f32 %v2794, 0.0
    %v3307 = vmax.f32 %v2795, 0.0
    %v3308 = vmax.f32 %v2796, 0.0
    %v3309 = vmax.f32 %v2797, 0.0
    %v3310 = vmax.f32 %v2798, 0.0
    %v3311 = vmax.f32 %v2799, 0.0
    %v3312 = vmax.f32 %v2800, 0.0
    %v3313 = vmax.f32 %v2801, 0.0
    %v3314 = vmax.f32 %v2802, 0.0
    %v3315 = vmax.f32 %v2803, 0.0
    %v3316 = vmax.f32 %v2804, 0.0
    %v3317 = vmax.f32 %v2805, 0.0
    %v3318 = vmax.f32 %v2806, 0.0
    %v3319 = vmax.f32 %v2807, 0.0
    %v3320 = vmax.f32 %v2808, 0.0
    %v3321 = vmax.f32 %v2809, 0.0
    %v3322 = vmax.f32 %v2810, 0.0
    %v3323 = vmax.f32 %v2811, 0.0
    %v3324 = vmax.f32 %v2812, 0.0
    %v3325 = vmax.f32 %v2813, 0.0
    %v3326 = vmax.f32 %v2814, 0.0
    %v3327 = vmax.f32 %v2815, 0.0
    %v3328 = vmax.f32 %v2816, 0.0
    %v3329 = vmax.f32 %v2817, 0.0
    %v3330 = vmax.f32 %v2818, 0.0
    %v3331 = vmax.f32 %v2819, 0.0
    %v3332 = vmax.f32 %v2820, 0.0
    %v3333 = vmax.f32 %v2821, 0.0
    %v3334 = vmax.f32 %v2822, 0.0
    %v3335 = vmax.f32 %v2823, 0.0
    %v3336 = vmax.f32 %v2824, 0.0
    %v3337 = vmax.f32 %v2825, 0.0
    %v3338 = vmax.f32 %v2826, 0.0
    %v3339 = vmax.f32 %v2827, 0.0
    %v3340 = vmax.f32 %v2828, 0.0
    %v3341 = vmax.f32 %v2829, 0.0
    %v3342 = vmax.f32 %v2830, 0.0
    %v3343 = vmax.f32 %v2831, 0.0
    %v3344 = vmax.f32 %v2832, 0.0
    %v3345 = vmax.f32 %v2833, 0.0
    %v3346 = vmax.f32 %v2834, 0.0
    %v3347 = vmax.f32 %v2835, 0.0
    %v3348 = vmax.f32 %v2836, 0.0
    %v3349 = vmax.f32 %v2837, 0.0
    %v3350 = vmax.f32 %v2838, 0.0
    %v3351 = vmax.f32 %v2839, 0.0
    %v3352 = vmax.f32 %v2840, 0.0
    %v3353 = vmax.f32 %v2841, 0.0
    %v3354 = vmax.f32 %v2842, 0.0
    %v3355 = vmax.f32 %v2843, 0.0
    %v3356 = vmax.f32 %v2844, 0.0
    %v3357 = vmax.f32 %v2845, 0.0
    %v3358 = vmax.f32 %v2846, 0.0
    %v3359 = vmax.f32 %v2847, 0.0
    %v3360 = vmax.f32 %v2848, 0.0
    %v3361 = vmax.f32 %v2849, 0.0
    %v3362 = vmax.f32 %v2850, 0.0
    %v3363 = vmax.f32 %v2851, 0.0
    %v3364 = vmax.f32 %v2852, 0.0
    %v3365 = vmax.f32 %v2853, 0.0
    %v3366 = vmax.f32 %v2854, 0.0
    %v3367 = vmax.f32 %v2855, 0.0
    %v3368 = vmax.f32 %v2856, 0.0
    %v3369 = vmax.f32 %v2857, 0.0
    %v3370 = vmax.f32 %v2858, 0.0
    %v3371 = vmax.f32 %v2859, 0.0
    %v3372 = vmax.f32 %v2860, 0.0
    %v3373 = vmax.f32 %v2861, 0.0
    %v3374 = vmax.f32 %v2862, 0.0
    %v3375 = vmax.f32 %v2863, 0.0
    %v3376 = vmax.f32 %v2864, 0.0
    %v3377 = vmax.f32 %v2865, 0.0
    %v3378 = vmax.f32 %v2866, 0.0
    %v3379 = vmax.f32 %v2867, 0.0
    %v3380 = vmax.f32 %v2868, 0.0
    %v3381 = vmax.f32 %v2869, 0.0
    %v3382 = vmax.f32 %v2870, 0.0
    %v3383 = vmax.f32 %v2871, 0.0
    %v3384 = vmax.f32 %v2872, 0.0
    %v3385 = vmax.f32 %v2873, 0.0
    %v3386 = vmax.f32 %v2874, 0.0
    %v3387 = vmax.f32 %v2875, 0.0
    %v3388 = vmax.f32 %v2876, 0.0
    %v3389 = vmax.f32 %v2877, 0.0
    %v3390 = vmax.f32 %v2878, 0.0
    %v3391 = vmax.f32 %v2879, 0.0
    %v3392 = vmax.f32 %v2880, 0.0
    %v3393 = vmax.f32 %v2881, 0.0
    %v3394 = vmax.f32 %v2882, 0.0
    %v3395 = vmax.f32 %v2883, 0.0
    %v3396 = vmax.f32 %v2884, 0.0
    %v3397 = vmax.f32 %v2885, 0.0
    %v3398 = vmax.f32 %v2886, 0.0
    %v3399 = vmax.f32 %v2887, 0.0
    %v3400 = vmax.f32 %v2888, 0.0
    %v3401 = vmax.f32 %v2889, 0.0
    %v3402 = vmax.f32 %v2890, 0.0
    %v3403 = vmax.f32 %v2891, 0.0
    %v3404 = vmax.f32 %v2892, 0.0
    %v3405 = vmax.f32 %v2893, 0.0
    %v3406 = vmax.f32 %v2894, 0.0
    %v3407 = vmax.f32 %v2895, 0.0
    %v3408 = vmax.f32 %v2896, 0.0
    %v3409 = vmax.f32 %v2897, 0.0
    %v3410 = vmax.f32 %v2898, 0.0
    %v3411 = vmax.f32 %v2899, 0.0
    %v3412 = vmax.f32 %v2900, 0.0
    %v3413 = vmax.f32 %v2901, 0.0
    %v3414 = vmax.f32 %v2902, 0.0
    %v3415 = vmax.f32 %v2903, 0.0
    %v3416 = vmax.f32 %v2904, 0.0
    %v3417 = vmax.f32 %v2905, 0.0
    %v3418 = vmax.f32 %v2906, 0.0
    %v3419 = vmax.f32 %v2907, 0.0
    %v3420 = vmax.f32 %v2908, 0.0
    %v3421 = vmax.f32 %v2909, 0.0
    %v3422 = vmax.f32 %v2910, 0.0
    %v3423 = vmax.f32 %v2911, 0.0
    %v3424 = vmax.f32 %v2912, 0.0
    %v3425 = vmax.f32 %v2913, 0.0
    %v3426 = vmax.f32 %v2914, 0.0
    %v3427 = vmax.f32 %v2915, 0.0
    %v3428 = vmax.f32 %v2916, 0.0
    %v3429 = vmax.f32 %v2917, 0.0
    %v3430 = vmax.f32 %v2918, 0.0
    %v3431 = vmax.f32 %v2919, 0.0
    %v3432 = vmax.f32 %v2920, 0.0
    %v3433 = vmax.f32 %v2921, 0.0
    %v3434 = vmax.f32 %v2922, 0.0
    %v3435 = vmax.f32 %v2923, 0.0
    %v3436 = vmax.f32 %v2924, 0.0
    %v3437 = vmax.f32 %v2925, 0.0
    %v3438 = vmax.f32 %v2926, 0.0
    %v3439 = vmax.f32 %v2927, 0.0
    %v3440 = vmax.f32 %v2928, 0.0
    %v3441 = vmax.f32 %v2929, 0.0
    %v3442 = vmax.f32 %v2930, 0.0
    %v3443 = vmax.f32 %v2931, 0.0
    %v3444 = vmax.f32 %v2932, 0.0
    %v3445 = vmax.f32 %v2933, 0.0
    %v3446 = vmax.f32 %v2934, 0.0
    %v3447 = vmax.f32 %v2935, 0.0
    %v3448 = vmax.f32 %v2936, 0.0
    %v3449 = vmax.f32 %v2937, 0.0
    %v3450 = vmax.f32 %v2938, 0.0
    %v3451 = vmax.f32 %v2939, 0.0
    %v3452 = vmax.f32 %v2940, 0.0
    %v3453 = vmax.f32 %v2941, 0.0
    %v3454 = vmax.f32 %v2942, 0.0
    %v3455 = vmax.f32 %v2943, 0.0
    %v3456 = vmax.f32 %v2944, 0.0
    %v3457 = vmax.f32 %v2945, 0.0
    %v3458 = vmax.f32 %v2946, 0.0
    %v3459 = vmax.f32 %v2947, 0.0
    %v3460 = vmax.f32 %v2948, 0.0
    %v3461 = vmax.f32 %v2949, 0.0
    %v3462 = vmax.f32 %v2950, 0.0
    %v3463 = vmax.f32 %v2951, 0.0
    %v3464 = vmax.f32 %v2952, 0.0
    %v3465 = vmax.f32 %v2953, 0.0
    %v3466 = vmax.f32 %v2954, 0.0
    %v3467 = vmax.f32 %v2955, 0.0
    %v3468 = vmax.f32 %v2956, 0.0
    %v3469 = vmax.f32 %v2957, 0.0
    %v3470 = vmax.f32 %v2958, 0.0
    %v3471 = vmax.f32 %v2959, 0.0
    %v3472 = vmax.f32 %v2960, 0.0
    %v3473 = vmax.f32 %v2961, 0.0
    %v3474 = vmax.f32 %v2962, 0.0
    %v3475 = vmax.f32 %v2963, 0.0
    %v3476 = vmax.f32 %v2964, 0.0
    %v3477 = vmax.f32 %v2965, 0.0
    %v3478 = vmax.f32 %v2966, 0.0
    %v3479 = vmax.f32 %v2967, 0.0
    %v3480 = vmax.f32 %v2968, 0.0
    %v3481 = vmax.f32 %v2969, 0.0
    %v3482 = vmax.f32 %v2970, 0.0
    %v3483 = vmax.f32 %v2971, 0.0
    %v3484 = vmax.f32 %v2972, 0.0
    %v3485 = vmax.f32 %v2973, 0.0
    %v3486 = vmax.f32 %v2974, 0.0
    %v3487 = vmax.f32 %v2975, 0.0
    %v3488 = vmax.f32 %v2976, 0.0
    %v3489 = vmax.f32 %v2977, 0.0
    %v3490 = vmax.f32 %v2978, 0.0
    %v3491 = vmax.f32 %v2979, 0.0
    %v3492 = vmax.f32 %v2980, 0.0
    %v3493 = vmax.f32 %v2981, 0.0
    %v3494 = vmax.f32 %v2982, 0.0
    %v3495 = vmax.f32 %v2983, 0.0
    %v3496 = vmax.f32 %v2984, 0.0
    %v3497 = vmax.f32 %v2985, 0.0
    %v3498 = vmax.f32 %v2986, 0.0
    %v3499 = vmax.f32 %v2987, 0.0
    %v3500 = vmax.f32 %v2988, 0.0
    %v3501 = vmax.f32 %v2989, 0.0
    %v3502 = vmax.f32 %v2990, 0.0
    %v3503 = vmax.f32 %v2991, 0.0
    %v3504 = vmax.f32 %v2992, 0.0
    %v3505 = vmax.f32 %v2993, 0.0
    %v3506 = vmax.f32 %v2994, 0.0
    %v3507 = vmax.f32 %v2995, 0.0
    %v3508 = vmax.f32 %v2996, 0.0
    %v3509 = vmax.f32 %v2997, 0.0
    %v3510 = vmax.f32 %v2998, 0.0
    %v3511 = vmax.f32 %v2999, 0.0
    %v3512 = vmax.f32 %v3000, 0.0
    %v3513 = vmax.f32 %v3001, 0.0
    %v3514 = vmax.f32 %v3002, 0.0
    %v3515 = vmax.f32 %v3003, 0.0
    %v3516 = vmax.f32 %v3004, 0.0
    %v3517 = vmax.f32 %v3005, 0.0
    %v3518 = vmax.f32 %v3006, 0.0
    %v3519 = vmax.f32 %v3007, 0.0
    %v3520 = vmax.f32 %v3008, 0.0
    %v3521 = vmax.f32 %v3009, 0.0
    %v3522 = vmax.f32 %v3010, 0.0
    %v3523 = vmax.f32 %v3011, 0.0
    %v3524 = vmax.f32 %v3012, 0.0
    %v3525 = vmax.f32 %v3013, 0.0
    %v3526 = vmax.f32 %v3014, 0.0
    %v3527 = vmax.f32 %v3015, 0.0
    %v3528 = vmax.f32 %v3016, 0.0
    %v3529 = vmax.f32 %v3017, 0.0
    %v3530 = vmax.f32 %v3018, 0.0
    %v3531 = vmax.f32 %v3019, 0.0
    %v3532 = vmax.f32 %v3020, 0.0
    %v3533 = vmax.f32 %v3021, 0.0
    %v3534 = vmax.f32 %v3022, 0.0
    %v3535 = vmax.f32 %v3023, 0.0
    %v3536 = vmax.f32 %v3024, 0.0
    %v3537 = vmax.f32 %v3025, 0.0
    %v3538 = vmax.f32 %v3026, 0.0
    %v3539 = vmax.f32 %v3027, 0.0
    %v3540 = vmax.f32 %v3028, 0.0
    %v3541 = vmax.f32 %v3029, 0.0
    %v3542 = vmax.f32 %v3030, 0.0
    %v3543 = vmax.f32 %v3031, 0.0
    %v3544 = vmax.f32 %v3032, 0.0
    %v3545 = vmax.f32 %v3033, 0.0
    %v3546 = vmax.f32 %v3034, 0.0
    %v3547 = vmax.f32 %v3035, 0.0
    %v3548 = vmax.f32 %v3036, 0.0
    %v3549 = vmax.f32 %v3037, 0.0
    %v3550 = vmax.f32 %v3038, 0.0
    %v3551 = vmax.f32 %v3039, 0.0
    %v3552 = vmax.f32 %v3040, 0.0
    %v3553 = vmax.f32 %v3041, 0.0
    %v3554 = vmax.f32 %v3042, 0.0
    %v3555 = vmax.f32 %v3043, 0.0
    %v3556 = vmax.f32 %v3044, 0.0
    %v3557 = vmax.f32 %v3045, 0.0
    %v3558 = vmax.f32 %v3046, 0.0
    %v3559 = vmax.f32 %v3047, 0.0
    %v3560 = vmax.f32 %v3048, 0.0
    %v3561 = vmax.f32 %v3049, 0.0
    %v3562 = vmax.f32 %v3050, 0.0
    %v3563 = vmax.f32 %v3051, 0.0
    %v3564 = vmax.f32 %v3052, 0.0
    %v3565 = vmax.f32 %v3053, 0.0
    %v3566 = vmax.f32 %v3054, 0.0
    %v3567 = vmax.f32 %v3055, 0.0
    %v3568 = vmax.f32 %v3056, 0.0
    %v3569 = vmax.f32 %v3057, 0.0
    %v3570 = vmax.f32 %v3058, 0.0
    %v3571 = vmax.f32 %v3059, 0.0
    %v3572 = vmax.f32 %v3060, 0.0
    %v3573 = vmax.f32 %v3061, 0.0
    %v3574 = vmax.f32 %v3062, 0.0
    %v3575 = vmax.f32 %v3063, 0.0
    %v3576 = vmax.f32 %v3064, 0.0
    %v3577 = vmax.f32 %v3065, 0.0
    %v3578 = vmax.f32 %v3066, 0.0
    %v3579 = vmax.f32 %v3067, 0.0
    %v3580 = vmax.f32 %v3068, 0.0
    %v3581 = vmax.f32 %v3069, 0.0
    %v3582 = vmax.f32 %v3070, 0.0
    %v3583 = vmax.f32 %v3071, 0.0
    %v3584 = vmax.f32 %v3072, 0.0
    %v3585 = vmax.f32 %v3073, 0.0
    %v3586 = vmax.f32 %v3074, 0.0
    %v3587 = vmax.f32 %v3075, 0.0
    %v3588 = vmax.f32 %v3076, 0.0
    %v3589 = vmax.f32 %v3077, 0.0
    %v3590 = vmax.f32 %v3078, 0.0
    %v3591 = vmax.f32 %v3079, 0.0
    %v3592 = vmax.f32 %v3080, 0.0
    %v3593 = vmax.f32 %v3081, 0.0
    %v3594 = vmax.f32 %v3082, 0.0
    %v3595 = vmax.f32 %v3083, 0.0
    %v3596 = vmax.f32 %v3084, 0.0
    %v3597 = vmax.f32 %v3085, 0.0
    %v3598 = vmax.f32 %v3086, 0.0
    %v3599 = vmax.f32 %v3087, 0.0
    %v3600 = vmax.f32 %v3088, 0.0
    %v3601 = vmax.f32 %v3089, 0.0
    %v3602 = vmax.f32 %v3090, 0.0
    %v3603 = vmax.f32 %v3091, 0.0
    %v3604 = vmax.f32 %v3092, 0.0
    %v3605 = vmax.f32 %v3093, 0.0
    %v3606 = vmax.f32 %v3094, 0.0
    %v3607 = vmax.f32 %v3095, 0.0
    %v3608 = vmax.f32 %v3096, 0.0
    %v3609 = vmax.f32 %v3097, 0.0
    %v3610 = vmax.f32 %v3098, 0.0
    %v3611 = vmax.f32 %v3099, 0.0
    %v3612 = vmax.f32 %v3100, 0.0
    %v3613 = vmax.f32 %v3101, 0.0
    %v3614 = vmax.f32 %v3102, 0.0
    %v3615 = vmax.f32 %v3103, 0.0
    %v3616 = vmax.f32 %v3104, 0.0
    %v3617 = vmax.f32 %v3105, 0.0
    %v3618 = vmax.f32 %v3106, 0.0
    %v3619 = vmax.f32 %v3107, 0.0
    %v3620 = vmax.f32 %v3108, 0.0
    %v3621 = vmax.f32 %v3109, 0.0
    %v3622 = vmax.f32 %v3110, 0.0
    %v3623 = vmax.f32 %v3111, 0.0
    %v3624 = vmax.f32 %v3112, 0.0
    %v3625 = vmax.f32 %v3113, 0.0
    %v3626 = vmax.f32 %v3114, 0.0
    %v3627 = vmax.f32 %v3115, 0.0
    %v3628 = vmax.f32 %v3116, 0.0
    %v3629 = vmax.f32 %v3117, 0.0
    %v3630 = vmax.f32 %v3118, 0.0
    %v3631 = vmax.f32 %v3119, 0.0
    %v3632 = vmax.f32 %v3120, 0.0
    %v3633 = vmax.f32 %v3121, 0.0
    %v3634 = vmax.f32 %v3122, 0.0
    %v3635 = vmax.f32 %v3123, 0.0
    %v3636 = vmax.f32 %v3124, 0.0
    %v3637 = vmax.f32 %v3125, 0.0
    %v3638 = vmax.f32 %v3126, 0.0
    %v3639 = vmax.f32 %v3127, 0.0
    %v3640 = vmax.f32 %v3128, 0.0
    %v3641 = vmax.f32 %v3129, 0.0
    %v3642 = vmax.f32 %v3130, 0.0
    %v3643 = vmax.f32 %v3131, 0.0
    %v3644 = vmax.f32 %v3132, 0.0
    %v3645 = vmax.f32 %v3133, 0.0
    %v3646 = vmax.f32 %v3134, 0.0
    %v3647 = vmax.f32 %v3135, 0.0
    %v3648 = vmax.f32 %v3136, 0.0
    %v3649 = vmax.f32 %v3137, 0.0
    %v3650 = vmax.f32 %v3138, 0.0
    %v3651 = vmax.f32 %v3139, 0.0
    %v3652 = vmax.f32 %v3140, 0.0
    %v3653 = vmax.f32 %v3141, 0.0
    %v3654 = vmax.f32 %v3142, 0.0
    %v3655 = vmax.f32 %v3143, 0.0
    %v3656 = vmax.f32 %v3144, 0.0
    %v3657 = vmax.f32 %v3145, 0.0
    %v3658 = vmax.f32 %v3146, 0.0
    %v3659 = vmax.f32 %v3147, 0.0
    %v3660 = vmax.f32 %v3148, 0.0
    %v3661 = vmax.f32 %v3149, 0.0
    %v3662 = vmax.f32 %v3150, 0.0
    %v3663 = vmax.f32 %v3151, 0.0
    %v3664 = vmax.f32 %v3152, 0.0
    %v3665 = vmax.f32 %v3153, 0.0
    %v3666 = vmax.f32 %v3154, 0.0
    %v3667 = vmax.f32 %v3155, 0.0
    %v3668 = vmax.f32 %v3156, 0.0
    %v3669 = vmax.f32 %v3157, 0.0
    %v3670 = vmax.f32 %v3158, 0.0
    %v3671 = vmax.f32 %v3159, 0.0
    %v3672 = vmax.f32 %v3160, 0.0
    %v3673 = vmax.f32 %v3161, 0.0
    %v3674 = vmax.f32 %v3162, 0.0
    %v3675 = vmax.f32 %v3163, 0.0
    %v3676 = vmax.f32 %v3164, 0.0
    %v3677 = vmax.f32 %v3165, 0.0
    %v3678 = vmax.f32 %v3166, 0.0
    %v3679 = vmax.f32 %v3167, 0.0
    %v3680 = vmax.f32 %v3168, 0.0
    %v3681 = vmax.f32 %v3169, 0.0
    %v3682 = vmax.f32 %v3170, 0.0
    %v3683 = vmax.f32 %v3171, 0.0
    %v3684 = vmax.f32 %v3172, 0.0
    %v3685 = vmax.f32 %v3173, 0.0
    %v3686 = vmax.f32 %v3174, 0.0
    %v3687 = vmax.f32 %v3175, 0.0
    %v3688 = vmax.f32 %v3176, 0.0
    %v3689 = vmax.f32 %v3177, 0.0
    %v3690 = vmax.f32 %v3178, 0.0
    %v3691 = vmax.f32 %v3179, 0.0
    %v3692 = vmax.f32 %v3180, 0.0
    %v3693 = vmax.f32 %v3181, 0.0
    %v3694 = vmax.f32 %v3182, 0.0
    %v3695 = vmax.f32 %v3183, 0.0
    %v3696 = vmax.f32 %v3184, 0.0
    %v3697 = vmax.f32 %v3185, 0.0
    %v3698 = vmax.f32 %v3186, 0.0
    %v3699 = vmax.f32 %v3187, 0.0
    %v3700 = vmax.f32 %v3188, 0.0
    %v3701 = vmax.f32 %v3189, 0.0
    %v3702 = vmax.f32 %v3190, 0.0
    %v3703 = vmax.f32 %v3191, 0.0
    %v3704 = vmax.f32 %v3192, 0.0
    %v3705 = vmax.f32 %v3193, 0.0
    %v3706 = vmax.f32 %v3194, 0.0
    %v3707 = vmax.f32 %v3195, 0.0
    %v3708 = vmax.f32 %v3196, 0.0
    %v3709 = vmax.f32 %v3197, 0.0
    %v3710 = vmax.f32 %v3198, 0.0
    %v3711 = vmax.f32 %v3199, 0.0
    %v3712 = vmax.f32 %v3200, 0.0
    %v3713 = vmax.f32 %v3201, 0.0
    %v3714 = vmax.f32 %v3202, 0.0
    %v3715 = vmax.f32 %v3203, 0.0
    %v3716 = vmax.f32 %v3204, 0.0
    %v3717 = vmax.f32 %v3205, 0.0
    %v3718 = vmax.f32 %v3206, 0.0
    %v3719 = vmax.f32 %v3207, 0.0
    %v3720 = vmax.f32 %v3208, 0.0
    %v3721 = vmax.f32 %v3209, 0.0
    %v3722 = vmax.f32 %v3210, 0.0
    %v3723 = vmax.f32 %v3211, 0.0
    %v3724 = vmax.f32 %v3212, 0.0
    %v3725 = vmax.f32 %v3213, 0.0
    %v3726 = vmax.f32 %v3214, 0.0
    %v3727 = vmax.f32 %v3215, 0.0
    %v3728 = vmax.f32 %v3216, 0.0
    %v3729 = vmax.f32 %v3217, 0.0
    %v3730 = vmax.f32 %v3218, 0.0
    %v3731 = vmax.f32 %v3219, 0.0
    %v3732 = vmax.f32 %v3220, 0.0
    %v3733 = vmax.f32 %v3221, 0.0
    %v3734 = vmax.f32 %v3222, 0.0
    %v3735 = vmax.f32 %v3223, 0.0
    %v3736 = vmax.f32 %v3224, 0.0
    %v3737 = vmax.f32 %v3225, 0.0
    %v3738 = vmax.f32 %v3226, 0.0
    %v3739 = vmax.f32 %v3227, 0.0
    %v3740 = vmax.f32 %v3228, 0.0
    %v3741 = vmax.f32 %v3229, 0.0
    %v3742 = vmax.f32 %v3230, 0.0
    %v3743 = vmax.f32 %v3231, 0.0
    %v3744 = vmax.f32 %v3232, 0.0
    %v3745 = vmax.f32 %v3233, 0.0
    %v3746 = vmax.f32 %v3234, 0.0
    %v3747 = vmax.f32 %v3235, 0.0
    %v3748 = vmax.f32 %v3236, 0.0
    %v3749 = vmax.f32 %v3237, 0.0
    %v3750 = vmax.f32 %v3238, 0.0
    %v3751 = vmax.f32 %v3239, 0.0
    %v3752 = vmax.f32 %v3240, 0.0
    %v3753 = vmax.f32 %v3241, 0.0
    %v3754 = vmax.f32 %v3242, 0.0
    %v3755 = vmax.f32 %v3243, 0.0
    %v3756 = vmax.f32 %v3244, 0.0
    %v3757 = vmax.f32 %v3245, 0.0
    %v3758 = vmax.f32 %v3246, 0.0
    %v3759 = vmax.f32 %v3247, 0.0
    %v3760 = vmax.f32 %v3248, 0.0
    %v3762 = vperm.slane %v281, 0
    %v3763 = vperm.slane %v281, 1
    %v3766 = vmul.f32 %v3249, %v3762
    %v3767 = vmul.f32 %v3250, %v3763
    %v3768 = vmul.f32 %v3251, %v3762
    %v3769 = vmul.f32 %v3252, %v3763
    %v3770 = vmul.f32 %v3253, %v3762
    %v3771 = vmul.f32 %v3254, %v3763
    %v3772 = vmul.f32 %v3255, %v3762
    %v3773 = vmul.f32 %v3256, %v3763
    %v3774 = vmul.f32 %v3257, %v3762
    %v3775 = vmul.f32 %v3258, %v3763
    %v3776 = vmul.f32 %v3259, %v3762
    %v3777 = vmul.f32 %v3260, %v3763
    %v3778 = vmul.f32 %v3261, %v3762
    %v3779 = vmul.f32 %v3262, %v3763
    %v3780 = vmul.f32 %v3263, %v3762
    %v3781 = vmul.f32 %v3264, %v3763
    %v3782 = vmul.f32 %v3265, %v3762
    %v3783 = vmul.f32 %v3266, %v3763
    %v3784 = vmul.f32 %v3267, %v3762
    %v3785 = vmul.f32 %v3268, %v3763
    %v3786 = vmul.f32 %v3269, %v3762
    %v3787 = vmul.f32 %v3270, %v3763
    %v3788 = vmul.f32 %v3271, %v3762
    %v3789 = vmul.f32 %v3272, %v3763
    %v3790 = vmul.f32 %v3273, %v3762
    %v3791 = vmul.f32 %v3274, %v3763
    %v3792 = vmul.f32 %v3275, %v3762
    %v3793 = vmul.f32 %v3276, %v3763
    %v3794 = vmul.f32 %v3277, %v3762
    %v3795 = vmul.f32 %v3278, %v3763
    %v3796 = vmul.f32 %v3279, %v3762
    %v3797 = vmul.f32 %v3280, %v3763
    %v3798 = vmul.f32 %v3281, %v3762
    %v3799 = vmul.f32 %v3282, %v3763
    %v3800 = vmul.f32 %v3283, %v3762
    %v3801 = vmul.f32 %v3284, %v3763
    %v3802 = vmul.f32 %v3285, %v3762
    %v3803 = vmul.f32 %v3286, %v3763
    %v3804 = vmul.f32 %v3287, %v3762
    %v3805 = vmul.f32 %v3288, %v3763
    %v3806 = vmul.f32 %v3289, %v3762
    %v3807 = vmul.f32 %v3290, %v3763
    %v3808 = vmul.f32 %v3291, %v3762
    %v3809 = vmul.f32 %v3292, %v3763
    %v3810 = vmul.f32 %v3293, %v3762
    %v3811 = vmul.f32 %v3294, %v3763
    %v3812 = vmul.f32 %v3295, %v3762
    %v3813 = vmul.f32 %v3296, %v3763
    %v3814 = vmul.f32 %v3297, %v3762
    %v3815 = vmul.f32 %v3298, %v3763
    %v3816 = vmul.f32 %v3299, %v3762
    %v3817 = vmul.f32 %v3300, %v3763
    %v3818 = vmul.f32 %v3301, %v3762
    %v3819 = vmul.f32 %v3302, %v3763
    %v3820 = vmul.f32 %v3303, %v3762
    %v3821 = vmul.f32 %v3304, %v3763
    %v3822 = vmul.f32 %v3305, %v3762
    %v3823 = vmul.f32 %v3306, %v3763
    %v3824 = vmul.f32 %v3307, %v3762
    %v3825 = vmul.f32 %v3308, %v3763
    %v3826 = vmul.f32 %v3309, %v3762
    %v3827 = vmul.f32 %v3310, %v3763
    %v3828 = vmul.f32 %v3311, %v3762
    %v3829 = vmul.f32 %v3312, %v3763
    %v3830 = vmul.f32 %v3313, %v3762
    %v3831 = vmul.f32 %v3314, %v3763
    %v3832 = vmul.f32 %v3315, %v3762
    %v3833 = vmul.f32 %v3316, %v3763
    %v3834 = vmul.f32 %v3317, %v3762
    %v3835 = vmul.f32 %v3318, %v3763
    %v3836 = vmul.f32 %v3319, %v3762
    %v3837 = vmul.f32 %v3320, %v3763
    %v3838 = vmul.f32 %v3321, %v3762
    %v3839 = vmul.f32 %v3322, %v3763
    %v3840 = vmul.f32 %v3323, %v3762
    %v3841 = vmul.f32 %v3324, %v3763
    %v3842 = vmul.f32 %v3325, %v3762
    %v3843 = vmul.f32 %v3326, %v3763
    %v3844 = vmul.f32 %v3327, %v3762
    %v3845 = vmul.f32 %v3328, %v3763
    %v3846 = vmul.f32 %v3329, %v3762
    %v3847 = vmul.f32 %v3330, %v3763
    %v3848 = vmul.f32 %v3331, %v3762
    %v3849 = vmul.f32 %v3332, %v3763
    %v3850 = vmul.f32 %v3333, %v3762
    %v3851 = vmul.f32 %v3334, %v3763
    %v3852 = vmul.f32 %v3335, %v3762
    %v3853 = vmul.f32 %v3336, %v3763
    %v3854 = vmul.f32 %v3337, %v3762
    %v3855 = vmul.f32 %v3338, %v3763
    %v3856 = vmul.f32 %v3339, %v3762
    %v3857 = vmul.f32 %v3340, %v3763
    %v3858 = vmul.f32 %v3341, %v3762
    %v3859 = vmul.f32 %v3342, %v3763
    %v3860 = vmul.f32 %v3343, %v3762
    %v3861 = vmul.f32 %v3344, %v3763
    %v3862 = vmul.f32 %v3345, %v3762
    %v3863 = vmul.f32 %v3346, %v3763
    %v3864 = vmul.f32 %v3347, %v3762
    %v3865 = vmul.f32 %v3348, %v3763
    %v3866 = vmul.f32 %v3349, %v3762
    %v3867 = vmul.f32 %v3350, %v3763
    %v3868 = vmul.f32 %v3351, %v3762
    %v3869 = vmul.f32 %v3352, %v3763
    %v3870 = vmul.f32 %v3353, %v3762
    %v3871 = vmul.f32 %v3354, %v3763
    %v3872 = vmul.f32 %v3355, %v3762
    %v3873 = vmul.f32 %v3356, %v3763
    %v3874 = vmul.f32 %v3357, %v3762
    %v3875 = vmul.f32 %v3358, %v3763
    %v3876 = vmul.f32 %v3359, %v3762
    %v3877 = vmul.f32 %v3360, %v3763
    %v3878 = vmul.f32 %v3361, %v3762
    %v3879 = vmul.f32 %v3362, %v3763
    %v3880 = vmul.f32 %v3363, %v3762
    %v3881 = vmul.f32 %v3364, %v3763
    %v3882 = vmul.f32 %v3365, %v3762
    %v3883 = vmul.f32 %v3366, %v3763
    %v3884 = vmul.f32 %v3367, %v3762
    %v3885 = vmul.f32 %v3368, %v3763
    %v3886 = vmul.f32 %v3369, %v3762
    %v3887 = vmul.f32 %v3370, %v3763
    %v3888 = vmul.f32 %v3371, %v3762
    %v3889 = vmul.f32 %v3372, %v3763
    %v3890 = vmul.f32 %v3373, %v3762
    %v3891 = vmul.f32 %v3374, %v3763
    %v3892 = vmul.f32 %v3375, %v3762
    %v3893 = vmul.f32 %v3376, %v3763
    %v3894 = vmul.f32 %v3377, %v3762
    %v3895 = vmul.f32 %v3378, %v3763
    %v3896 = vmul.f32 %v3379, %v3762
    %v3897 = vmul.f32 %v3380, %v3763
    %v3898 = vmul.f32 %v3381, %v3762
    %v3899 = vmul.f32 %v3382, %v3763
    %v3900 = vmul.f32 %v3383, %v3762
    %v3901 = vmul.f32 %v3384, %v3763
    %v3902 = vmul.f32 %v3385, %v3762
    %v3903 = vmul.f32 %v3386, %v3763
    %v3904 = vmul.f32 %v3387, %v3762
    %v3905 = vmul.f32 %v3388, %v3763
    %v3906 = vmul.f32 %v3389, %v3762
    %v3907 = vmul.f32 %v3390, %v3763
    %v3908 = vmul.f32 %v3391, %v3762
    %v3909 = vmul.f32 %v3392, %v3763
    %v3910 = vmul.f32 %v3393, %v3762
    %v3911 = vmul.f32 %v3394, %v3763
    %v3912 = vmul.f32 %v3395, %v3762
    %v3913 = vmul.f32 %v3396, %v3763
    %v3914 = vmul.f32 %v3397, %v3762
    %v3915 = vmul.f32 %v3398, %v3763
    %v3916 = vmul.f32 %v3399, %v3762
    %v3917 = vmul.f32 %v3400, %v3763
    %v3918 = vmul.f32 %v3401, %v3762
    %v3919 = vmul.f32 %v3402, %v3763
    %v3920 = vmul.f32 %v3403, %v3762
    %v3921 = vmul.f32 %v3404, %v3763
    %v3922 = vmul.f32 %v3405, %v3762
    %v3923 = vmul.f32 %v3406, %v3763
    %v3924 = vmul.f32 %v3407, %v3762
    %v3925 = vmul.f32 %v3408, %v3763
    %v3926 = vmul.f32 %v3409, %v3762
    %v3927 = vmul.f32 %v3410, %v3763
    %v3928 = vmul.f32 %v3411, %v3762
    %v3929 = vmul.f32 %v3412, %v3763
    %v3930 = vmul.f32 %v3413, %v3762
    %v3931 = vmul.f32 %v3414, %v3763
    %v3932 = vmul.f32 %v3415, %v3762
    %v3933 = vmul.f32 %v3416, %v3763
    %v3934 = vmul.f32 %v3417, %v3762
    %v3935 = vmul.f32 %v3418, %v3763
    %v3936 = vmul.f32 %v3419, %v3762
    %v3937 = vmul.f32 %v3420, %v3763
    %v3938 = vmul.f32 %v3421, %v3762
    %v3939 = vmul.f32 %v3422, %v3763
    %v3940 = vmul.f32 %v3423, %v3762
    %v3941 = vmul.f32 %v3424, %v3763
    %v3942 = vmul.f32 %v3425, %v3762
    %v3943 = vmul.f32 %v3426, %v3763
    %v3944 = vmul.f32 %v3427, %v3762
    %v3945 = vmul.f32 %v3428, %v3763
    %v3946 = vmul.f32 %v3429, %v3762
    %v3947 = vmul.f32 %v3430, %v3763
    %v3948 = vmul.f32 %v3431, %v3762
    %v3949 = vmul.f32 %v3432, %v3763
    %v3950 = vmul.f32 %v3433, %v3762
    %v3951 = vmul.f32 %v3434, %v3763
    %v3952 = vmul.f32 %v3435, %v3762
    %v3953 = vmul.f32 %v3436, %v3763
    %v3954 = vmul.f32 %v3437, %v3762
    %v3955 = vmul.f32 %v3438, %v3763
    %v3956 = vmul.f32 %v3439, %v3762
    %v3957 = vmul.f32 %v3440, %v3763
    %v3958 = vmul.f32 %v3441, %v3762
    %v3959 = vmul.f32 %v3442, %v3763
    %v3960 = vmul.f32 %v3443, %v3762
    %v3961 = vmul.f32 %v3444, %v3763
    %v3962 = vmul.f32 %v3445, %v3762
    %v3963 = vmul.f32 %v3446, %v3763
    %v3964 = vmul.f32 %v3447, %v3762
    %v3965 = vmul.f32 %v3448, %v3763
    %v3966 = vmul.f32 %v3449, %v3762
    %v3967 = vmul.f32 %v3450, %v3763
    %v3968 = vmul.f32 %v3451, %v3762
    %v3969 = vmul.f32 %v3452, %v3763
    %v3970 = vmul.f32 %v3453, %v3762
    %v3971 = vmul.f32 %v3454, %v3763
    %v3972 = vmul.f32 %v3455, %v3762
    %v3973 = vmul.f32 %v3456, %v3763
    %v3974 = vmul.f32 %v3457, %v3762
    %v3975 = vmul.f32 %v3458, %v3763
    %v3976 = vmul.f32 %v3459, %v3762
    %v3977 = vmul.f32 %v3460, %v3763
    %v3978 = vmul.f32 %v3461, %v3762
    %v3979 = vmul.f32 %v3462, %v3763
    %v3980 = vmul.f32 %v3463, %v3762
    %v3981 = vmul.f32 %v3464, %v3763
    %v3982 = vmul.f32 %v3465, %v3762
    %v3983 = vmul.f32 %v3466, %v3763
    %v3984 = vmul.f32 %v3467, %v3762
    %v3985 = vmul.f32 %v3468, %v3763
    %v3986 = vmul.f32 %v3469, %v3762
    %v3987 = vmul.f32 %v3470, %v3763
    %v3988 = vmul.f32 %v3471, %v3762
    %v3989 = vmul.f32 %v3472, %v3763
    %v3990 = vmul.f32 %v3473, %v3762
    %v3991 = vmul.f32 %v3474, %v3763
    %v3992 = vmul.f32 %v3475, %v3762
    %v3993 = vmul.f32 %v3476, %v3763
    %v3994 = vmul.f32 %v3477, %v3762
    %v3995 = vmul.f32 %v3478, %v3763
    %v3996 = vmul.f32 %v3479, %v3762
    %v3997 = vmul.f32 %v3480, %v3763
    %v3998 = vmul.f32 %v3481, %v3762
    %v3999 = vmul.f32 %v3482, %v3763
    %v4000 = vmul.f32 %v3483, %v3762
    %v4001 = vmul.f32 %v3484, %v3763
    %v4002 = vmul.f32 %v3485, %v3762
    %v4003 = vmul.f32 %v3486, %v3763
    %v4004 = vmul.f32 %v3487, %v3762
    %v4005 = vmul.f32 %v3488, %v3763
    %v4006 = vmul.f32 %v3489, %v3762
    %v4007 = vmul.f32 %v3490, %v3763
    %v4008 = vmul.f32 %v3491, %v3762
    %v4009 = vmul.f32 %v3492, %v3763
    %v4010 = vmul.f32 %v3493, %v3762
    %v4011 = vmul.f32 %v3494, %v3763
    %v4012 = vmul.f32 %v3495, %v3762
    %v4013 = vmul.f32 %v3496, %v3763
    %v4014 = vmul.f32 %v3497, %v3762
    %v4015 = vmul.f32 %v3498, %v3763
    %v4016 = vmul.f32 %v3499, %v3762
    %v4017 = vmul.f32 %v3500, %v3763
    %v4018 = vmul.f32 %v3501, %v3762
    %v4019 = vmul.f32 %v3502, %v3763
    %v4020 = vmul.f32 %v3503, %v3762
    %v4021 = vmul.f32 %v3504, %v3763
    %v4022 = vmul.f32 %v3505, %v3762
    %v4023 = vmul.f32 %v3506, %v3763
    %v4024 = vmul.f32 %v3507, %v3762
    %v4025 = vmul.f32 %v3508, %v3763
    %v4026 = vmul.f32 %v3509, %v3762
    %v4027 = vmul.f32 %v3510, %v3763
    %v4028 = vmul.f32 %v3511, %v3762
    %v4029 = vmul.f32 %v3512, %v3763
    %v4030 = vmul.f32 %v3513, %v3762
    %v4031 = vmul.f32 %v3514, %v3763
    %v4032 = vmul.f32 %v3515, %v3762
    %v4033 = vmul.f32 %v3516, %v3763
    %v4034 = vmul.f32 %v3517, %v3762
    %v4035 = vmul.f32 %v3518, %v3763
    %v4036 = vmul.f32 %v3519, %v3762
    %v4037 = vmul.f32 %v3520, %v3763
    %v4038 = vmul.f32 %v3521, %v3762
    %v4039 = vmul.f32 %v3522, %v3763
    %v4040 = vmul.f32 %v3523, %v3762
    %v4041 = vmul.f32 %v3524, %v3763
    %v4042 = vmul.f32 %v3525, %v3762
    %v4043 = vmul.f32 %v3526, %v3763
    %v4044 = vmul.f32 %v3527, %v3762
    %v4045 = vmul.f32 %v3528, %v3763
    %v4046 = vmul.f32 %v3529, %v3762
    %v4047 = vmul.f32 %v3530, %v3763
    %v4048 = vmul.f32 %v3531, %v3762
    %v4049 = vmul.f32 %v3532, %v3763
    %v4050 = vmul.f32 %v3533, %v3762
    %v4051 = vmul.f32 %v3534, %v3763
    %v4052 = vmul.f32 %v3535, %v3762
    %v4053 = vmul.f32 %v3536, %v3763
    %v4054 = vmul.f32 %v3537, %v3762
    %v4055 = vmul.f32 %v3538, %v3763
    %v4056 = vmul.f32 %v3539, %v3762
    %v4057 = vmul.f32 %v3540, %v3763
    %v4058 = vmul.f32 %v3541, %v3762
    %v4059 = vmul.f32 %v3542, %v3763
    %v4060 = vmul.f32 %v3543, %v3762
    %v4061 = vmul.f32 %v3544, %v3763
    %v4062 = vmul.f32 %v3545, %v3762
    %v4063 = vmul.f32 %v3546, %v3763
    %v4064 = vmul.f32 %v3547, %v3762
    %v4065 = vmul.f32 %v3548, %v3763
    %v4066 = vmul.f32 %v3549, %v3762
    %v4067 = vmul.f32 %v3550, %v3763
    %v4068 = vmul.f32 %v3551, %v3762
    %v4069 = vmul.f32 %v3552, %v3763
    %v4070 = vmul.f32 %v3553, %v3762
    %v4071 = vmul.f32 %v3554, %v3763
    %v4072 = vmul.f32 %v3555, %v3762
    %v4073 = vmul.f32 %v3556, %v3763
    %v4074 = vmul.f32 %v3557, %v3762
    %v4075 = vmul.f32 %v3558, %v3763
    %v4076 = vmul.f32 %v3559, %v3762
    %v4077 = vmul.f32 %v3560, %v3763
    %v4078 = vmul.f32 %v3561, %v3762
    %v4079 = vmul.f32 %v3562, %v3763
    %v4080 = vmul.f32 %v3563, %v3762
    %v4081 = vmul.f32 %v3564, %v3763
    %v4082 = vmul.f32 %v3565, %v3762
    %v4083 = vmul.f32 %v3566, %v3763
    %v4084 = vmul.f32 %v3567, %v3762
    %v4085 = vmul.f32 %v3568, %v3763
    %v4086 = vmul.f32 %v3569, %v3762
    %v4087 = vmul.f32 %v3570, %v3763
    %v4088 = vmul.f32 %v3571, %v3762
    %v4089 = vmul.f32 %v3572, %v3763
    %v4090 = vmul.f32 %v3573, %v3762
    %v4091 = vmul.f32 %v3574, %v3763
    %v4092 = vmul.f32 %v3575, %v3762
    %v4093 = vmul.f32 %v3576, %v3763
    %v4094 = vmul.f32 %v3577, %v3762
    %v4095 = vmul.f32 %v3578, %v3763
    %v4096 = vmul.f32 %v3579, %v3762
    %v4097 = vmul.f32 %v3580, %v3763
    %v4098 = vmul.f32 %v3581, %v3762
    %v4099 = vmul.f32 %v3582, %v3763
    %v4100 = vmul.f32 %v3583, %v3762
    %v4101 = vmul.f32 %v3584, %v3763
    %v4102 = vmul.f32 %v3585, %v3762
    %v4103 = vmul.f32 %v3586, %v3763
    %v4104 = vmul.f32 %v3587, %v3762
    %v4105 = vmul.f32 %v3588, %v3763
    %v4106 = vmul.f32 %v3589, %v3762
    %v4107 = vmul.f32 %v3590, %v3763
    %v4108 = vmul.f32 %v3591, %v3762
    %v4109 = vmul.f32 %v3592, %v3763
    %v4110 = vmul.f32 %v3593, %v3762
    %v4111 = vmul.f32 %v3594, %v3763
    %v4112 = vmul.f32 %v3595, %v3762
    %v4113 = vmul.f32 %v3596, %v3763
    %v4114 = vmul.f32 %v3597, %v3762
    %v4115 = vmul.f32 %v3598, %v3763
    %v4116 = vmul.f32 %v3599, %v3762
    %v4117 = vmul.f32 %v3600, %v3763
    %v4118 = vmul.f32 %v3601, %v3762
    %v4119 = vmul.f32 %v3602, %v3763
    %v4120 = vmul.f32 %v3603, %v3762
    %v4121 = vmul.f32 %v3604, %v3763
    %v4122 = vmul.f32 %v3605, %v3762
    %v4123 = vmul.f32 %v3606, %v3763
    %v4124 = vmul.f32 %v3607, %v3762
    %v4125 = vmul.f32 %v3608, %v3763
    %v4126 = vmul.f32 %v3609, %v3762
    %v4127 = vmul.f32 %v3610, %v3763
    %v4128 = vmul.f32 %v3611, %v3762
    %v4129 = vmul.f32 %v3612, %v3763
    %v4130 = vmul.f32 %v3613, %v3762
    %v4131 = vmul.f32 %v3614, %v3763
    %v4132 = vmul.f32 %v3615, %v3762
    %v4133 = vmul.f32 %v3616, %v3763
    %v4134 = vmul.f32 %v3617, %v3762
    %v4135 = vmul.f32 %v3618, %v3763
    %v4136 = vmul.f32 %v3619, %v3762
    %v4137 = vmul.f32 %v3620, %v3763
    %v4138 = vmul.f32 %v3621, %v3762
    %v4139 = vmul.f32 %v3622, %v3763
    %v4140 = vmul.f32 %v3623, %v3762
    %v4141 = vmul.f32 %v3624, %v3763
    %v4142 = vmul.f32 %v3625, %v3762
    %v4143 = vmul.f32 %v3626, %v3763
    %v4144 = vmul.f32 %v3627, %v3762
    %v4145 = vmul.f32 %v3628, %v3763
    %v4146 = vmul.f32 %v3629, %v3762
    %v4147 = vmul.f32 %v3630, %v3763
    %v4148 = vmul.f32 %v3631, %v3762
    %v4149 = vmul.f32 %v3632, %v3763
    %v4150 = vmul.f32 %v3633, %v3762
    %v4151 = vmul.f32 %v3634, %v3763
    %v4152 = vmul.f32 %v3635, %v3762
    %v4153 = vmul.f32 %v3636, %v3763
    %v4154 = vmul.f32 %v3637, %v3762
    %v4155 = vmul.f32 %v3638, %v3763
    %v4156 = vmul.f32 %v3639, %v3762
    %v4157 = vmul.f32 %v3640, %v3763
    %v4158 = vmul.f32 %v3641, %v3762
    %v4159 = vmul.f32 %v3642, %v3763
    %v4160 = vmul.f32 %v3643, %v3762
    %v4161 = vmul.f32 %v3644, %v3763
    %v4162 = vmul.f32 %v3645, %v3762
    %v4163 = vmul.f32 %v3646, %v3763
    %v4164 = vmul.f32 %v3647, %v3762
    %v4165 = vmul.f32 %v3648, %v3763
    %v4166 = vmul.f32 %v3649, %v3762
    %v4167 = vmul.f32 %v3650, %v3763
    %v4168 = vmul.f32 %v3651, %v3762
    %v4169 = vmul.f32 %v3652, %v3763
    %v4170 = vmul.f32 %v3653, %v3762
    %v4171 = vmul.f32 %v3654, %v3763
    %v4172 = vmul.f32 %v3655, %v3762
    %v4173 = vmul.f32 %v3656, %v3763
    %v4174 = vmul.f32 %v3657, %v3762
    %v4175 = vmul.f32 %v3658, %v3763
    %v4176 = vmul.f32 %v3659, %v3762
    %v4177 = vmul.f32 %v3660, %v3763
    %v4178 = vmul.f32 %v3661, %v3762
    %v4179 = vmul.f32 %v3662, %v3763
    %v4180 = vmul.f32 %v3663, %v3762
    %v4181 = vmul.f32 %v3664, %v3763
    %v4182 = vmul.f32 %v3665, %v3762
    %v4183 = vmul.f32 %v3666, %v3763
    %v4184 = vmul.f32 %v3667, %v3762
    %v4185 = vmul.f32 %v3668, %v3763
    %v4186 = vmul.f32 %v3669, %v3762
    %v4187 = vmul.f32 %v3670, %v3763
    %v4188 = vmul.f32 %v3671, %v3762
    %v4189 = vmul.f32 %v3672, %v3763
    %v4190 = vmul.f32 %v3673, %v3762
    %v4191 = vmul.f32 %v3674, %v3763
    %v4192 = vmul.f32 %v3675, %v3762
    %v4193 = vmul.f32 %v3676, %v3763
    %v4194 = vmul.f32 %v3677, %v3762
    %v4195 = vmul.f32 %v3678, %v3763
    %v4196 = vmul.f32 %v3679, %v3762
    %v4197 = vmul.f32 %v3680, %v3763
    %v4198 = vmul.f32 %v3681, %v3762
    %v4199 = vmul.f32 %v3682, %v3763
    %v4200 = vmul.f32 %v3683, %v3762
    %v4201 = vmul.f32 %v3684, %v3763
    %v4202 = vmul.f32 %v3685, %v3762
    %v4203 = vmul.f32 %v3686, %v3763
    %v4204 = vmul.f32 %v3687, %v3762
    %v4205 = vmul.f32 %v3688, %v3763
    %v4206 = vmul.f32 %v3689, %v3762
    %v4207 = vmul.f32 %v3690, %v3763
    %v4208 = vmul.f32 %v3691, %v3762
    %v4209 = vmul.f32 %v3692, %v3763
    %v4210 = vmul.f32 %v3693, %v3762
    %v4211 = vmul.f32 %v3694, %v3763
    %v4212 = vmul.f32 %v3695, %v3762
    %v4213 = vmul.f32 %v3696, %v3763
    %v4214 = vmul.f32 %v3697, %v3762
    %v4215 = vmul.f32 %v3698, %v3763
    %v4216 = vmul.f32 %v3699, %v3762
    %v4217 = vmul.f32 %v3700, %v3763
    %v4218 = vmul.f32 %v3701, %v3762
    %v4219 = vmul.f32 %v3702, %v3763
    %v4220 = vmul.f32 %v3703, %v3762
    %v4221 = vmul.f32 %v3704, %v3763
    %v4222 = vmul.f32 %v3705, %v3762
    %v4223 = vmul.f32 %v3706, %v3763
    %v4224 = vmul.f32 %v3707, %v3762
    %v4225 = vmul.f32 %v3708, %v3763
    %v4226 = vmul.f32 %v3709, %v3762
    %v4227 = vmul.f32 %v3710, %v3763
    %v4228 = vmul.f32 %v3711, %v3762
    %v4229 = vmul.f32 %v3712, %v3763
    %v4230 = vmul.f32 %v3713, %v3762
    %v4231 = vmul.f32 %v3714, %v3763
    %v4232 = vmul.f32 %v3715, %v3762
    %v4233 = vmul.f32 %v3716, %v3763
    %v4234 = vmul.f32 %v3717, %v3762
    %v4235 = vmul.f32 %v3718, %v3763
    %v4236 = vmul.f32 %v3719, %v3762
    %v4237 = vmul.f32 %v3720, %v3763
    %v4238 = vmul.f32 %v3721, %v3762
    %v4239 = vmul.f32 %v3722, %v3763
    %v4240 = vmul.f32 %v3723, %v3762
    %v4241 = vmul.f32 %v3724, %v3763
    %v4242 = vmul.f32 %v3725, %v3762
    %v4243 = vmul.f32 %v3726, %v3763
    %v4244 = vmul.f32 %v3727, %v3762
    %v4245 = vmul.f32 %v3728, %v3763
    %v4246 = vmul.f32 %v3729, %v3762
    %v4247 = vmul.f32 %v3730, %v3763
    %v4248 = vmul.f32 %v3731, %v3762
    %v4249 = vmul.f32 %v3732, %v3763
    %v4250 = vmul.f32 %v3733, %v3762
    %v4251 = vmul.f32 %v3734, %v3763
    %v4252 = vmul.f32 %v3735, %v3762
    %v4253 = vmul.f32 %v3736, %v3763
    %v4254 = vmul.f32 %v3737, %v3762
    %v4255 = vmul.f32 %v3738, %v3763
    %v4256 = vmul.f32 %v3739, %v3762
    %v4257 = vmul.f32 %v3740, %v3763
    %v4258 = vmul.f32 %v3741, %v3762
    %v4259 = vmul.f32 %v3742, %v3763
    %v4260 = vmul.f32 %v3743, %v3762
    %v4261 = vmul.f32 %v3744, %v3763
    %v4262 = vmul.f32 %v3745, %v3762
    %v4263 = vmul.f32 %v3746, %v3763
    %v4264 = vmul.f32 %v3747, %v3762
    %v4265 = vmul.f32 %v3748, %v3763
    %v4266 = vmul.f32 %v3749, %v3762
    %v4267 = vmul.f32 %v3750, %v3763
    %v4268 = vmul.f32 %v3751, %v3762
    %v4269 = vmul.f32 %v3752, %v3763
    %v4270 = vmul.f32 %v3753, %v3762
    %v4271 = vmul.f32 %v3754, %v3763
    %v4272 = vmul.f32 %v3755, %v3762
    %v4273 = vmul.f32 %v3756, %v3763
    %v4274 = vmul.f32 %v3757, %v3762
    %v4275 = vmul.f32 %v3758, %v3763
    %v4276 = vmul.f32 %v3759, %v3762
    %v4277 = vmul.f32 %v3760, %v3763
    %v4278 = vadd.f32 %v3766, %v3767
    %4279 = vadd.xlane.f32.xlu0 %v4278
    %v4280 = vpop.xlane.xlu0 %4279
    %v4281 = vadd.f32 %v3768, %v3769
    %4282 = vadd.xlane.f32.xlu0 %v4281
    %v4283 = vpop.xlane.xlu0 %4282
    %v4284 = vadd.f32 %v3770, %v3771
    %4285 = vadd.xlane.f32.xlu0 %v4284
    %v4286 = vpop.xlane.xlu0 %4285
    %v4287 = vadd.f32 %v3772, %v3773
    %4288 = vadd.xlane.f32.xlu0 %v4287
    %v4289 = vpop.xlane.xlu0 %4288
    %v4290 = vadd.f32 %v3774, %v3775
    %4291 = vadd.xlane.f32.xlu0 %v4290
    %v4292 = vpop.xlane.xlu0 %4291
    %v4293 = vadd.f32 %v3776, %v3777
    %4294 = vadd.xlane.f32.xlu0 %v4293
    %v4295 = vpop.xlane.xlu0 %4294
    %v4296 = vadd.f32 %v3778, %v3779
    %4297 = vadd.xlane.f32.xlu0 %v4296
    %v4298 = vpop.xlane.xlu0 %4297
    %v4299 = vadd.f32 %v3780, %v3781
    %4300 = vadd.xlane.f32.xlu0 %v4299
    %v4301 = vpop.xlane.xlu0 %4300
    %v4302 = vadd.f32 %v3782, %v3783
    %4303 = vadd.xlane.f32.xlu0 %v4302
    %v4304 = vpop.xlane.xlu0 %4303
    %v4305 = vadd.f32 %v3784, %v3785
    %4306 = vadd.xlane.f32.xlu0 %v4305
    %v4307 = vpop.xlane.xlu0 %4306
    %v4308 = vadd.f32 %v3786, %v3787
    %4309 = vadd.xlane.f32.xlu0 %v4308
    %v4310 = vpop.xlane.xlu0 %4309
    %v4311 = vadd.f32 %v3788, %v3789
    %4312 = vadd.xlane.f32.xlu0 %v4311
    %v4313 = vpop.xlane.xlu0 %4312
    %v4314 = vadd.f32 %v3790, %v3791
    %4315 = vadd.xlane.f32.xlu0 %v4314
    %v4316 = vpop.xlane.xlu0 %4315
    %v4317 = vadd.f32 %v3792, %v3793
    %4318 = vadd.xlane.f32.xlu0 %v4317
    %v4319 = vpop.xlane.xlu0 %4318
    %v4320 = vadd.f32 %v3794, %v3795
    %4321 = vadd.xlane.f32.xlu0 %v4320
    %v4322 = vpop.xlane.xlu0 %4321
    %v4323 = vadd.f32 %v3796, %v3797
    %4324 = vadd.xlane.f32.xlu0 %v4323
    %v4325 = vpop.xlane.xlu0 %4324
    %v4326 = vadd.f32 %v3798, %v3799
    %4327 = vadd.xlane.f32.xlu0 %v4326
    %v4328 = vpop.xlane.xlu0 %4327
    %v4329 = vadd.f32 %v3800, %v3801
    %4330 = vadd.xlane.f32.xlu0 %v4329
    %v4331 = vpop.xlane.xlu0 %4330
    %v4332 = vadd.f32 %v3802, %v3803
    %4333 = vadd.xlane.f32.xlu0 %v4332
    %v4334 = vpop.xlane.xlu0 %4333
    %v4335 = vadd.f32 %v3804, %v3805
    %4336 = vadd.xlane.f32.xlu0 %v4335
    %v4337 = vpop.xlane.xlu0 %4336
    %v4338 = vadd.f32 %v3806, %v3807
    %4339 = vadd.xlane.f32.xlu0 %v4338
    %v4340 = vpop.xlane.xlu0 %4339
    %v4341 = vadd.f32 %v3808, %v3809
    %4342 = vadd.xlane.f32.xlu0 %v4341
    %v4343 = vpop.xlane.xlu0 %4342
    %v4344 = vadd.f32 %v3810, %v3811
    %4345 = vadd.xlane.f32.xlu0 %v4344
    %v4346 = vpop.xlane.xlu0 %4345
    %v4347 = vadd.f32 %v3812, %v3813
    %4348 = vadd.xlane.f32.xlu0 %v4347
    %v4349 = vpop.xlane.xlu0 %4348
    %v4350 = vadd.f32 %v3814, %v3815
    %4351 = vadd.xlane.f32.xlu0 %v4350
    %v4352 = vpop.xlane.xlu0 %4351
    %v4353 = vadd.f32 %v3816, %v3817
    %4354 = vadd.xlane.f32.xlu0 %v4353
    %v4355 = vpop.xlane.xlu0 %4354
    %v4356 = vadd.f32 %v3818, %v3819
    %4357 = vadd.xlane.f32.xlu0 %v4356
    %v4358 = vpop.xlane.xlu0 %4357
    %v4359 = vadd.f32 %v3820, %v3821
    %4360 = vadd.xlane.f32.xlu0 %v4359
    %v4361 = vpop.xlane.xlu0 %4360
    %v4362 = vadd.f32 %v3822, %v3823
    %4363 = vadd.xlane.f32.xlu0 %v4362
    %v4364 = vpop.xlane.xlu0 %4363
    %v4365 = vadd.f32 %v3824, %v3825
    %4366 = vadd.xlane.f32.xlu0 %v4365
    %v4367 = vpop.xlane.xlu0 %4366
    %v4368 = vadd.f32 %v3826, %v3827
    %4369 = vadd.xlane.f32.xlu0 %v4368
    %v4370 = vpop.xlane.xlu0 %4369
    %v4371 = vadd.f32 %v3828, %v3829
    %4372 = vadd.xlane.f32.xlu0 %v4371
    %v4373 = vpop.xlane.xlu0 %4372
    %v4374 = vadd.f32 %v3830, %v3831
    %4375 = vadd.xlane.f32.xlu0 %v4374
    %v4376 = vpop.xlane.xlu0 %4375
    %v4377 = vadd.f32 %v3832, %v3833
    %4378 = vadd.xlane.f32.xlu0 %v4377
    %v4379 = vpop.xlane.xlu0 %4378
    %v4380 = vadd.f32 %v3834, %v3835
    %4381 = vadd.xlane.f32.xlu0 %v4380
    %v4382 = vpop.xlane.xlu0 %4381
    %v4383 = vadd.f32 %v3836, %v3837
    %4384 = vadd.xlane.f32.xlu0 %v4383
    %v4385 = vpop.xlane.xlu0 %4384
    %v4386 = vadd.f32 %v3838, %v3839
    %4387 = vadd.xlane.f32.xlu0 %v4386
    %v4388 = vpop.xlane.xlu0 %4387
    %v4389 = vadd.f32 %v3840, %v3841
    %4390 = vadd.xlane.f32.xlu0 %v4389
    %v4391 = vpop.xlane.xlu0 %4390
    %v4392 = vadd.f32 %v3842, %v3843
    %4393 = vadd.xlane.f32.xlu0 %v4392
    %v4394 = vpop.xlane.xlu0 %4393
    %v4395 = vadd.f32 %v3844, %v3845
    %4396 = vadd.xlane.f32.xlu0 %v4395
    %v4397 = vpop.xlane.xlu0 %4396
    %v4398 = vadd.f32 %v3846, %v3847
    %4399 = vadd.xlane.f32.xlu0 %v4398
    %v4400 = vpop.xlane.xlu0 %4399
    %v4401 = vadd.f32 %v3848, %v3849
    %4402 = vadd.xlane.f32.xlu0 %v4401
    %v4403 = vpop.xlane.xlu0 %4402
    %v4404 = vadd.f32 %v3850, %v3851
    %4405 = vadd.xlane.f32.xlu0 %v4404
    %v4406 = vpop.xlane.xlu0 %4405
    %v4407 = vadd.f32 %v3852, %v3853
    %4408 = vadd.xlane.f32.xlu0 %v4407
    %v4409 = vpop.xlane.xlu0 %4408
    %v4410 = vadd.f32 %v3854, %v3855
    %4411 = vadd.xlane.f32.xlu0 %v4410
    %v4412 = vpop.xlane.xlu0 %4411
    %v4413 = vadd.f32 %v3856, %v3857
    %4414 = vadd.xlane.f32.xlu0 %v4413
    %v4415 = vpop.xlane.xlu0 %4414
    %v4416 = vadd.f32 %v3858, %v3859
    %4417 = vadd.xlane.f32.xlu0 %v4416
    %v4418 = vpop.xlane.xlu0 %4417
    %v4419 = vadd.f32 %v3860, %v3861
    %4420 = vadd.xlane.f32.xlu0 %v4419
    %v4421 = vpop.xlane.xlu0 %4420
    %v4422 = vadd.f32 %v3862, %v3863
    %4423 = vadd.xlane.f32.xlu0 %v4422
    %v4424 = vpop.xlane.xlu0 %4423
    %v4425 = vadd.f32 %v3864, %v3865
    %4426 = vadd.xlane.f32.xlu0 %v4425
    %v4427 = vpop.xlane.xlu0 %4426
    %v4428 = vadd.f32 %v3866, %v3867
    %4429 = vadd.xlane.f32.xlu0 %v4428
    %v4430 = vpop.xlane.xlu0 %4429
    %v4431 = vadd.f32 %v3868, %v3869
    %4432 = vadd.xlane.f32.xlu0 %v4431
    %v4433 = vpop.xlane.xlu0 %4432
    %v4434 = vadd.f32 %v3870, %v3871
    %4435 = vadd.xlane.f32.xlu0 %v4434
    %v4436 = vpop.xlane.xlu0 %4435
    %v4437 = vadd.f32 %v3872, %v3873
    %4438 = vadd.xlane.f32.xlu0 %v4437
    %v4439 = vpop.xlane.xlu0 %4438
    %v4440 = vadd.f32 %v3874, %v3875
    %4441 = vadd.xlane.f32.xlu0 %v4440
    %v4442 = vpop.xlane.xlu0 %4441
    %v4443 = vadd.f32 %v3876, %v3877
    %4444 = vadd.xlane.f32.xlu0 %v4443
    %v4445 = vpop.xlane.xlu0 %4444
    %v4446 = vadd.f32 %v3878, %v3879
    %4447 = vadd.xlane.f32.xlu0 %v4446
    %v4448 = vpop.xlane.xlu0 %4447
    %v4449 = vadd.f32 %v3880, %v3881
    %4450 = vadd.xlane.f32.xlu0 %v4449
    %v4451 = vpop.xlane.xlu0 %4450
    %v4452 = vadd.f32 %v3882, %v3883
    %4453 = vadd.xlane.f32.xlu0 %v4452
    %v4454 = vpop.xlane.xlu0 %4453
    %v4455 = vadd.f32 %v3884, %v3885
    %4456 = vadd.xlane.f32.xlu0 %v4455
    %v4457 = vpop.xlane.xlu0 %4456
    %v4458 = vadd.f32 %v3886, %v3887
    %4459 = vadd.xlane.f32.xlu0 %v4458
    %v4460 = vpop.xlane.xlu0 %4459
    %v4461 = vadd.f32 %v3888, %v3889
    %4462 = vadd.xlane.f32.xlu0 %v4461
    %v4463 = vpop.xlane.xlu0 %4462
    %v4464 = vadd.f32 %v3890, %v3891
    %4465 = vadd.xlane.f32.xlu0 %v4464
    %v4466 = vpop.xlane.xlu0 %4465
    %v4467 = vadd.f32 %v3892, %v3893
    %4468 = vadd.xlane.f32.xlu0 %v4467
    %v4469 = vpop.xlane.xlu0 %4468
    %v4470 = vadd.f32 %v3894, %v3895
    %4471 = vadd.xlane.f32.xlu0 %v4470
    %v4472 = vpop.xlane.xlu0 %4471
    %v4473 = vadd.f32 %v3896, %v3897
    %4474 = vadd.xlane.f32.xlu0 %v4473
    %v4475 = vpop.xlane.xlu0 %4474
    %v4476 = vadd.f32 %v3898, %v3899
    %4477 = vadd.xlane.f32.xlu0 %v4476
    %v4478 = vpop.xlane.xlu0 %4477
    %v4479 = vadd.f32 %v3900, %v3901
    %4480 = vadd.xlane.f32.xlu0 %v4479
    %v4481 = vpop.xlane.xlu0 %4480
    %v4482 = vadd.f32 %v3902, %v3903
    %4483 = vadd.xlane.f32.xlu0 %v4482
    %v4484 = vpop.xlane.xlu0 %4483
    %v4485 = vadd.f32 %v3904, %v3905
    %4486 = vadd.xlane.f32.xlu0 %v4485
    %v4487 = vpop.xlane.xlu0 %4486
    %v4488 = vadd.f32 %v3906, %v3907
    %4489 = vadd.xlane.f32.xlu0 %v4488
    %v4490 = vpop.xlane.xlu0 %4489
    %v4491 = vadd.f32 %v3908, %v3909
    %4492 = vadd.xlane.f32.xlu0 %v4491
    %v4493 = vpop.xlane.xlu0 %4492
    %v4494 = vadd.f32 %v3910, %v3911
    %4495 = vadd.xlane.f32.xlu0 %v4494
    %v4496 = vpop.xlane.xlu0 %4495
    %v4497 = vadd.f32 %v3912, %v3913
    %4498 = vadd.xlane.f32.xlu0 %v4497
    %v4499 = vpop.xlane.xlu0 %4498
    %v4500 = vadd.f32 %v3914, %v3915
    %4501 = vadd.xlane.f32.xlu0 %v4500
    %v4502 = vpop.xlane.xlu0 %4501
    %v4503 = vadd.f32 %v3916, %v3917
    %4504 = vadd.xlane.f32.xlu0 %v4503
    %v4505 = vpop.xlane.xlu0 %4504
    %v4506 = vadd.f32 %v3918, %v3919
    %4507 = vadd.xlane.f32.xlu0 %v4506
    %v4508 = vpop.xlane.xlu0 %4507
    %v4509 = vadd.f32 %v3920, %v3921
    %4510 = vadd.xlane.f32.xlu0 %v4509
    %v4511 = vpop.xlane.xlu0 %4510
    %v4512 = vadd.f32 %v3922, %v3923
    %4513 = vadd.xlane.f32.xlu0 %v4512
    %v4514 = vpop.xlane.xlu0 %4513
    %v4515 = vadd.f32 %v3924, %v3925
    %4516 = vadd.xlane.f32.xlu0 %v4515
    %v4517 = vpop.xlane.xlu0 %4516
    %v4518 = vadd.f32 %v3926, %v3927
    %4519 = vadd.xlane.f32.xlu0 %v4518
    %v4520 = vpop.xlane.xlu0 %4519
    %v4521 = vadd.f32 %v3928, %v3929
    %4522 = vadd.xlane.f32.xlu0 %v4521
    %v4523 = vpop.xlane.xlu0 %4522
    %v4524 = vadd.f32 %v3930, %v3931
    %4525 = vadd.xlane.f32.xlu0 %v4524
    %v4526 = vpop.xlane.xlu0 %4525
    %v4527 = vadd.f32 %v3932, %v3933
    %4528 = vadd.xlane.f32.xlu0 %v4527
    %v4529 = vpop.xlane.xlu0 %4528
    %v4530 = vadd.f32 %v3934, %v3935
    %4531 = vadd.xlane.f32.xlu0 %v4530
    %v4532 = vpop.xlane.xlu0 %4531
    %v4533 = vadd.f32 %v3936, %v3937
    %4534 = vadd.xlane.f32.xlu0 %v4533
    %v4535 = vpop.xlane.xlu0 %4534
    %v4536 = vadd.f32 %v3938, %v3939
    %4537 = vadd.xlane.f32.xlu0 %v4536
    %v4538 = vpop.xlane.xlu0 %4537
    %v4539 = vadd.f32 %v3940, %v3941
    %4540 = vadd.xlane.f32.xlu0 %v4539
    %v4541 = vpop.xlane.xlu0 %4540
    %v4542 = vadd.f32 %v3942, %v3943
    %4543 = vadd.xlane.f32.xlu0 %v4542
    %v4544 = vpop.xlane.xlu0 %4543
    %v4545 = vadd.f32 %v3944, %v3945
    %4546 = vadd.xlane.f32.xlu0 %v4545
    %v4547 = vpop.xlane.xlu0 %4546
    %v4548 = vadd.f32 %v3946, %v3947
    %4549 = vadd.xlane.f32.xlu0 %v4548
    %v4550 = vpop.xlane.xlu0 %4549
    %v4551 = vadd.f32 %v3948, %v3949
    %4552 = vadd.xlane.f32.xlu0 %v4551
    %v4553 = vpop.xlane.xlu0 %4552
    %v4554 = vadd.f32 %v3950, %v3951
    %4555 = vadd.xlane.f32.xlu0 %v4554
    %v4556 = vpop.xlane.xlu0 %4555
    %v4557 = vadd.f32 %v3952, %v3953
    %4558 = vadd.xlane.f32.xlu0 %v4557
    %v4559 = vpop.xlane.xlu0 %4558
    %v4560 = vadd.f32 %v3954, %v3955
    %4561 = vadd.xlane.f32.xlu0 %v4560
    %v4562 = vpop.xlane.xlu0 %4561
    %v4563 = vadd.f32 %v3956, %v3957
    %4564 = vadd.xlane.f32.xlu0 %v4563
    %v4565 = vpop.xlane.xlu0 %4564
    %v4566 = vadd.f32 %v3958, %v3959
    %4567 = vadd.xlane.f32.xlu0 %v4566
    %v4568 = vpop.xlane.xlu0 %4567
    %v4569 = vadd.f32 %v3960, %v3961
    %4570 = vadd.xlane.f32.xlu0 %v4569
    %v4571 = vpop.xlane.xlu0 %4570
    %v4572 = vadd.f32 %v3962, %v3963
    %4573 = vadd.xlane.f32.xlu0 %v4572
    %v4574 = vpop.xlane.xlu0 %4573
    %v4575 = vadd.f32 %v3964, %v3965
    %4576 = vadd.xlane.f32.xlu0 %v4575
    %v4577 = vpop.xlane.xlu0 %4576
    %v4578 = vadd.f32 %v3966, %v3967
    %4579 = vadd.xlane.f32.xlu0 %v4578
    %v4580 = vpop.xlane.xlu0 %4579
    %v4581 = vadd.f32 %v3968, %v3969
    %4582 = vadd.xlane.f32.xlu0 %v4581
    %v4583 = vpop.xlane.xlu0 %4582
    %v4584 = vadd.f32 %v3970, %v3971
    %4585 = vadd.xlane.f32.xlu0 %v4584
    %v4586 = vpop.xlane.xlu0 %4585
    %v4587 = vadd.f32 %v3972, %v3973
    %4588 = vadd.xlane.f32.xlu0 %v4587
    %v4589 = vpop.xlane.xlu0 %4588
    %v4590 = vadd.f32 %v3974, %v3975
    %4591 = vadd.xlane.f32.xlu0 %v4590
    %v4592 = vpop.xlane.xlu0 %4591
    %v4593 = vadd.f32 %v3976, %v3977
    %4594 = vadd.xlane.f32.xlu0 %v4593
    %v4595 = vpop.xlane.xlu0 %4594
    %v4596 = vadd.f32 %v3978, %v3979
    %4597 = vadd.xlane.f32.xlu0 %v4596
    %v4598 = vpop.xlane.xlu0 %4597
    %v4599 = vadd.f32 %v3980, %v3981
    %4600 = vadd.xlane.f32.xlu0 %v4599
    %v4601 = vpop.xlane.xlu0 %4600
    %v4602 = vadd.f32 %v3982, %v3983
    %4603 = vadd.xlane.f32.xlu0 %v4602
    %v4604 = vpop.xlane.xlu0 %4603
    %v4605 = vadd.f32 %v3984, %v3985
    %4606 = vadd.xlane.f32.xlu0 %v4605
    %v4607 = vpop.xlane.xlu0 %4606
    %v4608 = vadd.f32 %v3986, %v3987
    %4609 = vadd.xlane.f32.xlu0 %v4608
    %v4610 = vpop.xlane.xlu0 %4609
    %v4611 = vadd.f32 %v3988, %v3989
    %4612 = vadd.xlane.f32.xlu0 %v4611
    %v4613 = vpop.xlane.xlu0 %4612
    %v4614 = vadd.f32 %v3990, %v3991
    %4615 = vadd.xlane.f32.xlu0 %v4614
    %v4616 = vpop.xlane.xlu0 %4615
    %v4617 = vadd.f32 %v3992, %v3993
    %4618 = vadd.xlane.f32.xlu0 %v4617
    %v4619 = vpop.xlane.xlu0 %4618
    %v4620 = vadd.f32 %v3994, %v3995
    %4621 = vadd.xlane.f32.xlu0 %v4620
    %v4622 = vpop.xlane.xlu0 %4621
    %v4623 = vadd.f32 %v3996, %v3997
    %4624 = vadd.xlane.f32.xlu0 %v4623
    %v4625 = vpop.xlane.xlu0 %4624
    %v4626 = vadd.f32 %v3998, %v3999
    %4627 = vadd.xlane.f32.xlu0 %v4626
    %v4628 = vpop.xlane.xlu0 %4627
    %v4629 = vadd.f32 %v4000, %v4001
    %4630 = vadd.xlane.f32.xlu0 %v4629
    %v4631 = vpop.xlane.xlu0 %4630
    %v4632 = vadd.f32 %v4002, %v4003
    %4633 = vadd.xlane.f32.xlu0 %v4632
    %v4634 = vpop.xlane.xlu0 %4633
    %v4635 = vadd.f32 %v4004, %v4005
    %4636 = vadd.xlane.f32.xlu0 %v4635
    %v4637 = vpop.xlane.xlu0 %4636
    %v4638 = vadd.f32 %v4006, %v4007
    %4639 = vadd.xlane.f32.xlu0 %v4638
    %v4640 = vpop.xlane.xlu0 %4639
    %v4641 = vadd.f32 %v4008, %v4009
    %4642 = vadd.xlane.f32.xlu0 %v4641
    %v4643 = vpop.xlane.xlu0 %4642
    %v4644 = vadd.f32 %v4010, %v4011
    %4645 = vadd.xlane.f32.xlu0 %v4644
    %v4646 = vpop.xlane.xlu0 %4645
    %v4647 = vadd.f32 %v4012, %v4013
    %4648 = vadd.xlane.f32.xlu0 %v4647
    %v4649 = vpop.xlane.xlu0 %4648
    %v4650 = vadd.f32 %v4014, %v4015
    %4651 = vadd.xlane.f32.xlu0 %v4650
    %v4652 = vpop.xlane.xlu0 %4651
    %v4653 = vadd.f32 %v4016, %v4017
    %4654 = vadd.xlane.f32.xlu0 %v4653
    %v4655 = vpop.xlane.xlu0 %4654
    %v4656 = vadd.f32 %v4018, %v4019
    %4657 = vadd.xlane.f32.xlu0 %v4656
    %v4658 = vpop.xlane.xlu0 %4657
    %v4659 = vadd.f32 %v4020, %v4021
    %4660 = vadd.xlane.f32.xlu0 %v4659
    %v4661 = vpop.xlane.xlu0 %4660
    %v4662 = vadd.f32 %v4022, %v4023
    %4663 = vadd.xlane.f32.xlu0 %v4662
    %v4664 = vpop.xlane.xlu0 %4663
    %v4665 = vadd.f32 %v4024, %v4025
    %4666 = vadd.xlane.f32.xlu0 %v4665
    %v4667 = vpop.xlane.xlu0 %4666
    %v4668 = vadd.f32 %v4026, %v4027
    %4669 = vadd.xlane.f32.xlu0 %v4668
    %v4670 = vpop.xlane.xlu0 %4669
    %v4671 = vadd.f32 %v4028, %v4029
    %4672 = vadd.xlane.f32.xlu0 %v4671
    %v4673 = vpop.xlane.xlu0 %4672
    %v4674 = vadd.f32 %v4030, %v4031
    %4675 = vadd.xlane.f32.xlu0 %v4674
    %v4676 = vpop.xlane.xlu0 %4675
    %v4677 = vadd.f32 %v4032, %v4033
    %4678 = vadd.xlane.f32.xlu0 %v4677
    %v4679 = vpop.xlane.xlu0 %4678
    %v4680 = vadd.f32 %v4034, %v4035
    %4681 = vadd.xlane.f32.xlu0 %v4680
    %v4682 = vpop.xlane.xlu0 %4681
    %v4683 = vadd.f32 %v4036, %v4037
    %4684 = vadd.xlane.f32.xlu0 %v4683
    %v4685 = vpop.xlane.xlu0 %4684
    %v4686 = vadd.f32 %v4038, %v4039
    %4687 = vadd.xlane.f32.xlu0 %v4686
    %v4688 = vpop.xlane.xlu0 %4687
    %v4689 = vadd.f32 %v4040, %v4041
    %4690 = vadd.xlane.f32.xlu0 %v4689
    %v4691 = vpop.xlane.xlu0 %4690
    %v4692 = vadd.f32 %v4042, %v4043
    %4693 = vadd.xlane.f32.xlu0 %v4692
    %v4694 = vpop.xlane.xlu0 %4693
    %v4695 = vadd.f32 %v4044, %v4045
    %4696 = vadd.xlane.f32.xlu0 %v4695
    %v4697 = vpop.xlane.xlu0 %4696
    %v4698 = vadd.f32 %v4046, %v4047
    %4699 = vadd.xlane.f32.xlu0 %v4698
    %v4700 = vpop.xlane.xlu0 %4699
    %v4701 = vadd.f32 %v4048, %v4049
    %4702 = vadd.xlane.f32.xlu0 %v4701
    %v4703 = vpop.xlane.xlu0 %4702
    %v4704 = vadd.f32 %v4050, %v4051
    %4705 = vadd.xlane.f32.xlu0 %v4704
    %v4706 = vpop.xlane.xlu0 %4705
    %v4707 = vadd.f32 %v4052, %v4053
    %4708 = vadd.xlane.f32.xlu0 %v4707
    %v4709 = vpop.xlane.xlu0 %4708
    %v4710 = vadd.f32 %v4054, %v4055
    %4711 = vadd.xlane.f32.xlu0 %v4710
    %v4712 = vpop.xlane.xlu0 %4711
    %v4713 = vadd.f32 %v4056, %v4057
    %4714 = vadd.xlane.f32.xlu0 %v4713
    %v4715 = vpop.xlane.xlu0 %4714
    %v4716 = vadd.f32 %v4058, %v4059
    %4717 = vadd.xlane.f32.xlu0 %v4716
    %v4718 = vpop.xlane.xlu0 %4717
    %v4719 = vadd.f32 %v4060, %v4061
    %4720 = vadd.xlane.f32.xlu0 %v4719
    %v4721 = vpop.xlane.xlu0 %4720
    %v4722 = vadd.f32 %v4062, %v4063
    %4723 = vadd.xlane.f32.xlu0 %v4722
    %v4724 = vpop.xlane.xlu0 %4723
    %v4725 = vadd.f32 %v4064, %v4065
    %4726 = vadd.xlane.f32.xlu0 %v4725
    %v4727 = vpop.xlane.xlu0 %4726
    %v4728 = vadd.f32 %v4066, %v4067
    %4729 = vadd.xlane.f32.xlu0 %v4728
    %v4730 = vpop.xlane.xlu0 %4729
    %v4731 = vadd.f32 %v4068, %v4069
    %4732 = vadd.xlane.f32.xlu0 %v4731
    %v4733 = vpop.xlane.xlu0 %4732
    %v4734 = vadd.f32 %v4070, %v4071
    %4735 = vadd.xlane.f32.xlu0 %v4734
    %v4736 = vpop.xlane.xlu0 %4735
    %v4737 = vadd.f32 %v4072, %v4073
    %4738 = vadd.xlane.f32.xlu0 %v4737
    %v4739 = vpop.xlane.xlu0 %4738
    %v4740 = vadd.f32 %v4074, %v4075
    %4741 = vadd.xlane.f32.xlu0 %v4740
    %v4742 = vpop.xlane.xlu0 %4741
    %v4743 = vadd.f32 %v4076, %v4077
    %4744 = vadd.xlane.f32.xlu0 %v4743
    %v4745 = vpop.xlane.xlu0 %4744
    %v4746 = vadd.f32 %v4078, %v4079
    %4747 = vadd.xlane.f32.xlu0 %v4746
    %v4748 = vpop.xlane.xlu0 %4747
    %v4749 = vadd.f32 %v4080, %v4081
    %4750 = vadd.xlane.f32.xlu0 %v4749
    %v4751 = vpop.xlane.xlu0 %4750
    %v4752 = vadd.f32 %v4082, %v4083
    %4753 = vadd.xlane.f32.xlu0 %v4752
    %v4754 = vpop.xlane.xlu0 %4753
    %v4755 = vadd.f32 %v4084, %v4085
    %4756 = vadd.xlane.f32.xlu0 %v4755
    %v4757 = vpop.xlane.xlu0 %4756
    %v4758 = vadd.f32 %v4086, %v4087
    %4759 = vadd.xlane.f32.xlu0 %v4758
    %v4760 = vpop.xlane.xlu0 %4759
    %v4761 = vadd.f32 %v4088, %v4089
    %4762 = vadd.xlane.f32.xlu0 %v4761
    %v4763 = vpop.xlane.xlu0 %4762
    %v4764 = vadd.f32 %v4090, %v4091
    %4765 = vadd.xlane.f32.xlu0 %v4764
    %v4766 = vpop.xlane.xlu0 %4765
    %v4767 = vadd.f32 %v4092, %v4093
    %4768 = vadd.xlane.f32.xlu0 %v4767
    %v4769 = vpop.xlane.xlu0 %4768
    %v4770 = vadd.f32 %v4094, %v4095
    %4771 = vadd.xlane.f32.xlu0 %v4770
    %v4772 = vpop.xlane.xlu0 %4771
    %v4773 = vadd.f32 %v4096, %v4097
    %4774 = vadd.xlane.f32.xlu0 %v4773
    %v4775 = vpop.xlane.xlu0 %4774
    %v4776 = vadd.f32 %v4098, %v4099
    %4777 = vadd.xlane.f32.xlu0 %v4776
    %v4778 = vpop.xlane.xlu0 %4777
    %v4779 = vadd.f32 %v4100, %v4101
    %4780 = vadd.xlane.f32.xlu0 %v4779
    %v4781 = vpop.xlane.xlu0 %4780
    %v4782 = vadd.f32 %v4102, %v4103
    %4783 = vadd.xlane.f32.xlu0 %v4782
    %v4784 = vpop.xlane.xlu0 %4783
    %v4785 = vadd.f32 %v4104, %v4105
    %4786 = vadd.xlane.f32.xlu0 %v4785
    %v4787 = vpop.xlane.xlu0 %4786
    %v4788 = vadd.f32 %v4106, %v4107
    %4789 = vadd.xlane.f32.xlu0 %v4788
    %v4790 = vpop.xlane.xlu0 %4789
    %v4791 = vadd.f32 %v4108, %v4109
    %4792 = vadd.xlane.f32.xlu0 %v4791
    %v4793 = vpop.xlane.xlu0 %4792
    %v4794 = vadd.f32 %v4110, %v4111
    %4795 = vadd.xlane.f32.xlu0 %v4794
    %v4796 = vpop.xlane.xlu0 %4795
    %v4797 = vadd.f32 %v4112, %v4113
    %4798 = vadd.xlane.f32.xlu0 %v4797
    %v4799 = vpop.xlane.xlu0 %4798
    %v4800 = vadd.f32 %v4114, %v4115
    %4801 = vadd.xlane.f32.xlu0 %v4800
    %v4802 = vpop.xlane.xlu0 %4801
    %v4803 = vadd.f32 %v4116, %v4117
    %4804 = vadd.xlane.f32.xlu0 %v4803
    %v4805 = vpop.xlane.xlu0 %4804
    %v4806 = vadd.f32 %v4118, %v4119
    %4807 = vadd.xlane.f32.xlu0 %v4806
    %v4808 = vpop.xlane.xlu0 %4807
    %v4809 = vadd.f32 %v4120, %v4121
    %4810 = vadd.xlane.f32.xlu0 %v4809
    %v4811 = vpop.xlane.xlu0 %4810
    %v4812 = vadd.f32 %v4122, %v4123
    %4813 = vadd.xlane.f32.xlu0 %v4812
    %v4814 = vpop.xlane.xlu0 %4813
    %v4815 = vadd.f32 %v4124, %v4125
    %4816 = vadd.xlane.f32.xlu0 %v4815
    %v4817 = vpop.xlane.xlu0 %4816
    %v4818 = vadd.f32 %v4126, %v4127
    %4819 = vadd.xlane.f32.xlu0 %v4818
    %v4820 = vpop.xlane.xlu0 %4819
    %v4821 = vadd.f32 %v4128, %v4129
    %4822 = vadd.xlane.f32.xlu0 %v4821
    %v4823 = vpop.xlane.xlu0 %4822
    %v4824 = vadd.f32 %v4130, %v4131
    %4825 = vadd.xlane.f32.xlu0 %v4824
    %v4826 = vpop.xlane.xlu0 %4825
    %v4827 = vadd.f32 %v4132, %v4133
    %4828 = vadd.xlane.f32.xlu0 %v4827
    %v4829 = vpop.xlane.xlu0 %4828
    %v4830 = vadd.f32 %v4134, %v4135
    %4831 = vadd.xlane.f32.xlu0 %v4830
    %v4832 = vpop.xlane.xlu0 %4831
    %v4833 = vadd.f32 %v4136, %v4137
    %4834 = vadd.xlane.f32.xlu0 %v4833
    %v4835 = vpop.xlane.xlu0 %4834
    %v4836 = vadd.f32 %v4138, %v4139
    %4837 = vadd.xlane.f32.xlu0 %v4836
    %v4838 = vpop.xlane.xlu0 %4837
    %v4839 = vadd.f32 %v4140, %v4141
    %4840 = vadd.xlane.f32.xlu0 %v4839
    %v4841 = vpop.xlane.xlu0 %4840
    %v4842 = vadd.f32 %v4142, %v4143
    %4843 = vadd.xlane.f32.xlu0 %v4842
    %v4844 = vpop.xlane.xlu0 %4843
    %v4845 = vadd.f32 %v4144, %v4145
    %4846 = vadd.xlane.f32.xlu0 %v4845
    %v4847 = vpop.xlane.xlu0 %4846
    %v4848 = vadd.f32 %v4146, %v4147
    %4849 = vadd.xlane.f32.xlu0 %v4848
    %v4850 = vpop.xlane.xlu0 %4849
    %v4851 = vadd.f32 %v4148, %v4149
    %4852 = vadd.xlane.f32.xlu0 %v4851
    %v4853 = vpop.xlane.xlu0 %4852
    %v4854 = vadd.f32 %v4150, %v4151
    %4855 = vadd.xlane.f32.xlu0 %v4854
    %v4856 = vpop.xlane.xlu0 %4855
    %v4857 = vadd.f32 %v4152, %v4153
    %4858 = vadd.xlane.f32.xlu0 %v4857
    %v4859 = vpop.xlane.xlu0 %4858
    %v4860 = vadd.f32 %v4154, %v4155
    %4861 = vadd.xlane.f32.xlu0 %v4860
    %v4862 = vpop.xlane.xlu0 %4861
    %v4863 = vadd.f32 %v4156, %v4157
    %4864 = vadd.xlane.f32.xlu0 %v4863
    %v4865 = vpop.xlane.xlu0 %4864
    %v4866 = vadd.f32 %v4158, %v4159
    %4867 = vadd.xlane.f32.xlu0 %v4866
    %v4868 = vpop.xlane.xlu0 %4867
    %v4869 = vadd.f32 %v4160, %v4161
    %4870 = vadd.xlane.f32.xlu0 %v4869
    %v4871 = vpop.xlane.xlu0 %4870
    %v4872 = vadd.f32 %v4162, %v4163
    %4873 = vadd.xlane.f32.xlu0 %v4872
    %v4874 = vpop.xlane.xlu0 %4873
    %v4875 = vadd.f32 %v4164, %v4165
    %4876 = vadd.xlane.f32.xlu0 %v4875
    %v4877 = vpop.xlane.xlu0 %4876
    %v4878 = vadd.f32 %v4166, %v4167
    %4879 = vadd.xlane.f32.xlu0 %v4878
    %v4880 = vpop.xlane.xlu0 %4879
    %v4881 = vadd.f32 %v4168, %v4169
    %4882 = vadd.xlane.f32.xlu0 %v4881
    %v4883 = vpop.xlane.xlu0 %4882
    %v4884 = vadd.f32 %v4170, %v4171
    %4885 = vadd.xlane.f32.xlu0 %v4884
    %v4886 = vpop.xlane.xlu0 %4885
    %v4887 = vadd.f32 %v4172, %v4173
    %4888 = vadd.xlane.f32.xlu0 %v4887
    %v4889 = vpop.xlane.xlu0 %4888
    %v4890 = vadd.f32 %v4174, %v4175
    %4891 = vadd.xlane.f32.xlu0 %v4890
    %v4892 = vpop.xlane.xlu0 %4891
    %v4893 = vadd.f32 %v4176, %v4177
    %4894 = vadd.xlane.f32.xlu0 %v4893
    %v4895 = vpop.xlane.xlu0 %4894
    %v4896 = vadd.f32 %v4178, %v4179
    %4897 = vadd.xlane.f32.xlu0 %v4896
    %v4898 = vpop.xlane.xlu0 %4897
    %v4899 = vadd.f32 %v4180, %v4181
    %4900 = vadd.xlane.f32.xlu0 %v4899
    %v4901 = vpop.xlane.xlu0 %4900
    %v4902 = vadd.f32 %v4182, %v4183
    %4903 = vadd.xlane.f32.xlu0 %v4902
    %v4904 = vpop.xlane.xlu0 %4903
    %v4905 = vadd.f32 %v4184, %v4185
    %4906 = vadd.xlane.f32.xlu0 %v4905
    %v4907 = vpop.xlane.xlu0 %4906
    %v4908 = vadd.f32 %v4186, %v4187
    %4909 = vadd.xlane.f32.xlu0 %v4908
    %v4910 = vpop.xlane.xlu0 %4909
    %v4911 = vadd.f32 %v4188, %v4189
    %4912 = vadd.xlane.f32.xlu0 %v4911
    %v4913 = vpop.xlane.xlu0 %4912
    %v4914 = vadd.f32 %v4190, %v4191
    %4915 = vadd.xlane.f32.xlu0 %v4914
    %v4916 = vpop.xlane.xlu0 %4915
    %v4917 = vadd.f32 %v4192, %v4193
    %4918 = vadd.xlane.f32.xlu0 %v4917
    %v4919 = vpop.xlane.xlu0 %4918
    %v4920 = vadd.f32 %v4194, %v4195
    %4921 = vadd.xlane.f32.xlu0 %v4920
    %v4922 = vpop.xlane.xlu0 %4921
    %v4923 = vadd.f32 %v4196, %v4197
    %4924 = vadd.xlane.f32.xlu0 %v4923
    %v4925 = vpop.xlane.xlu0 %4924
    %v4926 = vadd.f32 %v4198, %v4199
    %4927 = vadd.xlane.f32.xlu0 %v4926
    %v4928 = vpop.xlane.xlu0 %4927
    %v4929 = vadd.f32 %v4200, %v4201
    %4930 = vadd.xlane.f32.xlu0 %v4929
    %v4931 = vpop.xlane.xlu0 %4930
    %v4932 = vadd.f32 %v4202, %v4203
    %4933 = vadd.xlane.f32.xlu0 %v4932
    %v4934 = vpop.xlane.xlu0 %4933
    %v4935 = vadd.f32 %v4204, %v4205
    %4936 = vadd.xlane.f32.xlu0 %v4935
    %v4937 = vpop.xlane.xlu0 %4936
    %v4938 = vadd.f32 %v4206, %v4207
    %4939 = vadd.xlane.f32.xlu0 %v4938
    %v4940 = vpop.xlane.xlu0 %4939
    %v4941 = vadd.f32 %v4208, %v4209
    %4942 = vadd.xlane.f32.xlu0 %v4941
    %v4943 = vpop.xlane.xlu0 %4942
    %v4944 = vadd.f32 %v4210, %v4211
    %4945 = vadd.xlane.f32.xlu0 %v4944
    %v4946 = vpop.xlane.xlu0 %4945
    %v4947 = vadd.f32 %v4212, %v4213
    %4948 = vadd.xlane.f32.xlu0 %v4947
    %v4949 = vpop.xlane.xlu0 %4948
    %v4950 = vadd.f32 %v4214, %v4215
    %4951 = vadd.xlane.f32.xlu0 %v4950
    %v4952 = vpop.xlane.xlu0 %4951
    %v4953 = vadd.f32 %v4216, %v4217
    %4954 = vadd.xlane.f32.xlu0 %v4953
    %v4955 = vpop.xlane.xlu0 %4954
    %v4956 = vadd.f32 %v4218, %v4219
    %4957 = vadd.xlane.f32.xlu0 %v4956
    %v4958 = vpop.xlane.xlu0 %4957
    %v4959 = vadd.f32 %v4220, %v4221
    %4960 = vadd.xlane.f32.xlu0 %v4959
    %v4961 = vpop.xlane.xlu0 %4960
    %v4962 = vadd.f32 %v4222, %v4223
    %4963 = vadd.xlane.f32.xlu0 %v4962
    %v4964 = vpop.xlane.xlu0 %4963
    %v4965 = vadd.f32 %v4224, %v4225
    %4966 = vadd.xlane.f32.xlu0 %v4965
    %v4967 = vpop.xlane.xlu0 %4966
    %v4968 = vadd.f32 %v4226, %v4227
    %4969 = vadd.xlane.f32.xlu0 %v4968
    %v4970 = vpop.xlane.xlu0 %4969
    %v4971 = vadd.f32 %v4228, %v4229
    %4972 = vadd.xlane.f32.xlu0 %v4971
    %v4973 = vpop.xlane.xlu0 %4972
    %v4974 = vadd.f32 %v4230, %v4231
    %4975 = vadd.xlane.f32.xlu0 %v4974
    %v4976 = vpop.xlane.xlu0 %4975
    %v4977 = vadd.f32 %v4232, %v4233
    %4978 = vadd.xlane.f32.xlu0 %v4977
    %v4979 = vpop.xlane.xlu0 %4978
    %v4980 = vadd.f32 %v4234, %v4235
    %4981 = vadd.xlane.f32.xlu0 %v4980
    %v4982 = vpop.xlane.xlu0 %4981
    %v4983 = vadd.f32 %v4236, %v4237
    %4984 = vadd.xlane.f32.xlu0 %v4983
    %v4985 = vpop.xlane.xlu0 %4984
    %v4986 = vadd.f32 %v4238, %v4239
    %4987 = vadd.xlane.f32.xlu0 %v4986
    %v4988 = vpop.xlane.xlu0 %4987
    %v4989 = vadd.f32 %v4240, %v4241
    %4990 = vadd.xlane.f32.xlu0 %v4989
    %v4991 = vpop.xlane.xlu0 %4990
    %v4992 = vadd.f32 %v4242, %v4243
    %4993 = vadd.xlane.f32.xlu0 %v4992
    %v4994 = vpop.xlane.xlu0 %4993
    %v4995 = vadd.f32 %v4244, %v4245
    %4996 = vadd.xlane.f32.xlu0 %v4995
    %v4997 = vpop.xlane.xlu0 %4996
    %v4998 = vadd.f32 %v4246, %v4247
    %4999 = vadd.xlane.f32.xlu0 %v4998
    %v5000 = vpop.xlane.xlu0 %4999
    %v5001 = vadd.f32 %v4248, %v4249
    %5002 = vadd.xlane.f32.xlu0 %v5001
    %v5003 = vpop.xlane.xlu0 %5002
    %v5004 = vadd.f32 %v4250, %v4251
    %5005 = vadd.xlane.f32.xlu0 %v5004
    %v5006 = vpop.xlane.xlu0 %5005
    %v5007 = vadd.f32 %v4252, %v4253
    %5008 = vadd.xlane.f32.xlu0 %v5007
    %v5009 = vpop.xlane.xlu0 %5008
    %v5010 = vadd.f32 %v4254, %v4255
    %5011 = vadd.xlane.f32.xlu0 %v5010
    %v5012 = vpop.xlane.xlu0 %5011
    %v5013 = vadd.f32 %v4256, %v4257
    %5014 = vadd.xlane.f32.xlu0 %v5013
    %v5015 = vpop.xlane.xlu0 %5014
    %v5016 = vadd.f32 %v4258, %v4259
    %5017 = vadd.xlane.f32.xlu0 %v5016
    %v5018 = vpop.xlane.xlu0 %5017
    %v5019 = vadd.f32 %v4260, %v4261
    %5020 = vadd.xlane.f32.xlu0 %v5019
    %v5021 = vpop.xlane.xlu0 %5020
    %v5022 = vadd.f32 %v4262, %v4263
    %5023 = vadd.xlane.f32.xlu0 %v5022
    %v5024 = vpop.xlane.xlu0 %5023
    %v5025 = vadd.f32 %v4264, %v4265
    %5026 = vadd.xlane.f32.xlu0 %v5025
    %v5027 = vpop.xlane.xlu0 %5026
    %v5028 = vadd.f32 %v4266, %v4267
    %5029 = vadd.xlane.f32.xlu0 %v5028
    %v5030 = vpop.xlane.xlu0 %5029
    %v5031 = vadd.f32 %v4268, %v4269
    %5032 = vadd.xlane.f32.xlu0 %v5031
    %v5033 = vpop.xlane.xlu0 %5032
    %v5034 = vadd.f32 %v4270, %v4271
    %5035 = vadd.xlane.f32.xlu0 %v5034
    %v5036 = vpop.xlane.xlu0 %5035
    %v5037 = vadd.f32 %v4272, %v4273
    %5038 = vadd.xlane.f32.xlu0 %v5037
    %v5039 = vpop.xlane.xlu0 %5038
    %v5040 = vadd.f32 %v4274, %v4275
    %5041 = vadd.xlane.f32.xlu0 %v5040
    %v5042 = vpop.xlane.xlu0 %5041
    %v5043 = vadd.f32 %v4276, %v4277
    %5044 = vadd.xlane.f32.xlu0 %v5043
    %v5045 = vpop.xlane.xlu0 %5044
    %v5046 = vadd.f32 %v4280, 0.0
    %v5047 = vadd.f32 %v4283, 0.0
    %v5048 = vadd.f32 %v4286, 0.0
    %v5049 = vadd.f32 %v4289, 0.0
    %v5050 = vadd.f32 %v4292, 0.0
    %v5051 = vadd.f32 %v4295, 0.0
    %v5052 = vadd.f32 %v4298, 0.0
    %v5053 = vadd.f32 %v4301, 0.0
    %v5054 = vadd.f32 %v4304, 0.0
    %v5055 = vadd.f32 %v4307, 0.0
    %v5056 = vadd.f32 %v4310, 0.0
    %v5057 = vadd.f32 %v4313, 0.0
    %v5058 = vadd.f32 %v4316, 0.0
    %v5059 = vadd.f32 %v4319, 0.0
    %v5060 = vadd.f32 %v4322, 0.0
    %v5061 = vadd.f32 %v4325, 0.0
    %v5062 = vadd.f32 %v4328, 0.0
    %v5063 = vadd.f32 %v4331, 0.0
    %v5064 = vadd.f32 %v4334, 0.0
    %v5065 = vadd.f32 %v4337, 0.0
    %v5066 = vadd.f32 %v4340, 0.0
    %v5067 = vadd.f32 %v4343, 0.0
    %v5068 = vadd.f32 %v4346, 0.0
    %v5069 = vadd.f32 %v4349, 0.0
    %v5070 = vadd.f32 %v4352, 0.0
    %v5071 = vadd.f32 %v4355, 0.0
    %v5072 = vadd.f32 %v4358, 0.0
    %v5073 = vadd.f32 %v4361, 0.0
    %v5074 = vadd.f32 %v4364, 0.0
    %v5075 = vadd.f32 %v4367, 0.0
    %v5076 = vadd.f32 %v4370, 0.0
    %v5077 = vadd.f32 %v4373, 0.0
    %v5078 = vadd.f32 %v4376, 0.0
    %v5079 = vadd.f32 %v4379, 0.0
    %v5080 = vadd.f32 %v4382, 0.0
    %v5081 = vadd.f32 %v4385, 0.0
    %v5082 = vadd.f32 %v4388, 0.0
    %v5083 = vadd.f32 %v4391, 0.0
    %v5084 = vadd.f32 %v4394, 0.0
    %v5085 = vadd.f32 %v4397, 0.0
    %v5086 = vadd.f32 %v4400, 0.0
    %v5087 = vadd.f32 %v4403, 0.0
    %v5088 = vadd.f32 %v4406, 0.0
    %v5089 = vadd.f32 %v4409, 0.0
    %v5090 = vadd.f32 %v4412, 0.0
    %v5091 = vadd.f32 %v4415, 0.0
    %v5092 = vadd.f32 %v4418, 0.0
    %v5093 = vadd.f32 %v4421, 0.0
    %v5094 = vadd.f32 %v4424, 0.0
    %v5095 = vadd.f32 %v4427, 0.0
    %v5096 = vadd.f32 %v4430, 0.0
    %v5097 = vadd.f32 %v4433, 0.0
    %v5098 = vadd.f32 %v4436, 0.0
    %v5099 = vadd.f32 %v4439, 0.0
    %v5100 = vadd.f32 %v4442, 0.0
    %v5101 = vadd.f32 %v4445, 0.0
    %v5102 = vadd.f32 %v4448, 0.0
    %v5103 = vadd.f32 %v4451, 0.0
    %v5104 = vadd.f32 %v4454, 0.0
    %v5105 = vadd.f32 %v4457, 0.0
    %v5106 = vadd.f32 %v4460, 0.0
    %v5107 = vadd.f32 %v4463, 0.0
    %v5108 = vadd.f32 %v4466, 0.0
    %v5109 = vadd.f32 %v4469, 0.0
    %v5110 = vadd.f32 %v4472, 0.0
    %v5111 = vadd.f32 %v4475, 0.0
    %v5112 = vadd.f32 %v4478, 0.0
    %v5113 = vadd.f32 %v4481, 0.0
    %v5114 = vadd.f32 %v4484, 0.0
    %v5115 = vadd.f32 %v4487, 0.0
    %v5116 = vadd.f32 %v4490, 0.0
    %v5117 = vadd.f32 %v4493, 0.0
    %v5118 = vadd.f32 %v4496, 0.0
    %v5119 = vadd.f32 %v4499, 0.0
    %v5120 = vadd.f32 %v4502, 0.0
    %v5121 = vadd.f32 %v4505, 0.0
    %v5122 = vadd.f32 %v4508, 0.0
    %v5123 = vadd.f32 %v4511, 0.0
    %v5124 = vadd.f32 %v4514, 0.0
    %v5125 = vadd.f32 %v4517, 0.0
    %v5126 = vadd.f32 %v4520, 0.0
    %v5127 = vadd.f32 %v4523, 0.0
    %v5128 = vadd.f32 %v4526, 0.0
    %v5129 = vadd.f32 %v4529, 0.0
    %v5130 = vadd.f32 %v4532, 0.0
    %v5131 = vadd.f32 %v4535, 0.0
    %v5132 = vadd.f32 %v4538, 0.0
    %v5133 = vadd.f32 %v4541, 0.0
    %v5134 = vadd.f32 %v4544, 0.0
    %v5135 = vadd.f32 %v4547, 0.0
    %v5136 = vadd.f32 %v4550, 0.0
    %v5137 = vadd.f32 %v4553, 0.0
    %v5138 = vadd.f32 %v4556, 0.0
    %v5139 = vadd.f32 %v4559, 0.0
    %v5140 = vadd.f32 %v4562, 0.0
    %v5141 = vadd.f32 %v4565, 0.0
    %v5142 = vadd.f32 %v4568, 0.0
    %v5143 = vadd.f32 %v4571, 0.0
    %v5144 = vadd.f32 %v4574, 0.0
    %v5145 = vadd.f32 %v4577, 0.0
    %v5146 = vadd.f32 %v4580, 0.0
    %v5147 = vadd.f32 %v4583, 0.0
    %v5148 = vadd.f32 %v4586, 0.0
    %v5149 = vadd.f32 %v4589, 0.0
    %v5150 = vadd.f32 %v4592, 0.0
    %v5151 = vadd.f32 %v4595, 0.0
    %v5152 = vadd.f32 %v4598, 0.0
    %v5153 = vadd.f32 %v4601, 0.0
    %v5154 = vadd.f32 %v4604, 0.0
    %v5155 = vadd.f32 %v4607, 0.0
    %v5156 = vadd.f32 %v4610, 0.0
    %v5157 = vadd.f32 %v4613, 0.0
    %v5158 = vadd.f32 %v4616, 0.0
    %v5159 = vadd.f32 %v4619, 0.0
    %v5160 = vadd.f32 %v4622, 0.0
    %v5161 = vadd.f32 %v4625, 0.0
    %v5162 = vadd.f32 %v4628, 0.0
    %v5163 = vadd.f32 %v4631, 0.0
    %v5164 = vadd.f32 %v4634, 0.0
    %v5165 = vadd.f32 %v4637, 0.0
    %v5166 = vadd.f32 %v4640, 0.0
    %v5167 = vadd.f32 %v4643, 0.0
    %v5168 = vadd.f32 %v4646, 0.0
    %v5169 = vadd.f32 %v4649, 0.0
    %v5170 = vadd.f32 %v4652, 0.0
    %v5171 = vadd.f32 %v4655, 0.0
    %v5172 = vadd.f32 %v4658, 0.0
    %v5173 = vadd.f32 %v4661, 0.0
    %v5174 = vadd.f32 %v4664, 0.0
    %v5175 = vadd.f32 %v4667, 0.0
    %v5176 = vadd.f32 %v4670, 0.0
    %v5177 = vadd.f32 %v4673, 0.0
    %v5178 = vadd.f32 %v4676, 0.0
    %v5179 = vadd.f32 %v4679, 0.0
    %v5180 = vadd.f32 %v4682, 0.0
    %v5181 = vadd.f32 %v4685, 0.0
    %v5182 = vadd.f32 %v4688, 0.0
    %v5183 = vadd.f32 %v4691, 0.0
    %v5184 = vadd.f32 %v4694, 0.0
    %v5185 = vadd.f32 %v4697, 0.0
    %v5186 = vadd.f32 %v4700, 0.0
    %v5187 = vadd.f32 %v4703, 0.0
    %v5188 = vadd.f32 %v4706, 0.0
    %v5189 = vadd.f32 %v4709, 0.0
    %v5190 = vadd.f32 %v4712, 0.0
    %v5191 = vadd.f32 %v4715, 0.0
    %v5192 = vadd.f32 %v4718, 0.0
    %v5193 = vadd.f32 %v4721, 0.0
    %v5194 = vadd.f32 %v4724, 0.0
    %v5195 = vadd.f32 %v4727, 0.0
    %v5196 = vadd.f32 %v4730, 0.0
    %v5197 = vadd.f32 %v4733, 0.0
    %v5198 = vadd.f32 %v4736, 0.0
    %v5199 = vadd.f32 %v4739, 0.0
    %v5200 = vadd.f32 %v4742, 0.0
    %v5201 = vadd.f32 %v4745, 0.0
    %v5202 = vadd.f32 %v4748, 0.0
    %v5203 = vadd.f32 %v4751, 0.0
    %v5204 = vadd.f32 %v4754, 0.0
    %v5205 = vadd.f32 %v4757, 0.0
    %v5206 = vadd.f32 %v4760, 0.0
    %v5207 = vadd.f32 %v4763, 0.0
    %v5208 = vadd.f32 %v4766, 0.0
    %v5209 = vadd.f32 %v4769, 0.0
    %v5210 = vadd.f32 %v4772, 0.0
    %v5211 = vadd.f32 %v4775, 0.0
    %v5212 = vadd.f32 %v4778, 0.0
    %v5213 = vadd.f32 %v4781, 0.0
    %v5214 = vadd.f32 %v4784, 0.0
    %v5215 = vadd.f32 %v4787, 0.0
    %v5216 = vadd.f32 %v4790, 0.0
    %v5217 = vadd.f32 %v4793, 0.0
    %v5218 = vadd.f32 %v4796, 0.0
    %v5219 = vadd.f32 %v4799, 0.0
    %v5220 = vadd.f32 %v4802, 0.0
    %v5221 = vadd.f32 %v4805, 0.0
    %v5222 = vadd.f32 %v4808, 0.0
    %v5223 = vadd.f32 %v4811, 0.0
    %v5224 = vadd.f32 %v4814, 0.0
    %v5225 = vadd.f32 %v4817, 0.0
    %v5226 = vadd.f32 %v4820, 0.0
    %v5227 = vadd.f32 %v4823, 0.0
    %v5228 = vadd.f32 %v4826, 0.0
    %v5229 = vadd.f32 %v4829, 0.0
    %v5230 = vadd.f32 %v4832, 0.0
    %v5231 = vadd.f32 %v4835, 0.0
    %v5232 = vadd.f32 %v4838, 0.0
    %v5233 = vadd.f32 %v4841, 0.0
    %v5234 = vadd.f32 %v4844, 0.0
    %v5235 = vadd.f32 %v4847, 0.0
    %v5236 = vadd.f32 %v4850, 0.0
    %v5237 = vadd.f32 %v4853, 0.0
    %v5238 = vadd.f32 %v4856, 0.0
    %v5239 = vadd.f32 %v4859, 0.0
    %v5240 = vadd.f32 %v4862, 0.0
    %v5241 = vadd.f32 %v4865, 0.0
    %v5242 = vadd.f32 %v4868, 0.0
    %v5243 = vadd.f32 %v4871, 0.0
    %v5244 = vadd.f32 %v4874, 0.0
    %v5245 = vadd.f32 %v4877, 0.0
    %v5246 = vadd.f32 %v4880, 0.0
    %v5247 = vadd.f32 %v4883, 0.0
    %v5248 = vadd.f32 %v4886, 0.0
    %v5249 = vadd.f32 %v4889, 0.0
    %v5250 = vadd.f32 %v4892, 0.0
    %v5251 = vadd.f32 %v4895, 0.0
    %v5252 = vadd.f32 %v4898, 0.0
    %v5253 = vadd.f32 %v4901, 0.0
    %v5254 = vadd.f32 %v4904, 0.0
    %v5255 = vadd.f32 %v4907, 0.0
    %v5256 = vadd.f32 %v4910, 0.0
    %v5257 = vadd.f32 %v4913, 0.0
    %v5258 = vadd.f32 %v4916, 0.0
    %v5259 = vadd.f32 %v4919, 0.0
    %v5260 = vadd.f32 %v4922, 0.0
    %v5261 = vadd.f32 %v4925, 0.0
    %v5262 = vadd.f32 %v4928, 0.0
    %v5263 = vadd.f32 %v4931, 0.0
    %v5264 = vadd.f32 %v4934, 0.0
    %v5265 = vadd.f32 %v4937, 0.0
    %v5266 = vadd.f32 %v4940, 0.0
    %v5267 = vadd.f32 %v4943, 0.0
    %v5268 = vadd.f32 %v4946, 0.0
    %v5269 = vadd.f32 %v4949, 0.0
    %v5270 = vadd.f32 %v4952, 0.0
    %v5271 = vadd.f32 %v4955, 0.0
    %v5272 = vadd.f32 %v4958, 0.0
    %v5273 = vadd.f32 %v4961, 0.0
    %v5274 = vadd.f32 %v4964, 0.0
    %v5275 = vadd.f32 %v4967, 0.0
    %v5276 = vadd.f32 %v4970, 0.0
    %v5277 = vadd.f32 %v4973, 0.0
    %v5278 = vadd.f32 %v4976, 0.0
    %v5279 = vadd.f32 %v4979, 0.0
    %v5280 = vadd.f32 %v4982, 0.0
    %v5281 = vadd.f32 %v4985, 0.0
    %v5282 = vadd.f32 %v4988, 0.0
    %v5283 = vadd.f32 %v4991, 0.0
    %v5284 = vadd.f32 %v4994, 0.0
    %v5285 = vadd.f32 %v4997, 0.0
    %v5286 = vadd.f32 %v5000, 0.0
    %v5287 = vadd.f32 %v5003, 0.0
    %v5288 = vadd.f32 %v5006, 0.0
    %v5289 = vadd.f32 %v5009, 0.0
    %v5290 = vadd.f32 %v5012, 0.0
    %v5291 = vadd.f32 %v5015, 0.0
    %v5292 = vadd.f32 %v5018, 0.0
    %v5293 = vadd.f32 %v5021, 0.0
    %v5294 = vadd.f32 %v5024, 0.0
    %v5295 = vadd.f32 %v5027, 0.0
    %v5296 = vadd.f32 %v5030, 0.0
    %v5297 = vadd.f32 %v5033, 0.0
    %v5298 = vadd.f32 %v5036, 0.0
    %v5299 = vadd.f32 %v5039, 0.0
    %v5300 = vadd.f32 %v5042, 0.0
    %v5301 = vadd.f32 %v5045, 0.0
    %v5302 = vlaneseq
    %v5303 = vand.u32 %v5302, 127
    %vm5304 = vcmp.lt.s32.totalorder %v5303, 16
    %v5561 = vperm.slane %v5046, %v5303
    %v5562 = vadd.s32 %v5303, 4294967288
    %v5563 = vperm.slane %v5047, %v5562
    %vm5564 = vcmask 130112
    %v5565 = vsel %vm5564, %v5563, %v5561
    %v5566 = vadd.s32 %v5303, 4294967280
    %v5567 = vperm.slane %v5048, %v5566
    %vm5568 = vcmask 195712
    %v5569 = vsel %vm5568, %v5567, %v5565
    %v5570 = vadd.s32 %v5303, 4294967272
    %v5571 = vperm.slane %v5049, %v5570
    %vm5572 = vcmask 261312
    %v5573 = vsel %vm5572, %v5571, %v5569
    %v5574 = vadd.s32 %v5303, 4294967264
    %v5575 = vperm.slane %v5050, %v5574
    %vm5576 = vcmask 326912
    %v5577 = vsel %vm5576, %v5575, %v5573
    %v5578 = vadd.s32 %v5303, 4294967256
    %v5579 = vperm.slane %v5051, %v5578
    %vm5580 = vcmask 392512
    %v5581 = vsel %vm5580, %v5579, %v5577
    %v5582 = vadd.s32 %v5303, 4294967248
    %v5583 = vperm.slane %v5052, %v5582
    %vm5584 = vcmask 458112
    %v5585 = vsel %vm5584, %v5583, %v5581
    %v5586 = vadd.s32 %v5303, 4294967240
    %v5587 = vperm.slane %v5053, %v5586
    %vm5588 = vcmask 523712
    %v5589 = vsel %vm5588, %v5587, %v5585
    %v5590 = vadd.s32 %v5303, 4294967232
    %v5591 = vperm.slane %v5054, %v5590
    %vm5592 = vcmask 589312
    %v5593 = vsel %vm5592, %v5591, %v5589
    %v5594 = vadd.s32 %v5303, 4294967224
    %v5595 = vperm.slane %v5055, %v5594
    %vm5596 = vcmask 654912
    %v5597 = vsel %vm5596, %v5595, %v5593
    %v5598 = vadd.s32 %v5303, 4294967216
    %v5599 = vperm.slane %v5056, %v5598
    %vm5600 = vcmask 720512
    %v5601 = vsel %vm5600, %v5599, %v5597
    %v5602 = vadd.s32 %v5303, 4294967208
    %v5603 = vperm.slane %v5057, %v5602
    %vm5604 = vcmask 786112
    %v5605 = vsel %vm5604, %v5603, %v5601
    %v5606 = vadd.s32 %v5303, 4294967200
    %v5607 = vperm.slane %v5058, %v5606
    %vm5608 = vcmask 851712
    %v5609 = vsel %vm5608, %v5607, %v5605
    %v5610 = vadd.s32 %v5303, 4294967192
    %v5611 = vperm.slane %v5059, %v5610
    %vm5612 = vcmask 917312
    %v5613 = vsel %vm5612, %v5611, %v5609
    %v5614 = vadd.s32 %v5303, 4294967184
    %v5615 = vperm.slane %v5060, %v5614
    %vm5616 = vcmask 982912
    %v5617 = vsel %vm5616, %v5615, %v5613
    %v5618 = vadd.s32 %v5303, 4294967176
    %v5619 = vperm.slane %v5061, %v5618
    %vm5620 = vcmask 1048512
    %v5621 = vsel %vm5620, %v5619, %v5617
    %v5622 = vperm.slane %v5062, %v5303
    %v5623 = vperm.slane %v5063, %v5562
    %v5624 = vsel %vm5564, %v5623, %v5622
    %v5625 = vperm.slane %v5064, %v5566
    %v5626 = vsel %vm5568, %v5625, %v5624
    %v5627 = vperm.slane %v5065, %v5570
    %v5628 = vsel %vm5572, %v5627, %v5626
    %v5629 = vperm.slane %v5066, %v5574
    %v5630 = vsel %vm5576, %v5629, %v5628
    %v5631 = vperm.slane %v5067, %v5578
    %v5632 = vsel %vm5580, %v5631, %v5630
    %v5633 = vperm.slane %v5068, %v5582
    %v5634 = vsel %vm5584, %v5633, %v5632
    %v5635 = vperm.slane %v5069, %v5586
    %v5636 = vsel %vm5588, %v5635, %v5634
    %v5637 = vperm.slane %v5070, %v5590
    %v5638 = vsel %vm5592, %v5637, %v5636
    %v5639 = vperm.slane %v5071, %v5594
    %v5640 = vsel %vm5596, %v5639, %v5638
    %v5641 = vperm.slane %v5072, %v5598
    %v5642 = vsel %vm5600, %v5641, %v5640
    %v5643 = vperm.slane %v5073, %v5602
    %v5644 = vsel %vm5604, %v5643, %v5642
    %v5645 = vperm.slane %v5074, %v5606
    %v5646 = vsel %vm5608, %v5645, %v5644
    %v5647 = vperm.slane %v5075, %v5610
    %v5648 = vsel %vm5612, %v5647, %v5646
    %v5649 = vperm.slane %v5076, %v5614
    %v5650 = vsel %vm5616, %v5649, %v5648
    %v5651 = vperm.slane %v5077, %v5618
    %v5652 = vsel %vm5620, %v5651, %v5650
    %v5653 = vperm.slane %v5078, %v5303
    %v5654 = vperm.slane %v5079, %v5562
    %v5655 = vsel %vm5564, %v5654, %v5653
    %v5656 = vperm.slane %v5080, %v5566
    %v5657 = vsel %vm5568, %v5656, %v5655
    %v5658 = vperm.slane %v5081, %v5570
    %v5659 = vsel %vm5572, %v5658, %v5657
    %v5660 = vperm.slane %v5082, %v5574
    %v5661 = vsel %vm5576, %v5660, %v5659
    %v5662 = vperm.slane %v5083, %v5578
    %v5663 = vsel %vm5580, %v5662, %v5661
    %v5664 = vperm.slane %v5084, %v5582
    %v5665 = vsel %vm5584, %v5664, %v5663
    %v5666 = vperm.slane %v5085, %v5586
    %v5667 = vsel %vm5588, %v5666, %v5665
    %v5668 = vperm.slane %v5086, %v5590
    %v5669 = vsel %vm5592, %v5668, %v5667
    %v5670 = vperm.slane %v5087, %v5594
    %v5671 = vsel %vm5596, %v5670, %v5669
    %v5672 = vperm.slane %v5088, %v5598
    %v5673 = vsel %vm5600, %v5672, %v5671
    %v5674 = vperm.slane %v5089, %v5602
    %v5675 = vsel %vm5604, %v5674, %v5673
    %v5676 = vperm.slane %v5090, %v5606
    %v5677 = vsel %vm5608, %v5676, %v5675
    %v5678 = vperm.slane %v5091, %v5610
    %v5679 = vsel %vm5612, %v5678, %v5677
    %v5680 = vperm.slane %v5092, %v5614
    %v5681 = vsel %vm5616, %v5680, %v5679
    %v5682 = vperm.slane %v5093, %v5618
    %v5683 = vsel %vm5620, %v5682, %v5681
    %v5684 = vperm.slane %v5094, %v5303
    %v5685 = vperm.slane %v5095, %v5562
    %v5686 = vsel %vm5564, %v5685, %v5684
    %v5687 = vperm.slane %v5096, %v5566
    %v5688 = vsel %vm5568, %v5687, %v5686
    %v5689 = vperm.slane %v5097, %v5570
    %v5690 = vsel %vm5572, %v5689, %v5688
    %v5691 = vperm.slane %v5098, %v5574
    %v5692 = vsel %vm5576, %v5691, %v5690
    %v5693 = vperm.slane %v5099, %v5578
    %v5694 = vsel %vm5580, %v5693, %v5692
    %v5695 = vperm.slane %v5100, %v5582
    %v5696 = vsel %vm5584, %v5695, %v5694
    %v5697 = vperm.slane %v5101, %v5586
    %v5698 = vsel %vm5588, %v5697, %v5696
    %v5699 = vperm.slane %v5102, %v5590
    %v5700 = vsel %vm5592, %v5699, %v5698
    %v5701 = vperm.slane %v5103, %v5594
    %v5702 = vsel %vm5596, %v5701, %v5700
    %v5703 = vperm.slane %v5104, %v5598
    %v5704 = vsel %vm5600, %v5703, %v5702
    %v5705 = vperm.slane %v5105, %v5602
    %v5706 = vsel %vm5604, %v5705, %v5704
    %v5707 = vperm.slane %v5106, %v5606
    %v5708 = vsel %vm5608, %v5707, %v5706
    %v5709 = vperm.slane %v5107, %v5610
    %v5710 = vsel %vm5612, %v5709, %v5708
    %v5711 = vperm.slane %v5108, %v5614
    %v5712 = vsel %vm5616, %v5711, %v5710
    %v5713 = vperm.slane %v5109, %v5618
    %v5714 = vsel %vm5620, %v5713, %v5712
    %v5715 = vperm.slane %v5110, %v5303
    %v5716 = vperm.slane %v5111, %v5562
    %v5717 = vsel %vm5564, %v5716, %v5715
    %v5718 = vperm.slane %v5112, %v5566
    %v5719 = vsel %vm5568, %v5718, %v5717
    %v5720 = vperm.slane %v5113, %v5570
    %v5721 = vsel %vm5572, %v5720, %v5719
    %v5722 = vperm.slane %v5114, %v5574
    %v5723 = vsel %vm5576, %v5722, %v5721
    %v5724 = vperm.slane %v5115, %v5578
    %v5725 = vsel %vm5580, %v5724, %v5723
    %v5726 = vperm.slane %v5116, %v5582
    %v5727 = vsel %vm5584, %v5726, %v5725
    %v5728 = vperm.slane %v5117, %v5586
    %v5729 = vsel %vm5588, %v5728, %v5727
    %v5730 = vperm.slane %v5118, %v5590
    %v5731 = vsel %vm5592, %v5730, %v5729
    %v5732 = vperm.slane %v5119, %v5594
    %v5733 = vsel %vm5596, %v5732, %v5731
    %v5734 = vperm.slane %v5120, %v5598
    %v5735 = vsel %vm5600, %v5734, %v5733
    %v5736 = vperm.slane %v5121, %v5602
    %v5737 = vsel %vm5604, %v5736, %v5735
    %v5738 = vperm.slane %v5122, %v5606
    %v5739 = vsel %vm5608, %v5738, %v5737
    %v5740 = vperm.slane %v5123, %v5610
    %v5741 = vsel %vm5612, %v5740, %v5739
    %v5742 = vperm.slane %v5124, %v5614
    %v5743 = vsel %vm5616, %v5742, %v5741
    %v5744 = vperm.slane %v5125, %v5618
    %v5745 = vsel %vm5620, %v5744, %v5743
    %v5746 = vperm.slane %v5126, %v5303
    %v5747 = vperm.slane %v5127, %v5562
    %v5748 = vsel %vm5564, %v5747, %v5746
    %v5749 = vperm.slane %v5128, %v5566
    %v5750 = vsel %vm5568, %v5749, %v5748
    %v5751 = vperm.slane %v5129, %v5570
    %v5752 = vsel %vm5572, %v5751, %v5750
    %v5753 = vperm.slane %v5130, %v5574
    %v5754 = vsel %vm5576, %v5753, %v5752
    %v5755 = vperm.slane %v5131, %v5578
    %v5756 = vsel %vm5580, %v5755, %v5754
    %v5757 = vperm.slane %v5132, %v5582
    %v5758 = vsel %vm5584, %v5757, %v5756
    %v5759 = vperm.slane %v5133, %v5586
    %v5760 = vsel %vm5588, %v5759, %v5758
    %v5761 = vperm.slane %v5134, %v5590
    %v5762 = vsel %vm5592, %v5761, %v5760
    %v5763 = vperm.slane %v5135, %v5594
    %v5764 = vsel %vm5596, %v5763, %v5762
    %v5765 = vperm.slane %v5136, %v5598
    %v5766 = vsel %vm5600, %v5765, %v5764
    %v5767 = vperm.slane %v5137, %v5602
    %v5768 = vsel %vm5604, %v5767, %v5766
    %v5769 = vperm.slane %v5138, %v5606
    %v5770 = vsel %vm5608, %v5769, %v5768
    %v5771 = vperm.slane %v5139, %v5610
    %v5772 = vsel %vm5612, %v5771, %v5770
    %v5773 = vperm.slane %v5140, %v5614
    %v5774 = vsel %vm5616, %v5773, %v5772
    %v5775 = vperm.slane %v5141, %v5618
    %v5776 = vsel %vm5620, %v5775, %v5774
    %v5777 = vperm.slane %v5142, %v5303
    %v5778 = vperm.slane %v5143, %v5562
    %v5779 = vsel %vm5564, %v5778, %v5777
    %v5780 = vperm.slane %v5144, %v5566
    %v5781 = vsel %vm5568, %v5780, %v5779
    %v5782 = vperm.slane %v5145, %v5570
    %v5783 = vsel %vm5572, %v5782, %v5781
    %v5784 = vperm.slane %v5146, %v5574
    %v5785 = vsel %vm5576, %v5784, %v5783
    %v5786 = vperm.slane %v5147, %v5578
    %v5787 = vsel %vm5580, %v5786, %v5785
    %v5788 = vperm.slane %v5148, %v5582
    %v5789 = vsel %vm5584, %v5788, %v5787
    %v5790 = vperm.slane %v5149, %v5586
    %v5791 = vsel %vm5588, %v5790, %v5789
    %v5792 = vperm.slane %v5150, %v5590
    %v5793 = vsel %vm5592, %v5792, %v5791
    %v5794 = vperm.slane %v5151, %v5594
    %v5795 = vsel %vm5596, %v5794, %v5793
    %v5796 = vperm.slane %v5152, %v5598
    %v5797 = vsel %vm5600, %v5796, %v5795
    %v5798 = vperm.slane %v5153, %v5602
    %v5799 = vsel %vm5604, %v5798, %v5797
    %v5800 = vperm.slane %v5154, %v5606
    %v5801 = vsel %vm5608, %v5800, %v5799
    %v5802 = vperm.slane %v5155, %v5610
    %v5803 = vsel %vm5612, %v5802, %v5801
    %v5804 = vperm.slane %v5156, %v5614
    %v5805 = vsel %vm5616, %v5804, %v5803
    %v5806 = vperm.slane %v5157, %v5618
    %v5807 = vsel %vm5620, %v5806, %v5805
    %v5808 = vperm.slane %v5158, %v5303
    %v5809 = vperm.slane %v5159, %v5562
    %v5810 = vsel %vm5564, %v5809, %v5808
    %v5811 = vperm.slane %v5160, %v5566
    %v5812 = vsel %vm5568, %v5811, %v5810
    %v5813 = vperm.slane %v5161, %v5570
    %v5814 = vsel %vm5572, %v5813, %v5812
    %v5815 = vperm.slane %v5162, %v5574
    %v5816 = vsel %vm5576, %v5815, %v5814
    %v5817 = vperm.slane %v5163, %v5578
    %v5818 = vsel %vm5580, %v5817, %v5816
    %v5819 = vperm.slane %v5164, %v5582
    %v5820 = vsel %vm5584, %v5819, %v5818
    %v5821 = vperm.slane %v5165, %v5586
    %v5822 = vsel %vm5588, %v5821, %v5820
    %v5823 = vperm.slane %v5166, %v5590
    %v5824 = vsel %vm5592, %v5823, %v5822
    %v5825 = vperm.slane %v5167, %v5594
    %v5826 = vsel %vm5596, %v5825, %v5824
    %v5827 = vperm.slane %v5168, %v5598
    %v5828 = vsel %vm5600, %v5827, %v5826
    %v5829 = vperm.slane %v5169, %v5602
    %v5830 = vsel %vm5604, %v5829, %v5828
    %v5831 = vperm.slane %v5170, %v5606
    %v5832 = vsel %vm5608, %v5831, %v5830
    %v5833 = vperm.slane %v5171, %v5610
    %v5834 = vsel %vm5612, %v5833, %v5832
    %v5835 = vperm.slane %v5172, %v5614
    %v5836 = vsel %vm5616, %v5835, %v5834
    %v5837 = vperm.slane %v5173, %v5618
    %v5838 = vsel %vm5620, %v5837, %v5836
    %v5839 = vperm.slane %v5174, %v5303
    %v5840 = vperm.slane %v5175, %v5562
    %v5841 = vsel %vm5564, %v5840, %v5839
    %v5842 = vperm.slane %v5176, %v5566
    %v5843 = vsel %vm5568, %v5842, %v5841
    %v5844 = vperm.slane %v5177, %v5570
    %v5845 = vsel %vm5572, %v5844, %v5843
    %v5846 = vperm.slane %v5178, %v5574
    %v5847 = vsel %vm5576, %v5846, %v5845
    %v5848 = vperm.slane %v5179, %v5578
    %v5849 = vsel %vm5580, %v5848, %v5847
    %v5850 = vperm.slane %v5180, %v5582
    %v5851 = vsel %vm5584, %v5850, %v5849
    %v5852 = vperm.slane %v5181, %v5586
    %v5853 = vsel %vm5588, %v5852, %v5851
    %v5854 = vperm.slane %v5182, %v5590
    %v5855 = vsel %vm5592, %v5854, %v5853
    %v5856 = vperm.slane %v5183, %v5594
    %v5857 = vsel %vm5596, %v5856, %v5855
    %v5858 = vperm.slane %v5184, %v5598
    %v5859 = vsel %vm5600, %v5858, %v5857
    %v5860 = vperm.slane %v5185, %v5602
    %v5861 = vsel %vm5604, %v5860, %v5859
    %v5862 = vperm.slane %v5186, %v5606
    %v5863 = vsel %vm5608, %v5862, %v5861
    %v5864 = vperm.slane %v5187, %v5610
    %v5865 = vsel %vm5612, %v5864, %v5863
    %v5866 = vperm.slane %v5188, %v5614
    %v5867 = vsel %vm5616, %v5866, %v5865
    %v5868 = vperm.slane %v5189, %v5618
    %v5869 = vsel %vm5620, %v5868, %v5867
    %v5870 = vperm.slane %v5190, %v5303
    %v5871 = vperm.slane %v5191, %v5562
    %v5872 = vsel %vm5564, %v5871, %v5870
    %v5873 = vperm.slane %v5192, %v5566
    %v5874 = vsel %vm5568, %v5873, %v5872
    %v5875 = vperm.slane %v5193, %v5570
    %v5876 = vsel %vm5572, %v5875, %v5874
    %v5877 = vperm.slane %v5194, %v5574
    %v5878 = vsel %vm5576, %v5877, %v5876
    %v5879 = vperm.slane %v5195, %v5578
    %v5880 = vsel %vm5580, %v5879, %v5878
    %v5881 = vperm.slane %v5196, %v5582
    %v5882 = vsel %vm5584, %v5881, %v5880
    %v5883 = vperm.slane %v5197, %v5586
    %v5884 = vsel %vm5588, %v5883, %v5882
    %v5885 = vperm.slane %v5198, %v5590
    %v5886 = vsel %vm5592, %v5885, %v5884
    %v5887 = vperm.slane %v5199, %v5594
    %v5888 = vsel %vm5596, %v5887, %v5886
    %v5889 = vperm.slane %v5200, %v5598
    %v5890 = vsel %vm5600, %v5889, %v5888
    %v5891 = vperm.slane %v5201, %v5602
    %v5892 = vsel %vm5604, %v5891, %v5890
    %v5893 = vperm.slane %v5202, %v5606
    %v5894 = vsel %vm5608, %v5893, %v5892
    %v5895 = vperm.slane %v5203, %v5610
    %v5896 = vsel %vm5612, %v5895, %v5894
    %v5897 = vperm.slane %v5204, %v5614
    %v5898 = vsel %vm5616, %v5897, %v5896
    %v5899 = vperm.slane %v5205, %v5618
    %v5900 = vsel %vm5620, %v5899, %v5898
    %v5901 = vperm.slane %v5206, %v5303
    %v5902 = vperm.slane %v5207, %v5562
    %v5903 = vsel %vm5564, %v5902, %v5901
    %v5904 = vperm.slane %v5208, %v5566
    %v5905 = vsel %vm5568, %v5904, %v5903
    %v5906 = vperm.slane %v5209, %v5570
    %v5907 = vsel %vm5572, %v5906, %v5905
    %v5908 = vperm.slane %v5210, %v5574
    %v5909 = vsel %vm5576, %v5908, %v5907
    %v5910 = vperm.slane %v5211, %v5578
    %v5911 = vsel %vm5580, %v5910, %v5909
    %v5912 = vperm.slane %v5212, %v5582
    %v5913 = vsel %vm5584, %v5912, %v5911
    %v5914 = vperm.slane %v5213, %v5586
    %v5915 = vsel %vm5588, %v5914, %v5913
    %v5916 = vperm.slane %v5214, %v5590
    %v5917 = vsel %vm5592, %v5916, %v5915
    %v5918 = vperm.slane %v5215, %v5594
    %v5919 = vsel %vm5596, %v5918, %v5917
    %v5920 = vperm.slane %v5216, %v5598
    %v5921 = vsel %vm5600, %v5920, %v5919
    %v5922 = vperm.slane %v5217, %v5602
    %v5923 = vsel %vm5604, %v5922, %v5921
    %v5924 = vperm.slane %v5218, %v5606
    %v5925 = vsel %vm5608, %v5924, %v5923
    %v5926 = vperm.slane %v5219, %v5610
    %v5927 = vsel %vm5612, %v5926, %v5925
    %v5928 = vperm.slane %v5220, %v5614
    %v5929 = vsel %vm5616, %v5928, %v5927
    %v5930 = vperm.slane %v5221, %v5618
    %v5931 = vsel %vm5620, %v5930, %v5929
    %v5932 = vperm.slane %v5222, %v5303
    %v5933 = vperm.slane %v5223, %v5562
    %v5934 = vsel %vm5564, %v5933, %v5932
    %v5935 = vperm.slane %v5224, %v5566
    %v5936 = vsel %vm5568, %v5935, %v5934
    %v5937 = vperm.slane %v5225, %v5570
    %v5938 = vsel %vm5572, %v5937, %v5936
    %v5939 = vperm.slane %v5226, %v5574
    %v5940 = vsel %vm5576, %v5939, %v5938
    %v5941 = vperm.slane %v5227, %v5578
    %v5942 = vsel %vm5580, %v5941, %v5940
    %v5943 = vperm.slane %v5228, %v5582
    %v5944 = vsel %vm5584, %v5943, %v5942
    %v5945 = vperm.slane %v5229, %v5586
    %v5946 = vsel %vm5588, %v5945, %v5944
    %v5947 = vperm.slane %v5230, %v5590
    %v5948 = vsel %vm5592, %v5947, %v5946
    %v5949 = vperm.slane %v5231, %v5594
    %v5950 = vsel %vm5596, %v5949, %v5948
    %v5951 = vperm.slane %v5232, %v5598
    %v5952 = vsel %vm5600, %v5951, %v5950
    %v5953 = vperm.slane %v5233, %v5602
    %v5954 = vsel %vm5604, %v5953, %v5952
    %v5955 = vperm.slane %v5234, %v5606
    %v5956 = vsel %vm5608, %v5955, %v5954
    %v5957 = vperm.slane %v5235, %v5610
    %v5958 = vsel %vm5612, %v5957, %v5956
    %v5959 = vperm.slane %v5236, %v5614
    %v5960 = vsel %vm5616, %v5959, %v5958
    %v5961 = vperm.slane %v5237, %v5618
    %v5962 = vsel %vm5620, %v5961, %v5960
    %v5963 = vperm.slane %v5238, %v5303
    %v5964 = vperm.slane %v5239, %v5562
    %v5965 = vsel %vm5564, %v5964, %v5963
    %v5966 = vperm.slane %v5240, %v5566
    %v5967 = vsel %vm5568, %v5966, %v5965
    %v5968 = vperm.slane %v5241, %v5570
    %v5969 = vsel %vm5572, %v5968, %v5967
    %v5970 = vperm.slane %v5242, %v5574
    %v5971 = vsel %vm5576, %v5970, %v5969
    %v5972 = vperm.slane %v5243, %v5578
    %v5973 = vsel %vm5580, %v5972, %v5971
    %v5974 = vperm.slane %v5244, %v5582
    %v5975 = vsel %vm5584, %v5974, %v5973
    %v5976 = vperm.slane %v5245, %v5586
    %v5977 = vsel %vm5588, %v5976, %v5975
    %v5978 = vperm.slane %v5246, %v5590
    %v5979 = vsel %vm5592, %v5978, %v5977
    %v5980 = vperm.slane %v5247, %v5594
    %v5981 = vsel %vm5596, %v5980, %v5979
    %v5982 = vperm.slane %v5248, %v5598
    %v5983 = vsel %vm5600, %v5982, %v5981
    %v5984 = vperm.slane %v5249, %v5602
    %v5985 = vsel %vm5604, %v5984, %v5983
    %v5986 = vperm.slane %v5250, %v5606
    %v5987 = vsel %vm5608, %v5986, %v5985
    %v5988 = vperm.slane %v5251, %v5610
    %v5989 = vsel %vm5612, %v5988, %v5987
    %v5990 = vperm.slane %v5252, %v5614
    %v5991 = vsel %vm5616, %v5990, %v5989
    %v5992 = vperm.slane %v5253, %v5618
    %v5993 = vsel %vm5620, %v5992, %v5991
    %v5994 = vperm.slane %v5254, %v5303
    %v5995 = vperm.slane %v5255, %v5562
    %v5996 = vsel %vm5564, %v5995, %v5994
    %v5997 = vperm.slane %v5256, %v5566
    %v5998 = vsel %vm5568, %v5997, %v5996
    %v5999 = vperm.slane %v5257, %v5570
    %v6000 = vsel %vm5572, %v5999, %v5998
    %v6001 = vperm.slane %v5258, %v5574
    %v6002 = vsel %vm5576, %v6001, %v6000
    %v6003 = vperm.slane %v5259, %v5578
    %v6004 = vsel %vm5580, %v6003, %v6002
    %v6005 = vperm.slane %v5260, %v5582
    %v6006 = vsel %vm5584, %v6005, %v6004
    %v6007 = vperm.slane %v5261, %v5586
    %v6008 = vsel %vm5588, %v6007, %v6006
    %v6009 = vperm.slane %v5262, %v5590
    %v6010 = vsel %vm5592, %v6009, %v6008
    %v6011 = vperm.slane %v5263, %v5594
    %v6012 = vsel %vm5596, %v6011, %v6010
    %v6013 = vperm.slane %v5264, %v5598
    %v6014 = vsel %vm5600, %v6013, %v6012
    %v6015 = vperm.slane %v5265, %v5602
    %v6016 = vsel %vm5604, %v6015, %v6014
    %v6017 = vperm.slane %v5266, %v5606
    %v6018 = vsel %vm5608, %v6017, %v6016
    %v6019 = vperm.slane %v5267, %v5610
    %v6020 = vsel %vm5612, %v6019, %v6018
    %v6021 = vperm.slane %v5268, %v5614
    %v6022 = vsel %vm5616, %v6021, %v6020
    %v6023 = vperm.slane %v5269, %v5618
    %v6024 = vsel %vm5620, %v6023, %v6022
    %v6025 = vperm.slane %v5270, %v5303
    %v6026 = vperm.slane %v5271, %v5562
    %v6027 = vsel %vm5564, %v6026, %v6025
    %v6028 = vperm.slane %v5272, %v5566
    %v6029 = vsel %vm5568, %v6028, %v6027
    %v6030 = vperm.slane %v5273, %v5570
    %v6031 = vsel %vm5572, %v6030, %v6029
    %v6032 = vperm.slane %v5274, %v5574
    %v6033 = vsel %vm5576, %v6032, %v6031
    %v6034 = vperm.slane %v5275, %v5578
    %v6035 = vsel %vm5580, %v6034, %v6033
    %v6036 = vperm.slane %v5276, %v5582
    %v6037 = vsel %vm5584, %v6036, %v6035
    %v6038 = vperm.slane %v5277, %v5586
    %v6039 = vsel %vm5588, %v6038, %v6037
    %v6040 = vperm.slane %v5278, %v5590
    %v6041 = vsel %vm5592, %v6040, %v6039
    %v6042 = vperm.slane %v5279, %v5594
    %v6043 = vsel %vm5596, %v6042, %v6041
    %v6044 = vperm.slane %v5280, %v5598
    %v6045 = vsel %vm5600, %v6044, %v6043
    %v6046 = vperm.slane %v5281, %v5602
    %v6047 = vsel %vm5604, %v6046, %v6045
    %v6048 = vperm.slane %v5282, %v5606
    %v6049 = vsel %vm5608, %v6048, %v6047
    %v6050 = vperm.slane %v5283, %v5610
    %v6051 = vsel %vm5612, %v6050, %v6049
    %v6052 = vperm.slane %v5284, %v5614
    %v6053 = vsel %vm5616, %v6052, %v6051
    %v6054 = vperm.slane %v5285, %v5618
    %v6055 = vsel %vm5620, %v6054, %v6053
    %v6056 = vperm.slane %v5286, %v5303
    %v6057 = vperm.slane %v5287, %v5562
    %v6058 = vsel %vm5564, %v6057, %v6056
    %v6059 = vperm.slane %v5288, %v5566
    %v6060 = vsel %vm5568, %v6059, %v6058
    %v6061 = vperm.slane %v5289, %v5570
    %v6062 = vsel %vm5572, %v6061, %v6060
    %v6063 = vperm.slane %v5290, %v5574
    %v6064 = vsel %vm5576, %v6063, %v6062
    %v6065 = vperm.slane %v5291, %v5578
    %v6066 = vsel %vm5580, %v6065, %v6064
    %v6067 = vperm.slane %v5292, %v5582
    %v6068 = vsel %vm5584, %v6067, %v6066
    %v6069 = vperm.slane %v5293, %v5586
    %v6070 = vsel %vm5588, %v6069, %v6068
    %v6071 = vperm.slane %v5294, %v5590
    %v6072 = vsel %vm5592, %v6071, %v6070
    %v6073 = vperm.slane %v5295, %v5594
    %v6074 = vsel %vm5596, %v6073, %v6072
    %v6075 = vperm.slane %v5296, %v5598
    %v6076 = vsel %vm5600, %v6075, %v6074
    %v6077 = vperm.slane %v5297, %v5602
    %v6078 = vsel %vm5604, %v6077, %v6076
    %v6079 = vperm.slane %v5298, %v5606
    %v6080 = vsel %vm5608, %v6079, %v6078
    %v6081 = vperm.slane %v5299, %v5610
    %v6082 = vsel %vm5612, %v6081, %v6080
    %v6083 = vperm.slane %v5300, %v5614
    %v6084 = vsel %vm5616, %v6083, %v6082
    %v6085 = vperm.slane %v5301, %v5618
    %v6086 = vsel %vm5620, %v6085, %v6084
    %v6087 = vsel %vm2637, %v5652, %v5621
    %v6088 = vsel %vm2640, %v5683, %v6087
    %v6089 = vsel %vm2643, %v5714, %v6088
    %v6090 = vsel %vm2646, %v5745, %v6089
    %v6091 = vsel %vm2649, %v5776, %v6090
    %v6092 = vsel %vm2652, %v5807, %v6091
    %vm6093 = vcmask 1047559
    %v6094 = vsel %vm6093, %v5838, %v6092
    %v6095 = vsel %vm2637, %v5900, %v5869
    %v6096 = vsel %vm2640, %v5931, %v6095
    %v6097 = vsel %vm2643, %v5962, %v6096
    %v6098 = vsel %vm2646, %v5993, %v6097
    %v6099 = vsel %vm2649, %v6024, %v6098
    %v6100 = vsel %vm2652, %v6055, %v6099
    %v6101 = vsel %vm6093, %v6086, %v6100
    %v6104 = vsel %vm5304, %v6094, -1e+30
    %v6105 = vsel %vm5304, %v6101, -1e+30
    %6106 = vmax.xlane.f32.xlu0 %v6104
    %v6107 = vpop.xlane.xlu0 %6106
    %6108 = vmax.xlane.f32.xlu0 %v6105
    %v6109 = vpop.xlane.xlu0 %6108
    %v6110 = vsub.f32 %v6104, %v6107
    %v6111 = vsub.f32 %v6105, %v6109
    %v6112 = vmul.f32 %v6110, 1.442695
    %v6113 = vpow.pop %v6112
    %v6114 = vmul.f32 %v6111, 1.442695
    %v6115 = vpow.pop %v6114
    %6116 = vadd.xlane.f32.xlu0 %v6113
    %v6117 = vpop.xlane.xlu0 %6116
    %6118 = vadd.xlane.f32.xlu0 %v6115
    %v6119 = vpop.xlane.xlu0 %6118
    %v6120 = vrcp.pop %v6117
    %v6121 = vrcp.pop %v6119
    %v6122 = vmul.f32 %v6117, %v6120
    %v6123 = vmul.f32 %v6119, %v6121
    %v6124 = vsub.f32 2.0, %v6122
    %v6125 = vsub.f32 2.0, %v6123
    %v6126 = vmul.f32 %v6120, %v6124
    %v6127 = vmul.f32 %v6121, %v6125
    %v6128 = vmul.f32 %v6113, %v6126
    %v6129 = vmul.f32 %v6115, %v6127
    %6130 = vst [vmem:[#allocation4] sm:$0xff] %v6128
    %6131 = vst [vmem:[#allocation4 + $0x8] sm:$0xff] %v6129
    %v6132 = vperm.slane %v6128, 0
    %v6133 = vlaneseq
    %v6134 = vshrl.u32 %v6133, 7
    %6136 = vset.pattern.permute.xlu0 %v6134
    %6137 = vperm.xlu0 %6136, %v6132
    %v6138 = vpop.permute.xlu0 %6137
    %v6139 = vlaneseq
    %v6140 = vshrl.u32 %v6139, 7
    %v6141 = vadd.s32 %v6140, 8
    %6142 = vset.pattern.permute.xlu0 %v6141
    %6143 = vperm.xlu0 %6142, %v6132
    %v6144 = vpop.permute.xlu0 %6143
    %v6145 = vlaneseq
    %v6146 = vshrl.u32 %v6145, 7
    %v6147 = vadd.s32 %v6146, 16
    %6148 = vset.pattern.permute.xlu0 %v6147
    %6149 = vperm.xlu0 %6148, %v6132
    %v6150 = vpop.permute.xlu0 %6149
    %v6151 = vlaneseq
    %v6152 = vshrl.u32 %v6151, 7
    %v6153 = vadd.s32 %v6152, 24
    %6154 = vset.pattern.permute.xlu0 %v6153
    %6155 = vperm.xlu0 %6154, %v6132
    %v6156 = vpop.permute.xlu0 %6155
    %v6157 = vlaneseq
    %v6158 = vshrl.u32 %v6157, 7
    %v6159 = vadd.s32 %v6158, 32
    %6160 = vset.pattern.permute.xlu0 %v6159
    %6161 = vperm.xlu0 %6160, %v6132
    %v6162 = vpop.permute.xlu0 %6161
    %v6163 = vlaneseq
    %v6164 = vshrl.u32 %v6163, 7
    %v6165 = vadd.s32 %v6164, 40
    %6166 = vset.pattern.permute.xlu0 %v6165
    %6167 = vperm.xlu0 %6166, %v6132
    %v6168 = vpop.permute.xlu0 %6167
    %v6169 = vlaneseq
    %v6170 = vshrl.u32 %v6169, 7
    %v6171 = vadd.s32 %v6170, 48
    %6172 = vset.pattern.permute.xlu0 %v6171
    %6173 = vperm.xlu0 %6172, %v6132
    %v6174 = vpop.permute.xlu0 %6173
    %v6175 = vlaneseq
    %v6176 = vshrl.u32 %v6175, 7
    %v6177 = vadd.s32 %v6176, 56
    %6178 = vset.pattern.permute.xlu0 %v6177
    %6179 = vperm.xlu0 %6178, %v6132
    %v6180 = vpop.permute.xlu0 %6179
    %v6181 = vlaneseq
    %v6182 = vshrl.u32 %v6181, 7
    %v6183 = vadd.s32 %v6182, 64
    %6184 = vset.pattern.permute.xlu0 %v6183
    %6185 = vperm.xlu0 %6184, %v6132
    %v6186 = vpop.permute.xlu0 %6185
    %v6187 = vlaneseq
    %v6188 = vshrl.u32 %v6187, 7
    %v6189 = vadd.s32 %v6188, 72
    %6190 = vset.pattern.permute.xlu0 %v6189
    %6191 = vperm.xlu0 %6190, %v6132
    %v6192 = vpop.permute.xlu0 %6191
    %v6193 = vlaneseq
    %v6194 = vshrl.u32 %v6193, 7
    %v6195 = vadd.s32 %v6194, 80
    %6196 = vset.pattern.permute.xlu0 %v6195
    %6197 = vperm.xlu0 %6196, %v6132
    %v6198 = vpop.permute.xlu0 %6197
    %v6199 = vlaneseq
    %v6200 = vshrl.u32 %v6199, 7
    %v6201 = vadd.s32 %v6200, 88
    %6202 = vset.pattern.permute.xlu0 %v6201
    %6203 = vperm.xlu0 %6202, %v6132
    %v6204 = vpop.permute.xlu0 %6203
    %v6205 = vlaneseq
    %v6206 = vshrl.u32 %v6205, 7
    %v6207 = vadd.s32 %v6206, 96
    %6208 = vset.pattern.permute.xlu0 %v6207
    %6209 = vperm.xlu0 %6208, %v6132
    %v6210 = vpop.permute.xlu0 %6209
    %v6211 = vlaneseq
    %v6212 = vshrl.u32 %v6211, 7
    %v6213 = vadd.s32 %v6212, 104
    %6214 = vset.pattern.permute.xlu0 %v6213
    %6215 = vperm.xlu0 %6214, %v6132
    %v6216 = vpop.permute.xlu0 %6215
    %v6217 = vlaneseq
    %v6218 = vshrl.u32 %v6217, 7
    %v6219 = vadd.s32 %v6218, 112
    %6220 = vset.pattern.permute.xlu0 %v6219
    %6221 = vperm.xlu0 %6220, %v6132
    %v6222 = vpop.permute.xlu0 %6221
    %v6223 = vlaneseq
    %v6224 = vshrl.u32 %v6223, 7
    %v6225 = vadd.s32 %v6224, 120
    %6226 = vset.pattern.permute.xlu0 %v6225
    %6227 = vperm.xlu0 %6226, %v6132
    %v6228 = vpop.permute.xlu0 %6227
    %v6229 = vperm.slane %v6128, 1
    %v6230 = vlaneseq
    %v6231 = vshrl.u32 %v6230, 7
    %6233 = vset.pattern.permute.xlu0 %v6231
    %6234 = vperm.xlu0 %6233, %v6229
    %v6235 = vpop.permute.xlu0 %6234
    %v6236 = vlaneseq
    %v6237 = vshrl.u32 %v6236, 7
    %v6238 = vadd.s32 %v6237, 8
    %6239 = vset.pattern.permute.xlu0 %v6238
    %6240 = vperm.xlu0 %6239, %v6229
    %v6241 = vpop.permute.xlu0 %6240
    %v6242 = vlaneseq
    %v6243 = vshrl.u32 %v6242, 7
    %v6244 = vadd.s32 %v6243, 16
    %6245 = vset.pattern.permute.xlu0 %v6244
    %6246 = vperm.xlu0 %6245, %v6229
    %v6247 = vpop.permute.xlu0 %6246
    %v6248 = vlaneseq
    %v6249 = vshrl.u32 %v6248, 7
    %v6250 = vadd.s32 %v6249, 24
    %6251 = vset.pattern.permute.xlu0 %v6250
    %6252 = vperm.xlu0 %6251, %v6229
    %v6253 = vpop.permute.xlu0 %6252
    %v6254 = vlaneseq
    %v6255 = vshrl.u32 %v6254, 7
    %v6256 = vadd.s32 %v6255, 32
    %6257 = vset.pattern.permute.xlu0 %v6256
    %6258 = vperm.xlu0 %6257, %v6229
    %v6259 = vpop.permute.xlu0 %6258
    %v6260 = vlaneseq
    %v6261 = vshrl.u32 %v6260, 7
    %v6262 = vadd.s32 %v6261, 40
    %6263 = vset.pattern.permute.xlu0 %v6262
    %6264 = vperm.xlu0 %6263, %v6229
    %v6265 = vpop.permute.xlu0 %6264
    %v6266 = vlaneseq
    %v6267 = vshrl.u32 %v6266, 7
    %v6268 = vadd.s32 %v6267, 48
    %6269 = vset.pattern.permute.xlu0 %v6268
    %6270 = vperm.xlu0 %6269, %v6229
    %v6271 = vpop.permute.xlu0 %6270
    %v6272 = vlaneseq
    %v6273 = vshrl.u32 %v6272, 7
    %v6274 = vadd.s32 %v6273, 56
    %6275 = vset.pattern.permute.xlu0 %v6274
    %6276 = vperm.xlu0 %6275, %v6229
    %v6277 = vpop.permute.xlu0 %6276
    %v6278 = vlaneseq
    %v6279 = vshrl.u32 %v6278, 7
    %v6280 = vadd.s32 %v6279, 64
    %6281 = vset.pattern.permute.xlu0 %v6280
    %6282 = vperm.xlu0 %6281, %v6229
    %v6283 = vpop.permute.xlu0 %6282
    %v6284 = vlaneseq
    %v6285 = vshrl.u32 %v6284, 7
    %v6286 = vadd.s32 %v6285, 72
    %6287 = vset.pattern.permute.xlu0 %v6286
    %6288 = vperm.xlu0 %6287, %v6229
    %v6289 = vpop.permute.xlu0 %6288
    %v6290 = vlaneseq
    %v6291 = vshrl.u32 %v6290, 7
    %v6292 = vadd.s32 %v6291, 80
    %6293 = vset.pattern.permute.xlu0 %v6292
    %6294 = vperm.xlu0 %6293, %v6229
    %v6295 = vpop.permute.xlu0 %6294
    %v6296 = vlaneseq
    %v6297 = vshrl.u32 %v6296, 7
    %v6298 = vadd.s32 %v6297, 88
    %6299 = vset.pattern.permute.xlu0 %v6298
    %6300 = vperm.xlu0 %6299, %v6229
    %v6301 = vpop.permute.xlu0 %6300
    %v6302 = vlaneseq
    %v6303 = vshrl.u32 %v6302, 7
    %v6304 = vadd.s32 %v6303, 96
    %6305 = vset.pattern.permute.xlu0 %v6304
    %6306 = vperm.xlu0 %6305, %v6229
    %v6307 = vpop.permute.xlu0 %6306
    %v6308 = vlaneseq
    %v6309 = vshrl.u32 %v6308, 7
    %v6310 = vadd.s32 %v6309, 104
    %6311 = vset.pattern.permute.xlu0 %v6310
    %6312 = vperm.xlu0 %6311, %v6229
    %v6313 = vpop.permute.xlu0 %6312
    %v6314 = vlaneseq
    %v6315 = vshrl.u32 %v6314, 7
    %v6316 = vadd.s32 %v6315, 112
    %6317 = vset.pattern.permute.xlu0 %v6316
    %6318 = vperm.xlu0 %6317, %v6229
    %v6319 = vpop.permute.xlu0 %6318
    %v6320 = vlaneseq
    %v6321 = vshrl.u32 %v6320, 7
    %v6322 = vadd.s32 %v6321, 120
    %6323 = vset.pattern.permute.xlu0 %v6322
    %6324 = vperm.xlu0 %6323, %v6229
    %v6325 = vpop.permute.xlu0 %6324
    %v6326 = vperm.slane %v6128, 2
    %v6327 = vlaneseq
    %v6328 = vshrl.u32 %v6327, 7
    %6330 = vset.pattern.permute.xlu0 %v6328
    %6331 = vperm.xlu0 %6330, %v6326
    %v6332 = vpop.permute.xlu0 %6331
    %v6333 = vlaneseq
    %v6334 = vshrl.u32 %v6333, 7
    %v6335 = vadd.s32 %v6334, 8
    %6336 = vset.pattern.permute.xlu0 %v6335
    %6337 = vperm.xlu0 %6336, %v6326
    %v6338 = vpop.permute.xlu0 %6337
    %v6339 = vlaneseq
    %v6340 = vshrl.u32 %v6339, 7
    %v6341 = vadd.s32 %v6340, 16
    %6342 = vset.pattern.permute.xlu0 %v6341
    %6343 = vperm.xlu0 %6342, %v6326
    %v6344 = vpop.permute.xlu0 %6343
    %v6345 = vlaneseq
    %v6346 = vshrl.u32 %v6345, 7
    %v6347 = vadd.s32 %v6346, 24
    %6348 = vset.pattern.permute.xlu0 %v6347
    %6349 = vperm.xlu0 %6348, %v6326
    %v6350 = vpop.permute.xlu0 %6349
    %v6351 = vlaneseq
    %v6352 = vshrl.u32 %v6351, 7
    %v6353 = vadd.s32 %v6352, 32
    %6354 = vset.pattern.permute.xlu0 %v6353
    %6355 = vperm.xlu0 %6354, %v6326
    %v6356 = vpop.permute.xlu0 %6355
    %v6357 = vlaneseq
    %v6358 = vshrl.u32 %v6357, 7
    %v6359 = vadd.s32 %v6358, 40
    %6360 = vset.pattern.permute.xlu0 %v6359
    %6361 = vperm.xlu0 %6360, %v6326
    %v6362 = vpop.permute.xlu0 %6361
    %v6363 = vlaneseq
    %v6364 = vshrl.u32 %v6363, 7
    %v6365 = vadd.s32 %v6364, 48
    %6366 = vset.pattern.permute.xlu0 %v6365
    %6367 = vperm.xlu0 %6366, %v6326
    %v6368 = vpop.permute.xlu0 %6367
    %v6369 = vlaneseq
    %v6370 = vshrl.u32 %v6369, 7
    %v6371 = vadd.s32 %v6370, 56
    %6372 = vset.pattern.permute.xlu0 %v6371
    %6373 = vperm.xlu0 %6372, %v6326
    %v6374 = vpop.permute.xlu0 %6373
    %v6375 = vlaneseq
    %v6376 = vshrl.u32 %v6375, 7
    %v6377 = vadd.s32 %v6376, 64
    %6378 = vset.pattern.permute.xlu0 %v6377
    %6379 = vperm.xlu0 %6378, %v6326
    %v6380 = vpop.permute.xlu0 %6379
    %v6381 = vlaneseq
    %v6382 = vshrl.u32 %v6381, 7
    %v6383 = vadd.s32 %v6382, 72
    %6384 = vset.pattern.permute.xlu0 %v6383
    %6385 = vperm.xlu0 %6384, %v6326
    %v6386 = vpop.permute.xlu0 %6385
    %v6387 = vlaneseq
    %v6388 = vshrl.u32 %v6387, 7
    %v6389 = vadd.s32 %v6388, 80
    %6390 = vset.pattern.permute.xlu0 %v6389
    %6391 = vperm.xlu0 %6390, %v6326
    %v6392 = vpop.permute.xlu0 %6391
    %v6393 = vlaneseq
    %v6394 = vshrl.u32 %v6393, 7
    %v6395 = vadd.s32 %v6394, 88
    %6396 = vset.pattern.permute.xlu0 %v6395
    %6397 = vperm.xlu0 %6396, %v6326
    %v6398 = vpop.permute.xlu0 %6397
    %v6399 = vlaneseq
    %v6400 = vshrl.u32 %v6399, 7
    %v6401 = vadd.s32 %v6400, 96
    %6402 = vset.pattern.permute.xlu0 %v6401
    %6403 = vperm.xlu0 %6402, %v6326
    %v6404 = vpop.permute.xlu0 %6403
    %v6405 = vlaneseq
    %v6406 = vshrl.u32 %v6405, 7
    %v6407 = vadd.s32 %v6406, 104
    %6408 = vset.pattern.permute.xlu0 %v6407
    %6409 = vperm.xlu0 %6408, %v6326
    %v6410 = vpop.permute.xlu0 %6409
    %v6411 = vlaneseq
    %v6412 = vshrl.u32 %v6411, 7
    %v6413 = vadd.s32 %v6412, 112
    %6414 = vset.pattern.permute.xlu0 %v6413
    %6415 = vperm.xlu0 %6414, %v6326
    %v6416 = vpop.permute.xlu0 %6415
    %v6417 = vlaneseq
    %v6418 = vshrl.u32 %v6417, 7
    %v6419 = vadd.s32 %v6418, 120
    %6420 = vset.pattern.permute.xlu0 %v6419
    %6421 = vperm.xlu0 %6420, %v6326
    %v6422 = vpop.permute.xlu0 %6421
    %v6423 = vperm.slane %v6128, 3
    %v6424 = vlaneseq
    %v6425 = vshrl.u32 %v6424, 7
    %6427 = vset.pattern.permute.xlu0 %v6425
    %6428 = vperm.xlu0 %6427, %v6423
    %v6429 = vpop.permute.xlu0 %6428
    %v6430 = vlaneseq
    %v6431 = vshrl.u32 %v6430, 7
    %v6432 = vadd.s32 %v6431, 8
    %6433 = vset.pattern.permute.xlu0 %v6432
    %6434 = vperm.xlu0 %6433, %v6423
    %v6435 = vpop.permute.xlu0 %6434
    %v6436 = vlaneseq
    %v6437 = vshrl.u32 %v6436, 7
    %v6438 = vadd.s32 %v6437, 16
    %6439 = vset.pattern.permute.xlu0 %v6438
    %6440 = vperm.xlu0 %6439, %v6423
    %v6441 = vpop.permute.xlu0 %6440
    %v6442 = vlaneseq
    %v6443 = vshrl.u32 %v6442, 7
    %v6444 = vadd.s32 %v6443, 24
    %6445 = vset.pattern.permute.xlu0 %v6444
    %6446 = vperm.xlu0 %6445, %v6423
    %v6447 = vpop.permute.xlu0 %6446
    %v6448 = vlaneseq
    %v6449 = vshrl.u32 %v6448, 7
    %v6450 = vadd.s32 %v6449, 32
    %6451 = vset.pattern.permute.xlu0 %v6450
    %6452 = vperm.xlu0 %6451, %v6423
    %v6453 = vpop.permute.xlu0 %6452
    %v6454 = vlaneseq
    %v6455 = vshrl.u32 %v6454, 7
    %v6456 = vadd.s32 %v6455, 40
    %6457 = vset.pattern.permute.xlu0 %v6456
    %6458 = vperm.xlu0 %6457, %v6423
    %v6459 = vpop.permute.xlu0 %6458
    %v6460 = vlaneseq
    %v6461 = vshrl.u32 %v6460, 7
    %v6462 = vadd.s32 %v6461, 48
    %6463 = vset.pattern.permute.xlu0 %v6462
    %6464 = vperm.xlu0 %6463, %v6423
    %v6465 = vpop.permute.xlu0 %6464
    %v6466 = vlaneseq
    %v6467 = vshrl.u32 %v6466, 7
    %v6468 = vadd.s32 %v6467, 56
    %6469 = vset.pattern.permute.xlu0 %v6468
    %6470 = vperm.xlu0 %6469, %v6423
    %v6471 = vpop.permute.xlu0 %6470
    %v6472 = vlaneseq
    %v6473 = vshrl.u32 %v6472, 7
    %v6474 = vadd.s32 %v6473, 64
    %6475 = vset.pattern.permute.xlu0 %v6474
    %6476 = vperm.xlu0 %6475, %v6423
    %v6477 = vpop.permute.xlu0 %6476
    %v6478 = vlaneseq
    %v6479 = vshrl.u32 %v6478, 7
    %v6480 = vadd.s32 %v6479, 72
    %6481 = vset.pattern.permute.xlu0 %v6480
    %6482 = vperm.xlu0 %6481, %v6423
    %v6483 = vpop.permute.xlu0 %6482
    %v6484 = vlaneseq
    %v6485 = vshrl.u32 %v6484, 7
    %v6486 = vadd.s32 %v6485, 80
    %6487 = vset.pattern.permute.xlu0 %v6486
    %6488 = vperm.xlu0 %6487, %v6423
    %v6489 = vpop.permute.xlu0 %6488
    %v6490 = vlaneseq
    %v6491 = vshrl.u32 %v6490, 7
    %v6492 = vadd.s32 %v6491, 88
    %6493 = vset.pattern.permute.xlu0 %v6492
    %6494 = vperm.xlu0 %6493, %v6423
    %v6495 = vpop.permute.xlu0 %6494
    %v6496 = vlaneseq
    %v6497 = vshrl.u32 %v6496, 7
    %v6498 = vadd.s32 %v6497, 96
    %6499 = vset.pattern.permute.xlu0 %v6498
    %6500 = vperm.xlu0 %6499, %v6423
    %v6501 = vpop.permute.xlu0 %6500
    %v6502 = vlaneseq
    %v6503 = vshrl.u32 %v6502, 7
    %v6504 = vadd.s32 %v6503, 104
    %6505 = vset.pattern.permute.xlu0 %v6504
    %6506 = vperm.xlu0 %6505, %v6423
    %v6507 = vpop.permute.xlu0 %6506
    %v6508 = vlaneseq
    %v6509 = vshrl.u32 %v6508, 7
    %v6510 = vadd.s32 %v6509, 112
    %6511 = vset.pattern.permute.xlu0 %v6510
    %6512 = vperm.xlu0 %6511, %v6423
    %v6513 = vpop.permute.xlu0 %6512
    %v6514 = vlaneseq
    %v6515 = vshrl.u32 %v6514, 7
    %v6516 = vadd.s32 %v6515, 120
    %6517 = vset.pattern.permute.xlu0 %v6516
    %6518 = vperm.xlu0 %6517, %v6423
    %v6519 = vpop.permute.xlu0 %6518
    %v6520 = vperm.slane %v6128, 4
    %v6521 = vlaneseq
    %v6522 = vshrl.u32 %v6521, 7
    %6524 = vset.pattern.permute.xlu0 %v6522
    %6525 = vperm.xlu0 %6524, %v6520
    %v6526 = vpop.permute.xlu0 %6525
    %v6527 = vlaneseq
    %v6528 = vshrl.u32 %v6527, 7
    %v6529 = vadd.s32 %v6528, 8
    %6530 = vset.pattern.permute.xlu0 %v6529
    %6531 = vperm.xlu0 %6530, %v6520
    %v6532 = vpop.permute.xlu0 %6531
    %v6533 = vlaneseq
    %v6534 = vshrl.u32 %v6533, 7
    %v6535 = vadd.s32 %v6534, 16
    %6536 = vset.pattern.permute.xlu0 %v6535
    %6537 = vperm.xlu0 %6536, %v6520
    %v6538 = vpop.permute.xlu0 %6537
    %v6539 = vlaneseq
    %v6540 = vshrl.u32 %v6539, 7
    %v6541 = vadd.s32 %v6540, 24
    %6542 = vset.pattern.permute.xlu0 %v6541
    %6543 = vperm.xlu0 %6542, %v6520
    %v6544 = vpop.permute.xlu0 %6543
    %v6545 = vlaneseq
    %v6546 = vshrl.u32 %v6545, 7
    %v6547 = vadd.s32 %v6546, 32
    %6548 = vset.pattern.permute.xlu0 %v6547
    %6549 = vperm.xlu0 %6548, %v6520
    %v6550 = vpop.permute.xlu0 %6549
    %v6551 = vlaneseq
    %v6552 = vshrl.u32 %v6551, 7
    %v6553 = vadd.s32 %v6552, 40
    %6554 = vset.pattern.permute.xlu0 %v6553
    %6555 = vperm.xlu0 %6554, %v6520
    %v6556 = vpop.permute.xlu0 %6555
    %v6557 = vlaneseq
    %v6558 = vshrl.u32 %v6557, 7
    %v6559 = vadd.s32 %v6558, 48
    %6560 = vset.pattern.permute.xlu0 %v6559
    %6561 = vperm.xlu0 %6560, %v6520
    %v6562 = vpop.permute.xlu0 %6561
    %v6563 = vlaneseq
    %v6564 = vshrl.u32 %v6563, 7
    %v6565 = vadd.s32 %v6564, 56
    %6566 = vset.pattern.permute.xlu0 %v6565
    %6567 = vperm.xlu0 %6566, %v6520
    %v6568 = vpop.permute.xlu0 %6567
    %v6569 = vlaneseq
    %v6570 = vshrl.u32 %v6569, 7
    %v6571 = vadd.s32 %v6570, 64
    %6572 = vset.pattern.permute.xlu0 %v6571
    %6573 = vperm.xlu0 %6572, %v6520
    %v6574 = vpop.permute.xlu0 %6573
    %v6575 = vlaneseq
    %v6576 = vshrl.u32 %v6575, 7
    %v6577 = vadd.s32 %v6576, 72
    %6578 = vset.pattern.permute.xlu0 %v6577
    %6579 = vperm.xlu0 %6578, %v6520
    %v6580 = vpop.permute.xlu0 %6579
    %v6581 = vlaneseq
    %v6582 = vshrl.u32 %v6581, 7
    %v6583 = vadd.s32 %v6582, 80
    %6584 = vset.pattern.permute.xlu0 %v6583
    %6585 = vperm.xlu0 %6584, %v6520
    %v6586 = vpop.permute.xlu0 %6585
    %v6587 = vlaneseq
    %v6588 = vshrl.u32 %v6587, 7
    %v6589 = vadd.s32 %v6588, 88
    %6590 = vset.pattern.permute.xlu0 %v6589
    %6591 = vperm.xlu0 %6590, %v6520
    %v6592 = vpop.permute.xlu0 %6591
    %v6593 = vlaneseq
    %v6594 = vshrl.u32 %v6593, 7
    %v6595 = vadd.s32 %v6594, 96
    %6596 = vset.pattern.permute.xlu0 %v6595
    %6597 = vperm.xlu0 %6596, %v6520
    %v6598 = vpop.permute.xlu0 %6597
    %v6599 = vlaneseq
    %v6600 = vshrl.u32 %v6599, 7
    %v6601 = vadd.s32 %v6600, 104
    %6602 = vset.pattern.permute.xlu0 %v6601
    %6603 = vperm.xlu0 %6602, %v6520
    %v6604 = vpop.permute.xlu0 %6603
    %v6605 = vlaneseq
    %v6606 = vshrl.u32 %v6605, 7
    %v6607 = vadd.s32 %v6606, 112
    %6608 = vset.pattern.permute.xlu0 %v6607
    %6609 = vperm.xlu0 %6608, %v6520
    %v6610 = vpop.permute.xlu0 %6609
    %v6611 = vlaneseq
    %v6612 = vshrl.u32 %v6611, 7
    %v6613 = vadd.s32 %v6612, 120
    %6614 = vset.pattern.permute.xlu0 %v6613
    %6615 = vperm.xlu0 %6614, %v6520
    %v6616 = vpop.permute.xlu0 %6615
    %v6617 = vperm.slane %v6128, 5
    %v6618 = vlaneseq
    %v6619 = vshrl.u32 %v6618, 7
    %6621 = vset.pattern.permute.xlu0 %v6619
    %6622 = vperm.xlu0 %6621, %v6617
    %v6623 = vpop.permute.xlu0 %6622
    %v6624 = vlaneseq
    %v6625 = vshrl.u32 %v6624, 7
    %v6626 = vadd.s32 %v6625, 8
    %6627 = vset.pattern.permute.xlu0 %v6626
    %6628 = vperm.xlu0 %6627, %v6617
    %v6629 = vpop.permute.xlu0 %6628
    %v6630 = vlaneseq
    %v6631 = vshrl.u32 %v6630, 7
    %v6632 = vadd.s32 %v6631, 16
    %6633 = vset.pattern.permute.xlu0 %v6632
    %6634 = vperm.xlu0 %6633, %v6617
    %v6635 = vpop.permute.xlu0 %6634
    %v6636 = vlaneseq
    %v6637 = vshrl.u32 %v6636, 7
    %v6638 = vadd.s32 %v6637, 24
    %6639 = vset.pattern.permute.xlu0 %v6638
    %6640 = vperm.xlu0 %6639, %v6617
    %v6641 = vpop.permute.xlu0 %6640
    %v6642 = vlaneseq
    %v6643 = vshrl.u32 %v6642, 7
    %v6644 = vadd.s32 %v6643, 32
    %6645 = vset.pattern.permute.xlu0 %v6644
    %6646 = vperm.xlu0 %6645, %v6617
    %v6647 = vpop.permute.xlu0 %6646
    %v6648 = vlaneseq
    %v6649 = vshrl.u32 %v6648, 7
    %v6650 = vadd.s32 %v6649, 40
    %6651 = vset.pattern.permute.xlu0 %v6650
    %6652 = vperm.xlu0 %6651, %v6617
    %v6653 = vpop.permute.xlu0 %6652
    %v6654 = vlaneseq
    %v6655 = vshrl.u32 %v6654, 7
    %v6656 = vadd.s32 %v6655, 48
    %6657 = vset.pattern.permute.xlu0 %v6656
    %6658 = vperm.xlu0 %6657, %v6617
    %v6659 = vpop.permute.xlu0 %6658
    %v6660 = vlaneseq
    %v6661 = vshrl.u32 %v6660, 7
    %v6662 = vadd.s32 %v6661, 56
    %6663 = vset.pattern.permute.xlu0 %v6662
    %6664 = vperm.xlu0 %6663, %v6617
    %v6665 = vpop.permute.xlu0 %6664
    %v6666 = vlaneseq
    %v6667 = vshrl.u32 %v6666, 7
    %v6668 = vadd.s32 %v6667, 64
    %6669 = vset.pattern.permute.xlu0 %v6668
    %6670 = vperm.xlu0 %6669, %v6617
    %v6671 = vpop.permute.xlu0 %6670
    %v6672 = vlaneseq
    %v6673 = vshrl.u32 %v6672, 7
    %v6674 = vadd.s32 %v6673, 72
    %6675 = vset.pattern.permute.xlu0 %v6674
    %6676 = vperm.xlu0 %6675, %v6617
    %v6677 = vpop.permute.xlu0 %6676
    %v6678 = vlaneseq
    %v6679 = vshrl.u32 %v6678, 7
    %v6680 = vadd.s32 %v6679, 80
    %6681 = vset.pattern.permute.xlu0 %v6680
    %6682 = vperm.xlu0 %6681, %v6617
    %v6683 = vpop.permute.xlu0 %6682
    %v6684 = vlaneseq
    %v6685 = vshrl.u32 %v6684, 7
    %v6686 = vadd.s32 %v6685, 88
    %6687 = vset.pattern.permute.xlu0 %v6686
    %6688 = vperm.xlu0 %6687, %v6617
    %v6689 = vpop.permute.xlu0 %6688
    %v6690 = vlaneseq
    %v6691 = vshrl.u32 %v6690, 7
    %v6692 = vadd.s32 %v6691, 96
    %6693 = vset.pattern.permute.xlu0 %v6692
    %6694 = vperm.xlu0 %6693, %v6617
    %v6695 = vpop.permute.xlu0 %6694
    %v6696 = vlaneseq
    %v6697 = vshrl.u32 %v6696, 7
    %v6698 = vadd.s32 %v6697, 104
    %6699 = vset.pattern.permute.xlu0 %v6698
    %6700 = vperm.xlu0 %6699, %v6617
    %v6701 = vpop.permute.xlu0 %6700
    %v6702 = vlaneseq
    %v6703 = vshrl.u32 %v6702, 7
    %v6704 = vadd.s32 %v6703, 112
    %6705 = vset.pattern.permute.xlu0 %v6704
    %6706 = vperm.xlu0 %6705, %v6617
    %v6707 = vpop.permute.xlu0 %6706
    %v6708 = vlaneseq
    %v6709 = vshrl.u32 %v6708, 7
    %v6710 = vadd.s32 %v6709, 120
    %6711 = vset.pattern.permute.xlu0 %v6710
    %6712 = vperm.xlu0 %6711, %v6617
    %v6713 = vpop.permute.xlu0 %6712
    %v6714 = vperm.slane %v6128, 6
    %v6715 = vlaneseq
    %v6716 = vshrl.u32 %v6715, 7
    %6718 = vset.pattern.permute.xlu0 %v6716
    %6719 = vperm.xlu0 %6718, %v6714
    %v6720 = vpop.permute.xlu0 %6719
    %v6721 = vlaneseq
    %v6722 = vshrl.u32 %v6721, 7
    %v6723 = vadd.s32 %v6722, 8
    %6724 = vset.pattern.permute.xlu0 %v6723
    %6725 = vperm.xlu0 %6724, %v6714
    %v6726 = vpop.permute.xlu0 %6725
    %v6727 = vlaneseq
    %v6728 = vshrl.u32 %v6727, 7
    %v6729 = vadd.s32 %v6728, 16
    %6730 = vset.pattern.permute.xlu0 %v6729
    %6731 = vperm.xlu0 %6730, %v6714
    %v6732 = vpop.permute.xlu0 %6731
    %v6733 = vlaneseq
    %v6734 = vshrl.u32 %v6733, 7
    %v6735 = vadd.s32 %v6734, 24
    %6736 = vset.pattern.permute.xlu0 %v6735
    %6737 = vperm.xlu0 %6736, %v6714
    %v6738 = vpop.permute.xlu0 %6737
    %v6739 = vlaneseq
    %v6740 = vshrl.u32 %v6739, 7
    %v6741 = vadd.s32 %v6740, 32
    %6742 = vset.pattern.permute.xlu0 %v6741
    %6743 = vperm.xlu0 %6742, %v6714
    %v6744 = vpop.permute.xlu0 %6743
    %v6745 = vlaneseq
    %v6746 = vshrl.u32 %v6745, 7
    %v6747 = vadd.s32 %v6746, 40
    %6748 = vset.pattern.permute.xlu0 %v6747
    %6749 = vperm.xlu0 %6748, %v6714
    %v6750 = vpop.permute.xlu0 %6749
    %v6751 = vlaneseq
    %v6752 = vshrl.u32 %v6751, 7
    %v6753 = vadd.s32 %v6752, 48
    %6754 = vset.pattern.permute.xlu0 %v6753
    %6755 = vperm.xlu0 %6754, %v6714
    %v6756 = vpop.permute.xlu0 %6755
    %v6757 = vlaneseq
    %v6758 = vshrl.u32 %v6757, 7
    %v6759 = vadd.s32 %v6758, 56
    %6760 = vset.pattern.permute.xlu0 %v6759
    %6761 = vperm.xlu0 %6760, %v6714
    %v6762 = vpop.permute.xlu0 %6761
    %v6763 = vlaneseq
    %v6764 = vshrl.u32 %v6763, 7
    %v6765 = vadd.s32 %v6764, 64
    %6766 = vset.pattern.permute.xlu0 %v6765
    %6767 = vperm.xlu0 %6766, %v6714
    %v6768 = vpop.permute.xlu0 %6767
    %v6769 = vlaneseq
    %v6770 = vshrl.u32 %v6769, 7
    %v6771 = vadd.s32 %v6770, 72
    %6772 = vset.pattern.permute.xlu0 %v6771
    %6773 = vperm.xlu0 %6772, %v6714
    %v6774 = vpop.permute.xlu0 %6773
    %v6775 = vlaneseq
    %v6776 = vshrl.u32 %v6775, 7
    %v6777 = vadd.s32 %v6776, 80
    %6778 = vset.pattern.permute.xlu0 %v6777
    %6779 = vperm.xlu0 %6778, %v6714
    %v6780 = vpop.permute.xlu0 %6779
    %v6781 = vlaneseq
    %v6782 = vshrl.u32 %v6781, 7
    %v6783 = vadd.s32 %v6782, 88
    %6784 = vset.pattern.permute.xlu0 %v6783
    %6785 = vperm.xlu0 %6784, %v6714
    %v6786 = vpop.permute.xlu0 %6785
    %v6787 = vlaneseq
    %v6788 = vshrl.u32 %v6787, 7
    %v6789 = vadd.s32 %v6788, 96
    %6790 = vset.pattern.permute.xlu0 %v6789
    %6791 = vperm.xlu0 %6790, %v6714
    %v6792 = vpop.permute.xlu0 %6791
    %v6793 = vlaneseq
    %v6794 = vshrl.u32 %v6793, 7
    %v6795 = vadd.s32 %v6794, 104
    %6796 = vset.pattern.permute.xlu0 %v6795
    %6797 = vperm.xlu0 %6796, %v6714
    %v6798 = vpop.permute.xlu0 %6797
    %v6799 = vlaneseq
    %v6800 = vshrl.u32 %v6799, 7
    %v6801 = vadd.s32 %v6800, 112
    %6802 = vset.pattern.permute.xlu0 %v6801
    %6803 = vperm.xlu0 %6802, %v6714
    %v6804 = vpop.permute.xlu0 %6803
    %v6805 = vlaneseq
    %v6806 = vshrl.u32 %v6805, 7
    %v6807 = vadd.s32 %v6806, 120
    %6808 = vset.pattern.permute.xlu0 %v6807
    %6809 = vperm.xlu0 %6808, %v6714
    %v6810 = vpop.permute.xlu0 %6809
    %v6811 = vperm.slane %v6128, 7
    %v6812 = vlaneseq
    %v6813 = vshrl.u32 %v6812, 7
    %6815 = vset.pattern.permute.xlu0 %v6813
    %6816 = vperm.xlu0 %6815, %v6811
    %v6817 = vpop.permute.xlu0 %6816
    %v6818 = vlaneseq
    %v6819 = vshrl.u32 %v6818, 7
    %v6820 = vadd.s32 %v6819, 8
    %6821 = vset.pattern.permute.xlu0 %v6820
    %6822 = vperm.xlu0 %6821, %v6811
    %v6823 = vpop.permute.xlu0 %6822
    %v6824 = vlaneseq
    %v6825 = vshrl.u32 %v6824, 7
    %v6826 = vadd.s32 %v6825, 16
    %6827 = vset.pattern.permute.xlu0 %v6826
    %6828 = vperm.xlu0 %6827, %v6811
    %v6829 = vpop.permute.xlu0 %6828
    %v6830 = vlaneseq
    %v6831 = vshrl.u32 %v6830, 7
    %v6832 = vadd.s32 %v6831, 24
    %6833 = vset.pattern.permute.xlu0 %v6832
    %6834 = vperm.xlu0 %6833, %v6811
    %v6835 = vpop.permute.xlu0 %6834
    %v6836 = vlaneseq
    %v6837 = vshrl.u32 %v6836, 7
    %v6838 = vadd.s32 %v6837, 32
    %6839 = vset.pattern.permute.xlu0 %v6838
    %6840 = vperm.xlu0 %6839, %v6811
    %v6841 = vpop.permute.xlu0 %6840
    %v6842 = vlaneseq
    %v6843 = vshrl.u32 %v6842, 7
    %v6844 = vadd.s32 %v6843, 40
    %6845 = vset.pattern.permute.xlu0 %v6844
    %6846 = vperm.xlu0 %6845, %v6811
    %v6847 = vpop.permute.xlu0 %6846
    %v6848 = vlaneseq
    %v6849 = vshrl.u32 %v6848, 7
    %v6850 = vadd.s32 %v6849, 48
    %6851 = vset.pattern.permute.xlu0 %v6850
    %6852 = vperm.xlu0 %6851, %v6811
    %v6853 = vpop.permute.xlu0 %6852
    %v6854 = vlaneseq
    %v6855 = vshrl.u32 %v6854, 7
    %v6856 = vadd.s32 %v6855, 56
    %6857 = vset.pattern.permute.xlu0 %v6856
    %6858 = vperm.xlu0 %6857, %v6811
    %v6859 = vpop.permute.xlu0 %6858
    %v6860 = vlaneseq
    %v6861 = vshrl.u32 %v6860, 7
    %v6862 = vadd.s32 %v6861, 64
    %6863 = vset.pattern.permute.xlu0 %v6862
    %6864 = vperm.xlu0 %6863, %v6811
    %v6865 = vpop.permute.xlu0 %6864
    %v6866 = vlaneseq
    %v6867 = vshrl.u32 %v6866, 7
    %v6868 = vadd.s32 %v6867, 72
    %6869 = vset.pattern.permute.xlu0 %v6868
    %6870 = vperm.xlu0 %6869, %v6811
    %v6871 = vpop.permute.xlu0 %6870
    %v6872 = vlaneseq
    %v6873 = vshrl.u32 %v6872, 7
    %v6874 = vadd.s32 %v6873, 80
    %6875 = vset.pattern.permute.xlu0 %v6874
    %6876 = vperm.xlu0 %6875, %v6811
    %v6877 = vpop.permute.xlu0 %6876
    %v6878 = vlaneseq
    %v6879 = vshrl.u32 %v6878, 7
    %v6880 = vadd.s32 %v6879, 88
    %6881 = vset.pattern.permute.xlu0 %v6880
    %6882 = vperm.xlu0 %6881, %v6811
    %v6883 = vpop.permute.xlu0 %6882
    %v6884 = vlaneseq
    %v6885 = vshrl.u32 %v6884, 7
    %v6886 = vadd.s32 %v6885, 96
    %6887 = vset.pattern.permute.xlu0 %v6886
    %6888 = vperm.xlu0 %6887, %v6811
    %v6889 = vpop.permute.xlu0 %6888
    %v6890 = vlaneseq
    %v6891 = vshrl.u32 %v6890, 7
    %v6892 = vadd.s32 %v6891, 104
    %6893 = vset.pattern.permute.xlu0 %v6892
    %6894 = vperm.xlu0 %6893, %v6811
    %v6895 = vpop.permute.xlu0 %6894
    %v6896 = vlaneseq
    %v6897 = vshrl.u32 %v6896, 7
    %v6898 = vadd.s32 %v6897, 112
    %6899 = vset.pattern.permute.xlu0 %v6898
    %6900 = vperm.xlu0 %6899, %v6811
    %v6901 = vpop.permute.xlu0 %6900
    %v6902 = vlaneseq
    %v6903 = vshrl.u32 %v6902, 7
    %v6904 = vadd.s32 %v6903, 120
    %6905 = vset.pattern.permute.xlu0 %v6904
    %6906 = vperm.xlu0 %6905, %v6811
    %v6907 = vpop.permute.xlu0 %6906
    %v6908 = vperm.slane %v6129, 0
    %v6909 = vlaneseq
    %v6910 = vshrl.u32 %v6909, 7
    %6912 = vset.pattern.permute.xlu0 %v6910
    %6913 = vperm.xlu0 %6912, %v6908
    %v6914 = vpop.permute.xlu0 %6913
    %v6915 = vlaneseq
    %v6916 = vshrl.u32 %v6915, 7
    %v6917 = vadd.s32 %v6916, 8
    %6918 = vset.pattern.permute.xlu0 %v6917
    %6919 = vperm.xlu0 %6918, %v6908
    %v6920 = vpop.permute.xlu0 %6919
    %v6921 = vlaneseq
    %v6922 = vshrl.u32 %v6921, 7
    %v6923 = vadd.s32 %v6922, 16
    %6924 = vset.pattern.permute.xlu0 %v6923
    %6925 = vperm.xlu0 %6924, %v6908
    %v6926 = vpop.permute.xlu0 %6925
    %v6927 = vlaneseq
    %v6928 = vshrl.u32 %v6927, 7
    %v6929 = vadd.s32 %v6928, 24
    %6930 = vset.pattern.permute.xlu0 %v6929
    %6931 = vperm.xlu0 %6930, %v6908
    %v6932 = vpop.permute.xlu0 %6931
    %v6933 = vlaneseq
    %v6934 = vshrl.u32 %v6933, 7
    %v6935 = vadd.s32 %v6934, 32
    %6936 = vset.pattern.permute.xlu0 %v6935
    %6937 = vperm.xlu0 %6936, %v6908
    %v6938 = vpop.permute.xlu0 %6937
    %v6939 = vlaneseq
    %v6940 = vshrl.u32 %v6939, 7
    %v6941 = vadd.s32 %v6940, 40
    %6942 = vset.pattern.permute.xlu0 %v6941
    %6943 = vperm.xlu0 %6942, %v6908
    %v6944 = vpop.permute.xlu0 %6943
    %v6945 = vlaneseq
    %v6946 = vshrl.u32 %v6945, 7
    %v6947 = vadd.s32 %v6946, 48
    %6948 = vset.pattern.permute.xlu0 %v6947
    %6949 = vperm.xlu0 %6948, %v6908
    %v6950 = vpop.permute.xlu0 %6949
    %v6951 = vlaneseq
    %v6952 = vshrl.u32 %v6951, 7
    %v6953 = vadd.s32 %v6952, 56
    %6954 = vset.pattern.permute.xlu0 %v6953
    %6955 = vperm.xlu0 %6954, %v6908
    %v6956 = vpop.permute.xlu0 %6955
    %v6957 = vlaneseq
    %v6958 = vshrl.u32 %v6957, 7
    %v6959 = vadd.s32 %v6958, 64
    %6960 = vset.pattern.permute.xlu0 %v6959
    %6961 = vperm.xlu0 %6960, %v6908
    %v6962 = vpop.permute.xlu0 %6961
    %v6963 = vlaneseq
    %v6964 = vshrl.u32 %v6963, 7
    %v6965 = vadd.s32 %v6964, 72
    %6966 = vset.pattern.permute.xlu0 %v6965
    %6967 = vperm.xlu0 %6966, %v6908
    %v6968 = vpop.permute.xlu0 %6967
    %v6969 = vlaneseq
    %v6970 = vshrl.u32 %v6969, 7
    %v6971 = vadd.s32 %v6970, 80
    %6972 = vset.pattern.permute.xlu0 %v6971
    %6973 = vperm.xlu0 %6972, %v6908
    %v6974 = vpop.permute.xlu0 %6973
    %v6975 = vlaneseq
    %v6976 = vshrl.u32 %v6975, 7
    %v6977 = vadd.s32 %v6976, 88
    %6978 = vset.pattern.permute.xlu0 %v6977
    %6979 = vperm.xlu0 %6978, %v6908
    %v6980 = vpop.permute.xlu0 %6979
    %v6981 = vlaneseq
    %v6982 = vshrl.u32 %v6981, 7
    %v6983 = vadd.s32 %v6982, 96
    %6984 = vset.pattern.permute.xlu0 %v6983
    %6985 = vperm.xlu0 %6984, %v6908
    %v6986 = vpop.permute.xlu0 %6985
    %v6987 = vlaneseq
    %v6988 = vshrl.u32 %v6987, 7
    %v6989 = vadd.s32 %v6988, 104
    %6990 = vset.pattern.permute.xlu0 %v6989
    %6991 = vperm.xlu0 %6990, %v6908
    %v6992 = vpop.permute.xlu0 %6991
    %v6993 = vlaneseq
    %v6994 = vshrl.u32 %v6993, 7
    %v6995 = vadd.s32 %v6994, 112
    %6996 = vset.pattern.permute.xlu0 %v6995
    %6997 = vperm.xlu0 %6996, %v6908
    %v6998 = vpop.permute.xlu0 %6997
    %v6999 = vlaneseq
    %v7000 = vshrl.u32 %v6999, 7
    %v7001 = vadd.s32 %v7000, 120
    %7002 = vset.pattern.permute.xlu0 %v7001
    %7003 = vperm.xlu0 %7002, %v6908
    %v7004 = vpop.permute.xlu0 %7003
    %v7005 = vperm.slane %v6129, 1
    %v7006 = vlaneseq
    %v7007 = vshrl.u32 %v7006, 7
    %7009 = vset.pattern.permute.xlu0 %v7007
    %7010 = vperm.xlu0 %7009, %v7005
    %v7011 = vpop.permute.xlu0 %7010
    %v7012 = vlaneseq
    %v7013 = vshrl.u32 %v7012, 7
    %v7014 = vadd.s32 %v7013, 8
    %7015 = vset.pattern.permute.xlu0 %v7014
    %7016 = vperm.xlu0 %7015, %v7005
    %v7017 = vpop.permute.xlu0 %7016
    %v7018 = vlaneseq
    %v7019 = vshrl.u32 %v7018, 7
    %v7020 = vadd.s32 %v7019, 16
    %7021 = vset.pattern.permute.xlu0 %v7020
    %7022 = vperm.xlu0 %7021, %v7005
    %v7023 = vpop.permute.xlu0 %7022
    %v7024 = vlaneseq
    %v7025 = vshrl.u32 %v7024, 7
    %v7026 = vadd.s32 %v7025, 24
    %7027 = vset.pattern.permute.xlu0 %v7026
    %7028 = vperm.xlu0 %7027, %v7005
    %v7029 = vpop.permute.xlu0 %7028
    %v7030 = vlaneseq
    %v7031 = vshrl.u32 %v7030, 7
    %v7032 = vadd.s32 %v7031, 32
    %7033 = vset.pattern.permute.xlu0 %v7032
    %7034 = vperm.xlu0 %7033, %v7005
    %v7035 = vpop.permute.xlu0 %7034
    %v7036 = vlaneseq
    %v7037 = vshrl.u32 %v7036, 7
    %v7038 = vadd.s32 %v7037, 40
    %7039 = vset.pattern.permute.xlu0 %v7038
    %7040 = vperm.xlu0 %7039, %v7005
    %v7041 = vpop.permute.xlu0 %7040
    %v7042 = vlaneseq
    %v7043 = vshrl.u32 %v7042, 7
    %v7044 = vadd.s32 %v7043, 48
    %7045 = vset.pattern.permute.xlu0 %v7044
    %7046 = vperm.xlu0 %7045, %v7005
    %v7047 = vpop.permute.xlu0 %7046
    %v7048 = vlaneseq
    %v7049 = vshrl.u32 %v7048, 7
    %v7050 = vadd.s32 %v7049, 56
    %7051 = vset.pattern.permute.xlu0 %v7050
    %7052 = vperm.xlu0 %7051, %v7005
    %v7053 = vpop.permute.xlu0 %7052
    %v7054 = vlaneseq
    %v7055 = vshrl.u32 %v7054, 7
    %v7056 = vadd.s32 %v7055, 64
    %7057 = vset.pattern.permute.xlu0 %v7056
    %7058 = vperm.xlu0 %7057, %v7005
    %v7059 = vpop.permute.xlu0 %7058
    %v7060 = vlaneseq
    %v7061 = vshrl.u32 %v7060, 7
    %v7062 = vadd.s32 %v7061, 72
    %7063 = vset.pattern.permute.xlu0 %v7062
    %7064 = vperm.xlu0 %7063, %v7005
    %v7065 = vpop.permute.xlu0 %7064
    %v7066 = vlaneseq
    %v7067 = vshrl.u32 %v7066, 7
    %v7068 = vadd.s32 %v7067, 80
    %7069 = vset.pattern.permute.xlu0 %v7068
    %7070 = vperm.xlu0 %7069, %v7005
    %v7071 = vpop.permute.xlu0 %7070
    %v7072 = vlaneseq
    %v7073 = vshrl.u32 %v7072, 7
    %v7074 = vadd.s32 %v7073, 88
    %7075 = vset.pattern.permute.xlu0 %v7074
    %7076 = vperm.xlu0 %7075, %v7005
    %v7077 = vpop.permute.xlu0 %7076
    %v7078 = vlaneseq
    %v7079 = vshrl.u32 %v7078, 7
    %v7080 = vadd.s32 %v7079, 96
    %7081 = vset.pattern.permute.xlu0 %v7080
    %7082 = vperm.xlu0 %7081, %v7005
    %v7083 = vpop.permute.xlu0 %7082
    %v7084 = vlaneseq
    %v7085 = vshrl.u32 %v7084, 7
    %v7086 = vadd.s32 %v7085, 104
    %7087 = vset.pattern.permute.xlu0 %v7086
    %7088 = vperm.xlu0 %7087, %v7005
    %v7089 = vpop.permute.xlu0 %7088
    %v7090 = vlaneseq
    %v7091 = vshrl.u32 %v7090, 7
    %v7092 = vadd.s32 %v7091, 112
    %7093 = vset.pattern.permute.xlu0 %v7092
    %7094 = vperm.xlu0 %7093, %v7005
    %v7095 = vpop.permute.xlu0 %7094
    %v7096 = vlaneseq
    %v7097 = vshrl.u32 %v7096, 7
    %v7098 = vadd.s32 %v7097, 120
    %7099 = vset.pattern.permute.xlu0 %v7098
    %7100 = vperm.xlu0 %7099, %v7005
    %v7101 = vpop.permute.xlu0 %7100
    %v7102 = vperm.slane %v6129, 2
    %v7103 = vlaneseq
    %v7104 = vshrl.u32 %v7103, 7
    %7106 = vset.pattern.permute.xlu0 %v7104
    %7107 = vperm.xlu0 %7106, %v7102
    %v7108 = vpop.permute.xlu0 %7107
    %v7109 = vlaneseq
    %v7110 = vshrl.u32 %v7109, 7
    %v7111 = vadd.s32 %v7110, 8
    %7112 = vset.pattern.permute.xlu0 %v7111
    %7113 = vperm.xlu0 %7112, %v7102
    %v7114 = vpop.permute.xlu0 %7113
    %v7115 = vlaneseq
    %v7116 = vshrl.u32 %v7115, 7
    %v7117 = vadd.s32 %v7116, 16
    %7118 = vset.pattern.permute.xlu0 %v7117
    %7119 = vperm.xlu0 %7118, %v7102
    %v7120 = vpop.permute.xlu0 %7119
    %v7121 = vlaneseq
    %v7122 = vshrl.u32 %v7121, 7
    %v7123 = vadd.s32 %v7122, 24
    %7124 = vset.pattern.permute.xlu0 %v7123
    %7125 = vperm.xlu0 %7124, %v7102
    %v7126 = vpop.permute.xlu0 %7125
    %v7127 = vlaneseq
    %v7128 = vshrl.u32 %v7127, 7
    %v7129 = vadd.s32 %v7128, 32
    %7130 = vset.pattern.permute.xlu0 %v7129
    %7131 = vperm.xlu0 %7130, %v7102
    %v7132 = vpop.permute.xlu0 %7131
    %v7133 = vlaneseq
    %v7134 = vshrl.u32 %v7133, 7
    %v7135 = vadd.s32 %v7134, 40
    %7136 = vset.pattern.permute.xlu0 %v7135
    %7137 = vperm.xlu0 %7136, %v7102
    %v7138 = vpop.permute.xlu0 %7137
    %v7139 = vlaneseq
    %v7140 = vshrl.u32 %v7139, 7
    %v7141 = vadd.s32 %v7140, 48
    %7142 = vset.pattern.permute.xlu0 %v7141
    %7143 = vperm.xlu0 %7142, %v7102
    %v7144 = vpop.permute.xlu0 %7143
    %v7145 = vlaneseq
    %v7146 = vshrl.u32 %v7145, 7
    %v7147 = vadd.s32 %v7146, 56
    %7148 = vset.pattern.permute.xlu0 %v7147
    %7149 = vperm.xlu0 %7148, %v7102
    %v7150 = vpop.permute.xlu0 %7149
    %v7151 = vlaneseq
    %v7152 = vshrl.u32 %v7151, 7
    %v7153 = vadd.s32 %v7152, 64
    %7154 = vset.pattern.permute.xlu0 %v7153
    %7155 = vperm.xlu0 %7154, %v7102
    %v7156 = vpop.permute.xlu0 %7155
    %v7157 = vlaneseq
    %v7158 = vshrl.u32 %v7157, 7
    %v7159 = vadd.s32 %v7158, 72
    %7160 = vset.pattern.permute.xlu0 %v7159
    %7161 = vperm.xlu0 %7160, %v7102
    %v7162 = vpop.permute.xlu0 %7161
    %v7163 = vlaneseq
    %v7164 = vshrl.u32 %v7163, 7
    %v7165 = vadd.s32 %v7164, 80
    %7166 = vset.pattern.permute.xlu0 %v7165
    %7167 = vperm.xlu0 %7166, %v7102
    %v7168 = vpop.permute.xlu0 %7167
    %v7169 = vlaneseq
    %v7170 = vshrl.u32 %v7169, 7
    %v7171 = vadd.s32 %v7170, 88
    %7172 = vset.pattern.permute.xlu0 %v7171
    %7173 = vperm.xlu0 %7172, %v7102
    %v7174 = vpop.permute.xlu0 %7173
    %v7175 = vlaneseq
    %v7176 = vshrl.u32 %v7175, 7
    %v7177 = vadd.s32 %v7176, 96
    %7178 = vset.pattern.permute.xlu0 %v7177
    %7179 = vperm.xlu0 %7178, %v7102
    %v7180 = vpop.permute.xlu0 %7179
    %v7181 = vlaneseq
    %v7182 = vshrl.u32 %v7181, 7
    %v7183 = vadd.s32 %v7182, 104
    %7184 = vset.pattern.permute.xlu0 %v7183
    %7185 = vperm.xlu0 %7184, %v7102
    %v7186 = vpop.permute.xlu0 %7185
    %v7187 = vlaneseq
    %v7188 = vshrl.u32 %v7187, 7
    %v7189 = vadd.s32 %v7188, 112
    %7190 = vset.pattern.permute.xlu0 %v7189
    %7191 = vperm.xlu0 %7190, %v7102
    %v7192 = vpop.permute.xlu0 %7191
    %v7193 = vlaneseq
    %v7194 = vshrl.u32 %v7193, 7
    %v7195 = vadd.s32 %v7194, 120
    %7196 = vset.pattern.permute.xlu0 %v7195
    %7197 = vperm.xlu0 %7196, %v7102
    %v7198 = vpop.permute.xlu0 %7197
    %v7199 = vperm.slane %v6129, 3
    %v7200 = vlaneseq
    %v7201 = vshrl.u32 %v7200, 7
    %7203 = vset.pattern.permute.xlu0 %v7201
    %7204 = vperm.xlu0 %7203, %v7199
    %v7205 = vpop.permute.xlu0 %7204
    %v7206 = vlaneseq
    %v7207 = vshrl.u32 %v7206, 7
    %v7208 = vadd.s32 %v7207, 8
    %7209 = vset.pattern.permute.xlu0 %v7208
    %7210 = vperm.xlu0 %7209, %v7199
    %v7211 = vpop.permute.xlu0 %7210
    %v7212 = vlaneseq
    %v7213 = vshrl.u32 %v7212, 7
    %v7214 = vadd.s32 %v7213, 16
    %7215 = vset.pattern.permute.xlu0 %v7214
    %7216 = vperm.xlu0 %7215, %v7199
    %v7217 = vpop.permute.xlu0 %7216
    %v7218 = vlaneseq
    %v7219 = vshrl.u32 %v7218, 7
    %v7220 = vadd.s32 %v7219, 24
    %7221 = vset.pattern.permute.xlu0 %v7220
    %7222 = vperm.xlu0 %7221, %v7199
    %v7223 = vpop.permute.xlu0 %7222
    %v7224 = vlaneseq
    %v7225 = vshrl.u32 %v7224, 7
    %v7226 = vadd.s32 %v7225, 32
    %7227 = vset.pattern.permute.xlu0 %v7226
    %7228 = vperm.xlu0 %7227, %v7199
    %v7229 = vpop.permute.xlu0 %7228
    %v7230 = vlaneseq
    %v7231 = vshrl.u32 %v7230, 7
    %v7232 = vadd.s32 %v7231, 40
    %7233 = vset.pattern.permute.xlu0 %v7232
    %7234 = vperm.xlu0 %7233, %v7199
    %v7235 = vpop.permute.xlu0 %7234
    %v7236 = vlaneseq
    %v7237 = vshrl.u32 %v7236, 7
    %v7238 = vadd.s32 %v7237, 48
    %7239 = vset.pattern.permute.xlu0 %v7238
    %7240 = vperm.xlu0 %7239, %v7199
    %v7241 = vpop.permute.xlu0 %7240
    %v7242 = vlaneseq
    %v7243 = vshrl.u32 %v7242, 7
    %v7244 = vadd.s32 %v7243, 56
    %7245 = vset.pattern.permute.xlu0 %v7244
    %7246 = vperm.xlu0 %7245, %v7199
    %v7247 = vpop.permute.xlu0 %7246
    %v7248 = vlaneseq
    %v7249 = vshrl.u32 %v7248, 7
    %v7250 = vadd.s32 %v7249, 64
    %7251 = vset.pattern.permute.xlu0 %v7250
    %7252 = vperm.xlu0 %7251, %v7199
    %v7253 = vpop.permute.xlu0 %7252
    %v7254 = vlaneseq
    %v7255 = vshrl.u32 %v7254, 7
    %v7256 = vadd.s32 %v7255, 72
    %7257 = vset.pattern.permute.xlu0 %v7256
    %7258 = vperm.xlu0 %7257, %v7199
    %v7259 = vpop.permute.xlu0 %7258
    %v7260 = vlaneseq
    %v7261 = vshrl.u32 %v7260, 7
    %v7262 = vadd.s32 %v7261, 80
    %7263 = vset.pattern.permute.xlu0 %v7262
    %7264 = vperm.xlu0 %7263, %v7199
    %v7265 = vpop.permute.xlu0 %7264
    %v7266 = vlaneseq
    %v7267 = vshrl.u32 %v7266, 7
    %v7268 = vadd.s32 %v7267, 88
    %7269 = vset.pattern.permute.xlu0 %v7268
    %7270 = vperm.xlu0 %7269, %v7199
    %v7271 = vpop.permute.xlu0 %7270
    %v7272 = vlaneseq
    %v7273 = vshrl.u32 %v7272, 7
    %v7274 = vadd.s32 %v7273, 96
    %7275 = vset.pattern.permute.xlu0 %v7274
    %7276 = vperm.xlu0 %7275, %v7199
    %v7277 = vpop.permute.xlu0 %7276
    %v7278 = vlaneseq
    %v7279 = vshrl.u32 %v7278, 7
    %v7280 = vadd.s32 %v7279, 104
    %7281 = vset.pattern.permute.xlu0 %v7280
    %7282 = vperm.xlu0 %7281, %v7199
    %v7283 = vpop.permute.xlu0 %7282
    %v7284 = vlaneseq
    %v7285 = vshrl.u32 %v7284, 7
    %v7286 = vadd.s32 %v7285, 112
    %7287 = vset.pattern.permute.xlu0 %v7286
    %7288 = vperm.xlu0 %7287, %v7199
    %v7289 = vpop.permute.xlu0 %7288
    %v7290 = vlaneseq
    %v7291 = vshrl.u32 %v7290, 7
    %v7292 = vadd.s32 %v7291, 120
    %7293 = vset.pattern.permute.xlu0 %v7292
    %7294 = vperm.xlu0 %7293, %v7199
    %v7295 = vpop.permute.xlu0 %7294
    %v7296 = vperm.slane %v6129, 4
    %v7297 = vlaneseq
    %v7298 = vshrl.u32 %v7297, 7
    %7300 = vset.pattern.permute.xlu0 %v7298
    %7301 = vperm.xlu0 %7300, %v7296
    %v7302 = vpop.permute.xlu0 %7301
    %v7303 = vlaneseq
    %v7304 = vshrl.u32 %v7303, 7
    %v7305 = vadd.s32 %v7304, 8
    %7306 = vset.pattern.permute.xlu0 %v7305
    %7307 = vperm.xlu0 %7306, %v7296
    %v7308 = vpop.permute.xlu0 %7307
    %v7309 = vlaneseq
    %v7310 = vshrl.u32 %v7309, 7
    %v7311 = vadd.s32 %v7310, 16
    %7312 = vset.pattern.permute.xlu0 %v7311
    %7313 = vperm.xlu0 %7312, %v7296
    %v7314 = vpop.permute.xlu0 %7313
    %v7315 = vlaneseq
    %v7316 = vshrl.u32 %v7315, 7
    %v7317 = vadd.s32 %v7316, 24
    %7318 = vset.pattern.permute.xlu0 %v7317
    %7319 = vperm.xlu0 %7318, %v7296
    %v7320 = vpop.permute.xlu0 %7319
    %v7321 = vlaneseq
    %v7322 = vshrl.u32 %v7321, 7
    %v7323 = vadd.s32 %v7322, 32
    %7324 = vset.pattern.permute.xlu0 %v7323
    %7325 = vperm.xlu0 %7324, %v7296
    %v7326 = vpop.permute.xlu0 %7325
    %v7327 = vlaneseq
    %v7328 = vshrl.u32 %v7327, 7
    %v7329 = vadd.s32 %v7328, 40
    %7330 = vset.pattern.permute.xlu0 %v7329
    %7331 = vperm.xlu0 %7330, %v7296
    %v7332 = vpop.permute.xlu0 %7331
    %v7333 = vlaneseq
    %v7334 = vshrl.u32 %v7333, 7
    %v7335 = vadd.s32 %v7334, 48
    %7336 = vset.pattern.permute.xlu0 %v7335
    %7337 = vperm.xlu0 %7336, %v7296
    %v7338 = vpop.permute.xlu0 %7337
    %v7339 = vlaneseq
    %v7340 = vshrl.u32 %v7339, 7
    %v7341 = vadd.s32 %v7340, 56
    %7342 = vset.pattern.permute.xlu0 %v7341
    %7343 = vperm.xlu0 %7342, %v7296
    %v7344 = vpop.permute.xlu0 %7343
    %v7345 = vlaneseq
    %v7346 = vshrl.u32 %v7345, 7
    %v7347 = vadd.s32 %v7346, 64
    %7348 = vset.pattern.permute.xlu0 %v7347
    %7349 = vperm.xlu0 %7348, %v7296
    %v7350 = vpop.permute.xlu0 %7349
    %v7351 = vlaneseq
    %v7352 = vshrl.u32 %v7351, 7
    %v7353 = vadd.s32 %v7352, 72
    %7354 = vset.pattern.permute.xlu0 %v7353
    %7355 = vperm.xlu0 %7354, %v7296
    %v7356 = vpop.permute.xlu0 %7355
    %v7357 = vlaneseq
    %v7358 = vshrl.u32 %v7357, 7
    %v7359 = vadd.s32 %v7358, 80
    %7360 = vset.pattern.permute.xlu0 %v7359
    %7361 = vperm.xlu0 %7360, %v7296
    %v7362 = vpop.permute.xlu0 %7361
    %v7363 = vlaneseq
    %v7364 = vshrl.u32 %v7363, 7
    %v7365 = vadd.s32 %v7364, 88
    %7366 = vset.pattern.permute.xlu0 %v7365
    %7367 = vperm.xlu0 %7366, %v7296
    %v7368 = vpop.permute.xlu0 %7367
    %v7369 = vlaneseq
    %v7370 = vshrl.u32 %v7369, 7
    %v7371 = vadd.s32 %v7370, 96
    %7372 = vset.pattern.permute.xlu0 %v7371
    %7373 = vperm.xlu0 %7372, %v7296
    %v7374 = vpop.permute.xlu0 %7373
    %v7375 = vlaneseq
    %v7376 = vshrl.u32 %v7375, 7
    %v7377 = vadd.s32 %v7376, 104
    %7378 = vset.pattern.permute.xlu0 %v7377
    %7379 = vperm.xlu0 %7378, %v7296
    %v7380 = vpop.permute.xlu0 %7379
    %v7381 = vlaneseq
    %v7382 = vshrl.u32 %v7381, 7
    %v7383 = vadd.s32 %v7382, 112
    %7384 = vset.pattern.permute.xlu0 %v7383
    %7385 = vperm.xlu0 %7384, %v7296
    %v7386 = vpop.permute.xlu0 %7385
    %v7387 = vlaneseq
    %v7388 = vshrl.u32 %v7387, 7
    %v7389 = vadd.s32 %v7388, 120
    %7390 = vset.pattern.permute.xlu0 %v7389
    %7391 = vperm.xlu0 %7390, %v7296
    %v7392 = vpop.permute.xlu0 %7391
    %v7393 = vperm.slane %v6129, 5
    %v7394 = vlaneseq
    %v7395 = vshrl.u32 %v7394, 7
    %7397 = vset.pattern.permute.xlu0 %v7395
    %7398 = vperm.xlu0 %7397, %v7393
    %v7399 = vpop.permute.xlu0 %7398
    %v7400 = vlaneseq
    %v7401 = vshrl.u32 %v7400, 7
    %v7402 = vadd.s32 %v7401, 8
    %7403 = vset.pattern.permute.xlu0 %v7402
    %7404 = vperm.xlu0 %7403, %v7393
    %v7405 = vpop.permute.xlu0 %7404
    %v7406 = vlaneseq
    %v7407 = vshrl.u32 %v7406, 7
    %v7408 = vadd.s32 %v7407, 16
    %7409 = vset.pattern.permute.xlu0 %v7408
    %7410 = vperm.xlu0 %7409, %v7393
    %v7411 = vpop.permute.xlu0 %7410
    %v7412 = vlaneseq
    %v7413 = vshrl.u32 %v7412, 7
    %v7414 = vadd.s32 %v7413, 24
    %7415 = vset.pattern.permute.xlu0 %v7414
    %7416 = vperm.xlu0 %7415, %v7393
    %v7417 = vpop.permute.xlu0 %7416
    %v7418 = vlaneseq
    %v7419 = vshrl.u32 %v7418, 7
    %v7420 = vadd.s32 %v7419, 32
    %7421 = vset.pattern.permute.xlu0 %v7420
    %7422 = vperm.xlu0 %7421, %v7393
    %v7423 = vpop.permute.xlu0 %7422
    %v7424 = vlaneseq
    %v7425 = vshrl.u32 %v7424, 7
    %v7426 = vadd.s32 %v7425, 40
    %7427 = vset.pattern.permute.xlu0 %v7426
    %7428 = vperm.xlu0 %7427, %v7393
    %v7429 = vpop.permute.xlu0 %7428
    %v7430 = vlaneseq
    %v7431 = vshrl.u32 %v7430, 7
    %v7432 = vadd.s32 %v7431, 48
    %7433 = vset.pattern.permute.xlu0 %v7432
    %7434 = vperm.xlu0 %7433, %v7393
    %v7435 = vpop.permute.xlu0 %7434
    %v7436 = vlaneseq
    %v7437 = vshrl.u32 %v7436, 7
    %v7438 = vadd.s32 %v7437, 56
    %7439 = vset.pattern.permute.xlu0 %v7438
    %7440 = vperm.xlu0 %7439, %v7393
    %v7441 = vpop.permute.xlu0 %7440
    %v7442 = vlaneseq
    %v7443 = vshrl.u32 %v7442, 7
    %v7444 = vadd.s32 %v7443, 64
    %7445 = vset.pattern.permute.xlu0 %v7444
    %7446 = vperm.xlu0 %7445, %v7393
    %v7447 = vpop.permute.xlu0 %7446
    %v7448 = vlaneseq
    %v7449 = vshrl.u32 %v7448, 7
    %v7450 = vadd.s32 %v7449, 72
    %7451 = vset.pattern.permute.xlu0 %v7450
    %7452 = vperm.xlu0 %7451, %v7393
    %v7453 = vpop.permute.xlu0 %7452
    %v7454 = vlaneseq
    %v7455 = vshrl.u32 %v7454, 7
    %v7456 = vadd.s32 %v7455, 80
    %7457 = vset.pattern.permute.xlu0 %v7456
    %7458 = vperm.xlu0 %7457, %v7393
    %v7459 = vpop.permute.xlu0 %7458
    %v7460 = vlaneseq
    %v7461 = vshrl.u32 %v7460, 7
    %v7462 = vadd.s32 %v7461, 88
    %7463 = vset.pattern.permute.xlu0 %v7462
    %7464 = vperm.xlu0 %7463, %v7393
    %v7465 = vpop.permute.xlu0 %7464
    %v7466 = vlaneseq
    %v7467 = vshrl.u32 %v7466, 7
    %v7468 = vadd.s32 %v7467, 96
    %7469 = vset.pattern.permute.xlu0 %v7468
    %7470 = vperm.xlu0 %7469, %v7393
    %v7471 = vpop.permute.xlu0 %7470
    %v7472 = vlaneseq
    %v7473 = vshrl.u32 %v7472, 7
    %v7474 = vadd.s32 %v7473, 104
    %7475 = vset.pattern.permute.xlu0 %v7474
    %7476 = vperm.xlu0 %7475, %v7393
    %v7477 = vpop.permute.xlu0 %7476
    %v7478 = vlaneseq
    %v7479 = vshrl.u32 %v7478, 7
    %v7480 = vadd.s32 %v7479, 112
    %7481 = vset.pattern.permute.xlu0 %v7480
    %7482 = vperm.xlu0 %7481, %v7393
    %v7483 = vpop.permute.xlu0 %7482
    %v7484 = vlaneseq
    %v7485 = vshrl.u32 %v7484, 7
    %v7486 = vadd.s32 %v7485, 120
    %7487 = vset.pattern.permute.xlu0 %v7486
    %7488 = vperm.xlu0 %7487, %v7393
    %v7489 = vpop.permute.xlu0 %7488
    %v7490 = vperm.slane %v6129, 6
    %v7491 = vlaneseq
    %v7492 = vshrl.u32 %v7491, 7
    %7494 = vset.pattern.permute.xlu0 %v7492
    %7495 = vperm.xlu0 %7494, %v7490
    %v7496 = vpop.permute.xlu0 %7495
    %v7497 = vlaneseq
    %v7498 = vshrl.u32 %v7497, 7
    %v7499 = vadd.s32 %v7498, 8
    %7500 = vset.pattern.permute.xlu0 %v7499
    %7501 = vperm.xlu0 %7500, %v7490
    %v7502 = vpop.permute.xlu0 %7501
    %v7503 = vlaneseq
    %v7504 = vshrl.u32 %v7503, 7
    %v7505 = vadd.s32 %v7504, 16
    %7506 = vset.pattern.permute.xlu0 %v7505
    %7507 = vperm.xlu0 %7506, %v7490
    %v7508 = vpop.permute.xlu0 %7507
    %v7509 = vlaneseq
    %v7510 = vshrl.u32 %v7509, 7
    %v7511 = vadd.s32 %v7510, 24
    %7512 = vset.pattern.permute.xlu0 %v7511
    %7513 = vperm.xlu0 %7512, %v7490
    %v7514 = vpop.permute.xlu0 %7513
    %v7515 = vlaneseq
    %v7516 = vshrl.u32 %v7515, 7
    %v7517 = vadd.s32 %v7516, 32
    %7518 = vset.pattern.permute.xlu0 %v7517
    %7519 = vperm.xlu0 %7518, %v7490
    %v7520 = vpop.permute.xlu0 %7519
    %v7521 = vlaneseq
    %v7522 = vshrl.u32 %v7521, 7
    %v7523 = vadd.s32 %v7522, 40
    %7524 = vset.pattern.permute.xlu0 %v7523
    %7525 = vperm.xlu0 %7524, %v7490
    %v7526 = vpop.permute.xlu0 %7525
    %v7527 = vlaneseq
    %v7528 = vshrl.u32 %v7527, 7
    %v7529 = vadd.s32 %v7528, 48
    %7530 = vset.pattern.permute.xlu0 %v7529
    %7531 = vperm.xlu0 %7530, %v7490
    %v7532 = vpop.permute.xlu0 %7531
    %v7533 = vlaneseq
    %v7534 = vshrl.u32 %v7533, 7
    %v7535 = vadd.s32 %v7534, 56
    %7536 = vset.pattern.permute.xlu0 %v7535
    %7537 = vperm.xlu0 %7536, %v7490
    %v7538 = vpop.permute.xlu0 %7537
    %v7539 = vlaneseq
    %v7540 = vshrl.u32 %v7539, 7
    %v7541 = vadd.s32 %v7540, 64
    %7542 = vset.pattern.permute.xlu0 %v7541
    %7543 = vperm.xlu0 %7542, %v7490
    %v7544 = vpop.permute.xlu0 %7543
    %v7545 = vlaneseq
    %v7546 = vshrl.u32 %v7545, 7
    %v7547 = vadd.s32 %v7546, 72
    %7548 = vset.pattern.permute.xlu0 %v7547
    %7549 = vperm.xlu0 %7548, %v7490
    %v7550 = vpop.permute.xlu0 %7549
    %v7551 = vlaneseq
    %v7552 = vshrl.u32 %v7551, 7
    %v7553 = vadd.s32 %v7552, 80
    %7554 = vset.pattern.permute.xlu0 %v7553
    %7555 = vperm.xlu0 %7554, %v7490
    %v7556 = vpop.permute.xlu0 %7555
    %v7557 = vlaneseq
    %v7558 = vshrl.u32 %v7557, 7
    %v7559 = vadd.s32 %v7558, 88
    %7560 = vset.pattern.permute.xlu0 %v7559
    %7561 = vperm.xlu0 %7560, %v7490
    %v7562 = vpop.permute.xlu0 %7561
    %v7563 = vlaneseq
    %v7564 = vshrl.u32 %v7563, 7
    %v7565 = vadd.s32 %v7564, 96
    %7566 = vset.pattern.permute.xlu0 %v7565
    %7567 = vperm.xlu0 %7566, %v7490
    %v7568 = vpop.permute.xlu0 %7567
    %v7569 = vlaneseq
    %v7570 = vshrl.u32 %v7569, 7
    %v7571 = vadd.s32 %v7570, 104
    %7572 = vset.pattern.permute.xlu0 %v7571
    %7573 = vperm.xlu0 %7572, %v7490
    %v7574 = vpop.permute.xlu0 %7573
    %v7575 = vlaneseq
    %v7576 = vshrl.u32 %v7575, 7
    %v7577 = vadd.s32 %v7576, 112
    %7578 = vset.pattern.permute.xlu0 %v7577
    %7579 = vperm.xlu0 %7578, %v7490
    %v7580 = vpop.permute.xlu0 %7579
    %v7581 = vlaneseq
    %v7582 = vshrl.u32 %v7581, 7
    %v7583 = vadd.s32 %v7582, 120
    %7584 = vset.pattern.permute.xlu0 %v7583
    %7585 = vperm.xlu0 %7584, %v7490
    %v7586 = vpop.permute.xlu0 %7585
    %v7587 = vperm.slane %v6129, 7
    %v7588 = vlaneseq
    %v7589 = vshrl.u32 %v7588, 7
    %7591 = vset.pattern.permute.xlu0 %v7589
    %7592 = vperm.xlu0 %7591, %v7587
    %v7593 = vpop.permute.xlu0 %7592
    %v7594 = vlaneseq
    %v7595 = vshrl.u32 %v7594, 7
    %v7596 = vadd.s32 %v7595, 8
    %7597 = vset.pattern.permute.xlu0 %v7596
    %7598 = vperm.xlu0 %7597, %v7587
    %v7599 = vpop.permute.xlu0 %7598
    %v7600 = vlaneseq
    %v7601 = vshrl.u32 %v7600, 7
    %v7602 = vadd.s32 %v7601, 16
    %7603 = vset.pattern.permute.xlu0 %v7602
    %7604 = vperm.xlu0 %7603, %v7587
    %v7605 = vpop.permute.xlu0 %7604
    %v7606 = vlaneseq
    %v7607 = vshrl.u32 %v7606, 7
    %v7608 = vadd.s32 %v7607, 24
    %7609 = vset.pattern.permute.xlu0 %v7608
    %7610 = vperm.xlu0 %7609, %v7587
    %v7611 = vpop.permute.xlu0 %7610
    %v7612 = vlaneseq
    %v7613 = vshrl.u32 %v7612, 7
    %v7614 = vadd.s32 %v7613, 32
    %7615 = vset.pattern.permute.xlu0 %v7614
    %7616 = vperm.xlu0 %7615, %v7587
    %v7617 = vpop.permute.xlu0 %7616
    %v7618 = vlaneseq
    %v7619 = vshrl.u32 %v7618, 7
    %v7620 = vadd.s32 %v7619, 40
    %7621 = vset.pattern.permute.xlu0 %v7620
    %7622 = vperm.xlu0 %7621, %v7587
    %v7623 = vpop.permute.xlu0 %7622
    %v7624 = vlaneseq
    %v7625 = vshrl.u32 %v7624, 7
    %v7626 = vadd.s32 %v7625, 48
    %7627 = vset.pattern.permute.xlu0 %v7626
    %7628 = vperm.xlu0 %7627, %v7587
    %v7629 = vpop.permute.xlu0 %7628
    %v7630 = vlaneseq
    %v7631 = vshrl.u32 %v7630, 7
    %v7632 = vadd.s32 %v7631, 56
    %7633 = vset.pattern.permute.xlu0 %v7632
    %7634 = vperm.xlu0 %7633, %v7587
    %v7635 = vpop.permute.xlu0 %7634
    %v7636 = vlaneseq
    %v7637 = vshrl.u32 %v7636, 7
    %v7638 = vadd.s32 %v7637, 64
    %7639 = vset.pattern.permute.xlu0 %v7638
    %7640 = vperm.xlu0 %7639, %v7587
    %v7641 = vpop.permute.xlu0 %7640
    %v7642 = vlaneseq
    %v7643 = vshrl.u32 %v7642, 7
    %v7644 = vadd.s32 %v7643, 72
    %7645 = vset.pattern.permute.xlu0 %v7644
    %7646 = vperm.xlu0 %7645, %v7587
    %v7647 = vpop.permute.xlu0 %7646
    %v7648 = vlaneseq
    %v7649 = vshrl.u32 %v7648, 7
    %v7650 = vadd.s32 %v7649, 80
    %7651 = vset.pattern.permute.xlu0 %v7650
    %7652 = vperm.xlu0 %7651, %v7587
    %v7653 = vpop.permute.xlu0 %7652
    %v7654 = vlaneseq
    %v7655 = vshrl.u32 %v7654, 7
    %v7656 = vadd.s32 %v7655, 88
    %7657 = vset.pattern.permute.xlu0 %v7656
    %7658 = vperm.xlu0 %7657, %v7587
    %v7659 = vpop.permute.xlu0 %7658
    %v7660 = vlaneseq
    %v7661 = vshrl.u32 %v7660, 7
    %v7662 = vadd.s32 %v7661, 96
    %7663 = vset.pattern.permute.xlu0 %v7662
    %7664 = vperm.xlu0 %7663, %v7587
    %v7665 = vpop.permute.xlu0 %7664
    %v7666 = vlaneseq
    %v7667 = vshrl.u32 %v7666, 7
    %v7668 = vadd.s32 %v7667, 104
    %7669 = vset.pattern.permute.xlu0 %v7668
    %7670 = vperm.xlu0 %7669, %v7587
    %v7671 = vpop.permute.xlu0 %7670
    %v7672 = vlaneseq
    %v7673 = vshrl.u32 %v7672, 7
    %v7674 = vadd.s32 %v7673, 112
    %7675 = vset.pattern.permute.xlu0 %v7674
    %7676 = vperm.xlu0 %7675, %v7587
    %v7677 = vpop.permute.xlu0 %7676
    %v7678 = vlaneseq
    %v7679 = vshrl.u32 %v7678, 7
    %v7680 = vadd.s32 %v7679, 120
    %7681 = vset.pattern.permute.xlu0 %v7680
    %7682 = vperm.xlu0 %7681, %v7587
    %v7683 = vpop.permute.xlu0 %7682
    %v7684 = vmul.f32 %v21, %v6138
    %v7685 = vmul.f32 %v22, %v6144
    %v7686 = vmul.f32 %v23, %v6150
    %v7687 = vmul.f32 %v24, %v6156
    %v7688 = vmul.f32 %v25, %v6162
    %v7689 = vmul.f32 %v26, %v6168
    %v7690 = vmul.f32 %v27, %v6174
    %v7691 = vmul.f32 %v28, %v6180
    %v7692 = vmul.f32 %v29, %v6186
    %v7693 = vmul.f32 %v30, %v6192
    %v7694 = vmul.f32 %v31, %v6198
    %v7695 = vmul.f32 %v32, %v6204
    %v7696 = vmul.f32 %v33, %v6210
    %v7697 = vmul.f32 %v34, %v6216
    %v7698 = vmul.f32 %v35, %v6222
    %v7699 = vmul.f32 %v36, %v6228
    %v7700 = vmul.f32 %v37, %v6235
    %v7701 = vmul.f32 %v38, %v6241
    %v7702 = vmul.f32 %v39, %v6247
    %v7703 = vmul.f32 %v40, %v6253
    %v7704 = vmul.f32 %v41, %v6259
    %v7705 = vmul.f32 %v42, %v6265
    %v7706 = vmul.f32 %v43, %v6271
    %v7707 = vmul.f32 %v44, %v6277
    %v7708 = vmul.f32 %v45, %v6283
    %v7709 = vmul.f32 %v46, %v6289
    %v7710 = vmul.f32 %v47, %v6295
    %v7711 = vmul.f32 %v48, %v6301
    %v7712 = vmul.f32 %v49, %v6307
    %v7713 = vmul.f32 %v50, %v6313
    %v7714 = vmul.f32 %v51, %v6319
    %v7715 = vmul.f32 %v52, %v6325
    %v7716 = vmul.f32 %v53, %v6332
    %v7717 = vmul.f32 %v54, %v6338
    %v7718 = vmul.f32 %v55, %v6344
    %v7719 = vmul.f32 %v56, %v6350
    %v7720 = vmul.f32 %v57, %v6356
    %v7721 = vmul.f32 %v58, %v6362
    %v7722 = vmul.f32 %v59, %v6368
    %v7723 = vmul.f32 %v60, %v6374
    %v7724 = vmul.f32 %v61, %v6380
    %v7725 = vmul.f32 %v62, %v6386
    %v7726 = vmul.f32 %v63, %v6392
    %v7727 = vmul.f32 %v64, %v6398
    %v7728 = vmul.f32 %v65, %v6404
    %v7729 = vmul.f32 %v66, %v6410
    %v7730 = vmul.f32 %v67, %v6416
    %v7731 = vmul.f32 %v68, %v6422
    %v7732 = vmul.f32 %v69, %v6429
    %v7733 = vmul.f32 %v70, %v6435
    %v7734 = vmul.f32 %v71, %v6441
    %v7735 = vmul.f32 %v72, %v6447
    %v7736 = vmul.f32 %v73, %v6453
    %v7737 = vmul.f32 %v74, %v6459
    %v7738 = vmul.f32 %v75, %v6465
    %v7739 = vmul.f32 %v76, %v6471
    %v7740 = vmul.f32 %v77, %v6477
    %v7741 = vmul.f32 %v78, %v6483
    %v7742 = vmul.f32 %v79, %v6489
    %v7743 = vmul.f32 %v80, %v6495
    %v7744 = vmul.f32 %v81, %v6501
    %v7745 = vmul.f32 %v82, %v6507
    %v7746 = vmul.f32 %v83, %v6513
    %v7747 = vmul.f32 %v84, %v6519
    %v7748 = vmul.f32 %v85, %v6526
    %v7749 = vmul.f32 %v86, %v6532
    %v7750 = vmul.f32 %v87, %v6538
    %v7751 = vmul.f32 %v88, %v6544
    %v7752 = vmul.f32 %v89, %v6550
    %v7753 = vmul.f32 %v90, %v6556
    %v7754 = vmul.f32 %v91, %v6562
    %v7755 = vmul.f32 %v92, %v6568
    %v7756 = vmul.f32 %v93, %v6574
    %v7757 = vmul.f32 %v94, %v6580
    %v7758 = vmul.f32 %v95, %v6586
    %v7759 = vmul.f32 %v96, %v6592
    %v7760 = vmul.f32 %v97, %v6598
    %v7761 = vmul.f32 %v98, %v6604
    %v7762 = vmul.f32 %v99, %v6610
    %v7763 = vmul.f32 %v100, %v6616
    %v7764 = vmul.f32 %v101, %v6623
    %v7765 = vmul.f32 %v102, %v6629
    %v7766 = vmul.f32 %v103, %v6635
    %v7767 = vmul.f32 %v104, %v6641
    %v7768 = vmul.f32 %v105, %v6647
    %v7769 = vmul.f32 %v106, %v6653
    %v7770 = vmul.f32 %v107, %v6659
    %v7771 = vmul.f32 %v108, %v6665
    %v7772 = vmul.f32 %v109, %v6671
    %v7773 = vmul.f32 %v110, %v6677
    %v7774 = vmul.f32 %v111, %v6683
    %v7775 = vmul.f32 %v112, %v6689
    %v7776 = vmul.f32 %v113, %v6695
    %v7777 = vmul.f32 %v114, %v6701
    %v7778 = vmul.f32 %v115, %v6707
    %v7779 = vmul.f32 %v116, %v6713
    %v7780 = vmul.f32 %v117, %v6720
    %v7781 = vmul.f32 %v118, %v6726
    %v7782 = vmul.f32 %v119, %v6732
    %v7783 = vmul.f32 %v120, %v6738
    %v7784 = vmul.f32 %v121, %v6744
    %v7785 = vmul.f32 %v122, %v6750
    %v7786 = vmul.f32 %v123, %v6756
    %v7787 = vmul.f32 %v124, %v6762
    %v7788 = vmul.f32 %v125, %v6768
    %v7789 = vmul.f32 %v126, %v6774
    %v7790 = vmul.f32 %v127, %v6780
    %v7791 = vmul.f32 %v128, %v6786
    %v7792 = vmul.f32 %v129, %v6792
    %v7793 = vmul.f32 %v130, %v6798
    %v7794 = vmul.f32 %v131, %v6804
    %v7795 = vmul.f32 %v132, %v6810
    %v7796 = vmul.f32 %v133, %v6817
    %v7797 = vmul.f32 %v134, %v6823
    %v7798 = vmul.f32 %v135, %v6829
    %v7799 = vmul.f32 %v136, %v6835
    %v7800 = vmul.f32 %v137, %v6841
    %v7801 = vmul.f32 %v138, %v6847
    %v7802 = vmul.f32 %v139, %v6853
    %v7803 = vmul.f32 %v140, %v6859
    %v7804 = vmul.f32 %v141, %v6865
    %v7805 = vmul.f32 %v142, %v6871
    %v7806 = vmul.f32 %v143, %v6877
    %v7807 = vmul.f32 %v144, %v6883
    %v7808 = vmul.f32 %v145, %v6889
    %v7809 = vmul.f32 %v146, %v6895
    %v7810 = vmul.f32 %v147, %v6901
    %v7811 = vmul.f32 %v148, %v6907
    %v7812 = vmul.f32 %v149, %v6914
    %v7813 = vmul.f32 %v150, %v6920
    %v7814 = vmul.f32 %v151, %v6926
    %v7815 = vmul.f32 %v152, %v6932
    %v7816 = vmul.f32 %v153, %v6938
    %v7817 = vmul.f32 %v154, %v6944
    %v7818 = vmul.f32 %v155, %v6950
    %v7819 = vmul.f32 %v156, %v6956
    %v7820 = vmul.f32 %v157, %v6962
    %v7821 = vmul.f32 %v158, %v6968
    %v7822 = vmul.f32 %v159, %v6974
    %v7823 = vmul.f32 %v160, %v6980
    %v7824 = vmul.f32 %v161, %v6986
    %v7825 = vmul.f32 %v162, %v6992
    %v7826 = vmul.f32 %v163, %v6998
    %v7827 = vmul.f32 %v164, %v7004
    %v7828 = vmul.f32 %v165, %v7011
    %v7829 = vmul.f32 %v166, %v7017
    %v7830 = vmul.f32 %v167, %v7023
    %v7831 = vmul.f32 %v168, %v7029
    %v7832 = vmul.f32 %v169, %v7035
    %v7833 = vmul.f32 %v170, %v7041
    %v7834 = vmul.f32 %v171, %v7047
    %v7835 = vmul.f32 %v172, %v7053
    %v7836 = vmul.f32 %v173, %v7059
    %v7837 = vmul.f32 %v174, %v7065
    %v7838 = vmul.f32 %v175, %v7071
    %v7839 = vmul.f32 %v176, %v7077
    %v7840 = vmul.f32 %v177, %v7083
    %v7841 = vmul.f32 %v178, %v7089
    %v7842 = vmul.f32 %v179, %v7095
    %v7843 = vmul.f32 %v180, %v7101
    %v7844 = vmul.f32 %v181, %v7108
    %v7845 = vmul.f32 %v182, %v7114
    %v7846 = vmul.f32 %v183, %v7120
    %v7847 = vmul.f32 %v184, %v7126
    %v7848 = vmul.f32 %v185, %v7132
    %v7849 = vmul.f32 %v186, %v7138
    %v7850 = vmul.f32 %v187, %v7144
    %v7851 = vmul.f32 %v188, %v7150
    %v7852 = vmul.f32 %v189, %v7156
    %v7853 = vmul.f32 %v190, %v7162
    %v7854 = vmul.f32 %v191, %v7168
    %v7855 = vmul.f32 %v192, %v7174
    %v7856 = vmul.f32 %v193, %v7180
    %v7857 = vmul.f32 %v194, %v7186
    %v7858 = vmul.f32 %v195, %v7192
    %v7859 = vmul.f32 %v196, %v7198
    %v7860 = vmul.f32 %v197, %v7205
    %v7861 = vmul.f32 %v198, %v7211
    %v7862 = vmul.f32 %v199, %v7217
    %v7863 = vmul.f32 %v200, %v7223
    %v7864 = vmul.f32 %v201, %v7229
    %v7865 = vmul.f32 %v202, %v7235
    %v7866 = vmul.f32 %v203, %v7241
    %v7867 = vmul.f32 %v204, %v7247
    %v7868 = vmul.f32 %v205, %v7253
    %v7869 = vmul.f32 %v206, %v7259
    %v7870 = vmul.f32 %v207, %v7265
    %v7871 = vmul.f32 %v208, %v7271
    %v7872 = vmul.f32 %v209, %v7277
    %v7873 = vmul.f32 %v210, %v7283
    %v7874 = vmul.f32 %v211, %v7289
    %v7875 = vmul.f32 %v212, %v7295
    %v7876 = vmul.f32 %v213, %v7302
    %v7877 = vmul.f32 %v214, %v7308
    %v7878 = vmul.f32 %v215, %v7314
    %v7879 = vmul.f32 %v216, %v7320
    %v7880 = vmul.f32 %v217, %v7326
    %v7881 = vmul.f32 %v218, %v7332
    %v7882 = vmul.f32 %v219, %v7338
    %v7883 = vmul.f32 %v220, %v7344
    %v7884 = vmul.f32 %v221, %v7350
    %v7885 = vmul.f32 %v222, %v7356
    %v7886 = vmul.f32 %v223, %v7362
    %v7887 = vmul.f32 %v224, %v7368
    %v7888 = vmul.f32 %v225, %v7374
    %v7889 = vmul.f32 %v226, %v7380
    %v7890 = vmul.f32 %v227, %v7386
    %v7891 = vmul.f32 %v228, %v7392
    %v7892 = vmul.f32 %v229, %v7399
    %v7893 = vmul.f32 %v230, %v7405
    %v7894 = vmul.f32 %v231, %v7411
    %v7895 = vmul.f32 %v232, %v7417
    %v7896 = vmul.f32 %v233, %v7423
    %v7897 = vmul.f32 %v234, %v7429
    %v7898 = vmul.f32 %v235, %v7435
    %v7899 = vmul.f32 %v236, %v7441
    %v7900 = vmul.f32 %v237, %v7447
    %v7901 = vmul.f32 %v238, %v7453
    %v7902 = vmul.f32 %v239, %v7459
    %v7903 = vmul.f32 %v240, %v7465
    %v7904 = vmul.f32 %v241, %v7471
    %v7905 = vmul.f32 %v242, %v7477
    %v7906 = vmul.f32 %v243, %v7483
    %v7907 = vmul.f32 %v244, %v7489
    %v7908 = vmul.f32 %v245, %v7496
    %v7909 = vmul.f32 %v246, %v7502
    %v7910 = vmul.f32 %v247, %v7508
    %v7911 = vmul.f32 %v248, %v7514
    %v7912 = vmul.f32 %v249, %v7520
    %v7913 = vmul.f32 %v250, %v7526
    %v7914 = vmul.f32 %v251, %v7532
    %v7915 = vmul.f32 %v252, %v7538
    %v7916 = vmul.f32 %v253, %v7544
    %v7917 = vmul.f32 %v254, %v7550
    %v7918 = vmul.f32 %v255, %v7556
    %v7919 = vmul.f32 %v256, %v7562
    %v7920 = vmul.f32 %v257, %v7568
    %v7921 = vmul.f32 %v258, %v7574
    %v7922 = vmul.f32 %v259, %v7580
    %v7923 = vmul.f32 %v260, %v7586
    %v7924 = vmul.f32 %v261, %v7593
    %v7925 = vmul.f32 %v262, %v7599
    %v7926 = vmul.f32 %v263, %v7605
    %v7927 = vmul.f32 %v264, %v7611
    %v7928 = vmul.f32 %v265, %v7617
    %v7929 = vmul.f32 %v266, %v7623
    %v7930 = vmul.f32 %v267, %v7629
    %v7931 = vmul.f32 %v268, %v7635
    %v7932 = vmul.f32 %v269, %v7641
    %v7933 = vmul.f32 %v270, %v7647
    %v7934 = vmul.f32 %v271, %v7653
    %v7935 = vmul.f32 %v272, %v7659
    %v7936 = vmul.f32 %v273, %v7665
    %v7937 = vmul.f32 %v274, %v7671
    %v7938 = vmul.f32 %v275, %v7677
    %v7939 = vmul.f32 %v276, %v7683
    %v7940 = vsel %vm290, %v7684, 0.0
    %v7941 = vsel %vm290, %v7685, 0.0
    %v7942 = vadd.f32 %v7940, %v7941
    %v7943 = vsel %vm290, %v7686, 0.0
    %v7944 = vadd.f32 %v7942, %v7943
    %v7945 = vsel %vm290, %v7687, 0.0
    %v7946 = vadd.f32 %v7944, %v7945
    %v7947 = vsel %vm290, %v7688, 0.0
    %v7948 = vadd.f32 %v7946, %v7947
    %v7949 = vsel %vm290, %v7689, 0.0
    %v7950 = vadd.f32 %v7948, %v7949
    %v7951 = vsel %vm290, %v7690, 0.0
    %v7952 = vadd.f32 %v7950, %v7951
    %v7953 = vsel %vm290, %v7691, 0.0
    %v7954 = vadd.f32 %v7952, %v7953
    %v7955 = vsel %vm290, %v7692, 0.0
    %v7956 = vadd.f32 %v7954, %v7955
    %v7957 = vsel %vm290, %v7693, 0.0
    %v7958 = vadd.f32 %v7956, %v7957
    %v7959 = vsel %vm290, %v7694, 0.0
    %v7960 = vadd.f32 %v7958, %v7959
    %v7961 = vsel %vm290, %v7695, 0.0
    %v7962 = vadd.f32 %v7960, %v7961
    %v7963 = vsel %vm290, %v7696, 0.0
    %v7964 = vadd.f32 %v7962, %v7963
    %v7965 = vsel %vm290, %v7697, 0.0
    %v7966 = vadd.f32 %v7964, %v7965
    %v7967 = vsel %vm290, %v7698, 0.0
    %v7968 = vadd.f32 %v7966, %v7967
    %v7969 = vsel %vm290, %v7699, 0.0
    %v7970 = vadd.f32 %v7968, %v7969
    %v7971 = vrot.slane %v7970, 4
    %v7972 = vadd.f32 %v7970, %v7971
    %v7973 = vrot.slane %v7972, 2
    %v7974 = vadd.f32 %v7972, %v7973
    %v7975 = vrot.slane %v7974, 1
    %v7976 = vadd.f32 %v7974, %v7975
    %v7977 = vsel %vm290, %v7700, 0.0
    %v7978 = vsel %vm290, %v7701, 0.0
    %v7979 = vadd.f32 %v7977, %v7978
    %v7980 = vsel %vm290, %v7702, 0.0
    %v7981 = vadd.f32 %v7979, %v7980
    %v7982 = vsel %vm290, %v7703, 0.0
    %v7983 = vadd.f32 %v7981, %v7982
    %v7984 = vsel %vm290, %v7704, 0.0
    %v7985 = vadd.f32 %v7983, %v7984
    %v7986 = vsel %vm290, %v7705, 0.0
    %v7987 = vadd.f32 %v7985, %v7986
    %v7988 = vsel %vm290, %v7706, 0.0
    %v7989 = vadd.f32 %v7987, %v7988
    %v7990 = vsel %vm290, %v7707, 0.0
    %v7991 = vadd.f32 %v7989, %v7990
    %v7992 = vsel %vm290, %v7708, 0.0
    %v7993 = vadd.f32 %v7991, %v7992
    %v7994 = vsel %vm290, %v7709, 0.0
    %v7995 = vadd.f32 %v7993, %v7994
    %v7996 = vsel %vm290, %v7710, 0.0
    %v7997 = vadd.f32 %v7995, %v7996
    %v7998 = vsel %vm290, %v7711, 0.0
    %v7999 = vadd.f32 %v7997, %v7998
    %v8000 = vsel %vm290, %v7712, 0.0
    %v8001 = vadd.f32 %v7999, %v8000
    %v8002 = vsel %vm290, %v7713, 0.0
    %v8003 = vadd.f32 %v8001, %v8002
    %v8004 = vsel %vm290, %v7714, 0.0
    %v8005 = vadd.f32 %v8003, %v8004
    %v8006 = vsel %vm290, %v7715, 0.0
    %v8007 = vadd.f32 %v8005, %v8006
    %v8008 = vrot.slane %v8007, 4
    %v8009 = vadd.f32 %v8007, %v8008
    %v8010 = vrot.slane %v8009, 2
    %v8011 = vadd.f32 %v8009, %v8010
    %v8012 = vrot.slane %v8011, 1
    %v8013 = vadd.f32 %v8011, %v8012
    %v8014 = vsel %vm290, %v7716, 0.0
    %v8015 = vsel %vm290, %v7717, 0.0
    %v8016 = vadd.f32 %v8014, %v8015
    %v8017 = vsel %vm290, %v7718, 0.0
    %v8018 = vadd.f32 %v8016, %v8017
    %v8019 = vsel %vm290, %v7719, 0.0
    %v8020 = vadd.f32 %v8018, %v8019
    %v8021 = vsel %vm290, %v7720, 0.0
    %v8022 = vadd.f32 %v8020, %v8021
    %v8023 = vsel %vm290, %v7721, 0.0
    %v8024 = vadd.f32 %v8022, %v8023
    %v8025 = vsel %vm290, %v7722, 0.0
    %v8026 = vadd.f32 %v8024, %v8025
    %v8027 = vsel %vm290, %v7723, 0.0
    %v8028 = vadd.f32 %v8026, %v8027
    %v8029 = vsel %vm290, %v7724, 0.0
    %v8030 = vadd.f32 %v8028, %v8029
    %v8031 = vsel %vm290, %v7725, 0.0
    %v8032 = vadd.f32 %v8030, %v8031
    %v8033 = vsel %vm290, %v7726, 0.0
    %v8034 = vadd.f32 %v8032, %v8033
    %v8035 = vsel %vm290, %v7727, 0.0
    %v8036 = vadd.f32 %v8034, %v8035
    %v8037 = vsel %vm290, %v7728, 0.0
    %v8038 = vadd.f32 %v8036, %v8037
    %v8039 = vsel %vm290, %v7729, 0.0
    %v8040 = vadd.f32 %v8038, %v8039
    %v8041 = vsel %vm290, %v7730, 0.0
    %v8042 = vadd.f32 %v8040, %v8041
    %v8043 = vsel %vm290, %v7731, 0.0
    %v8044 = vadd.f32 %v8042, %v8043
    %v8045 = vrot.slane %v8044, 4
    %v8046 = vadd.f32 %v8044, %v8045
    %v8047 = vrot.slane %v8046, 2
    %v8048 = vadd.f32 %v8046, %v8047
    %v8049 = vrot.slane %v8048, 1
    %v8050 = vadd.f32 %v8048, %v8049
    %v8051 = vsel %vm290, %v7732, 0.0
    %v8052 = vsel %vm290, %v7733, 0.0
    %v8053 = vadd.f32 %v8051, %v8052
    %v8054 = vsel %vm290, %v7734, 0.0
    %v8055 = vadd.f32 %v8053, %v8054
    %v8056 = vsel %vm290, %v7735, 0.0
    %v8057 = vadd.f32 %v8055, %v8056
    %v8058 = vsel %vm290, %v7736, 0.0
    %v8059 = vadd.f32 %v8057, %v8058
    %v8060 = vsel %vm290, %v7737, 0.0
    %v8061 = vadd.f32 %v8059, %v8060
    %v8062 = vsel %vm290, %v7738, 0.0
    %v8063 = vadd.f32 %v8061, %v8062
    %v8064 = vsel %vm290, %v7739, 0.0
    %v8065 = vadd.f32 %v8063, %v8064
    %v8066 = vsel %vm290, %v7740, 0.0
    %v8067 = vadd.f32 %v8065, %v8066
    %v8068 = vsel %vm290, %v7741, 0.0
    %v8069 = vadd.f32 %v8067, %v8068
    %v8070 = vsel %vm290, %v7742, 0.0
    %v8071 = vadd.f32 %v8069, %v8070
    %v8072 = vsel %vm290, %v7743, 0.0
    %v8073 = vadd.f32 %v8071, %v8072
    %v8074 = vsel %vm290, %v7744, 0.0
    %v8075 = vadd.f32 %v8073, %v8074
    %v8076 = vsel %vm290, %v7745, 0.0
    %v8077 = vadd.f32 %v8075, %v8076
    %v8078 = vsel %vm290, %v7746, 0.0
    %v8079 = vadd.f32 %v8077, %v8078
    %v8080 = vsel %vm290, %v7747, 0.0
    %v8081 = vadd.f32 %v8079, %v8080
    %v8082 = vrot.slane %v8081, 4
    %v8083 = vadd.f32 %v8081, %v8082
    %v8084 = vrot.slane %v8083, 2
    %v8085 = vadd.f32 %v8083, %v8084
    %v8086 = vrot.slane %v8085, 1
    %v8087 = vadd.f32 %v8085, %v8086
    %v8088 = vsel %vm290, %v7748, 0.0
    %v8089 = vsel %vm290, %v7749, 0.0
    %v8090 = vadd.f32 %v8088, %v8089
    %v8091 = vsel %vm290, %v7750, 0.0
    %v8092 = vadd.f32 %v8090, %v8091
    %v8093 = vsel %vm290, %v7751, 0.0
    %v8094 = vadd.f32 %v8092, %v8093
    %v8095 = vsel %vm290, %v7752, 0.0
    %v8096 = vadd.f32 %v8094, %v8095
    %v8097 = vsel %vm290, %v7753, 0.0
    %v8098 = vadd.f32 %v8096, %v8097
    %v8099 = vsel %vm290, %v7754, 0.0
    %v8100 = vadd.f32 %v8098, %v8099
    %v8101 = vsel %vm290, %v7755, 0.0
    %v8102 = vadd.f32 %v8100, %v8101
    %v8103 = vsel %vm290, %v7756, 0.0
    %v8104 = vadd.f32 %v8102, %v8103
    %v8105 = vsel %vm290, %v7757, 0.0
    %v8106 = vadd.f32 %v8104, %v8105
    %v8107 = vsel %vm290, %v7758, 0.0
    %v8108 = vadd.f32 %v8106, %v8107
    %v8109 = vsel %vm290, %v7759, 0.0
    %v8110 = vadd.f32 %v8108, %v8109
    %v8111 = vsel %vm290, %v7760, 0.0
    %v8112 = vadd.f32 %v8110, %v8111
    %v8113 = vsel %vm290, %v7761, 0.0
    %v8114 = vadd.f32 %v8112, %v8113
    %v8115 = vsel %vm290, %v7762, 0.0
    %v8116 = vadd.f32 %v8114, %v8115
    %v8117 = vsel %vm290, %v7763, 0.0
    %v8118 = vadd.f32 %v8116, %v8117
    %v8119 = vrot.slane %v8118, 4
    %v8120 = vadd.f32 %v8118, %v8119
    %v8121 = vrot.slane %v8120, 2
    %v8122 = vadd.f32 %v8120, %v8121
    %v8123 = vrot.slane %v8122, 1
    %v8124 = vadd.f32 %v8122, %v8123
    %v8125 = vsel %vm290, %v7764, 0.0
    %v8126 = vsel %vm290, %v7765, 0.0
    %v8127 = vadd.f32 %v8125, %v8126
    %v8128 = vsel %vm290, %v7766, 0.0
    %v8129 = vadd.f32 %v8127, %v8128
    %v8130 = vsel %vm290, %v7767, 0.0
    %v8131 = vadd.f32 %v8129, %v8130
    %v8132 = vsel %vm290, %v7768, 0.0
    %v8133 = vadd.f32 %v8131, %v8132
    %v8134 = vsel %vm290, %v7769, 0.0
    %v8135 = vadd.f32 %v8133, %v8134
    %v8136 = vsel %vm290, %v7770, 0.0
    %v8137 = vadd.f32 %v8135, %v8136
    %v8138 = vsel %vm290, %v7771, 0.0
    %v8139 = vadd.f32 %v8137, %v8138
    %v8140 = vsel %vm290, %v7772, 0.0
    %v8141 = vadd.f32 %v8139, %v8140
    %v8142 = vsel %vm290, %v7773, 0.0
    %v8143 = vadd.f32 %v8141, %v8142
    %v8144 = vsel %vm290, %v7774, 0.0
    %v8145 = vadd.f32 %v8143, %v8144
    %v8146 = vsel %vm290, %v7775, 0.0
    %v8147 = vadd.f32 %v8145, %v8146
    %v8148 = vsel %vm290, %v7776, 0.0
    %v8149 = vadd.f32 %v8147, %v8148
    %v8150 = vsel %vm290, %v7777, 0.0
    %v8151 = vadd.f32 %v8149, %v8150
    %v8152 = vsel %vm290, %v7778, 0.0
    %v8153 = vadd.f32 %v8151, %v8152
    %v8154 = vsel %vm290, %v7779, 0.0
    %v8155 = vadd.f32 %v8153, %v8154
    %v8156 = vrot.slane %v8155, 4
    %v8157 = vadd.f32 %v8155, %v8156
    %v8158 = vrot.slane %v8157, 2
    %v8159 = vadd.f32 %v8157, %v8158
    %v8160 = vrot.slane %v8159, 1
    %v8161 = vadd.f32 %v8159, %v8160
    %v8162 = vsel %vm290, %v7780, 0.0
    %v8163 = vsel %vm290, %v7781, 0.0
    %v8164 = vadd.f32 %v8162, %v8163
    %v8165 = vsel %vm290, %v7782, 0.0
    %v8166 = vadd.f32 %v8164, %v8165
    %v8167 = vsel %vm290, %v7783, 0.0
    %v8168 = vadd.f32 %v8166, %v8167
    %v8169 = vsel %vm290, %v7784, 0.0
    %v8170 = vadd.f32 %v8168, %v8169
    %v8171 = vsel %vm290, %v7785, 0.0
    %v8172 = vadd.f32 %v8170, %v8171
    %v8173 = vsel %vm290, %v7786, 0.0
    %v8174 = vadd.f32 %v8172, %v8173
    %v8175 = vsel %vm290, %v7787, 0.0
    %v8176 = vadd.f32 %v8174, %v8175
    %v8177 = vsel %vm290, %v7788, 0.0
    %v8178 = vadd.f32 %v8176, %v8177
    %v8179 = vsel %vm290, %v7789, 0.0
    %v8180 = vadd.f32 %v8178, %v8179
    %v8181 = vsel %vm290, %v7790, 0.0
    %v8182 = vadd.f32 %v8180, %v8181
    %v8183 = vsel %vm290, %v7791, 0.0
    %v8184 = vadd.f32 %v8182, %v8183
    %v8185 = vsel %vm290, %v7792, 0.0
    %v8186 = vadd.f32 %v8184, %v8185
    %v8187 = vsel %vm290, %v7793, 0.0
    %v8188 = vadd.f32 %v8186, %v8187
    %v8189 = vsel %vm290, %v7794, 0.0
    %v8190 = vadd.f32 %v8188, %v8189
    %v8191 = vsel %vm290, %v7795, 0.0
    %v8192 = vadd.f32 %v8190, %v8191
    %v8193 = vrot.slane %v8192, 4
    %v8194 = vadd.f32 %v8192, %v8193
    %v8195 = vrot.slane %v8194, 2
    %v8196 = vadd.f32 %v8194, %v8195
    %v8197 = vrot.slane %v8196, 1
    %v8198 = vadd.f32 %v8196, %v8197
    %v8199 = vsel %vm290, %v7796, 0.0
    %v8200 = vsel %vm290, %v7797, 0.0
    %v8201 = vadd.f32 %v8199, %v8200
    %v8202 = vsel %vm290, %v7798, 0.0
    %v8203 = vadd.f32 %v8201, %v8202
    %v8204 = vsel %vm290, %v7799, 0.0
    %v8205 = vadd.f32 %v8203, %v8204
    %v8206 = vsel %vm290, %v7800, 0.0
    %v8207 = vadd.f32 %v8205, %v8206
    %v8208 = vsel %vm290, %v7801, 0.0
    %v8209 = vadd.f32 %v8207, %v8208
    %v8210 = vsel %vm290, %v7802, 0.0
    %v8211 = vadd.f32 %v8209, %v8210
    %v8212 = vsel %vm290, %v7803, 0.0
    %v8213 = vadd.f32 %v8211, %v8212
    %v8214 = vsel %vm290, %v7804, 0.0
    %v8215 = vadd.f32 %v8213, %v8214
    %v8216 = vsel %vm290, %v7805, 0.0
    %v8217 = vadd.f32 %v8215, %v8216
    %v8218 = vsel %vm290, %v7806, 0.0
    %v8219 = vadd.f32 %v8217, %v8218
    %v8220 = vsel %vm290, %v7807, 0.0
    %v8221 = vadd.f32 %v8219, %v8220
    %v8222 = vsel %vm290, %v7808, 0.0
    %v8223 = vadd.f32 %v8221, %v8222
    %v8224 = vsel %vm290, %v7809, 0.0
    %v8225 = vadd.f32 %v8223, %v8224
    %v8226 = vsel %vm290, %v7810, 0.0
    %v8227 = vadd.f32 %v8225, %v8226
    %v8228 = vsel %vm290, %v7811, 0.0
    %v8229 = vadd.f32 %v8227, %v8228
    %v8230 = vrot.slane %v8229, 4
    %v8231 = vadd.f32 %v8229, %v8230
    %v8232 = vrot.slane %v8231, 2
    %v8233 = vadd.f32 %v8231, %v8232
    %v8234 = vrot.slane %v8233, 1
    %v8235 = vadd.f32 %v8233, %v8234
    %v8236 = vsel %vm290, %v7812, 0.0
    %v8237 = vsel %vm290, %v7813, 0.0
    %v8238 = vadd.f32 %v8236, %v8237
    %v8239 = vsel %vm290, %v7814, 0.0
    %v8240 = vadd.f32 %v8238, %v8239
    %v8241 = vsel %vm290, %v7815, 0.0
    %v8242 = vadd.f32 %v8240, %v8241
    %v8243 = vsel %vm290, %v7816, 0.0
    %v8244 = vadd.f32 %v8242, %v8243
    %v8245 = vsel %vm290, %v7817, 0.0
    %v8246 = vadd.f32 %v8244, %v8245
    %v8247 = vsel %vm290, %v7818, 0.0
    %v8248 = vadd.f32 %v8246, %v8247
    %v8249 = vsel %vm290, %v7819, 0.0
    %v8250 = vadd.f32 %v8248, %v8249
    %v8251 = vsel %vm290, %v7820, 0.0
    %v8252 = vadd.f32 %v8250, %v8251
    %v8253 = vsel %vm290, %v7821, 0.0
    %v8254 = vadd.f32 %v8252, %v8253
    %v8255 = vsel %vm290, %v7822, 0.0
    %v8256 = vadd.f32 %v8254, %v8255
    %v8257 = vsel %vm290, %v7823, 0.0
    %v8258 = vadd.f32 %v8256, %v8257
    %v8259 = vsel %vm290, %v7824, 0.0
    %v8260 = vadd.f32 %v8258, %v8259
    %v8261 = vsel %vm290, %v7825, 0.0
    %v8262 = vadd.f32 %v8260, %v8261
    %v8263 = vsel %vm290, %v7826, 0.0
    %v8264 = vadd.f32 %v8262, %v8263
    %v8265 = vsel %vm290, %v7827, 0.0
    %v8266 = vadd.f32 %v8264, %v8265
    %v8267 = vrot.slane %v8266, 4
    %v8268 = vadd.f32 %v8266, %v8267
    %v8269 = vrot.slane %v8268, 2
    %v8270 = vadd.f32 %v8268, %v8269
    %v8271 = vrot.slane %v8270, 1
    %v8272 = vadd.f32 %v8270, %v8271
    %v8273 = vsel %vm290, %v7828, 0.0
    %v8274 = vsel %vm290, %v7829, 0.0
    %v8275 = vadd.f32 %v8273, %v8274
    %v8276 = vsel %vm290, %v7830, 0.0
    %v8277 = vadd.f32 %v8275, %v8276
    %v8278 = vsel %vm290, %v7831, 0.0
    %v8279 = vadd.f32 %v8277, %v8278
    %v8280 = vsel %vm290, %v7832, 0.0
    %v8281 = vadd.f32 %v8279, %v8280
    %v8282 = vsel %vm290, %v7833, 0.0
    %v8283 = vadd.f32 %v8281, %v8282
    %v8284 = vsel %vm290, %v7834, 0.0
    %v8285 = vadd.f32 %v8283, %v8284
    %v8286 = vsel %vm290, %v7835, 0.0
    %v8287 = vadd.f32 %v8285, %v8286
    %v8288 = vsel %vm290, %v7836, 0.0
    %v8289 = vadd.f32 %v8287, %v8288
    %v8290 = vsel %vm290, %v7837, 0.0
    %v8291 = vadd.f32 %v8289, %v8290
    %v8292 = vsel %vm290, %v7838, 0.0
    %v8293 = vadd.f32 %v8291, %v8292
    %v8294 = vsel %vm290, %v7839, 0.0
    %v8295 = vadd.f32 %v8293, %v8294
    %v8296 = vsel %vm290, %v7840, 0.0
    %v8297 = vadd.f32 %v8295, %v8296
    %v8298 = vsel %vm290, %v7841, 0.0
    %v8299 = vadd.f32 %v8297, %v8298
    %v8300 = vsel %vm290, %v7842, 0.0
    %v8301 = vadd.f32 %v8299, %v8300
    %v8302 = vsel %vm290, %v7843, 0.0
    %v8303 = vadd.f32 %v8301, %v8302
    %v8304 = vrot.slane %v8303, 4
    %v8305 = vadd.f32 %v8303, %v8304
    %v8306 = vrot.slane %v8305, 2
    %v8307 = vadd.f32 %v8305, %v8306
    %v8308 = vrot.slane %v8307, 1
    %v8309 = vadd.f32 %v8307, %v8308
    %v8310 = vsel %vm290, %v7844, 0.0
    %v8311 = vsel %vm290, %v7845, 0.0
    %v8312 = vadd.f32 %v8310, %v8311
    %v8313 = vsel %vm290, %v7846, 0.0
    %v8314 = vadd.f32 %v8312, %v8313
    %v8315 = vsel %vm290, %v7847, 0.0
    %v8316 = vadd.f32 %v8314, %v8315
    %v8317 = vsel %vm290, %v7848, 0.0
    %v8318 = vadd.f32 %v8316, %v8317
    %v8319 = vsel %vm290, %v7849, 0.0
    %v8320 = vadd.f32 %v8318, %v8319
    %v8321 = vsel %vm290, %v7850, 0.0
    %v8322 = vadd.f32 %v8320, %v8321
    %v8323 = vsel %vm290, %v7851, 0.0
    %v8324 = vadd.f32 %v8322, %v8323
    %v8325 = vsel %vm290, %v7852, 0.0
    %v8326 = vadd.f32 %v8324, %v8325
    %v8327 = vsel %vm290, %v7853, 0.0
    %v8328 = vadd.f32 %v8326, %v8327
    %v8329 = vsel %vm290, %v7854, 0.0
    %v8330 = vadd.f32 %v8328, %v8329
    %v8331 = vsel %vm290, %v7855, 0.0
    %v8332 = vadd.f32 %v8330, %v8331
    %v8333 = vsel %vm290, %v7856, 0.0
    %v8334 = vadd.f32 %v8332, %v8333
    %v8335 = vsel %vm290, %v7857, 0.0
    %v8336 = vadd.f32 %v8334, %v8335
    %v8337 = vsel %vm290, %v7858, 0.0
    %v8338 = vadd.f32 %v8336, %v8337
    %v8339 = vsel %vm290, %v7859, 0.0
    %v8340 = vadd.f32 %v8338, %v8339
    %v8341 = vrot.slane %v8340, 4
    %v8342 = vadd.f32 %v8340, %v8341
    %v8343 = vrot.slane %v8342, 2
    %v8344 = vadd.f32 %v8342, %v8343
    %v8345 = vrot.slane %v8344, 1
    %v8346 = vadd.f32 %v8344, %v8345
    %v8347 = vsel %vm290, %v7860, 0.0
    %v8348 = vsel %vm290, %v7861, 0.0
    %v8349 = vadd.f32 %v8347, %v8348
    %v8350 = vsel %vm290, %v7862, 0.0
    %v8351 = vadd.f32 %v8349, %v8350
    %v8352 = vsel %vm290, %v7863, 0.0
    %v8353 = vadd.f32 %v8351, %v8352
    %v8354 = vsel %vm290, %v7864, 0.0
    %v8355 = vadd.f32 %v8353, %v8354
    %v8356 = vsel %vm290, %v7865, 0.0
    %v8357 = vadd.f32 %v8355, %v8356
    %v8358 = vsel %vm290, %v7866, 0.0
    %v8359 = vadd.f32 %v8357, %v8358
    %v8360 = vsel %vm290, %v7867, 0.0
    %v8361 = vadd.f32 %v8359, %v8360
    %v8362 = vsel %vm290, %v7868, 0.0
    %v8363 = vadd.f32 %v8361, %v8362
    %v8364 = vsel %vm290, %v7869, 0.0
    %v8365 = vadd.f32 %v8363, %v8364
    %v8366 = vsel %vm290, %v7870, 0.0
    %v8367 = vadd.f32 %v8365, %v8366
    %v8368 = vsel %vm290, %v7871, 0.0
    %v8369 = vadd.f32 %v8367, %v8368
    %v8370 = vsel %vm290, %v7872, 0.0
    %v8371 = vadd.f32 %v8369, %v8370
    %v8372 = vsel %vm290, %v7873, 0.0
    %v8373 = vadd.f32 %v8371, %v8372
    %v8374 = vsel %vm290, %v7874, 0.0
    %v8375 = vadd.f32 %v8373, %v8374
    %v8376 = vsel %vm290, %v7875, 0.0
    %v8377 = vadd.f32 %v8375, %v8376
    %v8378 = vrot.slane %v8377, 4
    %v8379 = vadd.f32 %v8377, %v8378
    %v8380 = vrot.slane %v8379, 2
    %v8381 = vadd.f32 %v8379, %v8380
    %v8382 = vrot.slane %v8381, 1
    %v8383 = vadd.f32 %v8381, %v8382
    %v8384 = vsel %vm290, %v7876, 0.0
    %v8385 = vsel %vm290, %v7877, 0.0
    %v8386 = vadd.f32 %v8384, %v8385
    %v8387 = vsel %vm290, %v7878, 0.0
    %v8388 = vadd.f32 %v8386, %v8387
    %v8389 = vsel %vm290, %v7879, 0.0
    %v8390 = vadd.f32 %v8388, %v8389
    %v8391 = vsel %vm290, %v7880, 0.0
    %v8392 = vadd.f32 %v8390, %v8391
    %v8393 = vsel %vm290, %v7881, 0.0
    %v8394 = vadd.f32 %v8392, %v8393
    %v8395 = vsel %vm290, %v7882, 0.0
    %v8396 = vadd.f32 %v8394, %v8395
    %v8397 = vsel %vm290, %v7883, 0.0
    %v8398 = vadd.f32 %v8396, %v8397
    %v8399 = vsel %vm290, %v7884, 0.0
    %v8400 = vadd.f32 %v8398, %v8399
    %v8401 = vsel %vm290, %v7885, 0.0
    %v8402 = vadd.f32 %v8400, %v8401
    %v8403 = vsel %vm290, %v7886, 0.0
    %v8404 = vadd.f32 %v8402, %v8403
    %v8405 = vsel %vm290, %v7887, 0.0
    %v8406 = vadd.f32 %v8404, %v8405
    %v8407 = vsel %vm290, %v7888, 0.0
    %v8408 = vadd.f32 %v8406, %v8407
    %v8409 = vsel %vm290, %v7889, 0.0
    %v8410 = vadd.f32 %v8408, %v8409
    %v8411 = vsel %vm290, %v7890, 0.0
    %v8412 = vadd.f32 %v8410, %v8411
    %v8413 = vsel %vm290, %v7891, 0.0
    %v8414 = vadd.f32 %v8412, %v8413
    %v8415 = vrot.slane %v8414, 4
    %v8416 = vadd.f32 %v8414, %v8415
    %v8417 = vrot.slane %v8416, 2
    %v8418 = vadd.f32 %v8416, %v8417
    %v8419 = vrot.slane %v8418, 1
    %v8420 = vadd.f32 %v8418, %v8419
    %v8421 = vsel %vm290, %v7892, 0.0
    %v8422 = vsel %vm290, %v7893, 0.0
    %v8423 = vadd.f32 %v8421, %v8422
    %v8424 = vsel %vm290, %v7894, 0.0
    %v8425 = vadd.f32 %v8423, %v8424
    %v8426 = vsel %vm290, %v7895, 0.0
    %v8427 = vadd.f32 %v8425, %v8426
    %v8428 = vsel %vm290, %v7896, 0.0
    %v8429 = vadd.f32 %v8427, %v8428
    %v8430 = vsel %vm290, %v7897, 0.0
    %v8431 = vadd.f32 %v8429, %v8430
    %v8432 = vsel %vm290, %v7898, 0.0
    %v8433 = vadd.f32 %v8431, %v8432
    %v8434 = vsel %vm290, %v7899, 0.0
    %v8435 = vadd.f32 %v8433, %v8434
    %v8436 = vsel %vm290, %v7900, 0.0
    %v8437 = vadd.f32 %v8435, %v8436
    %v8438 = vsel %vm290, %v7901, 0.0
    %v8439 = vadd.f32 %v8437, %v8438
    %v8440 = vsel %vm290, %v7902, 0.0
    %v8441 = vadd.f32 %v8439, %v8440
    %v8442 = vsel %vm290, %v7903, 0.0
    %v8443 = vadd.f32 %v8441, %v8442
    %v8444 = vsel %vm290, %v7904, 0.0
    %v8445 = vadd.f32 %v8443, %v8444
    %v8446 = vsel %vm290, %v7905, 0.0
    %v8447 = vadd.f32 %v8445, %v8446
    %v8448 = vsel %vm290, %v7906, 0.0
    %v8449 = vadd.f32 %v8447, %v8448
    %v8450 = vsel %vm290, %v7907, 0.0
    %v8451 = vadd.f32 %v8449, %v8450
    %v8452 = vrot.slane %v8451, 4
    %v8453 = vadd.f32 %v8451, %v8452
    %v8454 = vrot.slane %v8453, 2
    %v8455 = vadd.f32 %v8453, %v8454
    %v8456 = vrot.slane %v8455, 1
    %v8457 = vadd.f32 %v8455, %v8456
    %v8458 = vsel %vm290, %v7908, 0.0
    %v8459 = vsel %vm290, %v7909, 0.0
    %v8460 = vadd.f32 %v8458, %v8459
    %v8461 = vsel %vm290, %v7910, 0.0
    %v8462 = vadd.f32 %v8460, %v8461
    %v8463 = vsel %vm290, %v7911, 0.0
    %v8464 = vadd.f32 %v8462, %v8463
    %v8465 = vsel %vm290, %v7912, 0.0
    %v8466 = vadd.f32 %v8464, %v8465
    %v8467 = vsel %vm290, %v7913, 0.0
    %v8468 = vadd.f32 %v8466, %v8467
    %v8469 = vsel %vm290, %v7914, 0.0
    %v8470 = vadd.f32 %v8468, %v8469
    %v8471 = vsel %vm290, %v7915, 0.0
    %v8472 = vadd.f32 %v8470, %v8471
    %v8473 = vsel %vm290, %v7916, 0.0
    %v8474 = vadd.f32 %v8472, %v8473
    %v8475 = vsel %vm290, %v7917, 0.0
    %v8476 = vadd.f32 %v8474, %v8475
    %v8477 = vsel %vm290, %v7918, 0.0
    %v8478 = vadd.f32 %v8476, %v8477
    %v8479 = vsel %vm290, %v7919, 0.0
    %v8480 = vadd.f32 %v8478, %v8479
    %v8481 = vsel %vm290, %v7920, 0.0
    %v8482 = vadd.f32 %v8480, %v8481
    %v8483 = vsel %vm290, %v7921, 0.0
    %v8484 = vadd.f32 %v8482, %v8483
    %v8485 = vsel %vm290, %v7922, 0.0
    %v8486 = vadd.f32 %v8484, %v8485
    %v8487 = vsel %vm290, %v7923, 0.0
    %v8488 = vadd.f32 %v8486, %v8487
    %v8489 = vrot.slane %v8488, 4
    %v8490 = vadd.f32 %v8488, %v8489
    %v8491 = vrot.slane %v8490, 2
    %v8492 = vadd.f32 %v8490, %v8491
    %v8493 = vrot.slane %v8492, 1
    %v8494 = vadd.f32 %v8492, %v8493
    %v8495 = vsel %vm290, %v7924, 0.0
    %v8496 = vsel %vm290, %v7925, 0.0
    %v8497 = vadd.f32 %v8495, %v8496
    %v8498 = vsel %vm290, %v7926, 0.0
    %v8499 = vadd.f32 %v8497, %v8498
    %v8500 = vsel %vm290, %v7927, 0.0
    %v8501 = vadd.f32 %v8499, %v8500
    %v8502 = vsel %vm290, %v7928, 0.0
    %v8503 = vadd.f32 %v8501, %v8502
    %v8504 = vsel %vm290, %v7929, 0.0
    %v8505 = vadd.f32 %v8503, %v8504
    %v8506 = vsel %vm290, %v7930, 0.0
    %v8507 = vadd.f32 %v8505, %v8506
    %v8508 = vsel %vm290, %v7931, 0.0
    %v8509 = vadd.f32 %v8507, %v8508
    %v8510 = vsel %vm290, %v7932, 0.0
    %v8511 = vadd.f32 %v8509, %v8510
    %v8512 = vsel %vm290, %v7933, 0.0
    %v8513 = vadd.f32 %v8511, %v8512
    %v8514 = vsel %vm290, %v7934, 0.0
    %v8515 = vadd.f32 %v8513, %v8514
    %v8516 = vsel %vm290, %v7935, 0.0
    %v8517 = vadd.f32 %v8515, %v8516
    %v8518 = vsel %vm290, %v7936, 0.0
    %v8519 = vadd.f32 %v8517, %v8518
    %v8520 = vsel %vm290, %v7937, 0.0
    %v8521 = vadd.f32 %v8519, %v8520
    %v8522 = vsel %vm290, %v7938, 0.0
    %v8523 = vadd.f32 %v8521, %v8522
    %v8524 = vsel %vm290, %v7939, 0.0
    %v8525 = vadd.f32 %v8523, %v8524
    %v8526 = vrot.slane %v8525, 4
    %v8527 = vadd.f32 %v8525, %v8526
    %v8528 = vrot.slane %v8527, 2
    %v8529 = vadd.f32 %v8527, %v8528
    %v8530 = vrot.slane %v8529, 1
    %v8531 = vadd.f32 %v8529, %v8530
    %v8548 = vsel %vm2637, %v8013, %v7976
    %v8549 = vsel %vm2640, %v8050, %v8548
    %v8550 = vsel %vm2643, %v8087, %v8549
    %v8551 = vsel %vm2646, %v8124, %v8550
    %v8552 = vsel %vm2649, %v8161, %v8551
    %v8553 = vsel %vm2652, %v8198, %v8552
    %v8554 = vsel %vm6093, %v8235, %v8553
    %v8555 = vsel %vm2637, %v8309, %v8272
    %v8556 = vsel %vm2640, %v8346, %v8555
    %v8557 = vsel %vm2643, %v8383, %v8556
    %v8558 = vsel %vm2646, %v8420, %v8557
    %v8559 = vsel %vm2649, %v8457, %v8558
    %v8560 = vsel %vm2652, %v8494, %v8559
    %v8561 = vsel %vm6093, %v8531, %v8560
    %8564 = vst.msk [vmem:[#allocation2] sm:$0xff] %vm290, %v8554
    %8565 = vst.msk [vmem:[#allocation2 + $0x8] sm:$0xff] %vm290, %v8561
    // Predicated region
    $region18: #{tpu_custom_call.1} parent=1 // pred_check
      _
    $region19: #{tpu_custom_call.1} parent=1 // pred_check_branch
      %8567 = sbr.rel (0) target = $region21
    $region20: #{tpu_custom_call.1} parent=1 // pred_region
      %8569 = vsyncadd [#allocation3], 0
      %s8570 = sshll.u32 [#allocation2], 4
      %s8571 = int_to_ptr.vmem [resolvable:$true] %s8570
      %s8572 = sshll.u32 %s4, 4
      %s8573 = int_to_ptr.hbm [resolvable:$true] %s8572
      %8578 = dma.vmem_to_hbm [thread:$0]  %s8571, 256, %s8573, [#allocation3], 128, 128, 8
    $region21: #{tpu_custom_call.1} parent=1 // pred_fallthru
      _
    // Predicated region
    $region22: #{tpu_custom_call.1} parent=1 // pred_check
      _
    $region23: #{tpu_custom_call.1} parent=1 // pred_check_branch
      %8580 = sbr.rel (0) target = $region25
    $region24: #{tpu_custom_call.1} parent=1 // pred_region
      %8582 = vsyncadd [#allocation5], 0
      %s8583 = sshll.u32 [#allocation4], 4
      %s8584 = int_to_ptr.vmem [resolvable:$true] %s8583
      %s8585 = sshll.u32 %s5, 4
      %s8586 = int_to_ptr.hbm [resolvable:$true] %s8585
      %8591 = dma.vmem_to_hbm [thread:$0]  %s8584, 256, %s8586, [#allocation5], 128, 128, 8
    $region25: #{tpu_custom_call.1} parent=1 // pred_fallthru
      _
    // Predicated region
    $region26: #{tpu_custom_call.1} parent=1 // pred_check
      _
    $region27: #{tpu_custom_call.1} parent=1 // pred_check_branch
      %8593 = sbr.rel (0) target = $region29
    $region28: #{tpu_custom_call.1} parent=1 // pred_region
      %8595 = dma.done [#allocation3], 256
    $region29: #{tpu_custom_call.1} parent=1 // pred_fallthru
      _
    // Predicated region
    $region30: #{tpu_custom_call.1} parent=1 // pred_check
      _
    $region31: #{tpu_custom_call.1} parent=1 // pred_check_branch
      %8597 = sbr.rel (0) target = $region33
    $region32: #{tpu_custom_call.1} parent=1 // pred_region
      %8599 = dma.done [#allocation5], 256
    $region33: #{tpu_custom_call.1} parent=1 // pred_fallthru
      _
    %8600 = vsyncpa [#allocation3], 1
    %8601 = vsyncpa [#allocation5], 1

</llo_original>
